<compile_context>
chip_gen: v7x
topology: tpu7x:2x2x1
jax: 0.10.0
libtpu: 0.0.40
codegen_flags: <defaults>
</compile_context>

<pallas_src>
import functools
import math

import numpy as np
import jax
import jax.numpy as jnp
from jax.experimental import pallas as pl
from jax.experimental.pallas import tpu as pltpu


_F32 = jnp.float32
_MM = jnp.bfloat16            # MXU matmul operand dtype (accumulation stays f32)
_LN_EPS = 1e-5
_BN_EPS = 1e-5
_SQRT_HALF = 1.0 / math.sqrt(2.0)
_VMEM_LIMIT = 48 * 1024 * 1024   # explicit scoped-VMEM budget (fits v5e/v6e/v7x)

_VMEM_SPEC = pl.BlockSpec(memory_space=pltpu.MemorySpace.VMEM)


# ----------------------------------------------------------------------------
# In-kernel helpers (traced inside Pallas kernels).
# ----------------------------------------------------------------------------

def _gelu(x):
    # exact erf-based GELU, matching torch.nn.GELU default
    return 0.5 * x * (1.0 + jax.lax.erf(x * _SQRT_HALF))


def _ln(x, g, b, eps=_LN_EPS):
    mu = jnp.mean(x, axis=-1, keepdims=True)
    var = jnp.mean(jnp.square(x - mu), axis=-1, keepdims=True)
    return (x - mu) * jax.lax.rsqrt(var + eps) * g + b


# ----------------------------------------------------------------------------
# Kernel 1: ConvEmbed = conv-as-matmul (+bias) fused with the token LayerNorm,
# row(M)-tiled grid.
# ----------------------------------------------------------------------------

def _embed_kernel(x_ref, w_ref, b_ref, g_ref, bb_ref, o_ref):
    y = jnp.dot(x_ref[...].astype(_MM), w_ref[...],
                preferred_element_type=_F32) + b_ref[...]
    o_ref[...] = _ln(y, g_ref[...], bb_ref[...])


def _row_tile(m, target=512):
    """Largest row tile <= target that divides m and is a multiple of 8."""
    if m <= target:
        return m
    for t in range(target, 7, -1):
        if m % t == 0 and t % 8 == 0:
            return t
    return m


def pallas_conv_embed(cols, w, b, g, bb):
    M, K = cols.shape
    N = w.shape[1]
    tm = _row_tile(M)
    return pl.pallas_call(
        _embed_kernel,
        out_shape=jax.ShapeDtypeStruct((M, N), _F32),
        grid=(M // tm,),
        in_specs=[pl.BlockSpec((tm, K), lambda i: (i, 0)),
                  pl.BlockSpec((K, N), lambda i: (0, 0)),
                  pl.BlockSpec((1, N), lambda i: (0, 0)),
                  pl.BlockSpec((1, N), lambda i: (0, 0)),
                  pl.BlockSpec((1, N), lambda i: (0, 0))],
        out_specs=pl.BlockSpec((tm, N), lambda i: (i, 0)),
        compiler_params=pltpu.CompilerParams(
            dimension_semantics=("parallel",),
            vmem_limit_bytes=_VMEM_LIMIT),
    )(cols, w, b, g, bb)


# ----------------------------------------------------------------------------
# Kernel 2: fully fused transformer block (norm1 + depthwise conv projections +
# QKV/out projections + softmax attention + norm2 + MLP + both residuals),
# one grid step per batch element.
# ----------------------------------------------------------------------------

def _block_kernel(x_ref, sel_ref,
                  n1_g, n1_b,
                  qdw_w, qdw_b, kdw_w, kdw_b, vdw_w, vdw_b,
                  pq_w, pq_b, pk_w, pk_b, pv_w, pv_b,
                  po_w, po_b, n2_g, n2_b,
                  f1_w, f1_b, f2_w, f2_b,
                  o_ref,
                  pad_ref, qcat_ref, kcat_ref, vcat_ref,
                  *, num_heads, with_cls, H, W, pad, ksize):
    x = x_ref[0]                                   # (T, C) residual stream
    C = x.shape[-1]
    T_sp = H * W

    # ---- norm1 fused into the block kernel --------------------------------
    xn = _ln(x, n1_g[...], n1_b[...])
    xn_sp = xn[1:, :] if with_cls else xn          # (T_sp, C) spatial tokens

    # ---- zero-padded spatial map in VMEM scratch (no HBM tap expansion) ---
    Hp, Wp = H + 2 * pad, W + 2 * pad
    pad_ref[...] = jnp.zeros((Hp, Wp, C), dtype=_F32)
    pad_ref[pl.ds(pad, H), pl.ds(pad, W), :] = xn_sp.reshape(H, W, C)

    # ---- merged Q/K/V depthwise conv: one tap load feeds all three accs ---
    qw = qdw_w[...]                                # (k*k, 1, C), BN folded
    kw = kdw_w[...]
    vw = vdw_w[...]
    q_acc = k_acc = v_acc = None
    for t in range(ksize * ksize):
        di, dj = t // ksize, t % ksize
        tap = pad_ref[pl.ds(di, H), pl.ds(dj, W), :]          # (H, W, C)
        if t == 0:
            q_acc, k_acc, v_acc = tap * qw[t], tap * kw[t], tap * vw[t]
        else:
            q_acc = q_acc + tap * qw[t]
            k_acc = k_acc + tap * kw[t]
            v_acc = v_acc + tap * vw[t]
    q_conv = q_acc.reshape(T_sp, C) + qdw_b[...]              # stride_q == 1
    k_full = k_acc.reshape(T_sp, C) + kdw_b[...]
    v_full = v_acc.reshape(T_sp, C) + vdw_b[...]

    # ---- stride_kv downsample: exact 0/1 row-selection matmul on the MXU --
    # TODO(synk): replace with strided in-kernel loads at production shapes.
    sel = sel_ref[...]                                        # (Lkv_sp, T_sp)
    k_dn = jnp.dot(sel, k_full.astype(_MM), preferred_element_type=_F32)
    v_dn = jnp.dot(sel, v_full.astype(_MM), preferred_element_type=_F32)

    # ---- cls-token prepend via scratch rows (no sublane concatenate) ------
    row0 = 1 if with_cls else 0
    if with_cls:
        cls_n = xn[0:1, :]
        qcat_ref[0:1, :] = cls_n
        kcat_ref[0:1, :] = cls_n
        vcat_ref[0:1, :] = cls_n
    qcat_ref[pl.ds(row0, T_sp), :] = q_conv
    kcat_ref[pl.ds(row0, k_dn.shape[0]), :] = k_dn
    vcat_ref[pl.ds(row0, v_dn.shape[0]), :] = v_dn
    q_in = qcat_ref[...]                                      # (Lq, C)
    k_in = kcat_ref[...]                                      # (Lkv, C)
    v_in = vcat_ref[...]

    # ---- full-width (all-heads) projections; scale pre-folded into Q ------
    q_all = jnp.dot(q_in.astype(_MM), pq_w[...],
                    preferred_element_type=_F32) + pq_b[...]
    k_all = jnp.dot(k_in.astype(_MM), pk_w[...],
                    preferred_element_type=_F32) + pk_b[...]
    v_all = jnp.dot(v_in.astype(_MM), pv_w[...],
                    preferred_element_type=_F32) + pv_b[...]

    # ---- per-head attention (only scores / PV stay per-head) --------------
    hd = C // num_heads
    ctxs = []
    for hh in range(num_heads):
        qh = q_all[:, hh * hd:(hh + 1) * hd]
        kh = k_all[:, hh * hd:(hh + 1) * hd]
        vh = v_all[:, hh * hd:(hh + 1) * hd]
        s = jax.lax.dot_general(qh.astype(_MM), kh.astype(_MM),
                                (((1,), (1,)), ((), ())),
                                preferred_element_type=_F32)   # (Lq, Lkv)
        s = s - jnp.max(s, axis=-1, keepdims=True)
        p = jnp.exp(s)
        p = p * pl.reciprocal(jnp.sum(p, axis=-1, keepdims=True), approx=True)
        ctxs.append(jnp.dot(p.astype(_MM), vh.astype(_MM),
                            preferred_element_type=_F32))      # (Lq, hd)
    ctx = ctxs[0] if num_heads == 1 else jnp.concatenate(ctxs, axis=-1)

    attn = jnp.dot(ctx.astype(_MM), po_w[...],
                   preferred_element_type=_F32) + po_b[...]    # (Lq, C)

    # ---- residual 1, norm2, MLP (GELU), residual 2 -------------------------
    x1 = x + attn
    xn2 = _ln(x1, n2_g[...], n2_b[...])
    h1 = jnp.dot(xn2.astype(_MM), f1_w[...],
                 preferred_element_type=_F32) + f1_b[...]
    h1 = _gelu(h1)
    h2 = jnp.dot(h1.astype(_MM), f2_w[...],
                 preferred_element_type=_F32) + f2_b[...]
    o_ref[0] = x1 + h2


def _batched_spec(a):
    nd = a.ndim
    return pl.BlockSpec((1,) + a.shape[1:],
                        lambda b, nd=nd: (b,) + (0,) * (nd - 1))


def _shared_spec(a):
    nd = a.ndim
    # TODO(synk): on v7x mark these pipeline_mode=pl.Buffered(1) (constant
    #             index_map -> never re-fetched) to reclaim the duplicate buffer.
    return pl.BlockSpec(a.shape, lambda b, nd=nd: (0,) * nd)


def pallas_block(x, sel, p, *, num_heads, with_cls, H, W, pad, ksize):
    B, T, C = x.shape
    T_sp = H * W
    Lkv_sp = sel.shape[0]
    Lq = T_sp + (1 if with_cls else 0)
    Lkv = Lkv_sp + (1 if with_cls else 0)
    hidden = p['fc1_w'].shape[1]
    Hp, Wp = H + 2 * pad, W + 2 * pad
    k2 = ksize * ksize

    shared = [sel,
              p['norm1_g'], p['norm1_b'],
              p['q_dw_w'], p['q_dw_b'], p['k_dw_w'], p['k_dw_b'],
              p['v_dw_w'], p['v_dw_b'],
              p['proj_q_w'], p['proj_q_b'], p['proj_k_w'], p['proj_k_b'],
              p['proj_v_w'], p['proj_v_b'], p['proj_o_w'], p['proj_o_b'],
              p['norm2_g'], p['norm2_b'],
              p['fc1_w'], p['fc1_b'], p['fc2_w'], p['fc2_b']]

    flops = 2 * B * (3 * k2 * T_sp * C                 # merged depthwise convs
                     + 2 * Lkv_sp * T_sp * C           # stride_kv selection matmuls
                     + (Lq + 2 * Lkv) * C * C          # q/k/v full-width projections
                     + 2 * Lq * Lkv * C                # scores + PV
                     + Lq * C * C                      # output projection
                     + 2 * T * C * hidden)             # MLP
    transcendentals = B * (num_heads * Lq * Lkv + T * hidden + 4 * T)
    bytes_accessed = (2 * int(x.size) * x.dtype.itemsize
                      + sum(int(a.size) * a.dtype.itemsize for a in shared))

    kernel = functools.partial(_block_kernel, num_heads=num_heads,
                               with_cls=with_cls, H=H, W=W, pad=pad, ksize=ksize)
    return pl.pallas_call(
        kernel,
        out_shape=jax.ShapeDtypeStruct((B, T, C), _F32),
        grid=(B,),
        in_specs=[_batched_spec(x)] + [_shared_spec(a) for a in shared],
        out_specs=pl.BlockSpec((1, T, C), lambda b: (b, 0, 0)),
        scratch_shapes=[pltpu.VMEM((Hp, Wp, C), _F32),   # padded spatial map
                        pltpu.VMEM((Lq, C), _F32),       # q (cls + conv rows)
                        pltpu.VMEM((Lkv, C), _F32),      # k
                        pltpu.VMEM((Lkv, C), _F32)],     # v
        compiler_params=pltpu.CompilerParams(
            dimension_semantics=("parallel",),           # 2 TCs on v7x / megacore
            vmem_limit_bytes=_VMEM_LIMIT),
        cost_estimate=pl.CostEstimate(flops=int(flops),
                                      transcendentals=int(transcendentals),
                                      bytes_accessed=int(bytes_accessed)),
    )(x, *shared)


# ----------------------------------------------------------------------------
# Kernel 3: final LayerNorm (+ token mean) fused with the classifier head.
# ----------------------------------------------------------------------------

def _head_kernel(x_ref, g_ref, b_ref, w_ref, hb_ref, o_ref):
    xn = _ln(x_ref[...], g_ref[...], b_ref[...])        # (B, T, C)
    feat = jnp.mean(xn, axis=1)                         # (B, C); T==1 for cls path
    o_ref[...] = jnp.dot(feat.astype(_MM), w_ref[...],
                         preferred_element_type=_F32) + hb_ref[...]


def pallas_norm_head(tokens, g, b, w, hb):
    B = tokens.shape[0]
    N = w.shape[1]
    # TODO(synk): M-tile the no-cls path (large T) instead of one VMEM block.
    return pl.pallas_call(
        _head_kernel,
        out_shape=jax.ShapeDtypeStruct((B, N), _F32),
        in_specs=[_VMEM_SPEC] * 5,
        out_specs=_VMEM_SPEC,
        compiler_params=pltpu.CompilerParams(vmem_limit_bytes=_VMEM_LIMIT),
    )(tokens, g, b, w, hb)


# ----------------------------------------------------------------------------
# Glue (im2col, downsample selection matrix, reshapes) in plain JAX / numpy.
# ----------------------------------------------------------------------------

def _im2col(x, kh, kw, stride, padding):
    """x: (B, C, H, W) -> patches (B, C, kh*kw, Ho, Wo); tap order (kh, kw)."""
    B, C, H, W = x.shape
    xp = jnp.pad(x, ((0, 0), (0, 0), (padding, padding), (padding, padding)))
    Ho = (H + 2 * padding - kh) // stride + 1
    Wo = (W + 2 * padding - kw) // stride + 1
    cols = []
    for i in range(kh):
        for j in range(kw):
            cols.append(
                xp[:, :,
                   i: i + (Ho - 1) * stride + 1: stride,
                   j: j + (Wo - 1) * stride + 1: stride])
    return jnp.stack(cols, axis=2), Ho, Wo


def conv_embed_forward(x, st, patch_size, stride, padding):
    B, Cin, H, W = x.shape
    patches, ho, wo = _im2col(x, patch_size, patch_size, stride, padding)
    # bf16 staging of the (large) im2col matrix; it is consumed in bf16 anyway.
    cols = patches.transpose(0, 3, 4, 1, 2).reshape(
        B * ho * wo, Cin * patch_size * patch_size).astype(_MM)
    y = pallas_conv_embed(cols, st['patch_w'], st['patch_b'],
                          st['patch_norm_g'], st['patch_norm_b'])
    cout = st['patch_w'].shape[1]
    return y.reshape(B, ho * wo, cout), ho, wo


def _downsample_sel(h, w, stride, kernel, pad):
    """Exact 0/1 matrix mapping full-resolution conv outputs (stride 1) to the
    stride-`stride` conv outputs (valid because pad_kv == pad_q, same kernel)."""
    ho = (h + 2 * pad - kernel) // stride + 1
    wo = (w + 2 * pad - kernel) // stride + 1
    sel = np.zeros((ho * wo, h * w), dtype=np.float32)
    for i in range(ho):
        for j in range(wo):
            sel[i * wo + j, (i * stride) * w + (j * stride)] = 1.0
    return jnp.asarray(sel, dtype=_MM), ho, wo


def block_forward(x, blk, h, w, cfg):
    ksize = cfg['kernel']
    pad_q, pad_kv = cfg['pad_q'], cfg['pad_kv']
    assert cfg['stride_q'] == 1 and 2 * pad_q == ksize - 1, \
        "q conv must preserve the token grid"
    assert pad_kv == pad_q, "shared padded map requires pad_kv == pad_q"
    # TODO(synk): support pad_kv != pad_q with a second padded scratch in-kernel.
    sel, _, _ = _downsample_sel(h, w, cfg['stride_kv'], ksize, pad_kv)
    return pallas_block(x, sel, blk, num_heads=cfg['num_heads'],
                        with_cls=cfg['with_cls'], H=h, W=w,
                        pad=pad_q, ksize=ksize)


def stage_forward(x, st, spec, i):
    B = x.shape[0]
    tokens, h, w = conv_embed_forward(x, st, spec['PATCH_SIZE'][i],
                                      spec['PATCH_STRIDE'][i],
                                      spec['PATCH_PADDING'][i])
    C = tokens.shape[-1]
    with_cls = spec['CLS_TOKEN'][i]
    if with_cls:
        cls = jnp.broadcast_to(st['cls_token'], (B, 1, C))
        tokens = jnp.concatenate([cls, tokens], axis=1)
    cfg = {'with_cls': with_cls, 'num_heads': spec['NUM_HEADS'][i],
           'kernel': spec['KERNEL_QKV'][i],
           'stride_q': spec['STRIDE_Q'][i], 'stride_kv': spec['STRIDE_KV'][i],
           'pad_q': spec['PADDING_Q'][i], 'pad_kv': spec['PADDING_KV'][i]}
    for blk in st['blocks']:
        tokens = block_forward(tokens, blk, h, w, cfg)
    cls_tokens = None
    if with_cls:
        cls_tokens, tokens = tokens[:, :1, :], tokens[:, 1:, :]
    x_out = tokens.transpose(0, 2, 1).reshape(B, C, h, w)
    return x_out, cls_tokens


def cvt_forward(x, prep, spec):
    cls_tokens = None
    for i in range(spec['NUM_STAGES']):
        x, cls_tokens = stage_forward(x, prep[f'stage{i}'], spec, i)
    if spec['CLS_TOKEN'][-1]:
        tokens = cls_tokens                              # (B, 1, C)
    else:
        B, C, H, W = x.shape
        tokens = x.reshape(B, C, H * W).transpose(0, 2, 1)
    return pallas_norm_head(tokens, prep['norm_g'], prep['norm_b'],
                            prep['head_w'], prep['head_b'])


# ----------------------------------------------------------------------------
# Parameters: torch-layout synthetic init + one-time kernel-layout preparation.
# ----------------------------------------------------------------------------

class _Init:
    def __init__(self, key):
        self._key = key

    def normal(self, shape, std=0.02):
        self._key, sub = jax.random.split(self._key)
        return (std * jax.random.normal(sub, shape)).astype(_F32)


def init_params(spec, in_chans, num_classes, key):
    init = _Init(key)
    params = {}
    cin = in_chans
    for i in range(spec['NUM_STAGES']):
        dim = spec['DIM_EMBED'][i]
        k = spec['PATCH_SIZE'][i]
        kq = spec['KERNEL_QKV'][i]
        hidden = int(dim * spec['MLP_RATIO'][i])
        sp = {
            'patch_proj_w': init.normal((dim, cin, k, k)),
            'patch_proj_b': jnp.zeros((dim,), _F32),
            'patch_norm_g': jnp.ones((dim,), _F32),
            'patch_norm_b': jnp.zeros((dim,), _F32),
        }
        if spec['CLS_TOKEN'][i]:
            sp['cls_token'] = init.normal((1, 1, dim))

        def conv_proj_params():
            return {
                'conv_w': init.normal((dim, 1, kq, kq)),   # depthwise (groups=dim)
                'bn_g': jnp.ones((dim,), _F32),
                'bn_b': jnp.zeros((dim,), _F32),
                'bn_mean': jnp.zeros((dim,), _F32),
                'bn_var': jnp.ones((dim,), _F32),
            }

        blocks = []
        for _ in range(spec['DEPTH'][i]):
            blocks.append({
                'norm1_g': jnp.ones((dim,), _F32), 'norm1_b': jnp.zeros((dim,), _F32),
                'conv_q': conv_proj_params(), 'conv_k': conv_proj_params(),
                'conv_v': conv_proj_params(),
                'proj_q_w': init.normal((dim, dim)), 'proj_q_b': jnp.zeros((dim,), _F32),
                'proj_k_w': init.normal((dim, dim)), 'proj_k_b': jnp.zeros((dim,), _F32),
                'proj_v_w': init.normal((dim, dim)), 'proj_v_b': jnp.zeros((dim,), _F32),
                'proj_w': init.normal((dim, dim)), 'proj_b': jnp.zeros((dim,), _F32),
                'norm2_g': jnp.ones((dim,), _F32), 'norm2_b': jnp.zeros((dim,), _F32),
                'fc1_w': init.normal((hidden, dim)), 'fc1_b': jnp.zeros((hidden,), _F32),
                'fc2_w': init.normal((dim, hidden)), 'fc2_b': jnp.zeros((dim,), _F32),
            })
        sp['blocks'] = blocks
        params[f'stage{i}'] = sp
        cin = dim

    dim_last = spec['DIM_EMBED'][-1]
    params['norm_g'] = jnp.ones((dim_last,), _F32)
    params['norm_b'] = jnp.zeros((dim_last,), _F32)
    params['head_w'] = init.normal((num_classes, dim_last))
    params['head_b'] = jnp.zeros((num_classes,), _F32)
    return params


def prepare_params(params, spec):
    """One-time conversion of torch-layout params into kernel layouts:
    pre-transposed bf16 matmul weights, BN folded into the depthwise convs,
    attention scale folded into the Q projection."""
    prep = {}
    for i in range(spec['NUM_STAGES']):
        sp = params[f'stage{i}']
        dim = spec['DIM_EMBED'][i]
        kq = spec['KERNEL_QKV'][i]
        scale = float(dim) ** -0.5          # CvT uses dim_out ** -0.5 (NOT head_dim)
        st = {
            'patch_w': sp['patch_proj_w'].reshape(dim, -1).T.astype(_MM),
            'patch_b': sp['patch_proj_b'].reshape(1, dim),
            'patch_norm_g': sp['patch_norm_g'].reshape(1, dim),
            'patch_norm_b': sp['patch_norm_b'].reshape(1, dim),
        }
        if spec['CLS_TOKEN'][i]:
            st['cls_token'] = sp['cls_token']

        def fold_dw(cp):
            s = cp['bn_g'] / jnp.sqrt(cp['bn_var'] + _BN_EPS)
            shift = cp['bn_b'] - cp['bn_mean'] * s
            w = cp['conv_w'].reshape(dim, kq * kq)           # (C, K2), taps (i, j)
            wf = (w * s[:, None]).T.reshape(kq * kq, 1, dim)
            return wf.astype(_F32), shift.reshape(1, dim).astype(_F32)

        blocks = []
        for blk in sp['blocks']:
            qw, qb = fold_dw(blk['conv_q'])
            kw, kb = fold_dw(blk['conv_k'])
            vw, vb = fold_dw(blk['conv_v'])
            hidden = blk['fc1_w'].shape[0]
            blocks.append({
                'norm1_g': blk['norm1_g'].reshape(1, dim),
                'norm1_b': blk['norm1_b'].reshape(1, dim),
                'q_dw_w': qw, 'q_dw_b': qb,
                'k_dw_w': kw, 'k_dw_b': kb,
                'v_dw_w': vw, 'v_dw_b': vb,
                # full-width (all-heads) projections, pre-transposed to (in, out);
                # attention scale folded into the Q projection weight + bias.
                'proj_q_w': (blk['proj_q_w'].T * scale).astype(_MM),
                'proj_q_b': (blk['proj_q_b'] * scale).reshape(1, dim).astype(_F32),
                'proj_k_w': blk['proj_k_w'].T.astype(_MM),
                'proj_k_b': blk['proj_k_b'].reshape(1, dim),
                'proj_v_w': blk['proj_v_w'].T.astype(_MM),
                'proj_v_b': blk['proj_v_b'].reshape(1, dim),
                'proj_o_w': blk['proj_w'].T.astype(_MM),
                'proj_o_b': blk['proj_b'].reshape(1, dim),
                'norm2_g': blk['norm2_g'].reshape(1, dim),
                'norm2_b': blk['norm2_b'].reshape(1, dim),
                'fc1_w': blk['fc1_w'].T.astype(_MM), 'fc1_b': blk['fc1_b'].reshape(1, hidden),
                'fc2_w': blk['fc2_w'].T.astype(_MM), 'fc2_b': blk['fc2_b'].reshape(1, dim),
            })
        st['blocks'] = blocks
        prep[f'stage{i}'] = st

    dim_last = spec['DIM_EMBED'][-1]
    prep['norm_g'] = params['norm_g'].reshape(1, 1, dim_last)
    prep['norm_b'] = params['norm_b'].reshape(1, 1, dim_last)
    prep['head_w'] = params['head_w'].T.astype(_MM)
    prep['head_b'] = params['head_b'].reshape(1, -1)
    return prep


# ----------------------------------------------------------------------------
# Small CvT spec (2 hierarchical stages; cls token only in the last stage).
# ----------------------------------------------------------------------------

SPEC = {
    'NUM_STAGES': 2,
    'PATCH_SIZE': [3, 3],
    'PATCH_STRIDE': [2, 2],
    'PATCH_PADDING': [1, 1],
    'DIM_EMBED': [16, 32],
    'DEPTH': [1, 1],
    'NUM_HEADS': [1, 2],
    'MLP_RATIO': [2.0, 2.0],
    'QKV_BIAS': [True, True],
    'DROP_RATE': [0.0, 0.0],
    'ATTN_DROP_RATE': [0.0, 0.0],
    'DROP_PATH_RATE': [0.0, 0.0],
    'CLS_TOKEN': [False, True],
    'QKV_PROJ_METHOD': ['dw_bn', 'dw_bn'],
    'KERNEL_QKV': [3, 3],
    'PADDING_Q': [1, 1],
    'PADDING_KV': [1, 1],
    'STRIDE_KV': [2, 2],
    'STRIDE_Q': [1, 1],
}


if __name__ == "__main__":
    key = jax.random.PRNGKey(0)
    pkey, xkey = jax.random.split(key)
    raw_params = init_params(SPEC, in_chans=3, num_classes=10, key=pkey)
    params = prepare_params(raw_params, SPEC)      # one-time layout / BN-fold prep
    x = jax.random.normal(xkey, (2, 3, 16, 16), dtype=jnp.float32)

    fwd = jax.jit(functools.partial(cvt_forward, spec=SPEC))
    logits = fwd(x, params)
    jax.block_until_ready(logits)
    assert logits.shape == (2, 10) and logits.dtype == jnp.float32
    print("KERNEL_OK")
</pallas_src>

<mosaic_0001>
module attributes {stable_mosaic.version = 11 : i64} {
  func.func @_embed_kernel(%arg0: i32, %arg1: memref<128x27xbf16, #tpu.memory_space<vmem>>, %arg2: memref<27x16xbf16, #tpu.memory_space<vmem>>, %arg3: memref<1x16xf32, #tpu.memory_space<vmem>>, %arg4: memref<1x16xf32, #tpu.memory_space<vmem>>, %arg5: memref<1x16xf32, #tpu.memory_space<vmem>>, %arg6: memref<128x16xf32, #tpu.memory_space<vmem>>) attributes {dimension_semantics = [#tpu.dimension_semantics<parallel>], iteration_bounds = array<i64: 1>, scalar_prefetch = 0 : i64, scratch_operands = 0 : i64, tpu.core_type = #tpu.core_type<tc>, window_params = [{transform_indices = @transform_0, window_bounds = array<i64: 128, 27>}, {pipeline_mode = #tpu.pipeline_mode<synchronous>, transform_indices = @transform_1, window_bounds = array<i64: 27, 16>}, {pipeline_mode = #tpu.pipeline_mode<synchronous>, transform_indices = @transform_2, window_bounds = array<i64: 1, 16>}, {pipeline_mode = #tpu.pipeline_mode<synchronous>, transform_indices = @transform_3, window_bounds = array<i64: 1, 16>}, {pipeline_mode = #tpu.pipeline_mode<synchronous>, transform_indices = @transform_4, window_bounds = array<i64: 1, 16>}, {transform_indices = @transform_5, window_bounds = array<i64: 128, 16>}]} {
    %c0 = arith.constant 0 : index
    %c0_0 = arith.constant 0 : index
    %0 = vector.load %arg1[%c0, %c0_0] : memref<128x27xbf16, #tpu.memory_space<vmem>>, vector<128x27xbf16>
    %c0_1 = arith.constant 0 : index
    %c0_2 = arith.constant 0 : index
    %1 = vector.load %arg2[%c0_1, %c0_2] : memref<27x16xbf16, #tpu.memory_space<vmem>>, vector<27x16xbf16>
    %cst = arith.constant dense<0.000000e+00> : vector<128x16xf32>
    %2 = tpu.matmul %0, %1, %cst {dimension_numbers = #tpu.dot_dimension_numbers<[1], [0], [0], [1], [0, 0, 1, 1], [], []>} : vector<128x27xbf16>, vector<27x16xbf16>, vector<128x16xf32> -> vector<128x16xf32>
    %c0_3 = arith.constant 0 : index
    %c0_4 = arith.constant 0 : index
    %3 = vector.load %arg3[%c0_3, %c0_4] : memref<1x16xf32, #tpu.memory_space<vmem>>, vector<1x16xf32>
    %4 = vector.broadcast %3 : vector<1x16xf32> to vector<128x16xf32>
    %5 = arith.addf %2, %4 : vector<128x16xf32>
    %c0_5 = arith.constant 0 : index
    %c0_6 = arith.constant 0 : index
    %6 = vector.load %arg4[%c0_5, %c0_6] : memref<1x16xf32, #tpu.memory_space<vmem>>, vector<1x16xf32>
    %c0_7 = arith.constant 0 : index
    %c0_8 = arith.constant 0 : index
    %7 = vector.load %arg5[%c0_7, %c0_8] : memref<1x16xf32, #tpu.memory_space<vmem>>, vector<1x16xf32>
    %cst_9 = arith.constant dense<0.000000e+00> : vector<128xf32>
    %8 = vector.multi_reduction <add>, %5, %cst_9 [1] : vector<128x16xf32> to vector<128xf32>
    %9 = vector.shape_cast %8 : vector<128xf32> to vector<128x1xf32>
    %cst_10 = arith.constant 1.600000e+01 : f32
    %10 = vector.broadcast %cst_10 : f32 to vector<128x1xf32>
    %11 = arith.divf %9, %10 : vector<128x1xf32>
    %12 = vector.broadcast %11 : vector<128x1xf32> to vector<128x16xf32>
    %13 = arith.subf %5, %12 : vector<128x16xf32>
    %14 = arith.mulf %13, %13 : vector<128x16xf32>
    %cst_11 = arith.constant dense<0.000000e+00> : vector<128xf32>
    %15 = vector.multi_reduction <add>, %14, %cst_11 [1] : vector<128x16xf32> to vector<128xf32>
    %16 = vector.shape_cast %15 : vector<128xf32> to vector<128x1xf32>
    %cst_12 = arith.constant 1.600000e+01 : f32
    %17 = vector.broadcast %cst_12 : f32 to vector<128x1xf32>
    %18 = arith.divf %16, %17 : vector<128x1xf32>
    %19 = vector.broadcast %11 : vector<128x1xf32> to vector<128x16xf32>
    %20 = arith.subf %5, %19 : vector<128x16xf32>
    %cst_13 = arith.constant 9.99999974E-6 : f32
    %21 = vector.broadcast %cst_13 : f32 to vector<128x1xf32>
    %22 = arith.addf %18, %21 : vector<128x1xf32>
    %23 = math.rsqrt %22 : vector<128x1xf32>
    %24 = vector.broadcast %23 : vector<128x1xf32> to vector<128x16xf32>
    %25 = arith.mulf %20, %24 : vector<128x16xf32>
    %26 = vector.broadcast %6 : vector<1x16xf32> to vector<128x16xf32>
    %27 = arith.mulf %25, %26 : vector<128x16xf32>
    %28 = vector.broadcast %7 : vector<1x16xf32> to vector<128x16xf32>
    %29 = arith.addf %27, %28 : vector<128x16xf32>
    %c0_14 = arith.constant 0 : index
    %c0_15 = arith.constant 0 : index
    %30 = vector.load %arg6[%c0_14, %c0_15] : memref<128x16xf32, #tpu.memory_space<vmem>>, vector<128x16xf32>
    tpu.vector_store %arg6[%c0_14, %c0_15], %29 {strides = array<i32>} : memref<128x16xf32, #tpu.memory_space<vmem>>, vector<128x16xf32>,
    return
  }
  func.func @transform_0(%arg0: i32) -> (i32, i32) {
    %c0_i32 = arith.constant 0 : i32
    %c0_i32_0 = arith.constant 0 : i32
    return %arg0, %c0_i32 : i32, i32
  }
  func.func @transform_1(%arg0: i32) -> (i32, i32) {
    %c0_i32 = arith.constant 0 : i32
    %c0_i32_0 = arith.constant 0 : i32
    %c0_i32_1 = arith.constant 0 : i32
    return %c0_i32, %c0_i32_0 : i32, i32
  }
  func.func @transform_2(%arg0: i32) -> (i32, i32) {
    %c0_i32 = arith.constant 0 : i32
    %c0_i32_0 = arith.constant 0 : i32
    %c0_i32_1 = arith.constant 0 : i32
    return %c0_i32, %c0_i32_0 : i32, i32
  }
  func.func @transform_3(%arg0: i32) -> (i32, i32) {
    %c0_i32 = arith.constant 0 : i32
    %c0_i32_0 = arith.constant 0 : i32
    %c0_i32_1 = arith.constant 0 : i32
    return %c0_i32, %c0_i32_0 : i32, i32
  }
  func.func @transform_4(%arg0: i32) -> (i32, i32) {
    %c0_i32 = arith.constant 0 : i32
    %c0_i32_0 = arith.constant 0 : i32
    %c0_i32_1 = arith.constant 0 : i32
    return %c0_i32, %c0_i32_0 : i32, i32
  }
  func.func @transform_5(%arg0: i32) -> (i32, i32) {
    %c0_i32 = arith.constant 0 : i32
    %c0_i32_0 = arith.constant 0 : i32
    return %arg0, %c0_i32 : i32, i32
  }
}

module attributes {stable_mosaic.version = 11 : i64} {
  func.func @_block_kernel(%arg0: i32, %arg1: memref<1x64x16xf32, #tpu.memory_space<vmem>>, %arg2: memref<16x64xbf16, #tpu.memory_space<vmem>>, %arg3: memref<1x16xf32, #tpu.memory_space<vmem>>, %arg4: memref<1x16xf32, #tpu.memory_space<vmem>>, %arg5: memref<9x1x16xf32, #tpu.memory_space<vmem>>, %arg6: memref<1x16xf32, #tpu.memory_space<vmem>>, %arg7: memref<9x1x16xf32, #tpu.memory_space<vmem>>, %arg8: memref<1x16xf32, #tpu.memory_space<vmem>>, %arg9: memref<9x1x16xf32, #tpu.memory_space<vmem>>, %arg10: memref<1x16xf32, #tpu.memory_space<vmem>>, %arg11: memref<16x16xbf16, #tpu.memory_space<vmem>>, %arg12: memref<1x16xf32, #tpu.memory_space<vmem>>, %arg13: memref<16x16xbf16, #tpu.memory_space<vmem>>, %arg14: memref<1x16xf32, #tpu.memory_space<vmem>>, %arg15: memref<16x16xbf16, #tpu.memory_space<vmem>>, %arg16: memref<1x16xf32, #tpu.memory_space<vmem>>, %arg17: memref<16x16xbf16, #tpu.memory_space<vmem>>, %arg18: memref<1x16xf32, #tpu.memory_space<vmem>>, %arg19: memref<1x16xf32, #tpu.memory_space<vmem>>, %arg20: memref<1x16xf32, #tpu.memory_space<vmem>>, %arg21: memref<16x32xbf16, #tpu.memory_space<vmem>>, %arg22: memref<1x32xf32, #tpu.memory_space<vmem>>, %arg23: memref<32x16xbf16, #tpu.memory_space<vmem>>, %arg24: memref<1x16xf32, #tpu.memory_space<vmem>>, %arg25: memref<1x64x16xf32, #tpu.memory_space<vmem>>, %arg26: memref<10x10x16xf32, #tpu.memory_space<vmem>>, %arg27: memref<64x16xf32, #tpu.memory_space<vmem>>, %arg28: memref<16x16xf32, #tpu.memory_space<vmem>>, %arg29: memref<16x16xf32, #tpu.memory_space<vmem>>) attributes {dimension_semantics = [#tpu.dimension_semantics<parallel>], iteration_bounds = array<i64: 2>, scalar_prefetch = 0 : i64, scratch_operands = 4 : i64, tpu.core_type = #tpu.core_type<tc>, window_params = [{transform_indices = @transform_0, window_bounds = array<i64: 1, 64, 16>}, {pipeline_mode = #tpu.pipeline_mode<synchronous>, transform_indices = @transform_1, window_bounds = array<i64: 16, 64>}, {pipeline_mode = #tpu.pipeline_mode<synchronous>, transform_indices = @transform_2, window_bounds = array<i64: 1, 16>}, {pipeline_mode = #tpu.pipeline_mode<synchronous>, transform_indices = @transform_3, window_bounds = array<i64: 1, 16>}, {pipeline_mode = #tpu.pipeline_mode<synchronous>, transform_indices = @transform_4, window_bounds = array<i64: 9, 1, 16>}, {pipeline_mode = #tpu.pipeline_mode<synchronous>, transform_indices = @transform_5, window_bounds = array<i64: 1, 16>}, {pipeline_mode = #tpu.pipeline_mode<synchronous>, transform_indices = @transform_6, window_bounds = array<i64: 9, 1, 16>}, {pipeline_mode = #tpu.pipeline_mode<synchronous>, transform_indices = @transform_7, window_bounds = array<i64: 1, 16>}, {pipeline_mode = #tpu.pipeline_mode<synchronous>, transform_indices = @transform_8, window_bounds = array<i64: 9, 1, 16>}, {pipeline_mode = #tpu.pipeline_mode<synchronous>, transform_indices = @transform_9, window_bounds = array<i64: 1, 16>}, {pipeline_mode = #tpu.pipeline_mode<synchronous>, transform_indices = @transform_10, window_bounds = array<i64: 16, 16>}, {pipeline_mode = #tpu.pipeline_mode<synchronous>, transform_indices = @transform_11, window_bounds = array<i64: 1, 16>}, {pipeline_mode = #tpu.pipeline_mode<synchronous>, transform_indices = @transform_12, window_bounds = array<i64: 16, 16>}, {pipeline_mode = #tpu.pipeline_mode<synchronous>, transform_indices = @transform_13, window_bounds = array<i64: 1, 16>}, {pipeline_mode = #tpu.pipeline_mode<synchronous>, transform_indices = @transform_14, window_bounds = array<i64: 16, 16>}, {pipeline_mode = #tpu.pipeline_mode<synchronous>, transform_indices = @transform_15, window_bounds = array<i64: 1, 16>}, {pipeline_mode = #tpu.pipeline_mode<synchronous>, transform_indices = @transform_16, window_bounds = array<i64: 16, 16>}, {pipeline_mode = #tpu.pipeline_mode<synchronous>, transform_indices = @transform_17, window_bounds = array<i64: 1, 16>}, {pipeline_mode = #tpu.pipeline_mode<synchronous>, transform_indices = @transform_18, window_bounds = array<i64: 1, 16>}, {pipeline_mode = #tpu.pipeline_mode<synchronous>, transform_indices = @transform_19, window_bounds = array<i64: 1, 16>}, {pipeline_mode = #tpu.pipeline_mode<synchronous>, transform_indices = @transform_20, window_bounds = array<i64: 16, 32>}, {pipeline_mode = #tpu.pipeline_mode<synchronous>, transform_indices = @transform_21, window_bounds = array<i64: 1, 32>}, {pipeline_mode = #tpu.pipeline_mode<synchronous>, transform_indices = @transform_22, window_bounds = array<i64: 32, 16>}, {pipeline_mode = #tpu.pipeline_mode<synchronous>, transform_indices = @transform_23, window_bounds = array<i64: 1, 16>}, {transform_indices = @transform_24, window_bounds = array<i64: 1, 64, 16>}]} {
    %c0 = arith.constant 0 : index
    %c0_0 = arith.constant 0 : index
    %c0_1 = arith.constant 0 : index
    %0 = vector.load %arg1[%c0, %c0_0, %c0_1] : memref<1x64x16xf32, #tpu.memory_space<vmem>>, vector<1x64x16xf32>
    %1 = vector.shape_cast %0 : vector<1x64x16xf32> to vector<64x16xf32>
    %c0_2 = arith.constant 0 : index
    %c0_3 = arith.constant 0 : index
    %2 = vector.load %arg3[%c0_2, %c0_3] : memref<1x16xf32, #tpu.memory_space<vmem>>, vector<1x16xf32>
    %c0_4 = arith.constant 0 : index
    %c0_5 = arith.constant 0 : index
    %3 = vector.load %arg4[%c0_4, %c0_5] : memref<1x16xf32, #tpu.memory_space<vmem>>, vector<1x16xf32>
    %cst = arith.constant dense<0.000000e+00> : vector<64xf32>
    %4 = vector.multi_reduction <add>, %1, %cst [1] : vector<64x16xf32> to vector<64xf32>
    %5 = vector.shape_cast %4 : vector<64xf32> to vector<64x1xf32>
    %cst_6 = arith.constant 1.600000e+01 : f32
    %6 = vector.broadcast %cst_6 : f32 to vector<64x1xf32>
    %7 = arith.divf %5, %6 : vector<64x1xf32>
    %8 = vector.broadcast %7 : vector<64x1xf32> to vector<64x16xf32>
    %9 = arith.subf %1, %8 : vector<64x16xf32>
    %10 = arith.mulf %9, %9 : vector<64x16xf32>
    %cst_7 = arith.constant dense<0.000000e+00> : vector<64xf32>
    %11 = vector.multi_reduction <add>, %10, %cst_7 [1] : vector<64x16xf32> to vector<64xf32>
    %12 = vector.shape_cast %11 : vector<64xf32> to vector<64x1xf32>
    %cst_8 = arith.constant 1.600000e+01 : f32
    %13 = vector.broadcast %cst_8 : f32 to vector<64x1xf32>
    %14 = arith.divf %12, %13 : vector<64x1xf32>
    %15 = vector.broadcast %7 : vector<64x1xf32> to vector<64x16xf32>
    %16 = arith.subf %1, %15 : vector<64x16xf32>
    %cst_9 = arith.constant 9.99999974E-6 : f32
    %17 = vector.broadcast %cst_9 : f32 to vector<64x1xf32>
    %18 = arith.addf %14, %17 : vector<64x1xf32>
    %19 = math.rsqrt %18 : vector<64x1xf32>
    %20 = vector.broadcast %19 : vector<64x1xf32> to vector<64x16xf32>
    %21 = arith.mulf %16, %20 : vector<64x16xf32>
    %22 = vector.broadcast %2 : vector<1x16xf32> to vector<64x16xf32>
    %23 = arith.mulf %21, %22 : vector<64x16xf32>
    %24 = vector.broadcast %3 : vector<1x16xf32> to vector<64x16xf32>
    %25 = arith.addf %23, %24 : vector<64x16xf32>
    %cst_10 = arith.constant 0.000000e+00 : f32
    %26 = vector.broadcast %cst_10 : f32 to vector<10x10x16xf32>
    %c0_11 = arith.constant 0 : index
    %c0_12 = arith.constant 0 : index
    %c0_13 = arith.constant 0 : index
    %27 = vector.load %arg26[%c0_11, %c0_12, %c0_13] : memref<10x10x16xf32, #tpu.memory_space<vmem>>, vector<10x10x16xf32>
    tpu.vector_store %arg26[%c0_11, %c0_12, %c0_13], %26 {strides = array<i32>} : memref<10x10x16xf32, #tpu.memory_space<vmem>>, vector<10x10x16xf32>,
    %28 = vector.shape_cast %25 : vector<64x16xf32> to vector<8x8x16xf32>
    %c1 = arith.constant 1 : index
    %c1_14 = arith.constant 1 : index
    %c0_15 = arith.constant 0 : index
    %29 = vector.load %arg26[%c1, %c1_14, %c0_15] : memref<10x10x16xf32, #tpu.memory_space<vmem>>, vector<8x8x16xf32>
    tpu.vector_store %arg26[%c1, %c1_14, %c0_15], %28 {strides = array<i32>} : memref<10x10x16xf32, #tpu.memory_space<vmem>>, vector<8x8x16xf32>,
    %c0_16 = arith.constant 0 : index
    %c0_17 = arith.constant 0 : index
    %c0_18 = arith.constant 0 : index
    %30 = vector.load %arg5[%c0_16, %c0_17, %c0_18] : memref<9x1x16xf32, #tpu.memory_space<vmem>>, vector<9x1x16xf32>
    %c0_19 = arith.constant 0 : index
    %c0_20 = arith.constant 0 : index
    %c0_21 = arith.constant 0 : index
    %31 = vector.load %arg7[%c0_19, %c0_20, %c0_21] : memref<9x1x16xf32, #tpu.memory_space<vmem>>, vector<9x1x16xf32>
    %c0_22 = arith.constant 0 : index
    %c0_23 = arith.constant 0 : index
    %c0_24 = arith.constant 0 : index
    %32 = vector.load %arg9[%c0_22, %c0_23, %c0_24] : memref<9x1x16xf32, #tpu.memory_space<vmem>>, vector<9x1x16xf32>
    %c0_25 = arith.constant 0 : index
    %c0_26 = arith.constant 0 : index
    %c0_27 = arith.constant 0 : index
    %33 = vector.load %arg26[%c0_25, %c0_26, %c0_27] : memref<10x10x16xf32, #tpu.memory_space<vmem>>, vector<8x8x16xf32>
    %34 = vector.extract_strided_slice %30 {offsets = [0, 0, 0], sizes = [1, 1, 16], strides = [1, 1, 1]} : vector<9x1x16xf32> to vector<1x1x16xf32>
    %35 = vector.shape_cast %34 : vector<1x1x16xf32> to vector<1x16xf32>
    %36 = vector.shape_cast %35 : vector<1x16xf32> to vector<1x1x16xf32>
    %37 = vector.broadcast %36 : vector<1x1x16xf32> to vector<8x8x16xf32>
    %38 = arith.mulf %33, %37 : vector<8x8x16xf32>
    %39 = vector.extract_strided_slice %31 {offsets = [0, 0, 0], sizes = [1, 1, 16], strides = [1, 1, 1]} : vector<9x1x16xf32> to vector<1x1x16xf32>
    %40 = vector.shape_cast %39 : vector<1x1x16xf32> to vector<1x16xf32>
    %41 = vector.shape_cast %40 : vector<1x16xf32> to vector<1x1x16xf32>
    %42 = vector.broadcast %41 : vector<1x1x16xf32> to vector<8x8x16xf32>
    %43 = arith.mulf %33, %42 : vector<8x8x16xf32>
    %44 = vector.extract_strided_slice %32 {offsets = [0, 0, 0], sizes = [1, 1, 16], strides = [1, 1, 1]} : vector<9x1x16xf32> to vector<1x1x16xf32>
    %45 = vector.shape_cast %44 : vector<1x1x16xf32> to vector<1x16xf32>
    %46 = vector.shape_cast %45 : vector<1x16xf32> to vector<1x1x16xf32>
    %47 = vector.broadcast %46 : vector<1x1x16xf32> to vector<8x8x16xf32>
    %48 = arith.mulf %33, %47 : vector<8x8x16xf32>
    %c0_28 = arith.constant 0 : index
    %c1_29 = arith.constant 1 : index
    %c0_30 = arith.constant 0 : index
    %49 = vector.load %arg26[%c0_28, %c1_29, %c0_30] : memref<10x10x16xf32, #tpu.memory_space<vmem>>, vector<8x8x16xf32>
    %50 = vector.extract_strided_slice %30 {offsets = [1, 0, 0], sizes = [1, 1, 16], strides = [1, 1, 1]} : vector<9x1x16xf32> to vector<1x1x16xf32>
    %51 = vector.shape_cast %50 : vector<1x1x16xf32> to vector<1x16xf32>
    %52 = vector.shape_cast %51 : vector<1x16xf32> to vector<1x1x16xf32>
    %53 = vector.broadcast %52 : vector<1x1x16xf32> to vector<8x8x16xf32>
    %54 = arith.mulf %49, %53 : vector<8x8x16xf32>
    %55 = arith.addf %38, %54 : vector<8x8x16xf32>
    %56 = vector.extract_strided_slice %31 {offsets = [1, 0, 0], sizes = [1, 1, 16], strides = [1, 1, 1]} : vector<9x1x16xf32> to vector<1x1x16xf32>
    %57 = vector.shape_cast %56 : vector<1x1x16xf32> to vector<1x16xf32>
    %58 = vector.shape_cast %57 : vector<1x16xf32> to vector<1x1x16xf32>
    %59 = vector.broadcast %58 : vector<1x1x16xf32> to vector<8x8x16xf32>
    %60 = arith.mulf %49, %59 : vector<8x8x16xf32>
    %61 = arith.addf %43, %60 : vector<8x8x16xf32>
    %62 = vector.extract_strided_slice %32 {offsets = [1, 0, 0], sizes = [1, 1, 16], strides = [1, 1, 1]} : vector<9x1x16xf32> to vector<1x1x16xf32>
    %63 = vector.shape_cast %62 : vector<1x1x16xf32> to vector<1x16xf32>
    %64 = vector.shape_cast %63 : vector<1x16xf32> to vector<1x1x16xf32>
    %65 = vector.broadcast %64 : vector<1x1x16xf32> to vector<8x8x16xf32>
    %66 = arith.mulf %49, %65 : vector<8x8x16xf32>
    %67 = arith.addf %48, %66 : vector<8x8x16xf32>
    %c0_31 = arith.constant 0 : index
    %c2 = arith.constant 2 : index
    %c0_32 = arith.constant 0 : index
    %68 = vector.load %arg26[%c0_31, %c2, %c0_32] : memref<10x10x16xf32, #tpu.memory_space<vmem>>, vector<8x8x16xf32>
    %69 = vector.extract_strided_slice %30 {offsets = [2, 0, 0], sizes = [1, 1, 16], strides = [1, 1, 1]} : vector<9x1x16xf32> to vector<1x1x16xf32>
    %70 = vector.shape_cast %69 : vector<1x1x16xf32> to vector<1x16xf32>
    %71 = vector.shape_cast %70 : vector<1x16xf32> to vector<1x1x16xf32>
    %72 = vector.broadcast %71 : vector<1x1x16xf32> to vector<8x8x16xf32>
    %73 = arith.mulf %68, %72 : vector<8x8x16xf32>
    %74 = arith.addf %55, %73 : vector<8x8x16xf32>
    %75 = vector.extract_strided_slice %31 {offsets = [2, 0, 0], sizes = [1, 1, 16], strides = [1, 1, 1]} : vector<9x1x16xf32> to vector<1x1x16xf32>
    %76 = vector.shape_cast %75 : vector<1x1x16xf32> to vector<1x16xf32>
    %77 = vector.shape_cast %76 : vector<1x16xf32> to vector<1x1x16xf32>
    %78 = vector.broadcast %77 : vector<1x1x16xf32> to vector<8x8x16xf32>
    %79 = arith.mulf %68, %78 : vector<8x8x16xf32>
    %80 = arith.addf %61, %79 : vector<8x8x16xf32>
    %81 = vector.extract_strided_slice %32 {offsets = [2, 0, 0], sizes = [1, 1, 16], strides = [1, 1, 1]} : vector<9x1x16xf32> to vector<1x1x16xf32>
    %82 = vector.shape_cast %81 : vector<1x1x16xf32> to vector<1x16xf32>
    %83 = vector.shape_cast %82 : vector<1x16xf32> to vector<1x1x16xf32>
    %84 = vector.broadcast %83 : vector<1x1x16xf32> to vector<8x8x16xf32>
    %85 = arith.mulf %68, %84 : vector<8x8x16xf32>
    %86 = arith.addf %67, %85 : vector<8x8x16xf32>
    %c1_33 = arith.constant 1 : index
    %c0_34 = arith.constant 0 : index
    %c0_35 = arith.constant 0 : index
    %87 = vector.load %arg26[%c1_33, %c0_34, %c0_35] : memref<10x10x16xf32, #tpu.memory_space<vmem>>, vector<8x8x16xf32>
    %88 = vector.extract_strided_slice %30 {offsets = [3, 0, 0], sizes = [1, 1, 16], strides = [1, 1, 1]} : vector<9x1x16xf32> to vector<1x1x16xf32>
    %89 = vector.shape_cast %88 : vector<1x1x16xf32> to vector<1x16xf32>
    %90 = vector.shape_cast %89 : vector<1x16xf32> to vector<1x1x16xf32>
    %91 = vector.broadcast %90 : vector<1x1x16xf32> to vector<8x8x16xf32>
    %92 = arith.mulf %87, %91 : vector<8x8x16xf32>
    %93 = arith.addf %74, %92 : vector<8x8x16xf32>
    %94 = vector.extract_strided_slice %31 {offsets = [3, 0, 0], sizes = [1, 1, 16], strides = [1, 1, 1]} : vector<9x1x16xf32> to vector<1x1x16xf32>
    %95 = vector.shape_cast %94 : vector<1x1x16xf32> to vector<1x16xf32>
    %96 = vector.shape_cast %95 : vector<1x16xf32> to vector<1x1x16xf32>
    %97 = vector.broadcast %96 : vector<1x1x16xf32> to vector<8x8x16xf32>
    %98 = arith.mulf %87, %97 : vector<8x8x16xf32>
    %99 = arith.addf %80, %98 : vector<8x8x16xf32>
    %100 = vector.extract_strided_slice %32 {offsets = [3, 0, 0], sizes = [1, 1, 16], strides = [1, 1, 1]} : vector<9x1x16xf32> to vector<1x1x16xf32>
    %101 = vector.shape_cast %100 : vector<1x1x16xf32> to vector<1x16xf32>
    %102 = vector.shape_cast %101 : vector<1x16xf32> to vector<1x1x16xf32>
    %103 = vector.broadcast %102 : vector<1x1x16xf32> to vector<8x8x16xf32>
    %104 = arith.mulf %87, %103 : vector<8x8x16xf32>
    %105 = arith.addf %86, %104 : vector<8x8x16xf32>
    %c1_36 = arith.constant 1 : index
    %c1_37 = arith.constant 1 : index
    %c0_38 = arith.constant 0 : index
    %106 = vector.load %arg26[%c1_36, %c1_37, %c0_38] : memref<10x10x16xf32, #tpu.memory_space<vmem>>, vector<8x8x16xf32>
    %107 = vector.extract_strided_slice %30 {offsets = [4, 0, 0], sizes = [1, 1, 16], strides = [1, 1, 1]} : vector<9x1x16xf32> to vector<1x1x16xf32>
    %108 = vector.shape_cast %107 : vector<1x1x16xf32> to vector<1x16xf32>
    %109 = vector.shape_cast %108 : vector<1x16xf32> to vector<1x1x16xf32>
    %110 = vector.broadcast %109 : vector<1x1x16xf32> to vector<8x8x16xf32>
    %111 = arith.mulf %106, %110 : vector<8x8x16xf32>
    %112 = arith.addf %93, %111 : vector<8x8x16xf32>
    %113 = vector.extract_strided_slice %31 {offsets = [4, 0, 0], sizes = [1, 1, 16], strides = [1, 1, 1]} : vector<9x1x16xf32> to vector<1x1x16xf32>
    %114 = vector.shape_cast %113 : vector<1x1x16xf32> to vector<1x16xf32>
    %115 = vector.shape_cast %114 : vector<1x16xf32> to vector<1x1x16xf32>
    %116 = vector.broadcast %115 : vector<1x1x16xf32> to vector<8x8x16xf32>
    %117 = arith.mulf %106, %116 : vector<8x8x16xf32>
    %118 = arith.addf %99, %117 : vector<8x8x16xf32>
    %119 = vector.extract_strided_slice %32 {offsets = [4, 0, 0], sizes = [1, 1, 16], strides = [1, 1, 1]} : vector<9x1x16xf32> to vector<1x1x16xf32>
    %120 = vector.shape_cast %119 : vector<1x1x16xf32> to vector<1x16xf32>
    %121 = vector.shape_cast %120 : vector<1x16xf32> to vector<1x1x16xf32>
    %122 = vector.broadcast %121 : vector<1x1x16xf32> to vector<8x8x16xf32>
    %123 = arith.mulf %106, %122 : vector<8x8x16xf32>
    %124 = arith.addf %105, %123 : vector<8x8x16xf32>
    %c1_39 = arith.constant 1 : index
    %c2_40 = arith.constant 2 : index
    %c0_41 = arith.constant 0 : index
    %125 = vector.load %arg26[%c1_39, %c2_40, %c0_41] : memref<10x10x16xf32, #tpu.memory_space<vmem>>, vector<8x8x16xf32>
    %126 = vector.extract_strided_slice %30 {offsets = [5, 0, 0], sizes = [1, 1, 16], strides = [1, 1, 1]} : vector<9x1x16xf32> to vector<1x1x16xf32>
    %127 = vector.shape_cast %126 : vector<1x1x16xf32> to vector<1x16xf32>
    %128 = vector.shape_cast %127 : vector<1x16xf32> to vector<1x1x16xf32>
    %129 = vector.broadcast %128 : vector<1x1x16xf32> to vector<8x8x16xf32>
    %130 = arith.mulf %125, %129 : vector<8x8x16xf32>
    %131 = arith.addf %112, %130 : vector<8x8x16xf32>
    %132 = vector.extract_strided_slice %31 {offsets = [5, 0, 0], sizes = [1, 1, 16], strides = [1, 1, 1]} : vector<9x1x16xf32> to vector<1x1x16xf32>
    %133 = vector.shape_cast %132 : vector<1x1x16xf32> to vector<1x16xf32>
    %134 = vector.shape_cast %133 : vector<1x16xf32> to vector<1x1x16xf32>
    %135 = vector.broadcast %134 : vector<1x1x16xf32> to vector<8x8x16xf32>
    %136 = arith.mulf %125, %135 : vector<8x8x16xf32>
    %137 = arith.addf %118, %136 : vector<8x8x16xf32>
    %138 = vector.extract_strided_slice %32 {offsets = [5, 0, 0], sizes = [1, 1, 16], strides = [1, 1, 1]} : vector<9x1x16xf32> to vector<1x1x16xf32>
    %139 = vector.shape_cast %138 : vector<1x1x16xf32> to vector<1x16xf32>
    %140 = vector.shape_cast %139 : vector<1x16xf32> to vector<1x1x16xf32>
    %141 = vector.broadcast %140 : vector<1x1x16xf32> to vector<8x8x16xf32>
    %142 = arith.mulf %125, %141 : vector<8x8x16xf32>
    %143 = arith.addf %124, %142 : vector<8x8x16xf32>
    %c2_42 = arith.constant 2 : index
    %c0_43 = arith.constant 0 : index
    %c0_44 = arith.constant 0 : index
    %144 = vector.load %arg26[%c2_42, %c0_43, %c0_44] : memref<10x10x16xf32, #tpu.memory_space<vmem>>, vector<8x8x16xf32>
    %145 = vector.extract_strided_slice %30 {offsets = [6, 0, 0], sizes = [1, 1, 16], strides = [1, 1, 1]} : vector<9x1x16xf32> to vector<1x1x16xf32>
    %146 = vector.shape_cast %145 : vector<1x1x16xf32> to vector<1x16xf32>
    %147 = vector.shape_cast %146 : vector<1x16xf32> to vector<1x1x16xf32>
    %148 = vector.broadcast %147 : vector<1x1x16xf32> to vector<8x8x16xf32>
    %149 = arith.mulf %144, %148 : vector<8x8x16xf32>
    %150 = arith.addf %131, %149 : vector<8x8x16xf32>
    %151 = vector.extract_strided_slice %31 {offsets = [6, 0, 0], sizes = [1, 1, 16], strides = [1, 1, 1]} : vector<9x1x16xf32> to vector<1x1x16xf32>
    %152 = vector.shape_cast %151 : vector<1x1x16xf32> to vector<1x16xf32>
    %153 = vector.shape_cast %152 : vector<1x16xf32> to vector<1x1x16xf32>
    %154 = vector.broadcast %153 : vector<1x1x16xf32> to vector<8x8x16xf32>
    %155 = arith.mulf %144, %154 : vector<8x8x16xf32>
    %156 = arith.addf %137, %155 : vector<8x8x16xf32>
    %157 = vector.extract_strided_slice %32 {offsets = [6, 0, 0], sizes = [1, 1, 16], strides = [1, 1, 1]} : vector<9x1x16xf32> to vector<1x1x16xf32>
    %158 = vector.shape_cast %157 : vector<1x1x16xf32> to vector<1x16xf32>
    %159 = vector.shape_cast %158 : vector<1x16xf32> to vector<1x1x16xf32>
    %160 = vector.broadcast %159 : vector<1x1x16xf32> to vector<8x8x16xf32>
    %161 = arith.mulf %144, %160 : vector<8x8x16xf32>
    %162 = arith.addf %143, %161 : vector<8x8x16xf32>
    %c2_45 = arith.constant 2 : index
    %c1_46 = arith.constant 1 : index
    %c0_47 = arith.constant 0 : index
    %163 = vector.load %arg26[%c2_45, %c1_46, %c0_47] : memref<10x10x16xf32, #tpu.memory_space<vmem>>, vector<8x8x16xf32>
    %164 = vector.extract_strided_slice %30 {offsets = [7, 0, 0], sizes = [1, 1, 16], strides = [1, 1, 1]} : vector<9x1x16xf32> to vector<1x1x16xf32>
    %165 = vector.shape_cast %164 : vector<1x1x16xf32> to vector<1x16xf32>
    %166 = vector.shape_cast %165 : vector<1x16xf32> to vector<1x1x16xf32>
    %167 = vector.broadcast %166 : vector<1x1x16xf32> to vector<8x8x16xf32>
    %168 = arith.mulf %163, %167 : vector<8x8x16xf32>
    %169 = arith.addf %150, %168 : vector<8x8x16xf32>
    %170 = vector.extract_strided_slice %31 {offsets = [7, 0, 0], sizes = [1, 1, 16], strides = [1, 1, 1]} : vector<9x1x16xf32> to vector<1x1x16xf32>
    %171 = vector.shape_cast %170 : vector<1x1x16xf32> to vector<1x16xf32>
    %172 = vector.shape_cast %171 : vector<1x16xf32> to vector<1x1x16xf32>
    %173 = vector.broadcast %172 : vector<1x1x16xf32> to vector<8x8x16xf32>
    %174 = arith.mulf %163, %173 : vector<8x8x16xf32>
    %175 = arith.addf %156, %174 : vector<8x8x16xf32>
    %176 = vector.extract_strided_slice %32 {offsets = [7, 0, 0], sizes = [1, 1, 16], strides = [1, 1, 1]} : vector<9x1x16xf32> to vector<1x1x16xf32>
    %177 = vector.shape_cast %176 : vector<1x1x16xf32> to vector<1x16xf32>
    %178 = vector.shape_cast %177 : vector<1x16xf32> to vector<1x1x16xf32>
    %179 = vector.broadcast %178 : vector<1x1x16xf32> to vector<8x8x16xf32>
    %180 = arith.mulf %163, %179 : vector<8x8x16xf32>
    %181 = arith.addf %162, %180 : vector<8x8x16xf32>
    %c2_48 = arith.constant 2 : index
    %c2_49 = arith.constant 2 : index
    %c0_50 = arith.constant 0 : index
    %182 = vector.load %arg26[%c2_48, %c2_49, %c0_50] : memref<10x10x16xf32, #tpu.memory_space<vmem>>, vector<8x8x16xf32>
    %183 = vector.extract_strided_slice %30 {offsets = [8, 0, 0], sizes = [1, 1, 16], strides = [1, 1, 1]} : vector<9x1x16xf32> to vector<1x1x16xf32>
    %184 = vector.shape_cast %183 : vector<1x1x16xf32> to vector<1x16xf32>
    %185 = vector.shape_cast %184 : vector<1x16xf32> to vector<1x1x16xf32>
    %186 = vector.broadcast %185 : vector<1x1x16xf32> to vector<8x8x16xf32>
    %187 = arith.mulf %182, %186 : vector<8x8x16xf32>
    %188 = arith.addf %169, %187 : vector<8x8x16xf32>
    %189 = vector.extract_strided_slice %31 {offsets = [8, 0, 0], sizes = [1, 1, 16], strides = [1, 1, 1]} : vector<9x1x16xf32> to vector<1x1x16xf32>
    %190 = vector.shape_cast %189 : vector<1x1x16xf32> to vector<1x16xf32>
    %191 = vector.shape_cast %190 : vector<1x16xf32> to vector<1x1x16xf32>
    %192 = vector.broadcast %191 : vector<1x1x16xf32> to vector<8x8x16xf32>
    %193 = arith.mulf %182, %192 : vector<8x8x16xf32>
    %194 = arith.addf %175, %193 : vector<8x8x16xf32>
    %195 = vector.extract_strided_slice %32 {offsets = [8, 0, 0], sizes = [1, 1, 16], strides = [1, 1, 1]} : vector<9x1x16xf32> to vector<1x1x16xf32>
    %196 = vector.shape_cast %195 : vector<1x1x16xf32> to vector<1x16xf32>
    %197 = vector.shape_cast %196 : vector<1x16xf32> to vector<1x1x16xf32>
    %198 = vector.broadcast %197 : vector<1x1x16xf32> to vector<8x8x16xf32>
    %199 = arith.mulf %182, %198 : vector<8x8x16xf32>
    %200 = arith.addf %181, %199 : vector<8x8x16xf32>
    %201 = vector.shape_cast %188 : vector<8x8x16xf32> to vector<64x16xf32>
    %c0_51 = arith.constant 0 : index
    %c0_52 = arith.constant 0 : index
    %202 = vector.load %arg6[%c0_51, %c0_52] : memref<1x16xf32, #tpu.memory_space<vmem>>, vector<1x16xf32>
    %203 = vector.broadcast %202 : vector<1x16xf32> to vector<64x16xf32>
    %204 = arith.addf %201, %203 : vector<64x16xf32>
    %205 = vector.shape_cast %194 : vector<8x8x16xf32> to vector<64x16xf32>
    %c0_53 = arith.constant 0 : index
    %c0_54 = arith.constant 0 : index
    %206 = vector.load %arg8[%c0_53, %c0_54] : memref<1x16xf32, #tpu.memory_space<vmem>>, vector<1x16xf32>
    %207 = vector.broadcast %206 : vector<1x16xf32> to vector<64x16xf32>
    %208 = arith.addf %205, %207 : vector<64x16xf32>
    %209 = vector.shape_cast %200 : vector<8x8x16xf32> to vector<64x16xf32>
    %c0_55 = arith.constant 0 : index
    %c0_56 = arith.constant 0 : index
    %210 = vector.load %arg10[%c0_55, %c0_56] : memref<1x16xf32, #tpu.memory_space<vmem>>, vector<1x16xf32>
    %211 = vector.broadcast %210 : vector<1x16xf32> to vector<64x16xf32>
    %212 = arith.addf %209, %211 : vector<64x16xf32>
    %c0_57 = arith.constant 0 : index
    %c0_58 = arith.constant 0 : index
    %213 = vector.load %arg2[%c0_57, %c0_58] : memref<16x64xbf16, #tpu.memory_space<vmem>>, vector<16x64xbf16>
    %214 = arith.truncf %208 : vector<64x16xf32> to vector<64x16xbf16>
    %cst_59 = arith.constant dense<0.000000e+00> : vector<16x16xf32>
    %215 = tpu.matmul %213, %214, %cst_59 {dimension_numbers = #tpu.dot_dimension_numbers<[1], [0], [0], [1], [0, 0, 1, 1], [], []>} : vector<16x64xbf16>, vector<64x16xbf16>, vector<16x16xf32> -> vector<16x16xf32>
    %216 = arith.truncf %212 : vector<64x16xf32> to vector<64x16xbf16>
    %cst_60 = arith.constant dense<0.000000e+00> : vector<16x16xf32>
    %217 = tpu.matmul %213, %216, %cst_60 {dimension_numbers = #tpu.dot_dimension_numbers<[1], [0], [0], [1], [0, 0, 1, 1], [], []>} : vector<16x64xbf16>, vector<64x16xbf16>, vector<16x16xf32> -> vector<16x16xf32>
    %c0_61 = arith.constant 0 : index
    %c0_62 = arith.constant 0 : index
    %218 = vector.load %arg27[%c0_61, %c0_62] : memref<64x16xf32, #tpu.memory_space<vmem>>, vector<64x16xf32>
    tpu.vector_store %arg27[%c0_61, %c0_62], %204 {strides = array<i32>} : memref<64x16xf32, #tpu.memory_space<vmem>>, vector<64x16xf32>,
    %c0_63 = arith.constant 0 : index
    %c0_64 = arith.constant 0 : index
    %219 = vector.load %arg28[%c0_63, %c0_64] : memref<16x16xf32, #tpu.memory_space<vmem>>, vector<16x16xf32>
    tpu.vector_store %arg28[%c0_63, %c0_64], %215 {strides = array<i32>} : memref<16x16xf32, #tpu.memory_space<vmem>>, vector<16x16xf32>,
    %c0_65 = arith.constant 0 : index
    %c0_66 = arith.constant 0 : index
    %220 = vector.load %arg29[%c0_65, %c0_66] : memref<16x16xf32, #tpu.memory_space<vmem>>, vector<16x16xf32>
    tpu.vector_store %arg29[%c0_65, %c0_66], %217 {strides = array<i32>} : memref<16x16xf32, #tpu.memory_space<vmem>>, vector<16x16xf32>,
    %c0_67 = arith.constant 0 : index
    %c0_68 = arith.constant 0 : index
    %221 = vector.load %arg27[%c0_67, %c0_68] : memref<64x16xf32, #tpu.memory_space<vmem>>, vector<64x16xf32>
    %c0_69 = arith.constant 0 : index
    %c0_70 = arith.constant 0 : index
    %222 = vector.load %arg28[%c0_69, %c0_70] : memref<16x16xf32, #tpu.memory_space<vmem>>, vector<16x16xf32>
    %c0_71 = arith.constant 0 : index
    %c0_72 = arith.constant 0 : index
    %223 = vector.load %arg29[%c0_71, %c0_72] : memref<16x16xf32, #tpu.memory_space<vmem>>, vector<16x16xf32>
    %224 = arith.truncf %221 : vector<64x16xf32> to vector<64x16xbf16>
    %c0_73 = arith.constant 0 : index
    %c0_74 = arith.constant 0 : index
    %225 = vector.load %arg11[%c0_73, %c0_74] : memref<16x16xbf16, #tpu.memory_space<vmem>>, vector<16x16xbf16>
    %cst_75 = arith.constant dense<0.000000e+00> : vector<64x16xf32>
    %226 = tpu.matmul %224, %225, %cst_75 {dimension_numbers = #tpu.dot_dimension_numbers<[1], [0], [0], [1], [0, 0, 1, 1], [], []>} : vector<64x16xbf16>, vector<16x16xbf16>, vector<64x16xf32> -> vector<64x16xf32>
    %c0_76 = arith.constant 0 : index
    %c0_77 = arith.constant 0 : index
    %227 = vector.load %arg12[%c0_76, %c0_77] : memref<1x16xf32, #tpu.memory_space<vmem>>, vector<1x16xf32>
    %228 = vector.broadcast %227 : vector<1x16xf32> to vector<64x16xf32>
    %229 = arith.addf %226, %228 : vector<64x16xf32>
    %230 = arith.truncf %222 : vector<16x16xf32> to vector<16x16xbf16>
    %c0_78 = arith.constant 0 : index
    %c0_79 = arith.constant 0 : index
    %231 = vector.load %arg13[%c0_78, %c0_79] : memref<16x16xbf16, #tpu.memory_space<vmem>>, vector<16x16xbf16>
    %cst_80 = arith.constant dense<0.000000e+00> : vector<16x16xf32>
    %232 = tpu.matmul %230, %231, %cst_80 {dimension_numbers = #tpu.dot_dimension_numbers<[1], [0], [0], [1], [0, 0, 1, 1], [], []>} : vector<16x16xbf16>, vector<16x16xbf16>, vector<16x16xf32> -> vector<16x16xf32>
    %c0_81 = arith.constant 0 : index
    %c0_82 = arith.constant 0 : index
    %233 = vector.load %arg14[%c0_81, %c0_82] : memref<1x16xf32, #tpu.memory_space<vmem>>, vector<1x16xf32>
    %234 = vector.broadcast %233 : vector<1x16xf32> to vector<16x16xf32>
    %235 = arith.addf %232, %234 : vector<16x16xf32>
    %236 = arith.truncf %223 : vector<16x16xf32> to vector<16x16xbf16>
    %c0_83 = arith.constant 0 : index
    %c0_84 = arith.constant 0 : index
    %237 = vector.load %arg15[%c0_83, %c0_84] : memref<16x16xbf16, #tpu.memory_space<vmem>>, vector<16x16xbf16>
    %cst_85 = arith.constant dense<0.000000e+00> : vector<16x16xf32>
    %238 = tpu.matmul %236, %237, %cst_85 {dimension_numbers = #tpu.dot_dimension_numbers<[1], [0], [0], [1], [0, 0, 1, 1], [], []>} : vector<16x16xbf16>, vector<16x16xbf16>, vector<16x16xf32> -> vector<16x16xf32>
    %c0_86 = arith.constant 0 : index
    %c0_87 = arith.constant 0 : index
    %239 = vector.load %arg16[%c0_86, %c0_87] : memref<1x16xf32, #tpu.memory_space<vmem>>, vector<1x16xf32>
    %240 = vector.broadcast %239 : vector<1x16xf32> to vector<16x16xf32>
    %241 = arith.addf %238, %240 : vector<16x16xf32>
    %242 = arith.truncf %229 : vector<64x16xf32> to vector<64x16xbf16>
    %243 = arith.truncf %235 : vector<16x16xf32> to vector<16x16xbf16>
    %cst_88 = arith.constant dense<0.000000e+00> : vector<64x16xf32>
    %244 = tpu.matmul %242, %243, %cst_88 {dimension_numbers = #tpu.dot_dimension_numbers<[1], [1], [0], [0], [0, 0, 1, 0], [], []>} : vector<64x16xbf16>, vector<16x16xbf16>, vector<64x16xf32> -> vector<64x16xf32>
    %cst_89 = arith.constant dense<0xFF800000> : vector<64xf32>
    %245 = vector.multi_reduction <maximumf>, %244, %cst_89 [1] : vector<64x16xf32> to vector<64xf32>
    %246 = vector.shape_cast %245 : vector<64xf32> to vector<64x1xf32>
    %247 = vector.broadcast %246 : vector<64x1xf32> to vector<64x16xf32>
    %248 = arith.subf %244, %247 : vector<64x16xf32>
    %249 = math.exp %248 : vector<64x16xf32>
    %cst_90 = arith.constant dense<0.000000e+00> : vector<64xf32>
    %250 = vector.multi_reduction <add>, %249, %cst_90 [1] : vector<64x16xf32> to vector<64xf32>
    %251 = vector.shape_cast %250 : vector<64xf32> to vector<64x1xf32>
    %252 = tpu.reciprocal %251 {approx = true} : vector<64x1xf32> -> vector<64x1xf32>
    %253 = vector.broadcast %252 : vector<64x1xf32> to vector<64x16xf32>
    %254 = arith.mulf %249, %253 : vector<64x16xf32>
    %255 = arith.truncf %254 : vector<64x16xf32> to vector<64x16xbf16>
    %256 = arith.truncf %241 : vector<16x16xf32> to vector<16x16xbf16>
    %cst_91 = arith.constant dense<0.000000e+00> : vector<64x16xf32>
    %257 = tpu.matmul %255, %256, %cst_91 {dimension_numbers = #tpu.dot_dimension_numbers<[1], [0], [0], [1], [0, 0, 1, 1], [], []>} : vector<64x16xbf16>, vector<16x16xbf16>, vector<64x16xf32> -> vector<64x16xf32>
    %258 = arith.truncf %257 : vector<64x16xf32> to vector<64x16xbf16>
    %c0_92 = arith.constant 0 : index
    %c0_93 = arith.constant 0 : index
    %259 = vector.load %arg17[%c0_92, %c0_93] : memref<16x16xbf16, #tpu.memory_space<vmem>>, vector<16x16xbf16>
    %cst_94 = arith.constant dense<0.000000e+00> : vector<64x16xf32>
    %260 = tpu.matmul %258, %259, %cst_94 {dimension_numbers = #tpu.dot_dimension_numbers<[1], [0], [0], [1], [0, 0, 1, 1], [], []>} : vector<64x16xbf16>, vector<16x16xbf16>, vector<64x16xf32> -> vector<64x16xf32>
    %c0_95 = arith.constant 0 : index
    %c0_96 = arith.constant 0 : index
    %261 = vector.load %arg18[%c0_95, %c0_96] : memref<1x16xf32, #tpu.memory_space<vmem>>, vector<1x16xf32>
    %262 = vector.broadcast %261 : vector<1x16xf32> to vector<64x16xf32>
    %263 = arith.addf %260, %262 : vector<64x16xf32>
    %264 = arith.addf %1, %263 : vector<64x16xf32>
    %c0_97 = arith.constant 0 : index
    %c0_98 = arith.constant 0 : index
    %265 = vector.load %arg19[%c0_97, %c0_98] : memref<1x16xf32, #tpu.memory_space<vmem>>, vector<1x16xf32>
    %c0_99 = arith.constant 0 : index
    %c0_100 = arith.constant 0 : index
    %266 = vector.load %arg20[%c0_99, %c0_100] : memref<1x16xf32, #tpu.memory_space<vmem>>, vector<1x16xf32>
    %cst_101 = arith.constant dense<0.000000e+00> : vector<64xf32>
    %267 = vector.multi_reduction <add>, %264, %cst_101 [1] : vector<64x16xf32> to vector<64xf32>
    %268 = vector.shape_cast %267 : vector<64xf32> to vector<64x1xf32>
    %cst_102 = arith.constant 1.600000e+01 : f32
    %269 = vector.broadcast %cst_102 : f32 to vector<64x1xf32>
    %270 = arith.divf %268, %269 : vector<64x1xf32>
    %271 = vector.broadcast %270 : vector<64x1xf32> to vector<64x16xf32>
    %272 = arith.subf %264, %271 : vector<64x16xf32>
    %273 = arith.mulf %272, %272 : vector<64x16xf32>
    %cst_103 = arith.constant dense<0.000000e+00> : vector<64xf32>
    %274 = vector.multi_reduction <add>, %273, %cst_103 [1] : vector<64x16xf32> to vector<64xf32>
    %275 = vector.shape_cast %274 : vector<64xf32> to vector<64x1xf32>
    %cst_104 = arith.constant 1.600000e+01 : f32
    %276 = vector.broadcast %cst_104 : f32 to vector<64x1xf32>
    %277 = arith.divf %275, %276 : vector<64x1xf32>
    %278 = vector.broadcast %270 : vector<64x1xf32> to vector<64x16xf32>
    %279 = arith.subf %264, %278 : vector<64x16xf32>
    %cst_105 = arith.constant 9.99999974E-6 : f32
    %280 = vector.broadcast %cst_105 : f32 to vector<64x1xf32>
    %281 = arith.addf %277, %280 : vector<64x1xf32>
    %282 = math.rsqrt %281 : vector<64x1xf32>
    %283 = vector.broadcast %282 : vector<64x1xf32> to vector<64x16xf32>
    %284 = arith.mulf %279, %283 : vector<64x16xf32>
    %285 = vector.broadcast %265 : vector<1x16xf32> to vector<64x16xf32>
    %286 = arith.mulf %284, %285 : vector<64x16xf32>
    %287 = vector.broadcast %266 : vector<1x16xf32> to vector<64x16xf32>
    %288 = arith.addf %286, %287 : vector<64x16xf32>
    %289 = arith.truncf %288 : vector<64x16xf32> to vector<64x16xbf16>
    %c0_106 = arith.constant 0 : index
    %c0_107 = arith.constant 0 : index
    %290 = vector.load %arg21[%c0_106, %c0_107] : memref<16x32xbf16, #tpu.memory_space<vmem>>, vector<16x32xbf16>
    %cst_108 = arith.constant dense<0.000000e+00> : vector<64x32xf32>
    %291 = tpu.matmul %289, %290, %cst_108 {dimension_numbers = #tpu.dot_dimension_numbers<[1], [0], [0], [1], [0, 0, 1, 1], [], []>} : vector<64x16xbf16>, vector<16x32xbf16>, vector<64x32xf32> -> vector<64x32xf32>
    %c0_109 = arith.constant 0 : index
    %c0_110 = arith.constant 0 : index
    %292 = vector.load %arg22[%c0_109, %c0_110] : memref<1x32xf32, #tpu.memory_space<vmem>>, vector<1x32xf32>
    %293 = vector.broadcast %292 : vector<1x32xf32> to vector<64x32xf32>
    %294 = arith.addf %291, %293 : vector<64x32xf32>
    %cst_111 = arith.constant 5.000000e-01 : f32
    %295 = vector.broadcast %cst_111 : f32 to vector<64x32xf32>
    %296 = arith.mulf %295, %294 : vector<64x32xf32>
    %cst_112 = arith.constant 0.707106769 : f32
    %297 = vector.broadcast %cst_112 : f32 to vector<64x32xf32>
    %298 = arith.mulf %294, %297 : vector<64x32xf32>
    %299 = math.erf %298 : vector<64x32xf32>
    %cst_113 = arith.constant 1.000000e+00 : f32
    %300 = vector.broadcast %cst_113 : f32 to vector<64x32xf32>
    %301 = arith.addf %300, %299 : vector<64x32xf32>
    %302 = arith.mulf %296, %301 : vector<64x32xf32>
    %303 = arith.truncf %302 : vector<64x32xf32> to vector<64x32xbf16>
    %c0_114 = arith.constant 0 : index
    %c0_115 = arith.constant 0 : index
    %304 = vector.load %arg23[%c0_114, %c0_115] : memref<32x16xbf16, #tpu.memory_space<vmem>>, vector<32x16xbf16>
    %cst_116 = arith.constant dense<0.000000e+00> : vector<64x16xf32>
    %305 = tpu.matmul %303, %304, %cst_116 {dimension_numbers = #tpu.dot_dimension_numbers<[1], [0], [0], [1], [0, 0, 1, 1], [], []>} : vector<64x32xbf16>, vector<32x16xbf16>, vector<64x16xf32> -> vector<64x16xf32>
    %c0_117 = arith.constant 0 : index
    %c0_118 = arith.constant 0 : index
    %306 = vector.load %arg24[%c0_117, %c0_118] : memref<1x16xf32, #tpu.memory_space<vmem>>, vector<1x16xf32>
    %307 = vector.broadcast %306 : vector<1x16xf32> to vector<64x16xf32>
    %308 = arith.addf %305, %307 : vector<64x16xf32>
    %309 = arith.addf %264, %308 : vector<64x16xf32>
    %c0_119 = arith.constant 0 : index
    %c0_120 = arith.constant 0 : index
    %c0_121 = arith.constant 0 : index
    %310 = vector.load %arg25[%c0_119, %c0_120, %c0_121] : memref<1x64x16xf32, #tpu.memory_space<vmem>>, vector<1x64x16xf32>
    %311 = vector.shape_cast %310 : vector<1x64x16xf32> to vector<64x16xf32>
    %312 = vector.shape_cast %309 : vector<64x16xf32> to vector<1x64x16xf32>
    tpu.vector_store %arg25[%c0_119, %c0_120, %c0_121], %312 {strides = array<i32>} : memref<1x64x16xf32, #tpu.memory_space<vmem>>, vector<1x64x16xf32>,
    return
  }
  func.func @transform_0(%arg0: i32) -> (i32, i32, i32) {
    %c0_i32 = arith.constant 0 : i32
    %c0_i32_0 = arith.constant 0 : i32
    %c0_i32_1 = arith.constant 0 : i32
    return %arg0, %c0_i32, %c0_i32_0 : i32, i32, i32
  }
  func.func @transform_1(%arg0: i32) -> (i32, i32) {
    %c0_i32 = arith.constant 0 : i32
    %c0_i32_0 = arith.constant 0 : i32
    %c0_i32_1 = arith.constant 0 : i32
    return %c0_i32, %c0_i32_0 : i32, i32
  }
  func.func @transform_2(%arg0: i32) -> (i32, i32) {
    %c0_i32 = arith.constant 0 : i32
    %c0_i32_0 = arith.constant 0 : i32
    %c0_i32_1 = arith.constant 0 : i32
    return %c0_i32, %c0_i32_0 : i32, i32
  }
  func.func @transform_3(%arg0: i32) -> (i32, i32) {
    %c0_i32 = arith.constant 0 : i32
    %c0_i32_0 = arith.constant 0 : i32
    %c0_i32_1 = arith.constant 0 : i32
    return %c0_i32, %c0_i32_0 : i32, i32
  }
  func.func @transform_4(%arg0: i32) -> (i32, i32, i32) {
    %c0_i32 = arith.constant 0 : i32
    %c0_i32_0 = arith.constant 0 : i32
    %c0_i32_1 = arith.constant 0 : i32
    %c0_i32_2 = arith.constant 0 : i32
    return %c0_i32, %c0_i32_0, %c0_i32_1 : i32, i32, i32
  }
  func.func @transform_5(%arg0: i32) -> (i32, i32) {
    %c0_i32 = arith.constant 0 : i32
    %c0_i32_0 = arith.constant 0 : i32
    %c0_i32_1 = arith.constant 0 : i32
    return %c0_i32, %c0_i32_0 : i32, i32
  }
  func.func @transform_6(%arg0: i32) -> (i32, i32, i32) {
    %c0_i32 = arith.constant 0 : i32
    %c0_i32_0 = arith.constant 0 : i32
    %c0_i32_1 = arith.constant 0 : i32
    %c0_i32_2 = arith.constant 0 : i32
    return %c0_i32, %c0_i32_0, %c0_i32_1 : i32, i32, i32
  }
  func.func @transform_7(%arg0: i32) -> (i32, i32) {
    %c0_i32 = arith.constant 0 : i32
    %c0_i32_0 = arith.constant 0 : i32
    %c0_i32_1 = arith.constant 0 : i32
    return %c0_i32, %c0_i32_0 : i32, i32
  }
  func.func @transform_8(%arg0: i32) -> (i32, i32, i32) {
    %c0_i32 = arith.constant 0 : i32
    %c0_i32_0 = arith.constant 0 : i32
    %c0_i32_1 = arith.constant 0 : i32
    %c0_i32_2 = arith.constant 0 : i32
    return %c0_i32, %c0_i32_0, %c0_i32_1 : i32, i32, i32
  }
  func.func @transform_9(%arg0: i32) -> (i32, i32) {
    %c0_i32 = arith.constant 0 : i32
    %c0_i32_0 = arith.constant 0 : i32
    %c0_i32_1 = arith.constant 0 : i32
    return %c0_i32, %c0_i32_0 : i32, i32
  }
  func.func @transform_10(%arg0: i32) -> (i32, i32) {
    %c0_i32 = arith.constant 0 : i32
    %c0_i32_0 = arith.constant 0 : i32
    %c0_i32_1 = arith.constant 0 : i32
    return %c0_i32, %c0_i32_0 : i32, i32
  }
  func.func @transform_11(%arg0: i32) -> (i32, i32) {
    %c0_i32 = arith.constant 0 : i32
    %c0_i32_0 = arith.constant 0 : i32
    %c0_i32_1 = arith.constant 0 : i32
    return %c0_i32, %c0_i32_0 : i32, i32
  }
  func.func @transform_12(%arg0: i32) -> (i32, i32) {
    %c0_i32 = arith.constant 0 : i32
    %c0_i32_0 = arith.constant 0 : i32
    %c0_i32_1 = arith.constant 0 : i32
    return %c0_i32, %c0_i32_0 : i32, i32
  }
  func.func @transform_13(%arg0: i32) -> (i32, i32) {
    %c0_i32 = arith.constant 0 : i32
    %c0_i32_0 = arith.constant 0 : i32
    %c0_i32_1 = arith.constant 0 : i32
    return %c0_i32, %c0_i32_0 : i32, i32
  }
  func.func @transform_14(%arg0: i32) -> (i32, i32) {
    %c0_i32 = arith.constant 0 : i32
    %c0_i32_0 = arith.constant 0 : i32
    %c0_i32_1 = arith.constant 0 : i32
    return %c0_i32, %c0_i32_0 : i32, i32
  }
  func.func @transform_15(%arg0: i32) -> (i32, i32) {
    %c0_i32 = arith.constant 0 : i32
    %c0_i32_0 = arith.constant 0 : i32
    %c0_i32_1 = arith.constant 0 : i32
    return %c0_i32, %c0_i32_0 : i32, i32
  }
  func.func @transform_16(%arg0: i32) -> (i32, i32) {
    %c0_i32 = arith.constant 0 : i32
    %c0_i32_0 = arith.constant 0 : i32
    %c0_i32_1 = arith.constant 0 : i32
    return %c0_i32, %c0_i32_0 : i32, i32
  }
  func.func @transform_17(%arg0: i32) -> (i32, i32) {
    %c0_i32 = arith.constant 0 : i32
    %c0_i32_0 = arith.constant 0 : i32
    %c0_i32_1 = arith.constant 0 : i32
    return %c0_i32, %c0_i32_0 : i32, i32
  }
  func.func @transform_18(%arg0: i32) -> (i32, i32) {
    %c0_i32 = arith.constant 0 : i32
    %c0_i32_0 = arith.constant 0 : i32
    %c0_i32_1 = arith.constant 0 : i32
    return %c0_i32, %c0_i32_0 : i32, i32
  }
  func.func @transform_19(%arg0: i32) -> (i32, i32) {
    %c0_i32 = arith.constant 0 : i32
    %c0_i32_0 = arith.constant 0 : i32
    %c0_i32_1 = arith.constant 0 : i32
    return %c0_i32, %c0_i32_0 : i32, i32
  }
  func.func @transform_20(%arg0: i32) -> (i32, i32) {
    %c0_i32 = arith.constant 0 : i32
    %c0_i32_0 = arith.constant 0 : i32
    %c0_i32_1 = arith.constant 0 : i32
    return %c0_i32, %c0_i32_0 : i32, i32
  }
  func.func @transform_21(%arg0: i32) -> (i32, i32) {
    %c0_i32 = arith.constant 0 : i32
    %c0_i32_0 = arith.constant 0 : i32
    %c0_i32_1 = arith.constant 0 : i32
    return %c0_i32, %c0_i32_0 : i32, i32
  }
  func.func @transform_22(%arg0: i32) -> (i32, i32) {
    %c0_i32 = arith.constant 0 : i32
    %c0_i32_0 = arith.constant 0 : i32
    %c0_i32_1 = arith.constant 0 : i32
    return %c0_i32, %c0_i32_0 : i32, i32
  }
  func.func @transform_23(%arg0: i32) -> (i32, i32) {
    %c0_i32 = arith.constant 0 : i32
    %c0_i32_0 = arith.constant 0 : i32
    %c0_i32_1 = arith.constant 0 : i32
    return %c0_i32, %c0_i32_0 : i32, i32
  }
  func.func @transform_24(%arg0: i32) -> (i32, i32, i32) {
    %c0_i32 = arith.constant 0 : i32
    %c0_i32_0 = arith.constant 0 : i32
    %c0_i32_1 = arith.constant 0 : i32
    return %arg0, %c0_i32, %c0_i32_0 : i32, i32, i32
  }
}

module attributes {stable_mosaic.version = 11 : i64} {
  func.func @_embed_kernel(%arg0: i32, %arg1: memref<32x144xbf16, #tpu.memory_space<vmem>>, %arg2: memref<144x32xbf16, #tpu.memory_space<vmem>>, %arg3: memref<1x32xf32, #tpu.memory_space<vmem>>, %arg4: memref<1x32xf32, #tpu.memory_space<vmem>>, %arg5: memref<1x32xf32, #tpu.memory_space<vmem>>, %arg6: memref<32x32xf32, #tpu.memory_space<vmem>>) attributes {dimension_semantics = [#tpu.dimension_semantics<parallel>], iteration_bounds = array<i64: 1>, scalar_prefetch = 0 : i64, scratch_operands = 0 : i64, tpu.core_type = #tpu.core_type<tc>, window_params = [{transform_indices = @transform_0, window_bounds = array<i64: 32, 144>}, {pipeline_mode = #tpu.pipeline_mode<synchronous>, transform_indices = @transform_1, window_bounds = array<i64: 144, 32>}, {pipeline_mode = #tpu.pipeline_mode<synchronous>, transform_indices = @transform_2, window_bounds = array<i64: 1, 32>}, {pipeline_mode = #tpu.pipeline_mode<synchronous>, transform_indices = @transform_3, window_bounds = array<i64: 1, 32>}, {pipeline_mode = #tpu.pipeline_mode<synchronous>, transform_indices = @transform_4, window_bounds = array<i64: 1, 32>}, {transform_indices = @transform_5, window_bounds = array<i64: 32, 32>}]} {
    %c0 = arith.constant 0 : index
    %c0_0 = arith.constant 0 : index
    %0 = vector.load %arg1[%c0, %c0_0] : memref<32x144xbf16, #tpu.memory_space<vmem>>, vector<32x144xbf16>
    %c0_1 = arith.constant 0 : index
    %c0_2 = arith.constant 0 : index
    %1 = vector.load %arg2[%c0_1, %c0_2] : memref<144x32xbf16, #tpu.memory_space<vmem>>, vector<144x32xbf16>
    %cst = arith.constant dense<0.000000e+00> : vector<32x32xf32>
    %2 = tpu.matmul %0, %1, %cst {dimension_numbers = #tpu.dot_dimension_numbers<[1], [0], [0], [1], [0, 0, 1, 1], [], []>} : vector<32x144xbf16>, vector<144x32xbf16>, vector<32x32xf32> -> vector<32x32xf32>
    %c0_3 = arith.constant 0 : index
    %c0_4 = arith.constant 0 : index
    %3 = vector.load %arg3[%c0_3, %c0_4] : memref<1x32xf32, #tpu.memory_space<vmem>>, vector<1x32xf32>
    %4 = vector.broadcast %3 : vector<1x32xf32> to vector<32x32xf32>
    %5 = arith.addf %2, %4 : vector<32x32xf32>
    %c0_5 = arith.constant 0 : index
    %c0_6 = arith.constant 0 : index
    %6 = vector.load %arg4[%c0_5, %c0_6] : memref<1x32xf32, #tpu.memory_space<vmem>>, vector<1x32xf32>
    %c0_7 = arith.constant 0 : index
    %c0_8 = arith.constant 0 : index
    %7 = vector.load %arg5[%c0_7, %c0_8] : memref<1x32xf32, #tpu.memory_space<vmem>>, vector<1x32xf32>
    %cst_9 = arith.constant dense<0.000000e+00> : vector<32xf32>
    %8 = vector.multi_reduction <add>, %5, %cst_9 [1] : vector<32x32xf32> to vector<32xf32>
    %9 = vector.shape_cast %8 : vector<32xf32> to vector<32x1xf32>
    %cst_10 = arith.constant 3.200000e+01 : f32
    %10 = vector.broadcast %cst_10 : f32 to vector<32x1xf32>
    %11 = arith.divf %9, %10 : vector<32x1xf32>
    %12 = vector.broadcast %11 : vector<32x1xf32> to vector<32x32xf32>
    %13 = arith.subf %5, %12 : vector<32x32xf32>
    %14 = arith.mulf %13, %13 : vector<32x32xf32>
    %cst_11 = arith.constant dense<0.000000e+00> : vector<32xf32>
    %15 = vector.multi_reduction <add>, %14, %cst_11 [1] : vector<32x32xf32> to vector<32xf32>
    %16 = vector.shape_cast %15 : vector<32xf32> to vector<32x1xf32>
    %cst_12 = arith.constant 3.200000e+01 : f32
    %17 = vector.broadcast %cst_12 : f32 to vector<32x1xf32>
    %18 = arith.divf %16, %17 : vector<32x1xf32>
    %19 = vector.broadcast %11 : vector<32x1xf32> to vector<32x32xf32>
    %20 = arith.subf %5, %19 : vector<32x32xf32>
    %cst_13 = arith.constant 9.99999974E-6 : f32
    %21 = vector.broadcast %cst_13 : f32 to vector<32x1xf32>
    %22 = arith.addf %18, %21 : vector<32x1xf32>
    %23 = math.rsqrt %22 : vector<32x1xf32>
    %24 = vector.broadcast %23 : vector<32x1xf32> to vector<32x32xf32>
    %25 = arith.mulf %20, %24 : vector<32x32xf32>
    %26 = vector.broadcast %6 : vector<1x32xf32> to vector<32x32xf32>
    %27 = arith.mulf %25, %26 : vector<32x32xf32>
    %28 = vector.broadcast %7 : vector<1x32xf32> to vector<32x32xf32>
    %29 = arith.addf %27, %28 : vector<32x32xf32>
    %c0_14 = arith.constant 0 : index
    %c0_15 = arith.constant 0 : index
    %30 = vector.load %arg6[%c0_14, %c0_15] : memref<32x32xf32, #tpu.memory_space<vmem>>, vector<32x32xf32>
    tpu.vector_store %arg6[%c0_14, %c0_15], %29 {strides = array<i32>} : memref<32x32xf32, #tpu.memory_space<vmem>>, vector<32x32xf32>,
    return
  }
  func.func @transform_0(%arg0: i32) -> (i32, i32) {
    %c0_i32 = arith.constant 0 : i32
    %c0_i32_0 = arith.constant 0 : i32
    return %arg0, %c0_i32 : i32, i32
  }
  func.func @transform_1(%arg0: i32) -> (i32, i32) {
    %c0_i32 = arith.constant 0 : i32
    %c0_i32_0 = arith.constant 0 : i32
    %c0_i32_1 = arith.constant 0 : i32
    return %c0_i32, %c0_i32_0 : i32, i32
  }
  func.func @transform_2(%arg0: i32) -> (i32, i32) {
    %c0_i32 = arith.constant 0 : i32
    %c0_i32_0 = arith.constant 0 : i32
    %c0_i32_1 = arith.constant 0 : i32
    return %c0_i32, %c0_i32_0 : i32, i32
  }
  func.func @transform_3(%arg0: i32) -> (i32, i32) {
    %c0_i32 = arith.constant 0 : i32
    %c0_i32_0 = arith.constant 0 : i32
    %c0_i32_1 = arith.constant 0 : i32
    return %c0_i32, %c0_i32_0 : i32, i32
  }
  func.func @transform_4(%arg0: i32) -> (i32, i32) {
    %c0_i32 = arith.constant 0 : i32
    %c0_i32_0 = arith.constant 0 : i32
    %c0_i32_1 = arith.constant 0 : i32
    return %c0_i32, %c0_i32_0 : i32, i32
  }
  func.func @transform_5(%arg0: i32) -> (i32, i32) {
    %c0_i32 = arith.constant 0 : i32
    %c0_i32_0 = arith.constant 0 : i32
    return %arg0, %c0_i32 : i32, i32
  }
}

module attributes {stable_mosaic.version = 11 : i64} {
  func.func @_head_kernel(%arg0: memref<2x1x32xf32, #tpu.memory_space<vmem>>, %arg1: memref<1x1x32xf32, #tpu.memory_space<vmem>>, %arg2: memref<1x1x32xf32, #tpu.memory_space<vmem>>, %arg3: memref<32x10xbf16, #tpu.memory_space<vmem>>, %arg4: memref<1x10xf32, #tpu.memory_space<vmem>>, %arg5: memref<2x10xf32, #tpu.memory_space<vmem>>) attributes {dimension_semantics = [], scalar_prefetch = 0 : i64, scratch_operands = 0 : i64, tpu.core_type = #tpu.core_type<tc>} {
    %c0 = arith.constant 0 : index
    %c0_0 = arith.constant 0 : index
    %c0_1 = arith.constant 0 : index
    %0 = vector.load %arg0[%c0, %c0_0, %c0_1] : memref<2x1x32xf32, #tpu.memory_space<vmem>>, vector<2x1x32xf32>
    %c0_2 = arith.constant 0 : index
    %c0_3 = arith.constant 0 : index
    %c0_4 = arith.constant 0 : index
    %1 = vector.load %arg1[%c0_2, %c0_3, %c0_4] : memref<1x1x32xf32, #tpu.memory_space<vmem>>, vector<1x1x32xf32>
    %c0_5 = arith.constant 0 : index
    %c0_6 = arith.constant 0 : index
    %c0_7 = arith.constant 0 : index
    %2 = vector.load %arg2[%c0_5, %c0_6, %c0_7] : memref<1x1x32xf32, #tpu.memory_space<vmem>>, vector<1x1x32xf32>
    %cst = arith.constant dense<0.000000e+00> : vector<2x1xf32>
    %3 = vector.multi_reduction <add>, %0, %cst [2] : vector<2x1x32xf32> to vector<2x1xf32>
    %4 = vector.shape_cast %3 : vector<2x1xf32> to vector<2x1x1xf32>
    %cst_8 = arith.constant 3.200000e+01 : f32
    %5 = vector.broadcast %cst_8 : f32 to vector<2x1x1xf32>
    %6 = arith.divf %4, %5 : vector<2x1x1xf32>
    %7 = vector.broadcast %6 : vector<2x1x1xf32> to vector<2x1x32xf32>
    %8 = arith.subf %0, %7 : vector<2x1x32xf32>
    %9 = arith.mulf %8, %8 : vector<2x1x32xf32>
    %cst_9 = arith.constant dense<0.000000e+00> : vector<2x1xf32>
    %10 = vector.multi_reduction <add>, %9, %cst_9 [2] : vector<2x1x32xf32> to vector<2x1xf32>
    %11 = vector.shape_cast %10 : vector<2x1xf32> to vector<2x1x1xf32>
    %cst_10 = arith.constant 3.200000e+01 : f32
    %12 = vector.broadcast %cst_10 : f32 to vector<2x1x1xf32>
    %13 = arith.divf %11, %12 : vector<2x1x1xf32>
    %14 = vector.broadcast %6 : vector<2x1x1xf32> to vector<2x1x32xf32>
    %15 = arith.subf %0, %14 : vector<2x1x32xf32>
    %cst_11 = arith.constant 9.99999974E-6 : f32
    %16 = vector.broadcast %cst_11 : f32 to vector<2x1x1xf32>
    %17 = arith.addf %13, %16 : vector<2x1x1xf32>
    %18 = math.rsqrt %17 : vector<2x1x1xf32>
    %19 = vector.broadcast %18 : vector<2x1x1xf32> to vector<2x1x32xf32>
    %20 = arith.mulf %15, %19 : vector<2x1x32xf32>
    %21 = vector.broadcast %1 : vector<1x1x32xf32> to vector<2x1x32xf32>
    %22 = arith.mulf %20, %21 : vector<2x1x32xf32>
    %23 = vector.broadcast %2 : vector<1x1x32xf32> to vector<2x1x32xf32>
    %24 = arith.addf %22, %23 : vector<2x1x32xf32>
    %cst_12 = arith.constant dense<0.000000e+00> : vector<2x32xf32>
    %25 = vector.multi_reduction <add>, %24, %cst_12 [1] : vector<2x1x32xf32> to vector<2x32xf32>
    %cst_13 = arith.constant 1.000000e+00 : f32
    %26 = vector.broadcast %cst_13 : f32 to vector<2x32xf32>
    %27 = arith.divf %25, %26 : vector<2x32xf32>
    %28 = arith.truncf %27 : vector<2x32xf32> to vector<2x32xbf16>
    %c0_14 = arith.constant 0 : index
    %c0_15 = arith.constant 0 : index
    %29 = vector.load %arg3[%c0_14, %c0_15] : memref<32x10xbf16, #tpu.memory_space<vmem>>, vector<32x10xbf16>
    %cst_16 = arith.constant dense<0.000000e+00> : vector<2x10xf32>
    %30 = tpu.matmul %28, %29, %cst_16 {dimension_numbers = #tpu.dot_dimension_numbers<[1], [0], [0], [1], [0, 0, 1, 1], [], []>} : vector<2x32xbf16>, vector<32x10xbf16>, vector<2x10xf32> -> vector<2x10xf32>
    %c0_17 = arith.constant 0 : index
    %c0_18 = arith.constant 0 : index
    %31 = vector.load %arg4[%c0_17, %c0_18] : memref<1x10xf32, #tpu.memory_space<vmem>>, vector<1x10xf32>
    %32 = vector.broadcast %31 : vector<1x10xf32> to vector<2x10xf32>
    %33 = arith.addf %30, %32 : vector<2x10xf32>
    %c0_19 = arith.constant 0 : index
    %c0_20 = arith.constant 0 : index
    %34 = vector.load %arg5[%c0_19, %c0_20] : memref<2x10xf32, #tpu.memory_space<vmem>>, vector<2x10xf32>
    tpu.vector_store %arg5[%c0_19, %c0_20], %33 {strides = array<i32>} : memref<2x10xf32, #tpu.memory_space<vmem>>, vector<2x10xf32>,
    return
  }
}

module attributes {stable_mosaic.version = 11 : i64} {
  func.func @_block_kernel(%arg0: i32, %arg1: memref<1x17x32xf32, #tpu.memory_space<vmem>>, %arg2: memref<4x16xbf16, #tpu.memory_space<vmem>>, %arg3: memref<1x32xf32, #tpu.memory_space<vmem>>, %arg4: memref<1x32xf32, #tpu.memory_space<vmem>>, %arg5: memref<9x1x32xf32, #tpu.memory_space<vmem>>, %arg6: memref<1x32xf32, #tpu.memory_space<vmem>>, %arg7: memref<9x1x32xf32, #tpu.memory_space<vmem>>, %arg8: memref<1x32xf32, #tpu.memory_space<vmem>>, %arg9: memref<9x1x32xf32, #tpu.memory_space<vmem>>, %arg10: memref<1x32xf32, #tpu.memory_space<vmem>>, %arg11: memref<32x32xbf16, #tpu.memory_space<vmem>>, %arg12: memref<1x32xf32, #tpu.memory_space<vmem>>, %arg13: memref<32x32xbf16, #tpu.memory_space<vmem>>, %arg14: memref<1x32xf32, #tpu.memory_space<vmem>>, %arg15: memref<32x32xbf16, #tpu.memory_space<vmem>>, %arg16: memref<1x32xf32, #tpu.memory_space<vmem>>, %arg17: memref<32x32xbf16, #tpu.memory_space<vmem>>, %arg18: memref<1x32xf32, #tpu.memory_space<vmem>>, %arg19: memref<1x32xf32, #tpu.memory_space<vmem>>, %arg20: memref<1x32xf32, #tpu.memory_space<vmem>>, %arg21: memref<32x64xbf16, #tpu.memory_space<vmem>>, %arg22: memref<1x64xf32, #tpu.memory_space<vmem>>, %arg23: memref<64x32xbf16, #tpu.memory_space<vmem>>, %arg24: memref<1x32xf32, #tpu.memory_space<vmem>>, %arg25: memref<1x17x32xf32, #tpu.memory_space<vmem>>, %arg26: memref<6x6x32xf32, #tpu.memory_space<vmem>>, %arg27: memref<17x32xf32, #tpu.memory_space<vmem>>, %arg28: memref<5x32xf32, #tpu.memory_space<vmem>>, %arg29: memref<5x32xf32, #tpu.memory_space<vmem>>) attributes {dimension_semantics = [#tpu.dimension_semantics<parallel>], iteration_bounds = array<i64: 2>, scalar_prefetch = 0 : i64, scratch_operands = 4 : i64, tpu.core_type = #tpu.core_type<tc>, window_params = [{transform_indices = @transform_0, window_bounds = array<i64: 1, 17, 32>}, {pipeline_mode = #tpu.pipeline_mode<synchronous>, transform_indices = @transform_1, window_bounds = array<i64: 4, 16>}, {pipeline_mode = #tpu.pipeline_mode<synchronous>, transform_indices = @transform_2, window_bounds = array<i64: 1, 32>}, {pipeline_mode = #tpu.pipeline_mode<synchronous>, transform_indices = @transform_3, window_bounds = array<i64: 1, 32>}, {pipeline_mode = #tpu.pipeline_mode<synchronous>, transform_indices = @transform_4, window_bounds = array<i64: 9, 1, 32>}, {pipeline_mode = #tpu.pipeline_mode<synchronous>, transform_indices = @transform_5, window_bounds = array<i64: 1, 32>}, {pipeline_mode = #tpu.pipeline_mode<synchronous>, transform_indices = @transform_6, window_bounds = array<i64: 9, 1, 32>}, {pipeline_mode = #tpu.pipeline_mode<synchronous>, transform_indices = @transform_7, window_bounds = array<i64: 1, 32>}, {pipeline_mode = #tpu.pipeline_mode<synchronous>, transform_indices = @transform_8, window_bounds = array<i64: 9, 1, 32>}, {pipeline_mode = #tpu.pipeline_mode<synchronous>, transform_indices = @transform_9, window_bounds = array<i64: 1, 32>}, {pipeline_mode = #tpu.pipeline_mode<synchronous>, transform_indices = @transform_10, window_bounds = array<i64: 32, 32>}, {pipeline_mode = #tpu.pipeline_mode<synchronous>, transform_indices = @transform_11, window_bounds = array<i64: 1, 32>}, {pipeline_mode = #tpu.pipeline_mode<synchronous>, transform_indices = @transform_12, window_bounds = array<i64: 32, 32>}, {pipeline_mode = #tpu.pipeline_mode<synchronous>, transform_indices = @transform_13, window_bounds = array<i64: 1, 32>}, {pipeline_mode = #tpu.pipeline_mode<synchronous>, transform_indices = @transform_14, window_bounds = array<i64: 32, 32>}, {pipeline_mode = #tpu.pipeline_mode<synchronous>, transform_indices = @transform_15, window_bounds = array<i64: 1, 32>}, {pipeline_mode = #tpu.pipeline_mode<synchronous>, transform_indices = @transform_16, window_bounds = array<i64: 32, 32>}, {pipeline_mode = #tpu.pipeline_mode<synchronous>, transform_indices = @transform_17, window_bounds = array<i64: 1, 32>}, {pipeline_mode = #tpu.pipeline_mode<synchronous>, transform_indices = @transform_18, window_bounds = array<i64: 1, 32>}, {pipeline_mode = #tpu.pipeline_mode<synchronous>, transform_indices = @transform_19, window_bounds = array<i64: 1, 32>}, {pipeline_mode = #tpu.pipeline_mode<synchronous>, transform_indices = @transform_20, window_bounds = array<i64: 32, 64>}, {pipeline_mode = #tpu.pipeline_mode<synchronous>, transform_indices = @transform_21, window_bounds = array<i64: 1, 64>}, {pipeline_mode = #tpu.pipeline_mode<synchronous>, transform_indices = @transform_22, window_bounds = array<i64: 64, 32>}, {pipeline_mode = #tpu.pipeline_mode<synchronous>, transform_indices = @transform_23, window_bounds = array<i64: 1, 32>}, {transform_indices = @transform_24, window_bounds = array<i64: 1, 17, 32>}]} {
    %c0 = arith.constant 0 : index
    %c0_0 = arith.constant 0 : index
    %c0_1 = arith.constant 0 : index
    %0 = vector.load %arg1[%c0, %c0_0, %c0_1] : memref<1x17x32xf32, #tpu.memory_space<vmem>>, vector<1x17x32xf32>
    %1 = vector.shape_cast %0 : vector<1x17x32xf32> to vector<17x32xf32>
    %c0_2 = arith.constant 0 : index
    %c0_3 = arith.constant 0 : index
    %2 = vector.load %arg3[%c0_2, %c0_3] : memref<1x32xf32, #tpu.memory_space<vmem>>, vector<1x32xf32>
    %c0_4 = arith.constant 0 : index
    %c0_5 = arith.constant 0 : index
    %3 = vector.load %arg4[%c0_4, %c0_5] : memref<1x32xf32, #tpu.memory_space<vmem>>, vector<1x32xf32>
    %cst = arith.constant dense<0.000000e+00> : vector<17xf32>
    %4 = vector.multi_reduction <add>, %1, %cst [1] : vector<17x32xf32> to vector<17xf32>
    %5 = vector.shape_cast %4 : vector<17xf32> to vector<17x1xf32>
    %cst_6 = arith.constant 3.200000e+01 : f32
    %6 = vector.broadcast %cst_6 : f32 to vector<17x1xf32>
    %7 = arith.divf %5, %6 : vector<17x1xf32>
    %8 = vector.broadcast %7 : vector<17x1xf32> to vector<17x32xf32>
    %9 = arith.subf %1, %8 : vector<17x32xf32>
    %10 = arith.mulf %9, %9 : vector<17x32xf32>
    %cst_7 = arith.constant dense<0.000000e+00> : vector<17xf32>
    %11 = vector.multi_reduction <add>, %10, %cst_7 [1] : vector<17x32xf32> to vector<17xf32>
    %12 = vector.shape_cast %11 : vector<17xf32> to vector<17x1xf32>
    %cst_8 = arith.constant 3.200000e+01 : f32
    %13 = vector.broadcast %cst_8 : f32 to vector<17x1xf32>
    %14 = arith.divf %12, %13 : vector<17x1xf32>
    %15 = vector.broadcast %7 : vector<17x1xf32> to vector<17x32xf32>
    %16 = arith.subf %1, %15 : vector<17x32xf32>
    %cst_9 = arith.constant 9.99999974E-6 : f32
    %17 = vector.broadcast %cst_9 : f32 to vector<17x1xf32>
    %18 = arith.addf %14, %17 : vector<17x1xf32>
    %19 = math.rsqrt %18 : vector<17x1xf32>
    %20 = vector.broadcast %19 : vector<17x1xf32> to vector<17x32xf32>
    %21 = arith.mulf %16, %20 : vector<17x32xf32>
    %22 = vector.broadcast %2 : vector<1x32xf32> to vector<17x32xf32>
    %23 = arith.mulf %21, %22 : vector<17x32xf32>
    %24 = vector.broadcast %3 : vector<1x32xf32> to vector<17x32xf32>
    %25 = arith.addf %23, %24 : vector<17x32xf32>
    %26 = vector.extract_strided_slice %25 {offsets = [1, 0], sizes = [16, 32], strides = [1, 1]} : vector<17x32xf32> to vector<16x32xf32>
    %cst_10 = arith.constant 0.000000e+00 : f32
    %27 = vector.broadcast %cst_10 : f32 to vector<6x6x32xf32>
    %c0_11 = arith.constant 0 : index
    %c0_12 = arith.constant 0 : index
    %c0_13 = arith.constant 0 : index
    %28 = vector.load %arg26[%c0_11, %c0_12, %c0_13] : memref<6x6x32xf32, #tpu.memory_space<vmem>>, vector<6x6x32xf32>
    tpu.vector_store %arg26[%c0_11, %c0_12, %c0_13], %27 {strides = array<i32>} : memref<6x6x32xf32, #tpu.memory_space<vmem>>, vector<6x6x32xf32>,
    %29 = vector.shape_cast %26 : vector<16x32xf32> to vector<4x4x32xf32>
    %c1 = arith.constant 1 : index
    %c1_14 = arith.constant 1 : index
    %c0_15 = arith.constant 0 : index
    %30 = vector.load %arg26[%c1, %c1_14, %c0_15] : memref<6x6x32xf32, #tpu.memory_space<vmem>>, vector<4x4x32xf32>
    tpu.vector_store %arg26[%c1, %c1_14, %c0_15], %29 {strides = array<i32>} : memref<6x6x32xf32, #tpu.memory_space<vmem>>, vector<4x4x32xf32>,
    %c0_16 = arith.constant 0 : index
    %c0_17 = arith.constant 0 : index
    %c0_18 = arith.constant 0 : index
    %31 = vector.load %arg5[%c0_16, %c0_17, %c0_18] : memref<9x1x32xf32, #tpu.memory_space<vmem>>, vector<9x1x32xf32>
    %c0_19 = arith.constant 0 : index
    %c0_20 = arith.constant 0 : index
    %c0_21 = arith.constant 0 : index
    %32 = vector.load %arg7[%c0_19, %c0_20, %c0_21] : memref<9x1x32xf32, #tpu.memory_space<vmem>>, vector<9x1x32xf32>
    %c0_22 = arith.constant 0 : index
    %c0_23 = arith.constant 0 : index
    %c0_24 = arith.constant 0 : index
    %33 = vector.load %arg9[%c0_22, %c0_23, %c0_24] : memref<9x1x32xf32, #tpu.memory_space<vmem>>, vector<9x1x32xf32>
    %c0_25 = arith.constant 0 : index
    %c0_26 = arith.constant 0 : index
    %c0_27 = arith.constant 0 : index
    %34 = vector.load %arg26[%c0_25, %c0_26, %c0_27] : memref<6x6x32xf32, #tpu.memory_space<vmem>>, vector<4x4x32xf32>
    %35 = vector.extract_strided_slice %31 {offsets = [0, 0, 0], sizes = [1, 1, 32], strides = [1, 1, 1]} : vector<9x1x32xf32> to vector<1x1x32xf32>
    %36 = vector.shape_cast %35 : vector<1x1x32xf32> to vector<1x32xf32>
    %37 = vector.shape_cast %36 : vector<1x32xf32> to vector<1x1x32xf32>
    %38 = vector.broadcast %37 : vector<1x1x32xf32> to vector<4x4x32xf32>
    %39 = arith.mulf %34, %38 : vector<4x4x32xf32>
    %40 = vector.extract_strided_slice %32 {offsets = [0, 0, 0], sizes = [1, 1, 32], strides = [1, 1, 1]} : vector<9x1x32xf32> to vector<1x1x32xf32>
    %41 = vector.shape_cast %40 : vector<1x1x32xf32> to vector<1x32xf32>
    %42 = vector.shape_cast %41 : vector<1x32xf32> to vector<1x1x32xf32>
    %43 = vector.broadcast %42 : vector<1x1x32xf32> to vector<4x4x32xf32>
    %44 = arith.mulf %34, %43 : vector<4x4x32xf32>
    %45 = vector.extract_strided_slice %33 {offsets = [0, 0, 0], sizes = [1, 1, 32], strides = [1, 1, 1]} : vector<9x1x32xf32> to vector<1x1x32xf32>
    %46 = vector.shape_cast %45 : vector<1x1x32xf32> to vector<1x32xf32>
    %47 = vector.shape_cast %46 : vector<1x32xf32> to vector<1x1x32xf32>
    %48 = vector.broadcast %47 : vector<1x1x32xf32> to vector<4x4x32xf32>
    %49 = arith.mulf %34, %48 : vector<4x4x32xf32>
    %c0_28 = arith.constant 0 : index
    %c1_29 = arith.constant 1 : index
    %c0_30 = arith.constant 0 : index
    %50 = vector.load %arg26[%c0_28, %c1_29, %c0_30] : memref<6x6x32xf32, #tpu.memory_space<vmem>>, vector<4x4x32xf32>
    %51 = vector.extract_strided_slice %31 {offsets = [1, 0, 0], sizes = [1, 1, 32], strides = [1, 1, 1]} : vector<9x1x32xf32> to vector<1x1x32xf32>
    %52 = vector.shape_cast %51 : vector<1x1x32xf32> to vector<1x32xf32>
    %53 = vector.shape_cast %52 : vector<1x32xf32> to vector<1x1x32xf32>
    %54 = vector.broadcast %53 : vector<1x1x32xf32> to vector<4x4x32xf32>
    %55 = arith.mulf %50, %54 : vector<4x4x32xf32>
    %56 = arith.addf %39, %55 : vector<4x4x32xf32>
    %57 = vector.extract_strided_slice %32 {offsets = [1, 0, 0], sizes = [1, 1, 32], strides = [1, 1, 1]} : vector<9x1x32xf32> to vector<1x1x32xf32>
    %58 = vector.shape_cast %57 : vector<1x1x32xf32> to vector<1x32xf32>
    %59 = vector.shape_cast %58 : vector<1x32xf32> to vector<1x1x32xf32>
    %60 = vector.broadcast %59 : vector<1x1x32xf32> to vector<4x4x32xf32>
    %61 = arith.mulf %50, %60 : vector<4x4x32xf32>
    %62 = arith.addf %44, %61 : vector<4x4x32xf32>
    %63 = vector.extract_strided_slice %33 {offsets = [1, 0, 0], sizes = [1, 1, 32], strides = [1, 1, 1]} : vector<9x1x32xf32> to vector<1x1x32xf32>
    %64 = vector.shape_cast %63 : vector<1x1x32xf32> to vector<1x32xf32>
    %65 = vector.shape_cast %64 : vector<1x32xf32> to vector<1x1x32xf32>
    %66 = vector.broadcast %65 : vector<1x1x32xf32> to vector<4x4x32xf32>
    %67 = arith.mulf %50, %66 : vector<4x4x32xf32>
    %68 = arith.addf %49, %67 : vector<4x4x32xf32>
    %c0_31 = arith.constant 0 : index
    %c2 = arith.constant 2 : index
    %c0_32 = arith.constant 0 : index
    %69 = vector.load %arg26[%c0_31, %c2, %c0_32] : memref<6x6x32xf32, #tpu.memory_space<vmem>>, vector<4x4x32xf32>
    %70 = vector.extract_strided_slice %31 {offsets = [2, 0, 0], sizes = [1, 1, 32], strides = [1, 1, 1]} : vector<9x1x32xf32> to vector<1x1x32xf32>
    %71 = vector.shape_cast %70 : vector<1x1x32xf32> to vector<1x32xf32>
    %72 = vector.shape_cast %71 : vector<1x32xf32> to vector<1x1x32xf32>
    %73 = vector.broadcast %72 : vector<1x1x32xf32> to vector<4x4x32xf32>
    %74 = arith.mulf %69, %73 : vector<4x4x32xf32>
    %75 = arith.addf %56, %74 : vector<4x4x32xf32>
    %76 = vector.extract_strided_slice %32 {offsets = [2, 0, 0], sizes = [1, 1, 32], strides = [1, 1, 1]} : vector<9x1x32xf32> to vector<1x1x32xf32>
    %77 = vector.shape_cast %76 : vector<1x1x32xf32> to vector<1x32xf32>
    %78 = vector.shape_cast %77 : vector<1x32xf32> to vector<1x1x32xf32>
    %79 = vector.broadcast %78 : vector<1x1x32xf32> to vector<4x4x32xf32>
    %80 = arith.mulf %69, %79 : vector<4x4x32xf32>
    %81 = arith.addf %62, %80 : vector<4x4x32xf32>
    %82 = vector.extract_strided_slice %33 {offsets = [2, 0, 0], sizes = [1, 1, 32], strides = [1, 1, 1]} : vector<9x1x32xf32> to vector<1x1x32xf32>
    %83 = vector.shape_cast %82 : vector<1x1x32xf32> to vector<1x32xf32>
    %84 = vector.shape_cast %83 : vector<1x32xf32> to vector<1x1x32xf32>
    %85 = vector.broadcast %84 : vector<1x1x32xf32> to vector<4x4x32xf32>
    %86 = arith.mulf %69, %85 : vector<4x4x32xf32>
    %87 = arith.addf %68, %86 : vector<4x4x32xf32>
    %c1_33 = arith.constant 1 : index
    %c0_34 = arith.constant 0 : index
    %c0_35 = arith.constant 0 : index
    %88 = vector.load %arg26[%c1_33, %c0_34, %c0_35] : memref<6x6x32xf32, #tpu.memory_space<vmem>>, vector<4x4x32xf32>
    %89 = vector.extract_strided_slice %31 {offsets = [3, 0, 0], sizes = [1, 1, 32], strides = [1, 1, 1]} : vector<9x1x32xf32> to vector<1x1x32xf32>
    %90 = vector.shape_cast %89 : vector<1x1x32xf32> to vector<1x32xf32>
    %91 = vector.shape_cast %90 : vector<1x32xf32> to vector<1x1x32xf32>
    %92 = vector.broadcast %91 : vector<1x1x32xf32> to vector<4x4x32xf32>
    %93 = arith.mulf %88, %92 : vector<4x4x32xf32>
    %94 = arith.addf %75, %93 : vector<4x4x32xf32>
    %95 = vector.extract_strided_slice %32 {offsets = [3, 0, 0], sizes = [1, 1, 32], strides = [1, 1, 1]} : vector<9x1x32xf32> to vector<1x1x32xf32>
    %96 = vector.shape_cast %95 : vector<1x1x32xf32> to vector<1x32xf32>
    %97 = vector.shape_cast %96 : vector<1x32xf32> to vector<1x1x32xf32>
    %98 = vector.broadcast %97 : vector<1x1x32xf32> to vector<4x4x32xf32>
    %99 = arith.mulf %88, %98 : vector<4x4x32xf32>
    %100 = arith.addf %81, %99 : vector<4x4x32xf32>
    %101 = vector.extract_strided_slice %33 {offsets = [3, 0, 0], sizes = [1, 1, 32], strides = [1, 1, 1]} : vector<9x1x32xf32> to vector<1x1x32xf32>
    %102 = vector.shape_cast %101 : vector<1x1x32xf32> to vector<1x32xf32>
    %103 = vector.shape_cast %102 : vector<1x32xf32> to vector<1x1x32xf32>
    %104 = vector.broadcast %103 : vector<1x1x32xf32> to vector<4x4x32xf32>
    %105 = arith.mulf %88, %104 : vector<4x4x32xf32>
    %106 = arith.addf %87, %105 : vector<4x4x32xf32>
    %c1_36 = arith.constant 1 : index
    %c1_37 = arith.constant 1 : index
    %c0_38 = arith.constant 0 : index
    %107 = vector.load %arg26[%c1_36, %c1_37, %c0_38] : memref<6x6x32xf32, #tpu.memory_space<vmem>>, vector<4x4x32xf32>
    %108 = vector.extract_strided_slice %31 {offsets = [4, 0, 0], sizes = [1, 1, 32], strides = [1, 1, 1]} : vector<9x1x32xf32> to vector<1x1x32xf32>
    %109 = vector.shape_cast %108 : vector<1x1x32xf32> to vector<1x32xf32>
    %110 = vector.shape_cast %109 : vector<1x32xf32> to vector<1x1x32xf32>
    %111 = vector.broadcast %110 : vector<1x1x32xf32> to vector<4x4x32xf32>
    %112 = arith.mulf %107, %111 : vector<4x4x32xf32>
    %113 = arith.addf %94, %112 : vector<4x4x32xf32>
    %114 = vector.extract_strided_slice %32 {offsets = [4, 0, 0], sizes = [1, 1, 32], strides = [1, 1, 1]} : vector<9x1x32xf32> to vector<1x1x32xf32>
    %115 = vector.shape_cast %114 : vector<1x1x32xf32> to vector<1x32xf32>
    %116 = vector.shape_cast %115 : vector<1x32xf32> to vector<1x1x32xf32>
    %117 = vector.broadcast %116 : vector<1x1x32xf32> to vector<4x4x32xf32>
    %118 = arith.mulf %107, %117 : vector<4x4x32xf32>
    %119 = arith.addf %100, %118 : vector<4x4x32xf32>
    %120 = vector.extract_strided_slice %33 {offsets = [4, 0, 0], sizes = [1, 1, 32], strides = [1, 1, 1]} : vector<9x1x32xf32> to vector<1x1x32xf32>
    %121 = vector.shape_cast %120 : vector<1x1x32xf32> to vector<1x32xf32>
    %122 = vector.shape_cast %121 : vector<1x32xf32> to vector<1x1x32xf32>
    %123 = vector.broadcast %122 : vector<1x1x32xf32> to vector<4x4x32xf32>
    %124 = arith.mulf %107, %123 : vector<4x4x32xf32>
    %125 = arith.addf %106, %124 : vector<4x4x32xf32>
    %c1_39 = arith.constant 1 : index
    %c2_40 = arith.constant 2 : index
    %c0_41 = arith.constant 0 : index
    %126 = vector.load %arg26[%c1_39, %c2_40, %c0_41] : memref<6x6x32xf32, #tpu.memory_space<vmem>>, vector<4x4x32xf32>
    %127 = vector.extract_strided_slice %31 {offsets = [5, 0, 0], sizes = [1, 1, 32], strides = [1, 1, 1]} : vector<9x1x32xf32> to vector<1x1x32xf32>
    %128 = vector.shape_cast %127 : vector<1x1x32xf32> to vector<1x32xf32>
    %129 = vector.shape_cast %128 : vector<1x32xf32> to vector<1x1x32xf32>
    %130 = vector.broadcast %129 : vector<1x1x32xf32> to vector<4x4x32xf32>
    %131 = arith.mulf %126, %130 : vector<4x4x32xf32>
    %132 = arith.addf %113, %131 : vector<4x4x32xf32>
    %133 = vector.extract_strided_slice %32 {offsets = [5, 0, 0], sizes = [1, 1, 32], strides = [1, 1, 1]} : vector<9x1x32xf32> to vector<1x1x32xf32>
    %134 = vector.shape_cast %133 : vector<1x1x32xf32> to vector<1x32xf32>
    %135 = vector.shape_cast %134 : vector<1x32xf32> to vector<1x1x32xf32>
    %136 = vector.broadcast %135 : vector<1x1x32xf32> to vector<4x4x32xf32>
    %137 = arith.mulf %126, %136 : vector<4x4x32xf32>
    %138 = arith.addf %119, %137 : vector<4x4x32xf32>
    %139 = vector.extract_strided_slice %33 {offsets = [5, 0, 0], sizes = [1, 1, 32], strides = [1, 1, 1]} : vector<9x1x32xf32> to vector<1x1x32xf32>
    %140 = vector.shape_cast %139 : vector<1x1x32xf32> to vector<1x32xf32>
    %141 = vector.shape_cast %140 : vector<1x32xf32> to vector<1x1x32xf32>
    %142 = vector.broadcast %141 : vector<1x1x32xf32> to vector<4x4x32xf32>
    %143 = arith.mulf %126, %142 : vector<4x4x32xf32>
    %144 = arith.addf %125, %143 : vector<4x4x32xf32>
    %c2_42 = arith.constant 2 : index
    %c0_43 = arith.constant 0 : index
    %c0_44 = arith.constant 0 : index
    %145 = vector.load %arg26[%c2_42, %c0_43, %c0_44] : memref<6x6x32xf32, #tpu.memory_space<vmem>>, vector<4x4x32xf32>
    %146 = vector.extract_strided_slice %31 {offsets = [6, 0, 0], sizes = [1, 1, 32], strides = [1, 1, 1]} : vector<9x1x32xf32> to vector<1x1x32xf32>
    %147 = vector.shape_cast %146 : vector<1x1x32xf32> to vector<1x32xf32>
    %148 = vector.shape_cast %147 : vector<1x32xf32> to vector<1x1x32xf32>
    %149 = vector.broadcast %148 : vector<1x1x32xf32> to vector<4x4x32xf32>
    %150 = arith.mulf %145, %149 : vector<4x4x32xf32>
    %151 = arith.addf %132, %150 : vector<4x4x32xf32>
    %152 = vector.extract_strided_slice %32 {offsets = [6, 0, 0], sizes = [1, 1, 32], strides = [1, 1, 1]} : vector<9x1x32xf32> to vector<1x1x32xf32>
    %153 = vector.shape_cast %152 : vector<1x1x32xf32> to vector<1x32xf32>
    %154 = vector.shape_cast %153 : vector<1x32xf32> to vector<1x1x32xf32>
    %155 = vector.broadcast %154 : vector<1x1x32xf32> to vector<4x4x32xf32>
    %156 = arith.mulf %145, %155 : vector<4x4x32xf32>
    %157 = arith.addf %138, %156 : vector<4x4x32xf32>
    %158 = vector.extract_strided_slice %33 {offsets = [6, 0, 0], sizes = [1, 1, 32], strides = [1, 1, 1]} : vector<9x1x32xf32> to vector<1x1x32xf32>
    %159 = vector.shape_cast %158 : vector<1x1x32xf32> to vector<1x32xf32>
    %160 = vector.shape_cast %159 : vector<1x32xf32> to vector<1x1x32xf32>
    %161 = vector.broadcast %160 : vector<1x1x32xf32> to vector<4x4x32xf32>
    %162 = arith.mulf %145, %161 : vector<4x4x32xf32>
    %163 = arith.addf %144, %162 : vector<4x4x32xf32>
    %c2_45 = arith.constant 2 : index
    %c1_46 = arith.constant 1 : index
    %c0_47 = arith.constant 0 : index
    %164 = vector.load %arg26[%c2_45, %c1_46, %c0_47] : memref<6x6x32xf32, #tpu.memory_space<vmem>>, vector<4x4x32xf32>
    %165 = vector.extract_strided_slice %31 {offsets = [7, 0, 0], sizes = [1, 1, 32], strides = [1, 1, 1]} : vector<9x1x32xf32> to vector<1x1x32xf32>
    %166 = vector.shape_cast %165 : vector<1x1x32xf32> to vector<1x32xf32>
    %167 = vector.shape_cast %166 : vector<1x32xf32> to vector<1x1x32xf32>
    %168 = vector.broadcast %167 : vector<1x1x32xf32> to vector<4x4x32xf32>
    %169 = arith.mulf %164, %168 : vector<4x4x32xf32>
    %170 = arith.addf %151, %169 : vector<4x4x32xf32>
    %171 = vector.extract_strided_slice %32 {offsets = [7, 0, 0], sizes = [1, 1, 32], strides = [1, 1, 1]} : vector<9x1x32xf32> to vector<1x1x32xf32>
    %172 = vector.shape_cast %171 : vector<1x1x32xf32> to vector<1x32xf32>
    %173 = vector.shape_cast %172 : vector<1x32xf32> to vector<1x1x32xf32>
    %174 = vector.broadcast %173 : vector<1x1x32xf32> to vector<4x4x32xf32>
    %175 = arith.mulf %164, %174 : vector<4x4x32xf32>
    %176 = arith.addf %157, %175 : vector<4x4x32xf32>
    %177 = vector.extract_strided_slice %33 {offsets = [7, 0, 0], sizes = [1, 1, 32], strides = [1, 1, 1]} : vector<9x1x32xf32> to vector<1x1x32xf32>
    %178 = vector.shape_cast %177 : vector<1x1x32xf32> to vector<1x32xf32>
    %179 = vector.shape_cast %178 : vector<1x32xf32> to vector<1x1x32xf32>
    %180 = vector.broadcast %179 : vector<1x1x32xf32> to vector<4x4x32xf32>
    %181 = arith.mulf %164, %180 : vector<4x4x32xf32>
    %182 = arith.addf %163, %181 : vector<4x4x32xf32>
    %c2_48 = arith.constant 2 : index
    %c2_49 = arith.constant 2 : index
    %c0_50 = arith.constant 0 : index
    %183 = vector.load %arg26[%c2_48, %c2_49, %c0_50] : memref<6x6x32xf32, #tpu.memory_space<vmem>>, vector<4x4x32xf32>
    %184 = vector.extract_strided_slice %31 {offsets = [8, 0, 0], sizes = [1, 1, 32], strides = [1, 1, 1]} : vector<9x1x32xf32> to vector<1x1x32xf32>
    %185 = vector.shape_cast %184 : vector<1x1x32xf32> to vector<1x32xf32>
    %186 = vector.shape_cast %185 : vector<1x32xf32> to vector<1x1x32xf32>
    %187 = vector.broadcast %186 : vector<1x1x32xf32> to vector<4x4x32xf32>
    %188 = arith.mulf %183, %187 : vector<4x4x32xf32>
    %189 = arith.addf %170, %188 : vector<4x4x32xf32>
    %190 = vector.extract_strided_slice %32 {offsets = [8, 0, 0], sizes = [1, 1, 32], strides = [1, 1, 1]} : vector<9x1x32xf32> to vector<1x1x32xf32>
    %191 = vector.shape_cast %190 : vector<1x1x32xf32> to vector<1x32xf32>
    %192 = vector.shape_cast %191 : vector<1x32xf32> to vector<1x1x32xf32>
    %193 = vector.broadcast %192 : vector<1x1x32xf32> to vector<4x4x32xf32>
    %194 = arith.mulf %183, %193 : vector<4x4x32xf32>
    %195 = arith.addf %176, %194 : vector<4x4x32xf32>
    %196 = vector.extract_strided_slice %33 {offsets = [8, 0, 0], sizes = [1, 1, 32], strides = [1, 1, 1]} : vector<9x1x32xf32> to vector<1x1x32xf32>
    %197 = vector.shape_cast %196 : vector<1x1x32xf32> to vector<1x32xf32>
    %198 = vector.shape_cast %197 : vector<1x32xf32> to vector<1x1x32xf32>
    %199 = vector.broadcast %198 : vector<1x1x32xf32> to vector<4x4x32xf32>
    %200 = arith.mulf %183, %199 : vector<4x4x32xf32>
    %201 = arith.addf %182, %200 : vector<4x4x32xf32>
    %202 = vector.shape_cast %189 : vector<4x4x32xf32> to vector<16x32xf32>
    %c0_51 = arith.constant 0 : index
    %c0_52 = arith.constant 0 : index
    %203 = vector.load %arg6[%c0_51, %c0_52] : memref<1x32xf32, #tpu.memory_space<vmem>>, vector<1x32xf32>
    %204 = vector.broadcast %203 : vector<1x32xf32> to vector<16x32xf32>
    %205 = arith.addf %202, %204 : vector<16x32xf32>
    %206 = vector.shape_cast %195 : vector<4x4x32xf32> to vector<16x32xf32>
    %c0_53 = arith.constant 0 : index
    %c0_54 = arith.constant 0 : index
    %207 = vector.load %arg8[%c0_53, %c0_54] : memref<1x32xf32, #tpu.memory_space<vmem>>, vector<1x32xf32>
    %208 = vector.broadcast %207 : vector<1x32xf32> to vector<16x32xf32>
    %209 = arith.addf %206, %208 : vector<16x32xf32>
    %210 = vector.shape_cast %201 : vector<4x4x32xf32> to vector<16x32xf32>
    %c0_55 = arith.constant 0 : index
    %c0_56 = arith.constant 0 : index
    %211 = vector.load %arg10[%c0_55, %c0_56] : memref<1x32xf32, #tpu.memory_space<vmem>>, vector<1x32xf32>
    %212 = vector.broadcast %211 : vector<1x32xf32> to vector<16x32xf32>
    %213 = arith.addf %210, %212 : vector<16x32xf32>
    %c0_57 = arith.constant 0 : index
    %c0_58 = arith.constant 0 : index
    %214 = vector.load %arg2[%c0_57, %c0_58] : memref<4x16xbf16, #tpu.memory_space<vmem>>, vector<4x16xbf16>
    %215 = arith.truncf %209 : vector<16x32xf32> to vector<16x32xbf16>
    %cst_59 = arith.constant dense<0.000000e+00> : vector<4x32xf32>
    %216 = tpu.matmul %214, %215, %cst_59 {dimension_numbers = #tpu.dot_dimension_numbers<[1], [0], [0], [1], [0, 0, 1, 1], [], []>} : vector<4x16xbf16>, vector<16x32xbf16>, vector<4x32xf32> -> vector<4x32xf32>
    %217 = arith.truncf %213 : vector<16x32xf32> to vector<16x32xbf16>
    %cst_60 = arith.constant dense<0.000000e+00> : vector<4x32xf32>
    %218 = tpu.matmul %214, %217, %cst_60 {dimension_numbers = #tpu.dot_dimension_numbers<[1], [0], [0], [1], [0, 0, 1, 1], [], []>} : vector<4x16xbf16>, vector<16x32xbf16>, vector<4x32xf32> -> vector<4x32xf32>
    %219 = vector.extract_strided_slice %25 {offsets = [0, 0], sizes = [1, 32], strides = [1, 1]} : vector<17x32xf32> to vector<1x32xf32>
    %c0_61 = arith.constant 0 : index
    %c0_62 = arith.constant 0 : index
    %220 = vector.load %arg27[%c0_61, %c0_62] : memref<17x32xf32, #tpu.memory_space<vmem>>, vector<1x32xf32>
    tpu.vector_store %arg27[%c0_61, %c0_62], %219 {strides = array<i32>} : memref<17x32xf32, #tpu.memory_space<vmem>>, vector<1x32xf32>,
    %c0_63 = arith.constant 0 : index
    %c0_64 = arith.constant 0 : index
    %221 = vector.load %arg28[%c0_63, %c0_64] : memref<5x32xf32, #tpu.memory_space<vmem>>, vector<1x32xf32>
    tpu.vector_store %arg28[%c0_63, %c0_64], %219 {strides = array<i32>} : memref<5x32xf32, #tpu.memory_space<vmem>>, vector<1x32xf32>,
    %c0_65 = arith.constant 0 : index
    %c0_66 = arith.constant 0 : index
    %222 = vector.load %arg29[%c0_65, %c0_66] : memref<5x32xf32, #tpu.memory_space<vmem>>, vector<1x32xf32>
    tpu.vector_store %arg29[%c0_65, %c0_66], %219 {strides = array<i32>} : memref<5x32xf32, #tpu.memory_space<vmem>>, vector<1x32xf32>,
    %c1_67 = arith.constant 1 : index
    %c0_68 = arith.constant 0 : index
    %223 = vector.load %arg27[%c1_67, %c0_68] : memref<17x32xf32, #tpu.memory_space<vmem>>, vector<16x32xf32>
    tpu.vector_store %arg27[%c1_67, %c0_68], %205 {strides = array<i32>} : memref<17x32xf32, #tpu.memory_space<vmem>>, vector<16x32xf32>,
    %c1_69 = arith.constant 1 : index
    %c0_70 = arith.constant 0 : index
    %224 = vector.load %arg28[%c1_69, %c0_70] : memref<5x32xf32, #tpu.memory_space<vmem>>, vector<4x32xf32>
    tpu.vector_store %arg28[%c1_69, %c0_70], %216 {strides = array<i32>} : memref<5x32xf32, #tpu.memory_space<vmem>>, vector<4x32xf32>,
    %c1_71 = arith.constant 1 : index
    %c0_72 = arith.constant 0 : index
    %225 = vector.load %arg29[%c1_71, %c0_72] : memref<5x32xf32, #tpu.memory_space<vmem>>, vector<4x32xf32>
    tpu.vector_store %arg29[%c1_71, %c0_72], %218 {strides = array<i32>} : memref<5x32xf32, #tpu.memory_space<vmem>>, vector<4x32xf32>,
    %c0_73 = arith.constant 0 : index
    %c0_74 = arith.constant 0 : index
    %226 = vector.load %arg27[%c0_73, %c0_74] : memref<17x32xf32, #tpu.memory_space<vmem>>, vector<17x32xf32>
    %c0_75 = arith.constant 0 : index
    %c0_76 = arith.constant 0 : index
    %227 = vector.load %arg28[%c0_75, %c0_76] : memref<5x32xf32, #tpu.memory_space<vmem>>, vector<5x32xf32>
    %c0_77 = arith.constant 0 : index
    %c0_78 = arith.constant 0 : index
    %228 = vector.load %arg29[%c0_77, %c0_78] : memref<5x32xf32, #tpu.memory_space<vmem>>, vector<5x32xf32>
    %229 = arith.truncf %226 : vector<17x32xf32> to vector<17x32xbf16>
    %c0_79 = arith.constant 0 : index
    %c0_80 = arith.constant 0 : index
    %230 = vector.load %arg11[%c0_79, %c0_80] : memref<32x32xbf16, #tpu.memory_space<vmem>>, vector<32x32xbf16>
    %cst_81 = arith.constant dense<0.000000e+00> : vector<17x32xf32>
    %231 = tpu.matmul %229, %230, %cst_81 {dimension_numbers = #tpu.dot_dimension_numbers<[1], [0], [0], [1], [0, 0, 1, 1], [], []>} : vector<17x32xbf16>, vector<32x32xbf16>, vector<17x32xf32> -> vector<17x32xf32>
    %c0_82 = arith.constant 0 : index
    %c0_83 = arith.constant 0 : index
    %232 = vector.load %arg12[%c0_82, %c0_83] : memref<1x32xf32, #tpu.memory_space<vmem>>, vector<1x32xf32>
    %233 = vector.broadcast %232 : vector<1x32xf32> to vector<17x32xf32>
    %234 = arith.addf %231, %233 : vector<17x32xf32>
    %235 = arith.truncf %227 : vector<5x32xf32> to vector<5x32xbf16>
    %c0_84 = arith.constant 0 : index
    %c0_85 = arith.constant 0 : index
    %236 = vector.load %arg13[%c0_84, %c0_85] : memref<32x32xbf16, #tpu.memory_space<vmem>>, vector<32x32xbf16>
    %cst_86 = arith.constant dense<0.000000e+00> : vector<5x32xf32>
    %237 = tpu.matmul %235, %236, %cst_86 {dimension_numbers = #tpu.dot_dimension_numbers<[1], [0], [0], [1], [0, 0, 1, 1], [], []>} : vector<5x32xbf16>, vector<32x32xbf16>, vector<5x32xf32> -> vector<5x32xf32>
    %c0_87 = arith.constant 0 : index
    %c0_88 = arith.constant 0 : index
    %238 = vector.load %arg14[%c0_87, %c0_88] : memref<1x32xf32, #tpu.memory_space<vmem>>, vector<1x32xf32>
    %239 = vector.broadcast %238 : vector<1x32xf32> to vector<5x32xf32>
    %240 = arith.addf %237, %239 : vector<5x32xf32>
    %241 = arith.truncf %228 : vector<5x32xf32> to vector<5x32xbf16>
    %c0_89 = arith.constant 0 : index
    %c0_90 = arith.constant 0 : index
    %242 = vector.load %arg15[%c0_89, %c0_90] : memref<32x32xbf16, #tpu.memory_space<vmem>>, vector<32x32xbf16>
    %cst_91 = arith.constant dense<0.000000e+00> : vector<5x32xf32>
    %243 = tpu.matmul %241, %242, %cst_91 {dimension_numbers = #tpu.dot_dimension_numbers<[1], [0], [0], [1], [0, 0, 1, 1], [], []>} : vector<5x32xbf16>, vector<32x32xbf16>, vector<5x32xf32> -> vector<5x32xf32>
    %c0_92 = arith.constant 0 : index
    %c0_93 = arith.constant 0 : index
    %244 = vector.load %arg16[%c0_92, %c0_93] : memref<1x32xf32, #tpu.memory_space<vmem>>, vector<1x32xf32>
    %245 = vector.broadcast %244 : vector<1x32xf32> to vector<5x32xf32>
    %246 = arith.addf %243, %245 : vector<5x32xf32>
    %247 = vector.extract_strided_slice %234 {offsets = [0, 0], sizes = [17, 16], strides = [1, 1]} : vector<17x32xf32> to vector<17x16xf32>
    %248 = vector.extract_strided_slice %240 {offsets = [0, 0], sizes = [5, 16], strides = [1, 1]} : vector<5x32xf32> to vector<5x16xf32>
    %249 = vector.extract_strided_slice %246 {offsets = [0, 0], sizes = [5, 16], strides = [1, 1]} : vector<5x32xf32> to vector<5x16xf32>
    %250 = arith.truncf %247 : vector<17x16xf32> to vector<17x16xbf16>
    %251 = arith.truncf %248 : vector<5x16xf32> to vector<5x16xbf16>
    %cst_94 = arith.constant dense<0.000000e+00> : vector<17x5xf32>
    %252 = tpu.matmul %250, %251, %cst_94 {dimension_numbers = #tpu.dot_dimension_numbers<[1], [1], [0], [0], [0, 0, 1, 0], [], []>} : vector<17x16xbf16>, vector<5x16xbf16>, vector<17x5xf32> -> vector<17x5xf32>
    %cst_95 = arith.constant dense<0xFF800000> : vector<17xf32>
    %253 = vector.multi_reduction <maximumf>, %252, %cst_95 [1] : vector<17x5xf32> to vector<17xf32>
    %254 = vector.shape_cast %253 : vector<17xf32> to vector<17x1xf32>
    %255 = vector.broadcast %254 : vector<17x1xf32> to vector<17x5xf32>
    %256 = arith.subf %252, %255 : vector<17x5xf32>
    %257 = math.exp %256 : vector<17x5xf32>
    %cst_96 = arith.constant dense<0.000000e+00> : vector<17xf32>
    %258 = vector.multi_reduction <add>, %257, %cst_96 [1] : vector<17x5xf32> to vector<17xf32>
    %259 = vector.shape_cast %258 : vector<17xf32> to vector<17x1xf32>
    %260 = tpu.reciprocal %259 {approx = true} : vector<17x1xf32> -> vector<17x1xf32>
    %261 = vector.broadcast %260 : vector<17x1xf32> to vector<17x5xf32>
    %262 = arith.mulf %257, %261 : vector<17x5xf32>
    %263 = arith.truncf %262 : vector<17x5xf32> to vector<17x5xbf16>
    %264 = arith.truncf %249 : vector<5x16xf32> to vector<5x16xbf16>
    %cst_97 = arith.constant dense<0.000000e+00> : vector<17x16xf32>
    %265 = tpu.matmul %263, %264, %cst_97 {dimension_numbers = #tpu.dot_dimension_numbers<[1], [0], [0], [1], [0, 0, 1, 1], [], []>} : vector<17x5xbf16>, vector<5x16xbf16>, vector<17x16xf32> -> vector<17x16xf32>
    %266 = vector.extract_strided_slice %234 {offsets = [0, 16], sizes = [17, 16], strides = [1, 1]} : vector<17x32xf32> to vector<17x16xf32>
    %267 = vector.extract_strided_slice %240 {offsets = [0, 16], sizes = [5, 16], strides = [1, 1]} : vector<5x32xf32> to vector<5x16xf32>
    %268 = vector.extract_strided_slice %246 {offsets = [0, 16], sizes = [5, 16], strides = [1, 1]} : vector<5x32xf32> to vector<5x16xf32>
    %269 = arith.truncf %266 : vector<17x16xf32> to vector<17x16xbf16>
    %270 = arith.truncf %267 : vector<5x16xf32> to vector<5x16xbf16>
    %cst_98 = arith.constant dense<0.000000e+00> : vector<17x5xf32>
    %271 = tpu.matmul %269, %270, %cst_98 {dimension_numbers = #tpu.dot_dimension_numbers<[1], [1], [0], [0], [0, 0, 1, 0], [], []>} : vector<17x16xbf16>, vector<5x16xbf16>, vector<17x5xf32> -> vector<17x5xf32>
    %cst_99 = arith.constant dense<0xFF800000> : vector<17xf32>
    %272 = vector.multi_reduction <maximumf>, %271, %cst_99 [1] : vector<17x5xf32> to vector<17xf32>
    %273 = vector.shape_cast %272 : vector<17xf32> to vector<17x1xf32>
    %274 = vector.broadcast %273 : vector<17x1xf32> to vector<17x5xf32>
    %275 = arith.subf %271, %274 : vector<17x5xf32>
    %276 = math.exp %275 : vector<17x5xf32>
    %cst_100 = arith.constant dense<0.000000e+00> : vector<17xf32>
    %277 = vector.multi_reduction <add>, %276, %cst_100 [1] : vector<17x5xf32> to vector<17xf32>
    %278 = vector.shape_cast %277 : vector<17xf32> to vector<17x1xf32>
    %279 = tpu.reciprocal %278 {approx = true} : vector<17x1xf32> -> vector<17x1xf32>
    %280 = vector.broadcast %279 : vector<17x1xf32> to vector<17x5xf32>
    %281 = arith.mulf %276, %280 : vector<17x5xf32>
    %282 = arith.truncf %281 : vector<17x5xf32> to vector<17x5xbf16>
    %283 = arith.truncf %268 : vector<5x16xf32> to vector<5x16xbf16>
    %cst_101 = arith.constant dense<0.000000e+00> : vector<17x16xf32>
    %284 = tpu.matmul %282, %283, %cst_101 {dimension_numbers = #tpu.dot_dimension_numbers<[1], [0], [0], [1], [0, 0, 1, 1], [], []>} : vector<17x5xbf16>, vector<5x16xbf16>, vector<17x16xf32> -> vector<17x16xf32>
    %285 = tpu.concatenate %265, %284 in 1 : vector<17x16xf32>, vector<17x16xf32> -> vector<17x32xf32>
    %286 = arith.truncf %285 : vector<17x32xf32> to vector<17x32xbf16>
    %c0_102 = arith.constant 0 : index
    %c0_103 = arith.constant 0 : index
    %287 = vector.load %arg17[%c0_102, %c0_103] : memref<32x32xbf16, #tpu.memory_space<vmem>>, vector<32x32xbf16>
    %cst_104 = arith.constant dense<0.000000e+00> : vector<17x32xf32>
    %288 = tpu.matmul %286, %287, %cst_104 {dimension_numbers = #tpu.dot_dimension_numbers<[1], [0], [0], [1], [0, 0, 1, 1], [], []>} : vector<17x32xbf16>, vector<32x32xbf16>, vector<17x32xf32> -> vector<17x32xf32>
    %c0_105 = arith.constant 0 : index
    %c0_106 = arith.constant 0 : index
    %289 = vector.load %arg18[%c0_105, %c0_106] : memref<1x32xf32, #tpu.memory_space<vmem>>, vector<1x32xf32>
    %290 = vector.broadcast %289 : vector<1x32xf32> to vector<17x32xf32>
    %291 = arith.addf %288, %290 : vector<17x32xf32>
    %292 = arith.addf %1, %291 : vector<17x32xf32>
    %c0_107 = arith.constant 0 : index
    %c0_108 = arith.constant 0 : index
    %293 = vector.load %arg19[%c0_107, %c0_108] : memref<1x32xf32, #tpu.memory_space<vmem>>, vector<1x32xf32>
    %c0_109 = arith.constant 0 : index
    %c0_110 = arith.constant 0 : index
    %294 = vector.load %arg20[%c0_109, %c0_110] : memref<1x32xf32, #tpu.memory_space<vmem>>, vector<1x32xf32>
    %cst_111 = arith.constant dense<0.000000e+00> : vector<17xf32>
    %295 = vector.multi_reduction <add>, %292, %cst_111 [1] : vector<17x32xf32> to vector<17xf32>
    %296 = vector.shape_cast %295 : vector<17xf32> to vector<17x1xf32>
    %cst_112 = arith.constant 3.200000e+01 : f32
    %297 = vector.broadcast %cst_112 : f32 to vector<17x1xf32>
    %298 = arith.divf %296, %297 : vector<17x1xf32>
    %299 = vector.broadcast %298 : vector<17x1xf32> to vector<17x32xf32>
    %300 = arith.subf %292, %299 : vector<17x32xf32>
    %301 = arith.mulf %300, %300 : vector<17x32xf32>
    %cst_113 = arith.constant dense<0.000000e+00> : vector<17xf32>
    %302 = vector.multi_reduction <add>, %301, %cst_113 [1] : vector<17x32xf32> to vector<17xf32>
    %303 = vector.shape_cast %302 : vector<17xf32> to vector<17x1xf32>
    %cst_114 = arith.constant 3.200000e+01 : f32
    %304 = vector.broadcast %cst_114 : f32 to vector<17x1xf32>
    %305 = arith.divf %303, %304 : vector<17x1xf32>
    %306 = vector.broadcast %298 : vector<17x1xf32> to vector<17x32xf32>
    %307 = arith.subf %292, %306 : vector<17x32xf32>
    %cst_115 = arith.constant 9.99999974E-6 : f32
    %308 = vector.broadcast %cst_115 : f32 to vector<17x1xf32>
    %309 = arith.addf %305, %308 : vector<17x1xf32>
    %310 = math.rsqrt %309 : vector<17x1xf32>
    %311 = vector.broadcast %310 : vector<17x1xf32> to vector<17x32xf32>
    %312 = arith.mulf %307, %311 : vector<17x32xf32>
    %313 = vector.broadcast %293 : vector<1x32xf32> to vector<17x32xf32>
    %314 = arith.mulf %312, %313 : vector<17x32xf32>
    %315 = vector.broadcast %294 : vector<1x32xf32> to vector<17x32xf32>
    %316 = arith.addf %314, %315 : vector<17x32xf32>
    %317 = arith.truncf %316 : vector<17x32xf32> to vector<17x32xbf16>
    %c0_116 = arith.constant 0 : index
    %c0_117 = arith.constant 0 : index
    %318 = vector.load %arg21[%c0_116, %c0_117] : memref<32x64xbf16, #tpu.memory_space<vmem>>, vector<32x64xbf16>
    %cst_118 = arith.constant dense<0.000000e+00> : vector<17x64xf32>
    %319 = tpu.matmul %317, %318, %cst_118 {dimension_numbers = #tpu.dot_dimension_numbers<[1], [0], [0], [1], [0, 0, 1, 1], [], []>} : vector<17x32xbf16>, vector<32x64xbf16>, vector<17x64xf32> -> vector<17x64xf32>
    %c0_119 = arith.constant 0 : index
    %c0_120 = arith.constant 0 : index
    %320 = vector.load %arg22[%c0_119, %c0_120] : memref<1x64xf32, #tpu.memory_space<vmem>>, vector<1x64xf32>
    %321 = vector.broadcast %320 : vector<1x64xf32> to vector<17x64xf32>
    %322 = arith.addf %319, %321 : vector<17x64xf32>
    %cst_121 = arith.constant 5.000000e-01 : f32
    %323 = vector.broadcast %cst_121 : f32 to vector<17x64xf32>
    %324 = arith.mulf %323, %322 : vector<17x64xf32>
    %cst_122 = arith.constant 0.707106769 : f32
    %325 = vector.broadcast %cst_122 : f32 to vector<17x64xf32>
    %326 = arith.mulf %322, %325 : vector<17x64xf32>
    %327 = math.erf %326 : vector<17x64xf32>
    %cst_123 = arith.constant 1.000000e+00 : f32
    %328 = vector.broadcast %cst_123 : f32 to vector<17x64xf32>
    %329 = arith.addf %328, %327 : vector<17x64xf32>
    %330 = arith.mulf %324, %329 : vector<17x64xf32>
    %331 = arith.truncf %330 : vector<17x64xf32> to vector<17x64xbf16>
    %c0_124 = arith.constant 0 : index
    %c0_125 = arith.constant 0 : index
    %332 = vector.load %arg23[%c0_124, %c0_125] : memref<64x32xbf16, #tpu.memory_space<vmem>>, vector<64x32xbf16>
    %cst_126 = arith.constant dense<0.000000e+00> : vector<17x32xf32>
    %333 = tpu.matmul %331, %332, %cst_126 {dimension_numbers = #tpu.dot_dimension_numbers<[1], [0], [0], [1], [0, 0, 1, 1], [], []>} : vector<17x64xbf16>, vector<64x32xbf16>, vector<17x32xf32> -> vector<17x32xf32>
    %c0_127 = arith.constant 0 : index
    %c0_128 = arith.constant 0 : index
    %334 = vector.load %arg24[%c0_127, %c0_128] : memref<1x32xf32, #tpu.memory_space<vmem>>, vector<1x32xf32>
    %335 = vector.broadcast %334 : vector<1x32xf32> to vector<17x32xf32>
    %336 = arith.addf %333, %335 : vector<17x32xf32>
    %337 = arith.addf %292, %336 : vector<17x32xf32>
    %c0_129 = arith.constant 0 : index
    %c0_130 = arith.constant 0 : index
    %c0_131 = arith.constant 0 : index
    %338 = vector.load %arg25[%c0_129, %c0_130, %c0_131] : memref<1x17x32xf32, #tpu.memory_space<vmem>>, vector<1x17x32xf32>
    %339 = vector.shape_cast %338 : vector<1x17x32xf32> to vector<17x32xf32>
    %340 = vector.shape_cast %337 : vector<17x32xf32> to vector<1x17x32xf32>
    tpu.vector_store %arg25[%c0_129, %c0_130, %c0_131], %340 {strides = array<i32>} : memref<1x17x32xf32, #tpu.memory_space<vmem>>, vector<1x17x32xf32>,
    return
  }
  func.func @transform_0(%arg0: i32) -> (i32, i32, i32) {
    %c0_i32 = arith.constant 0 : i32
    %c0_i32_0 = arith.constant 0 : i32
    %c0_i32_1 = arith.constant 0 : i32
    return %arg0, %c0_i32, %c0_i32_0 : i32, i32, i32
  }
  func.func @transform_1(%arg0: i32) -> (i32, i32) {
    %c0_i32 = arith.constant 0 : i32
    %c0_i32_0 = arith.constant 0 : i32
    %c0_i32_1 = arith.constant 0 : i32
    return %c0_i32, %c0_i32_0 : i32, i32
  }
  func.func @transform_2(%arg0: i32) -> (i32, i32) {
    %c0_i32 = arith.constant 0 : i32
    %c0_i32_0 = arith.constant 0 : i32
    %c0_i32_1 = arith.constant 0 : i32
    return %c0_i32, %c0_i32_0 : i32, i32
  }
  func.func @transform_3(%arg0: i32) -> (i32, i32) {
    %c0_i32 = arith.constant 0 : i32
    %c0_i32_0 = arith.constant 0 : i32
    %c0_i32_1 = arith.constant 0 : i32
    return %c0_i32, %c0_i32_0 : i32, i32
  }
  func.func @transform_4(%arg0: i32) -> (i32, i32, i32) {
    %c0_i32 = arith.constant 0 : i32
    %c0_i32_0 = arith.constant 0 : i32
    %c0_i32_1 = arith.constant 0 : i32
    %c0_i32_2 = arith.constant 0 : i32
    return %c0_i32, %c0_i32_0, %c0_i32_1 : i32, i32, i32
  }
  func.func @transform_5(%arg0: i32) -> (i32, i32) {
    %c0_i32 = arith.constant 0 : i32
    %c0_i32_0 = arith.constant 0 : i32
    %c0_i32_1 = arith.constant 0 : i32
    return %c0_i32, %c0_i32_0 : i32, i32
  }
  func.func @transform_6(%arg0: i32) -> (i32, i32, i32) {
    %c0_i32 = arith.constant 0 : i32
    %c0_i32_0 = arith.constant 0 : i32
    %c0_i32_1 = arith.constant 0 : i32
    %c0_i32_2 = arith.constant 0 : i32
    return %c0_i32, %c0_i32_0, %c0_i32_1 : i32, i32, i32
  }
  func.func @transform_7(%arg0: i32) -> (i32, i32) {
    %c0_i32 = arith.constant 0 : i32
    %c0_i32_0 = arith.constant 0 : i32
    %c0_i32_1 = arith.constant 0 : i32
    return %c0_i32, %c0_i32_0 : i32, i32
  }
  func.func @transform_8(%arg0: i32) -> (i32, i32, i32) {
    %c0_i32 = arith.constant 0 : i32
    %c0_i32_0 = arith.constant 0 : i32
    %c0_i32_1 = arith.constant 0 : i32
    %c0_i32_2 = arith.constant 0 : i32
    return %c0_i32, %c0_i32_0, %c0_i32_1 : i32, i32, i32
  }
  func.func @transform_9(%arg0: i32) -> (i32, i32) {
    %c0_i32 = arith.constant 0 : i32
    %c0_i32_0 = arith.constant 0 : i32
    %c0_i32_1 = arith.constant 0 : i32
    return %c0_i32, %c0_i32_0 : i32, i32
  }
  func.func @transform_10(%arg0: i32) -> (i32, i32) {
    %c0_i32 = arith.constant 0 : i32
    %c0_i32_0 = arith.constant 0 : i32
    %c0_i32_1 = arith.constant 0 : i32
    return %c0_i32, %c0_i32_0 : i32, i32
  }
  func.func @transform_11(%arg0: i32) -> (i32, i32) {
    %c0_i32 = arith.constant 0 : i32
    %c0_i32_0 = arith.constant 0 : i32
    %c0_i32_1 = arith.constant 0 : i32
    return %c0_i32, %c0_i32_0 : i32, i32
  }
  func.func @transform_12(%arg0: i32) -> (i32, i32) {
    %c0_i32 = arith.constant 0 : i32
    %c0_i32_0 = arith.constant 0 : i32
    %c0_i32_1 = arith.constant 0 : i32
    return %c0_i32, %c0_i32_0 : i32, i32
  }
  func.func @transform_13(%arg0: i32) -> (i32, i32) {
    %c0_i32 = arith.constant 0 : i32
    %c0_i32_0 = arith.constant 0 : i32
    %c0_i32_1 = arith.constant 0 : i32
    return %c0_i32, %c0_i32_0 : i32, i32
  }
  func.func @transform_14(%arg0: i32) -> (i32, i32) {
    %c0_i32 = arith.constant 0 : i32
    %c0_i32_0 = arith.constant 0 : i32
    %c0_i32_1 = arith.constant 0 : i32
    return %c0_i32, %c0_i32_0 : i32, i32
  }
  func.func @transform_15(%arg0: i32) -> (i32, i32) {
    %c0_i32 = arith.constant 0 : i32
    %c0_i32_0 = arith.constant 0 : i32
    %c0_i32_1 = arith.constant 0 : i32
    return %c0_i32, %c0_i32_0 : i32, i32
  }
  func.func @transform_16(%arg0: i32) -> (i32, i32) {
    %c0_i32 = arith.constant 0 : i32
    %c0_i32_0 = arith.constant 0 : i32
    %c0_i32_1 = arith.constant 0 : i32
    return %c0_i32, %c0_i32_0 : i32, i32
  }
  func.func @transform_17(%arg0: i32) -> (i32, i32) {
    %c0_i32 = arith.constant 0 : i32
    %c0_i32_0 = arith.constant 0 : i32
    %c0_i32_1 = arith.constant 0 : i32
    return %c0_i32, %c0_i32_0 : i32, i32
  }
  func.func @transform_18(%arg0: i32) -> (i32, i32) {
    %c0_i32 = arith.constant 0 : i32
    %c0_i32_0 = arith.constant 0 : i32
    %c0_i32_1 = arith.constant 0 : i32
    return %c0_i32, %c0_i32_0 : i32, i32
  }
  func.func @transform_19(%arg0: i32) -> (i32, i32) {
    %c0_i32 = arith.constant 0 : i32
    %c0_i32_0 = arith.constant 0 : i32
    %c0_i32_1 = arith.constant 0 : i32
    return %c0_i32, %c0_i32_0 : i32, i32
  }
  func.func @transform_20(%arg0: i32) -> (i32, i32) {
    %c0_i32 = arith.constant 0 : i32
    %c0_i32_0 = arith.constant 0 : i32
    %c0_i32_1 = arith.constant 0 : i32
    return %c0_i32, %c0_i32_0 : i32, i32
  }
  func.func @transform_21(%arg0: i32) -> (i32, i32) {
    %c0_i32 = arith.constant 0 : i32
    %c0_i32_0 = arith.constant 0 : i32
    %c0_i32_1 = arith.constant 0 : i32
    return %c0_i32, %c0_i32_0 : i32, i32
  }
  func.func @transform_22(%arg0: i32) -> (i32, i32) {
    %c0_i32 = arith.constant 0 : i32
    %c0_i32_0 = arith.constant 0 : i32
    %c0_i32_1 = arith.constant 0 : i32
    return %c0_i32, %c0_i32_0 : i32, i32
  }
  func.func @transform_23(%arg0: i32) -> (i32, i32) {
    %c0_i32 = arith.constant 0 : i32
    %c0_i32_0 = arith.constant 0 : i32
    %c0_i32_1 = arith.constant 0 : i32
    return %c0_i32, %c0_i32_0 : i32, i32
  }
  func.func @transform_24(%arg0: i32) -> (i32, i32, i32) {
    %c0_i32 = arith.constant 0 : i32
    %c0_i32_0 = arith.constant 0 : i32
    %c0_i32_1 = arith.constant 0 : i32
    return %arg0, %c0_i32, %c0_i32_0 : i32, i32, i32
  }
}

</mosaic_0001>

<llo_original>
// kernel: cvt_forward.5
$region0: #{cvt_forward.5}
  #allocation0 [shape = 'u32[]', space=smem, size = 0x4, offset = 0x4, fixed_abs, tag = 'smem constant byte address 0x4 - core index']
  #allocation1 [shape = 'u32[144,128]{1,0:T(1,128)}', space=vmem, size = 0x12000, scoped, tag = 'internal scratch']
  %s0 = inlined_call_operand.vmem [shape: bf16[128,27], index: 0, kind: input, shape index: {}]
  %s1 = inlined_call_operand.vmem [shape: bf16[27,16], index: 1, kind: input, shape index: {}]
  %s2 = inlined_call_operand.vmem [shape: f32[1,16], index: 2, kind: input, shape index: {}]
  %s3 = inlined_call_operand.vmem [shape: f32[1,16], index: 3, kind: input, shape index: {}]
  %s4 = inlined_call_operand.vmem [shape: f32[1,16], index: 4, kind: input, shape index: {}]
  %s5 = inlined_call_operand.vmem [shape: f32[128,16], index: 5, kind: output, shape index: {}]
  %s6 = sld [smem:[#allocation0]]
  $region30: #{cvt_forward.5} parent=0
    _
  %s8 = ssub.s32 1, %s6
  %s9 = scalar_select 0, %s8, %s6
  // Predicated region
  $region2: #{cvt_forward.5} parent=0 // pred_check
    _
  $region3: #{cvt_forward.5} parent=0 // pred_check_branch
    %11 = sbr.rel (0) target = $region5
  $region4: #{cvt_forward.5} parent=0 // pred_region
    _
  $region5: #{cvt_forward.5} parent=0 // pred_fallthru
    _
  // Predicated region
  $region6: #{cvt_forward.5} parent=0 // pred_check
    _
  $region7: #{cvt_forward.5} parent=0 // pred_check_branch
    %13 = sbr.rel (0) target = $region9
  $region8: #{cvt_forward.5} parent=0 // pred_region
    _
  $region9: #{cvt_forward.5} parent=0 // pred_fallthru
    _
  // Predicated region
  $region10: #{cvt_forward.5} parent=0 // pred_check
    _
  $region11: #{cvt_forward.5} parent=0 // pred_check_branch
    %15 = sbr.rel (0) target = $region13
  $region12: #{cvt_forward.5} parent=0 // pred_region
    _
  $region13: #{cvt_forward.5} parent=0 // pred_fallthru
    _
  // Predicated region
  $region14: #{cvt_forward.5} parent=0 // pred_check
    _
  $region15: #{cvt_forward.5} parent=0 // pred_check_branch
    %17 = sbr.rel (0) target = $region17
  $region16: #{cvt_forward.5} parent=0 // pred_region
    _
  $region17: #{cvt_forward.5} parent=0 // pred_fallthru
    _
  // Predicated region
  $region18: #{cvt_forward.5} parent=0 // pred_check
    _
  $region19: #{cvt_forward.5} parent=0 // pred_check_branch
    %19 = sbr.rel (0) target = $region21
  $region20: #{cvt_forward.5} parent=0 // pred_region
    _
  $region21: #{cvt_forward.5} parent=0 // pred_fallthru
    _
  %v21 = vld [vmem:[%s0] sm:$0xf]
  %v22 = vld [vmem:[%s0 + $0x4] sm:$0xf]
  %v23 = vld [vmem:[%s0 + $0x8] sm:$0xf]
  %v24 = vld [vmem:[%s0 + $0xc] sm:$0xf]
  %v25 = vld [vmem:[%s0 + $0x10] sm:$0xf]
  %v26 = vld [vmem:[%s0 + $0x14] sm:$0xf]
  %v27 = vld [vmem:[%s0 + $0x18] sm:$0xf]
  %v28 = vld [vmem:[%s0 + $0x1c] sm:$0xf]
  %v29 = vld [vmem:[%s0 + $0x20] sm:$0xf]
  %v30 = vld [vmem:[%s0 + $0x24] sm:$0xf]
  %v31 = vld [vmem:[%s0 + $0x28] sm:$0xf]
  %v32 = vld [vmem:[%s0 + $0x2c] sm:$0xf]
  %v33 = vld [vmem:[%s0 + $0x30] sm:$0xf]
  %v34 = vld [vmem:[%s0 + $0x34] sm:$0xf]
  %v35 = vld [vmem:[%s0 + $0x38] sm:$0xf]
  %v36 = vld [vmem:[%s0 + $0x3c] sm:$0xf]
  %v37 = vld [vmem:[%s1] sm:$0xf]
  %v38 = vld [vmem:[%s1 + $0x4] sm:$0xf]
  %v39 = vld [vmem:[%s1 + $0x8] sm:$0xf]
  %v40 = vld [vmem:[%s1 + $0xc] sm:$0x3]
  %v41 = vld [vmem:[%s2] sm:$0x1]
  %v43 = vlaneseq
  %v44 = vshrl.u32 %v43, 7
  %v45 = vsub.s32 0, %v44
  %v46 = vrot.slane %v41, %v45
  %v64 = vunpack.c.l.b16 %v21
  %v65 = vunpack.c.l.b16 %v22
  %v66 = vunpack.c.l.b16 %v23
  %v67 = vunpack.c.l.b16 %v24
  %v68 = vunpack.c.l.b16 %v25
  %v69 = vunpack.c.l.b16 %v26
  %v70 = vunpack.c.l.b16 %v27
  %v71 = vunpack.c.l.b16 %v28
  %v72 = vunpack.c.l.b16 %v29
  %v73 = vunpack.c.l.b16 %v30
  %v74 = vunpack.c.l.b16 %v31
  %v75 = vunpack.c.l.b16 %v32
  %v76 = vunpack.c.l.b16 %v33
  %v77 = vunpack.c.l.b16 %v34
  %v78 = vunpack.c.l.b16 %v35
  %v79 = vunpack.c.l.b16 %v36
  %v80 = vpack.c.b16 %v65, %v64
  %v81 = vpack.c.b16 %v67, %v66
  %v82 = vpack.c.b16 %v69, %v68
  %v83 = vpack.c.b16 %v71, %v70
  %v84 = vpack.c.b16 %v73, %v72
  %v85 = vpack.c.b16 %v75, %v74
  %v86 = vpack.c.b16 %v77, %v76
  %v87 = vpack.c.b16 %v79, %v78
  %v92 = vunpack.c.l.b16 %v37
  %v93 = vunpack.c.l.b16 %v38
  %v94 = vunpack.c.l.b16 %v39
  %v95 = vunpack.c.l.b16 %v40
  %v96 = vpack.c.b16 %v93, %v92
  %v97 = vpack.c.b16 %v95, %v94
  %vm99 = vcmask 220160
  %v101 = vsel %vm99, %v80, 0
  %v104 = vsel %vm99, %v81, 0
  %v107 = vsel %vm99, %v82, 0
  %v110 = vsel %vm99, %v83, 0
  %v113 = vsel %vm99, %v84, 0
  %v116 = vsel %vm99, %v85, 0
  %v119 = vsel %vm99, %v86, 0
  %v122 = vsel %vm99, %v87, 0
  %vm124 = vcmask 1044480
  %vm125 = vcmask 1045504
  %v126 = vsel %vm124, 4294967295, 65535
  %v127 = vsel %vm125, %v126, 0
  %v129 = vand.u32 %v97, %v127
  %131 = vmatprep.subr.bf16.mxu0 0
  %132 = vmatpush1.bf16.msra.mxu0 %v96
  %133 = vmatprep.subr.bf16.mxu0 0
  %134 = vmatpush1.bf16.msra.mxu0 %v129
  %135 = vmatprep.subr.bf16.mxu0 0
  %136 = vmatpush1.bf16.msra.mxu0 0
  %137 = vmatprep.subr.bf16.mxu0 0
  %138 = vmatpush1.bf16.msra.mxu0 0
  %139 = vmatprep.subr.bf16.mxu0 0
  %140 = vmatpush1.bf16.msra.mxu0 0
  %141 = vmatprep.subr.bf16.mxu0 0
  %142 = vmatpush1.bf16.msra.mxu0 0
  %143 = vmatprep.subr.bf16.mxu0 0
  %144 = vmatpush1.bf16.msra.mxu0 0
  %145 = vmatprep.subr.bf16.mxu0 0
  %146 = vmatpush1.bf16.msra.mxu0 0
  %147 = vmatprep.subr.bf16.mxu0 0
  %148 = vmatpush1.bf16.msra.mxu0 0
  %149 = vmatprep.subr.bf16.mxu0 0
  %150 = vmatpush1.bf16.msra.mxu0 0
  %151 = vmatprep.subr.bf16.mxu0 0
  %152 = vmatpush1.bf16.msra.mxu0 0
  %153 = vmatprep.subr.bf16.mxu0 0
  %154 = vmatpush1.bf16.msra.mxu0 0
  %155 = vmatprep.subr.bf16.mxu0 0
  %156 = vmatpush1.bf16.msra.mxu0 0
  %157 = vmatprep.subr.bf16.mxu0 0
  %158 = vmatpush1.bf16.msra.mxu0 0
  %159 = vmatprep.subr.bf16.mxu0 0
  %160 = vmatpush1.bf16.msra.mxu0 0
  %161 = vmatprep.subr.bf16.mxu0 0
  %162 = vmatpush1.bf16.msra.mxu0 0
  %163 = vmatprep.mubr.bf16.mxu0 0
  %164 = vmatmul.mubr.bf16.gmra.mrb[0].mxu0 %v101
  %v165 = vpop.f32.mrb[0].mxu0
  %v166 = vadd.f32 %v46, %v165
  %v167 = vpop.f32.mrb[0].mxu0
  %v168 = vpop.f32.mrb[0].mxu0
  %v169 = vadd.f32 %v46, %v168
  %v170 = vpop.f32.mrb[0].mxu0
  %171 = vmatprep.mubr.bf16.mxu0 0
  %172 = vmatmul.mubr.bf16.gmra.mrb[0].mxu0 %v104
  %v173 = vpop.f32.mrb[0].mxu0
  %v174 = vadd.f32 %v46, %v173
  %v175 = vpop.f32.mrb[0].mxu0
  %v176 = vpop.f32.mrb[0].mxu0
  %v177 = vadd.f32 %v46, %v176
  %v178 = vpop.f32.mrb[0].mxu0
  %179 = vmatprep.mubr.bf16.mxu0 0
  %180 = vmatmul.mubr.bf16.gmra.mrb[0].mxu0 %v107
  %v181 = vpop.f32.mrb[0].mxu0
  %v182 = vadd.f32 %v46, %v181
  %v183 = vpop.f32.mrb[0].mxu0
  %v184 = vpop.f32.mrb[0].mxu0
  %v185 = vadd.f32 %v46, %v184
  %v186 = vpop.f32.mrb[0].mxu0
  %187 = vmatprep.mubr.bf16.mxu0 0
  %188 = vmatmul.mubr.bf16.gmra.mrb[0].mxu0 %v110
  %v189 = vpop.f32.mrb[0].mxu0
  %v190 = vadd.f32 %v46, %v189
  %v191 = vpop.f32.mrb[0].mxu0
  %v192 = vpop.f32.mrb[0].mxu0
  %v193 = vadd.f32 %v46, %v192
  %v194 = vpop.f32.mrb[0].mxu0
  %195 = vmatprep.mubr.bf16.mxu0 0
  %196 = vmatmul.mubr.bf16.gmra.mrb[0].mxu0 %v113
  %v197 = vpop.f32.mrb[0].mxu0
  %v198 = vadd.f32 %v46, %v197
  %v199 = vpop.f32.mrb[0].mxu0
  %v200 = vpop.f32.mrb[0].mxu0
  %v201 = vadd.f32 %v46, %v200
  %v202 = vpop.f32.mrb[0].mxu0
  %203 = vmatprep.mubr.bf16.mxu0 0
  %204 = vmatmul.mubr.bf16.gmra.mrb[0].mxu0 %v116
  %v205 = vpop.f32.mrb[0].mxu0
  %v206 = vadd.f32 %v46, %v205
  %v207 = vpop.f32.mrb[0].mxu0
  %v208 = vpop.f32.mrb[0].mxu0
  %v209 = vadd.f32 %v46, %v208
  %v210 = vpop.f32.mrb[0].mxu0
  %211 = vmatprep.mubr.bf16.mxu0 0
  %212 = vmatmul.mubr.bf16.gmra.mrb[0].mxu0 %v119
  %v213 = vpop.f32.mrb[0].mxu0
  %v214 = vadd.f32 %v46, %v213
  %v215 = vpop.f32.mrb[0].mxu0
  %v216 = vpop.f32.mrb[0].mxu0
  %v217 = vadd.f32 %v46, %v216
  %v218 = vpop.f32.mrb[0].mxu0
  %219 = vmatprep.mubr.bf16.mxu0 0
  %220 = vmatmul.mubr.bf16.gmra.mrb[0].mxu0 %v122
  %v221 = vpop.f32.mrb[0].mxu0
  %v222 = vadd.f32 %v46, %v221
  %v223 = vpop.f32.mrb[0].mxu0
  %v224 = vpop.f32.mrb[0].mxu0
  %v225 = vadd.f32 %v46, %v224
  %v226 = vpop.f32.mrb[0].mxu0
  %227 = vdwg.mxu0
  %v228 = vld [vmem:[%s3] sm:$0x1]
  %v229 = vld [vmem:[%s4] sm:$0x1]
  %vm230 = vcmask 130048
  %v231 = vsel %vm230, %v166, 0.0
  %232 = vadd.xlane.f32.xlu0 %v231
  %v233 = vpop.xlane.xlu0 %232
  %v234 = vsel %vm230, %v169, 0.0
  %235 = vadd.xlane.f32.xlu0 %v234
  %v236 = vpop.xlane.xlu0 %235
  %v237 = vsel %vm230, %v174, 0.0
  %238 = vadd.xlane.f32.xlu0 %v237
  %v239 = vpop.xlane.xlu0 %238
  %v240 = vsel %vm230, %v177, 0.0
  %241 = vadd.xlane.f32.xlu0 %v240
  %v242 = vpop.xlane.xlu0 %241
  %v243 = vsel %vm230, %v182, 0.0
  %244 = vadd.xlane.f32.xlu0 %v243
  %v245 = vpop.xlane.xlu0 %244
  %v246 = vsel %vm230, %v185, 0.0
  %247 = vadd.xlane.f32.xlu0 %v246
  %v248 = vpop.xlane.xlu0 %247
  %v249 = vsel %vm230, %v190, 0.0
  %250 = vadd.xlane.f32.xlu0 %v249
  %v251 = vpop.xlane.xlu0 %250
  %v252 = vsel %vm230, %v193, 0.0
  %253 = vadd.xlane.f32.xlu0 %v252
  %v254 = vpop.xlane.xlu0 %253
  %v255 = vsel %vm230, %v198, 0.0
  %256 = vadd.xlane.f32.xlu0 %v255
  %v257 = vpop.xlane.xlu0 %256
  %v258 = vsel %vm230, %v201, 0.0
  %259 = vadd.xlane.f32.xlu0 %v258
  %v260 = vpop.xlane.xlu0 %259
  %v261 = vsel %vm230, %v206, 0.0
  %262 = vadd.xlane.f32.xlu0 %v261
  %v263 = vpop.xlane.xlu0 %262
  %v264 = vsel %vm230, %v209, 0.0
  %265 = vadd.xlane.f32.xlu0 %v264
  %v266 = vpop.xlane.xlu0 %265
  %v267 = vsel %vm230, %v214, 0.0
  %268 = vadd.xlane.f32.xlu0 %v267
  %v269 = vpop.xlane.xlu0 %268
  %v270 = vsel %vm230, %v217, 0.0
  %271 = vadd.xlane.f32.xlu0 %v270
  %v272 = vpop.xlane.xlu0 %271
  %v273 = vsel %vm230, %v222, 0.0
  %274 = vadd.xlane.f32.xlu0 %v273
  %v275 = vpop.xlane.xlu0 %274
  %v276 = vsel %vm230, %v225, 0.0
  %277 = vadd.xlane.f32.xlu0 %v276
  %v278 = vpop.xlane.xlu0 %277
  %v279 = vrcp.pop 16.0
  %v280 = vmul.f32 %v233, %v279
  %v281 = vmul.f32 %v236, %v279
  %v282 = vmul.f32 %v239, %v279
  %v283 = vmul.f32 %v242, %v279
  %v284 = vmul.f32 %v245, %v279
  %v285 = vmul.f32 %v248, %v279
  %v286 = vmul.f32 %v251, %v279
  %v287 = vmul.f32 %v254, %v279
  %v288 = vmul.f32 %v257, %v279
  %v289 = vmul.f32 %v260, %v279
  %v290 = vmul.f32 %v263, %v279
  %v291 = vmul.f32 %v266, %v279
  %v292 = vmul.f32 %v269, %v279
  %v293 = vmul.f32 %v272, %v279
  %v294 = vmul.f32 %v275, %v279
  %v295 = vmul.f32 %v278, %v279
  %v296 = vsub.f32 %v166, %v280
  %v297 = vsub.f32 %v169, %v281
  %v298 = vsub.f32 %v174, %v282
  %v299 = vsub.f32 %v177, %v283
  %v300 = vsub.f32 %v182, %v284
  %v301 = vsub.f32 %v185, %v285
  %v302 = vsub.f32 %v190, %v286
  %v303 = vsub.f32 %v193, %v287
  %v304 = vsub.f32 %v198, %v288
  %v305 = vsub.f32 %v201, %v289
  %v306 = vsub.f32 %v206, %v290
  %v307 = vsub.f32 %v209, %v291
  %v308 = vsub.f32 %v214, %v292
  %v309 = vsub.f32 %v217, %v293
  %v310 = vsub.f32 %v222, %v294
  %v311 = vsub.f32 %v225, %v295
  %v312 = vmul.f32 %v296, %v296
  %v313 = vmul.f32 %v297, %v297
  %v314 = vmul.f32 %v298, %v298
  %v315 = vmul.f32 %v299, %v299
  %v316 = vmul.f32 %v300, %v300
  %v317 = vmul.f32 %v301, %v301
  %v318 = vmul.f32 %v302, %v302
  %v319 = vmul.f32 %v303, %v303
  %v320 = vmul.f32 %v304, %v304
  %v321 = vmul.f32 %v305, %v305
  %v322 = vmul.f32 %v306, %v306
  %v323 = vmul.f32 %v307, %v307
  %v324 = vmul.f32 %v308, %v308
  %v325 = vmul.f32 %v309, %v309
  %v326 = vmul.f32 %v310, %v310
  %v327 = vmul.f32 %v311, %v311
  %v328 = vsel %vm230, %v312, 0.0
  %329 = vadd.xlane.f32.xlu0 %v328
  %v330 = vpop.xlane.xlu0 %329
  %v331 = vsel %vm230, %v313, 0.0
  %332 = vadd.xlane.f32.xlu0 %v331
  %v333 = vpop.xlane.xlu0 %332
  %v334 = vsel %vm230, %v314, 0.0
  %335 = vadd.xlane.f32.xlu0 %v334
  %v336 = vpop.xlane.xlu0 %335
  %v337 = vsel %vm230, %v315, 0.0
  %338 = vadd.xlane.f32.xlu0 %v337
  %v339 = vpop.xlane.xlu0 %338
  %v340 = vsel %vm230, %v316, 0.0
  %341 = vadd.xlane.f32.xlu0 %v340
  %v342 = vpop.xlane.xlu0 %341
  %v343 = vsel %vm230, %v317, 0.0
  %344 = vadd.xlane.f32.xlu0 %v343
  %v345 = vpop.xlane.xlu0 %344
  %v346 = vsel %vm230, %v318, 0.0
  %347 = vadd.xlane.f32.xlu0 %v346
  %v348 = vpop.xlane.xlu0 %347
  %v349 = vsel %vm230, %v319, 0.0
  %350 = vadd.xlane.f32.xlu0 %v349
  %v351 = vpop.xlane.xlu0 %350
  %v352 = vsel %vm230, %v320, 0.0
  %353 = vadd.xlane.f32.xlu0 %v352
  %v354 = vpop.xlane.xlu0 %353
  %v355 = vsel %vm230, %v321, 0.0
  %356 = vadd.xlane.f32.xlu0 %v355
  %v357 = vpop.xlane.xlu0 %356
  %v358 = vsel %vm230, %v322, 0.0
  %359 = vadd.xlane.f32.xlu0 %v358
  %v360 = vpop.xlane.xlu0 %359
  %v361 = vsel %vm230, %v323, 0.0
  %362 = vadd.xlane.f32.xlu0 %v361
  %v363 = vpop.xlane.xlu0 %362
  %v364 = vsel %vm230, %v324, 0.0
  %365 = vadd.xlane.f32.xlu0 %v364
  %v366 = vpop.xlane.xlu0 %365
  %v367 = vsel %vm230, %v325, 0.0
  %368 = vadd.xlane.f32.xlu0 %v367
  %v369 = vpop.xlane.xlu0 %368
  %v370 = vsel %vm230, %v326, 0.0
  %371 = vadd.xlane.f32.xlu0 %v370
  %v372 = vpop.xlane.xlu0 %371
  %v373 = vsel %vm230, %v327, 0.0
  %374 = vadd.xlane.f32.xlu0 %v373
  %v375 = vpop.xlane.xlu0 %374
  %v376 = vmul.f32 %v330, %v279
  %v377 = vmul.f32 %v333, %v279
  %v378 = vmul.f32 %v336, %v279
  %v379 = vmul.f32 %v339, %v279
  %v380 = vmul.f32 %v342, %v279
  %v381 = vmul.f32 %v345, %v279
  %v382 = vmul.f32 %v348, %v279
  %v383 = vmul.f32 %v351, %v279
  %v384 = vmul.f32 %v354, %v279
  %v385 = vmul.f32 %v357, %v279
  %v386 = vmul.f32 %v360, %v279
  %v387 = vmul.f32 %v363, %v279
  %v388 = vmul.f32 %v366, %v279
  %v389 = vmul.f32 %v369, %v279
  %v390 = vmul.f32 %v372, %v279
  %v391 = vmul.f32 %v375, %v279
  %v392 = vadd.f32 %v376, 1e-05
  %v393 = vadd.f32 %v377, 1e-05
  %v394 = vadd.f32 %v378, 1e-05
  %v395 = vadd.f32 %v379, 1e-05
  %v396 = vadd.f32 %v380, 1e-05
  %v397 = vadd.f32 %v381, 1e-05
  %v398 = vadd.f32 %v382, 1e-05
  %v399 = vadd.f32 %v383, 1e-05
  %v400 = vadd.f32 %v384, 1e-05
  %v401 = vadd.f32 %v385, 1e-05
  %v402 = vadd.f32 %v386, 1e-05
  %v403 = vadd.f32 %v387, 1e-05
  %v404 = vadd.f32 %v388, 1e-05
  %v405 = vadd.f32 %v389, 1e-05
  %v406 = vadd.f32 %v390, 1e-05
  %v407 = vadd.f32 %v391, 1e-05
  %v408 = vrsqrt.pop %v392
  %v409 = vrsqrt.pop %v393
  %v410 = vrsqrt.pop %v394
  %v411 = vrsqrt.pop %v395
  %v412 = vrsqrt.pop %v396
  %v413 = vrsqrt.pop %v397
  %v414 = vrsqrt.pop %v398
  %v415 = vrsqrt.pop %v399
  %v416 = vrsqrt.pop %v400
  %v417 = vrsqrt.pop %v401
  %v418 = vrsqrt.pop %v402
  %v419 = vrsqrt.pop %v403
  %v420 = vrsqrt.pop %v404
  %v421 = vrsqrt.pop %v405
  %v422 = vrsqrt.pop %v406
  %v423 = vrsqrt.pop %v407
  %v424 = vmul.f32 %v296, %v408
  %v425 = vmul.f32 %v297, %v409
  %v426 = vmul.f32 %v298, %v410
  %v427 = vmul.f32 %v299, %v411
  %v428 = vmul.f32 %v300, %v412
  %v429 = vmul.f32 %v301, %v413
  %v430 = vmul.f32 %v302, %v414
  %v431 = vmul.f32 %v303, %v415
  %v432 = vmul.f32 %v304, %v416
  %v433 = vmul.f32 %v305, %v417
  %v434 = vmul.f32 %v306, %v418
  %v435 = vmul.f32 %v307, %v419
  %v436 = vmul.f32 %v308, %v420
  %v437 = vmul.f32 %v309, %v421
  %v438 = vmul.f32 %v310, %v422
  %v439 = vmul.f32 %v311, %v423
  %v441 = vlaneseq
  %v442 = vshrl.u32 %v441, 7
  %v443 = vsub.s32 0, %v442
  %v444 = vrot.slane %v228, %v443
  %v446 = vmul.f32 %v424, %v444
  %v447 = vmul.f32 %v425, %v444
  %v448 = vmul.f32 %v426, %v444
  %v449 = vmul.f32 %v427, %v444
  %v450 = vmul.f32 %v428, %v444
  %v451 = vmul.f32 %v429, %v444
  %v452 = vmul.f32 %v430, %v444
  %v453 = vmul.f32 %v431, %v444
  %v454 = vmul.f32 %v432, %v444
  %v455 = vmul.f32 %v433, %v444
  %v456 = vmul.f32 %v434, %v444
  %v457 = vmul.f32 %v435, %v444
  %v458 = vmul.f32 %v436, %v444
  %v459 = vmul.f32 %v437, %v444
  %v460 = vmul.f32 %v438, %v444
  %v461 = vmul.f32 %v439, %v444
  %v463 = vlaneseq
  %v464 = vshrl.u32 %v463, 7
  %v465 = vsub.s32 0, %v464
  %v466 = vrot.slane %v229, %v465
  %v468 = vadd.f32 %v446, %v466
  %v469 = vadd.f32 %v447, %v466
  %v470 = vadd.f32 %v448, %v466
  %v471 = vadd.f32 %v449, %v466
  %v472 = vadd.f32 %v450, %v466
  %v473 = vadd.f32 %v451, %v466
  %v474 = vadd.f32 %v452, %v466
  %v475 = vadd.f32 %v453, %v466
  %v476 = vadd.f32 %v454, %v466
  %v477 = vadd.f32 %v455, %v466
  %v478 = vadd.f32 %v456, %v466
  %v479 = vadd.f32 %v457, %v466
  %v480 = vadd.f32 %v458, %v466
  %v481 = vadd.f32 %v459, %v466
  %v482 = vadd.f32 %v460, %v466
  %v483 = vadd.f32 %v461, %v466
  %484 = vst.msk [vmem:[%s5] sm:$0xff] %vm230, %v468
  %485 = vst.msk [vmem:[%s5 + $0x8] sm:$0xff] %vm230, %v469
  %486 = vst.msk [vmem:[%s5 + $0x10] sm:$0xff] %vm230, %v470
  %487 = vst.msk [vmem:[%s5 + $0x18] sm:$0xff] %vm230, %v471
  %488 = vst.msk [vmem:[%s5 + $0x20] sm:$0xff] %vm230, %v472
  %489 = vst.msk [vmem:[%s5 + $0x28] sm:$0xff] %vm230, %v473
  %490 = vst.msk [vmem:[%s5 + $0x30] sm:$0xff] %vm230, %v474
  %491 = vst.msk [vmem:[%s5 + $0x38] sm:$0xff] %vm230, %v475
  %492 = vst.msk [vmem:[%s5 + $0x40] sm:$0xff] %vm230, %v476
  %493 = vst.msk [vmem:[%s5 + $0x48] sm:$0xff] %vm230, %v477
  %494 = vst.msk [vmem:[%s5 + $0x50] sm:$0xff] %vm230, %v478
  %495 = vst.msk [vmem:[%s5 + $0x58] sm:$0xff] %vm230, %v479
  %496 = vst.msk [vmem:[%s5 + $0x60] sm:$0xff] %vm230, %v480
  %497 = vst.msk [vmem:[%s5 + $0x68] sm:$0xff] %vm230, %v481
  %498 = vst.msk [vmem:[%s5 + $0x70] sm:$0xff] %vm230, %v482
  %499 = vst.msk [vmem:[%s5 + $0x78] sm:$0xff] %vm230, %v483
  // Predicated region
  $region22: #{cvt_forward.5} parent=0 // pred_check
    _
  $region23: #{cvt_forward.5} parent=0 // pred_check_branch
    %501 = sbr.rel (0) target = $region25
  $region24: #{cvt_forward.5} parent=0 // pred_region
    _
  $region25: #{cvt_forward.5} parent=0 // pred_fallthru
    _
  // Predicated region
  $region26: #{cvt_forward.5} parent=0 // pred_check
    _
  $region27: #{cvt_forward.5} parent=0 // pred_check_branch
    %503 = sbr.rel (0) target = $region29
  $region28: #{cvt_forward.5} parent=0 // pred_region
    _
  $region29: #{cvt_forward.5} parent=0 // pred_fallthru
    _

// kernel: cvt_forward.7
$region0: #{cvt_forward.7}
  #allocation0 [shape = 'u32[]', space=smem, size = 0x4, offset = 0x4, fixed_abs, tag = 'smem constant byte address 0x4 - core index']
  #allocation1 [shape = 'u32[144,128]{1,0:T(1,128)}', space=vmem, size = 0x12000, scoped, tag = 'internal scratch']
  %s0 = inlined_call_operand.vmem [shape: bf16[32,144], index: 0, kind: input, shape index: {}]
  %s1 = inlined_call_operand.vmem [shape: bf16[144,32], index: 1, kind: input, shape index: {}]
  %s2 = inlined_call_operand.vmem [shape: f32[1,32], index: 2, kind: input, shape index: {}]
  %s3 = inlined_call_operand.vmem [shape: f32[1,32], index: 3, kind: input, shape index: {}]
  %s4 = inlined_call_operand.vmem [shape: f32[1,32], index: 4, kind: input, shape index: {}]
  %s5 = inlined_call_operand.vmem [shape: f32[32,32], index: 5, kind: output, shape index: {}]
  %s6 = sld [smem:[#allocation0]]
  $region30: #{cvt_forward.7} parent=0
    _
  %s8 = ssub.s32 1, %s6
  %s9 = scalar_select 0, %s8, %s6
  // Predicated region
  $region2: #{cvt_forward.7} parent=0 // pred_check
    _
  $region3: #{cvt_forward.7} parent=0 // pred_check_branch
    %11 = sbr.rel (0) target = $region5
  $region4: #{cvt_forward.7} parent=0 // pred_region
    _
  $region5: #{cvt_forward.7} parent=0 // pred_fallthru
    _
  // Predicated region
  $region6: #{cvt_forward.7} parent=0 // pred_check
    _
  $region7: #{cvt_forward.7} parent=0 // pred_check_branch
    %13 = sbr.rel (0) target = $region9
  $region8: #{cvt_forward.7} parent=0 // pred_region
    _
  $region9: #{cvt_forward.7} parent=0 // pred_fallthru
    _
  // Predicated region
  $region10: #{cvt_forward.7} parent=0 // pred_check
    _
  $region11: #{cvt_forward.7} parent=0 // pred_check_branch
    %15 = sbr.rel (0) target = $region13
  $region12: #{cvt_forward.7} parent=0 // pred_region
    _
  $region13: #{cvt_forward.7} parent=0 // pred_fallthru
    _
  // Predicated region
  $region14: #{cvt_forward.7} parent=0 // pred_check
    _
  $region15: #{cvt_forward.7} parent=0 // pred_check_branch
    %17 = sbr.rel (0) target = $region17
  $region16: #{cvt_forward.7} parent=0 // pred_region
    _
  $region17: #{cvt_forward.7} parent=0 // pred_fallthru
    _
  // Predicated region
  $region18: #{cvt_forward.7} parent=0 // pred_check
    _
  $region19: #{cvt_forward.7} parent=0 // pred_check_branch
    %19 = sbr.rel (0) target = $region21
  $region20: #{cvt_forward.7} parent=0 // pred_region
    _
  $region21: #{cvt_forward.7} parent=0 // pred_fallthru
    _
  %v21 = vld [vmem:[%s0] sm:$0xff]
  %v22 = vld [vmem:[%s0 + $0x8] sm:$0xff]
  %v23 = vld [vmem:[%s0 + $0x10] sm:$0xff]
  %v24 = vld [vmem:[%s0 + $0x18] sm:$0xff]
  %v25 = vld [vmem:[%s1] sm:$0xf]
  %v26 = vld [vmem:[%s1 + $0x4] sm:$0xf]
  %v27 = vld [vmem:[%s1 + $0x8] sm:$0xf]
  %v28 = vld [vmem:[%s1 + $0xc] sm:$0xf]
  %v29 = vld [vmem:[%s1 + $0x10] sm:$0xf]
  %v30 = vld [vmem:[%s1 + $0x14] sm:$0xf]
  %v31 = vld [vmem:[%s1 + $0x18] sm:$0xf]
  %v32 = vld [vmem:[%s1 + $0x1c] sm:$0xf]
  %v33 = vld [vmem:[%s1 + $0x20] sm:$0xf]
  %v34 = vld [vmem:[%s1 + $0x24] sm:$0xf]
  %v35 = vld [vmem:[%s1 + $0x28] sm:$0xf]
  %v36 = vld [vmem:[%s1 + $0x2c] sm:$0xf]
  %v37 = vld [vmem:[%s1 + $0x30] sm:$0xf]
  %v38 = vld [vmem:[%s1 + $0x34] sm:$0xf]
  %v39 = vld [vmem:[%s1 + $0x38] sm:$0xf]
  %v40 = vld [vmem:[%s1 + $0x3c] sm:$0xf]
  %v41 = vld [vmem:[%s1 + $0x40] sm:$0xf]
  %v42 = vld [vmem:[%s1 + $0x44] sm:$0xf]
  %v43 = vld [vmem:[%s2] sm:$0x1]
  %v45 = vlaneseq
  %v46 = vshrl.u32 %v45, 7
  %v47 = vsub.s32 0, %v46
  %v48 = vrot.slane %v43, %v47
  %v54 = vunpack.c.l.b16 %v21
  %v55 = vunpack.c.h.b16 %v21
  %v56 = vunpack.c.l.b16 %v22
  %v57 = vunpack.c.h.b16 %v22
  %v58 = vunpack.c.l.b16 %v23
  %v59 = vunpack.c.h.b16 %v23
  %v60 = vunpack.c.l.b16 %v24
  %v61 = vunpack.c.h.b16 %v24
  %v62 = vpack.c.b16 %v56, %v54
  %v63 = vpack.c.b16 %v57, %v55
  %v64 = vpack.c.b16 %v60, %v58
  %v65 = vpack.c.b16 %v61, %v59
  %v86 = vunpack.c.l.b16 %v25
  %v87 = vunpack.c.l.b16 %v26
  %v88 = vunpack.c.l.b16 %v27
  %v89 = vunpack.c.l.b16 %v28
  %v90 = vunpack.c.l.b16 %v29
  %v91 = vunpack.c.l.b16 %v30
  %v92 = vunpack.c.l.b16 %v31
  %v93 = vunpack.c.l.b16 %v32
  %v94 = vunpack.c.l.b16 %v33
  %v95 = vunpack.c.l.b16 %v34
  %v96 = vunpack.c.l.b16 %v35
  %v97 = vunpack.c.l.b16 %v36
  %v98 = vunpack.c.l.b16 %v37
  %v99 = vunpack.c.l.b16 %v38
  %v100 = vunpack.c.l.b16 %v39
  %v101 = vunpack.c.l.b16 %v40
  %v102 = vunpack.c.l.b16 %v41
  %v103 = vunpack.c.l.b16 %v42
  %v104 = vpack.c.b16 %v87, %v86
  %v105 = vpack.c.b16 %v89, %v88
  %v106 = vpack.c.b16 %v91, %v90
  %v107 = vpack.c.b16 %v93, %v92
  %v108 = vpack.c.b16 %v95, %v94
  %v109 = vpack.c.b16 %v97, %v96
  %v110 = vpack.c.b16 %v99, %v98
  %v111 = vpack.c.b16 %v101, %v100
  %v112 = vpack.c.b16 %v103, %v102
  %vm122 = vcmask 130048
  %v124 = vsel %vm122, %v63, 0
  %v127 = vsel %vm122, %v65, 0
  %129 = vmatprep.subr.bf16.mxu0 0
  %130 = vmatpush1.bf16.msra.mxu0 %v104
  %131 = vmatprep.subr.bf16.mxu0 0
  %132 = vmatpush1.bf16.msra.mxu0 %v105
  %133 = vmatprep.subr.bf16.mxu0 0
  %134 = vmatpush1.bf16.msra.mxu0 %v106
  %135 = vmatprep.subr.bf16.mxu0 0
  %136 = vmatpush1.bf16.msra.mxu0 %v107
  %137 = vmatprep.subr.bf16.mxu0 0
  %138 = vmatpush1.bf16.msra.mxu0 %v108
  %139 = vmatprep.subr.bf16.mxu0 0
  %140 = vmatpush1.bf16.msra.mxu0 %v109
  %141 = vmatprep.subr.bf16.mxu0 0
  %142 = vmatpush1.bf16.msra.mxu0 %v110
  %143 = vmatprep.subr.bf16.mxu0 0
  %144 = vmatpush1.bf16.msra.mxu0 %v111
  %145 = vmatprep.subr.bf16.mxu0 0
  %146 = vmatpush1.bf16.msra.mxu0 %v112
  %147 = vmatprep.subr.bf16.mxu0 0
  %148 = vmatpush1.bf16.msra.mxu0 0
  %149 = vmatprep.subr.bf16.mxu0 0
  %150 = vmatpush1.bf16.msra.mxu0 0
  %151 = vmatprep.subr.bf16.mxu0 0
  %152 = vmatpush1.bf16.msra.mxu0 0
  %153 = vmatprep.subr.bf16.mxu0 0
  %154 = vmatpush1.bf16.msra.mxu0 0
  %155 = vmatprep.subr.bf16.mxu0 0
  %156 = vmatpush1.bf16.msra.mxu0 0
  %157 = vmatprep.subr.bf16.mxu0 0
  %158 = vmatpush1.bf16.msra.mxu0 0
  %159 = vmatprep.subr.bf16.mxu0 0
  %160 = vmatpush1.bf16.msra.mxu0 0
  %161 = vmatprep.mubr.bf16.mxu0 %v124
  %162 = vmatmul.mubr.bf16.gmra.mrb[0].mxu0 %v62
  %v163 = vpop.f32.mrb[0].mxu0
  %v164 = vadd.f32 %v48, %v163
  %v165 = vpop.f32.mrb[0].mxu0
  %v166 = vpop.f32.mrb[0].mxu0
  %v167 = vadd.f32 %v48, %v166
  %v168 = vpop.f32.mrb[0].mxu0
  %169 = vmatprep.mubr.bf16.mxu0 %v127
  %170 = vmatmul.mubr.bf16.gmra.mrb[0].mxu0 %v64
  %v171 = vpop.f32.mrb[0].mxu0
  %v172 = vadd.f32 %v48, %v171
  %v173 = vpop.f32.mrb[0].mxu0
  %v174 = vpop.f32.mrb[0].mxu0
  %v175 = vadd.f32 %v48, %v174
  %v176 = vpop.f32.mrb[0].mxu0
  %177 = vdwg.mxu0
  %v178 = vld [vmem:[%s3] sm:$0x1]
  %v179 = vld [vmem:[%s4] sm:$0x1]
  %vm180 = vcmask 261120
  %v181 = vsel %vm180, %v164, 0.0
  %182 = vadd.xlane.f32.xlu0 %v181
  %v183 = vpop.xlane.xlu0 %182
  %v184 = vsel %vm180, %v167, 0.0
  %185 = vadd.xlane.f32.xlu0 %v184
  %v186 = vpop.xlane.xlu0 %185
  %v187 = vsel %vm180, %v172, 0.0
  %188 = vadd.xlane.f32.xlu0 %v187
  %v189 = vpop.xlane.xlu0 %188
  %v190 = vsel %vm180, %v175, 0.0
  %191 = vadd.xlane.f32.xlu0 %v190
  %v192 = vpop.xlane.xlu0 %191
  %v193 = vrcp.pop 32.0
  %v194 = vmul.f32 %v183, %v193
  %v195 = vmul.f32 %v186, %v193
  %v196 = vmul.f32 %v189, %v193
  %v197 = vmul.f32 %v192, %v193
  %v198 = vsub.f32 %v164, %v194
  %v199 = vsub.f32 %v167, %v195
  %v200 = vsub.f32 %v172, %v196
  %v201 = vsub.f32 %v175, %v197
  %v202 = vmul.f32 %v198, %v198
  %v203 = vmul.f32 %v199, %v199
  %v204 = vmul.f32 %v200, %v200
  %v205 = vmul.f32 %v201, %v201
  %v206 = vsel %vm180, %v202, 0.0
  %207 = vadd.xlane.f32.xlu0 %v206
  %v208 = vpop.xlane.xlu0 %207
  %v209 = vsel %vm180, %v203, 0.0
  %210 = vadd.xlane.f32.xlu0 %v209
  %v211 = vpop.xlane.xlu0 %210
  %v212 = vsel %vm180, %v204, 0.0
  %213 = vadd.xlane.f32.xlu0 %v212
  %v214 = vpop.xlane.xlu0 %213
  %v215 = vsel %vm180, %v205, 0.0
  %216 = vadd.xlane.f32.xlu0 %v215
  %v217 = vpop.xlane.xlu0 %216
  %v218 = vmul.f32 %v208, %v193
  %v219 = vmul.f32 %v211, %v193
  %v220 = vmul.f32 %v214, %v193
  %v221 = vmul.f32 %v217, %v193
  %v222 = vadd.f32 %v218, 1e-05
  %v223 = vadd.f32 %v219, 1e-05
  %v224 = vadd.f32 %v220, 1e-05
  %v225 = vadd.f32 %v221, 1e-05
  %v226 = vrsqrt.pop %v222
  %v227 = vrsqrt.pop %v223
  %v228 = vrsqrt.pop %v224
  %v229 = vrsqrt.pop %v225
  %v230 = vmul.f32 %v198, %v226
  %v231 = vmul.f32 %v199, %v227
  %v232 = vmul.f32 %v200, %v228
  %v233 = vmul.f32 %v201, %v229
  %v235 = vlaneseq
  %v236 = vshrl.u32 %v235, 7
  %v237 = vsub.s32 0, %v236
  %v238 = vrot.slane %v178, %v237
  %v240 = vmul.f32 %v230, %v238
  %v241 = vmul.f32 %v231, %v238
  %v242 = vmul.f32 %v232, %v238
  %v243 = vmul.f32 %v233, %v238
  %v245 = vlaneseq
  %v246 = vshrl.u32 %v245, 7
  %v247 = vsub.s32 0, %v246
  %v248 = vrot.slane %v179, %v247
  %v250 = vadd.f32 %v240, %v248
  %v251 = vadd.f32 %v241, %v248
  %v252 = vadd.f32 %v242, %v248
  %v253 = vadd.f32 %v243, %v248
  %254 = vst.msk [vmem:[%s5] sm:$0xff] %vm180, %v250
  %255 = vst.msk [vmem:[%s5 + $0x8] sm:$0xff] %vm180, %v251
  %256 = vst.msk [vmem:[%s5 + $0x10] sm:$0xff] %vm180, %v252
  %257 = vst.msk [vmem:[%s5 + $0x18] sm:$0xff] %vm180, %v253
  // Predicated region
  $region22: #{cvt_forward.7} parent=0 // pred_check
    _
  $region23: #{cvt_forward.7} parent=0 // pred_check_branch
    %259 = sbr.rel (0) target = $region25
  $region24: #{cvt_forward.7} parent=0 // pred_region
    _
  $region25: #{cvt_forward.7} parent=0 // pred_fallthru
    _
  // Predicated region
  $region26: #{cvt_forward.7} parent=0 // pred_check
    _
  $region27: #{cvt_forward.7} parent=0 // pred_check_branch
    %261 = sbr.rel (0) target = $region29
  $region28: #{cvt_forward.7} parent=0 // pred_region
    _
  $region29: #{cvt_forward.7} parent=0 // pred_fallthru
    _

// kernel: cvt_forward.6
$region0: #{cvt_forward.6}
  #allocation0 [shape = 'u32[]', space=smem, size = 0x4, offset = 0x4, fixed_abs, tag = 'smem constant byte address 0x4 - core index']
  #allocation1 [shape = 'u32[144,128]{1,0:T(1,128)}', space=vmem, size = 0x12000, scoped, tag = 'internal scratch']
  #allocation2 [shape = 'f32[10,10,16]{2,1,0:T(8,128)}', space=vmem, size = 0x14000, scoped, tag = 'scratch operand']
  #allocation3 [shape = 'f32[64,16]{1,0:T(8,128)}', space=vmem, size = 0x8000, scoped, tag = 'scratch operand']
  #allocation4 [shape = 'f32[16,16]{1,0:T(8,128)}', space=vmem, size = 0x2000, scoped, tag = 'scratch operand']
  #allocation5 [shape = 'f32[16,16]{1,0:T(8,128)}', space=vmem, size = 0x2000, scoped, tag = 'scratch operand']
  %s0 = inlined_call_operand.vmem [shape: f32[2,64,16], index: 0, kind: input, shape index: {}]
  %s1 = inlined_call_operand.vmem [shape: bf16[16,64], index: 1, kind: input, shape index: {}]
  %s2 = inlined_call_operand.vmem [shape: f32[1,16], index: 2, kind: input, shape index: {}]
  %s3 = inlined_call_operand.vmem [shape: f32[1,16], index: 3, kind: input, shape index: {}]
  %s4 = inlined_call_operand.vmem [shape: f32[9,1,16], index: 4, kind: input, shape index: {}]
  %s5 = inlined_call_operand.vmem [shape: f32[1,16], index: 5, kind: input, shape index: {}]
  %s6 = inlined_call_operand.vmem [shape: f32[9,1,16], index: 6, kind: input, shape index: {}]
  %s7 = inlined_call_operand.vmem [shape: f32[1,16], index: 7, kind: input, shape index: {}]
  %s8 = inlined_call_operand.vmem [shape: f32[9,1,16], index: 8, kind: input, shape index: {}]
  %s9 = inlined_call_operand.vmem [shape: f32[1,16], index: 9, kind: input, shape index: {}]
  %s10 = inlined_call_operand.vmem [shape: bf16[16,16], index: 10, kind: input, shape index: {}]
  %s11 = inlined_call_operand.vmem [shape: f32[1,16], index: 11, kind: input, shape index: {}]
  %s12 = inlined_call_operand.vmem [shape: bf16[16,16], index: 12, kind: input, shape index: {}]
  %s13 = inlined_call_operand.vmem [shape: f32[1,16], index: 13, kind: input, shape index: {}]
  %s14 = inlined_call_operand.vmem [shape: bf16[16,16], index: 14, kind: input, shape index: {}]
  %s15 = inlined_call_operand.vmem [shape: f32[1,16], index: 15, kind: input, shape index: {}]
  %s16 = inlined_call_operand.vmem [shape: bf16[16,16], index: 16, kind: input, shape index: {}]
  %s17 = inlined_call_operand.vmem [shape: f32[1,16], index: 17, kind: input, shape index: {}]
  %s18 = inlined_call_operand.vmem [shape: f32[1,16], index: 18, kind: input, shape index: {}]
  %s19 = inlined_call_operand.vmem [shape: f32[1,16], index: 19, kind: input, shape index: {}]
  %s20 = inlined_call_operand.vmem [shape: bf16[16,32], index: 20, kind: input, shape index: {}]
  %s21 = inlined_call_operand.vmem [shape: f32[1,32], index: 21, kind: input, shape index: {}]
  %s22 = inlined_call_operand.vmem [shape: bf16[32,16], index: 22, kind: input, shape index: {}]
  %s23 = inlined_call_operand.vmem [shape: f32[1,16], index: 23, kind: input, shape index: {}]
  %s24 = inlined_call_operand.vmem [shape: f32[2,64,16], index: 24, kind: output, shape index: {}]
  %s25 = sld [smem:[#allocation0]]
  $region129: #{cvt_forward.6} parent=0
    _
  %s27 = ssub.s32 1, %s25
  %s28 = scalar_select 0, %s27, %s25
  loop: start=0, step=1, limit=4
  $region2: #{cvt_forward.6} parent=0 // loop_pre_header
    _
  $region3: #{cvt_forward.6} parent=0 // loop_header
    %s30 = sphi 0, %s34
    %p31 = scmp.ge.s32.totalorder %s30, 4
    %s40 = sphi 0, %s42
    %s43 = sphi 0, %s40
    %s44 = sphi 0, %s43
    %s60 = sphi 0, %s44
    %s64 = sphi 0, %s64
    %s66 = sphi 0, %s64
    %s67 = sphi 0, %s66
    %s81 = sphi 0, %s67
    %s85 = sphi 0, %s85
    %s87 = sphi 0, %s85
    %s88 = sphi 0, %s87
    %s102 = sphi 0, %s88
    %s106 = sphi 0, %s106
    %s108 = sphi 0, %s106
    %s109 = sphi 0, %s108
    %s123 = sphi 0, %s109
    %s127 = sphi 0, %s127
    %s129 = sphi 0, %s127
    %s130 = sphi 0, %s129
    %s144 = sphi 0, %s130
    %s148 = sphi 0, %s148
    %s150 = sphi 0, %s148
    %s151 = sphi 0, %s150
    %s165 = sphi 0, %s151
    %s169 = sphi 0, %s169
    %s171 = sphi 0, %s169
    %s172 = sphi 0, %s171
    %s186 = sphi 0, %s172
    %s190 = sphi 0, %s190
    %s192 = sphi 0, %s190
    %s193 = sphi 0, %s192
    %s207 = sphi 0, %s193
    %s211 = sphi 0, %s211
    %s213 = sphi 0, %s211
    %s214 = sphi 0, %s213
    %s228 = sphi 0, %s214
    %s232 = sphi 0, %s232
    %s234 = sphi 0, %s232
    %s235 = sphi 0, %s234
    %s249 = sphi 0, %s235
    %s253 = sphi 0, %s253
    %s255 = sphi 0, %s253
    %s256 = sphi 0, %s255
    %s270 = sphi 0, %s256
    %s274 = sphi 0, %s274
    %s276 = sphi 0, %s274
    %s277 = sphi 0, %s276
    %s291 = sphi 0, %s277
    %s295 = sphi 0, %s295
    %s297 = sphi 0, %s295
    %s298 = sphi 0, %s297
    %s312 = sphi 0, %s298
    %s316 = sphi 0, %s316
    %s318 = sphi 0, %s316
    %s319 = sphi 0, %s318
    %s333 = sphi 0, %s319
    %s337 = sphi 0, %s337
    %s339 = sphi 0, %s337
    %s340 = sphi 0, %s339
    %s354 = sphi 0, %s340
    %s358 = sphi 0, %s358
    %s360 = sphi 0, %s358
    %s361 = sphi 0, %s360
    %s375 = sphi 0, %s361
    %s379 = sphi 0, %s379
    %s381 = sphi 0, %s379
    %s382 = sphi 0, %s381
    %s396 = sphi 0, %s382
    %s400 = sphi 0, %s400
    %s402 = sphi 0, %s400
    %s403 = sphi 0, %s402
    %s417 = sphi 0, %s403
    %s421 = sphi 0, %s421
    %s423 = sphi 0, %s421
    %s424 = sphi 0, %s423
    %s438 = sphi 0, %s424
    %s442 = sphi 0, %s442
    %s444 = sphi 0, %s442
    %s445 = sphi 0, %s444
    %s459 = sphi 0, %s445
    %s463 = sphi 0, %s463
    %s465 = sphi 0, %s463
    %s466 = sphi 0, %s465
    %s480 = sphi 0, %s466
    %s484 = sphi 0, %s484
    %s486 = sphi 0, %s484
    %s487 = sphi 0, %s486
    %s501 = sphi 0, %s487
    %s505 = sphi 0, %s505
    %s507 = sphi 0, %s505
    %s508 = sphi 0, %s507
    %s522 = sphi 0, %s508
    %s526 = sphi 0, %s526
    %s528 = sphi 0, %s526
    %s529 = sphi 0, %s528
    %s543 = sphi 0, %s529
    %s549 = sphi 0, %s551
    %s552 = sphi 0, %s549
    %s553 = sphi 0, %s552
    %s569 = sphi 0, %s553
  $region4: #{cvt_forward.6} parent=0 // loop_header_branch
    %33 = sbr.rel (%p31) target = $region8
  $region5: #{cvt_forward.6} parent=0 // loop_body
    %s35 = ssub.s32 %s30, 1
    %s36 = ssub.s32 %s30, 2
    %s37 = sadd.s32 %s30, 1
    %s38 = ssub.s32 %s30, %s37
    %p39 = scmp.eq.s32.totalorder %s38, 0
    %s41 = sadd.s32 %s40, 1
    %s42 = scalar_select %p39, %s40, %s41
    %p45 = pneg %p39
    %p46 = scmp.eq.s32.totalorder %s30, 1
    %p47 = por %p45, %p46
    %p48 = scmp.ne.s32.totalorder %s40, %s43
    %p49 = scmp.eq.s32.totalorder %s30, 0
    %p50 = por %p48, %p49
    %p51 = scmp.ne.s32.totalorder %s40, %s43
    %p52 = scmp.eq.s32.totalorder %s35, 1
    %p53 = por %p51, %p52
    %p54 = scmp.ne.s32.totalorder %s43, %s44
    %p55 = scmp.eq.s32.totalorder %s35, 0
    %p56 = por %p54, %p55
    %p57 = scmp.ne.s32.totalorder %s43, %s44
    %p58 = scmp.eq.s32.totalorder %s36, 1
    %p59 = por %p57, %p58
    %p61 = scmp.ne.s32.totalorder %s44, %s60
    %p62 = scmp.eq.s32.totalorder %s36, 0
    %p63 = por %p61, %p62
    %s65 = sadd.s32 %s64, 1
    %p68 = scmp.eq.s32.totalorder %s30, 1
    %p69 = scmp.ne.s32.totalorder %s64, %s66
    %p70 = scmp.eq.s32.totalorder %s30, 0
    %p71 = por %p69, %p70
    %p72 = scmp.ne.s32.totalorder %s64, %s66
    %p73 = scmp.eq.s32.totalorder %s35, 1
    %p74 = por %p72, %p73
    %p75 = scmp.ne.s32.totalorder %s66, %s67
    %p76 = scmp.eq.s32.totalorder %s35, 0
    %p77 = por %p75, %p76
    %p78 = scmp.ne.s32.totalorder %s66, %s67
    %p79 = scmp.eq.s32.totalorder %s36, 1
    %p80 = por %p78, %p79
    %p82 = scmp.ne.s32.totalorder %s67, %s81
    %p83 = scmp.eq.s32.totalorder %s36, 0
    %p84 = por %p82, %p83
    %s86 = sadd.s32 %s85, 1
    %p89 = scmp.eq.s32.totalorder %s30, 1
    %p90 = scmp.ne.s32.totalorder %s85, %s87
    %p91 = scmp.eq.s32.totalorder %s30, 0
    %p92 = por %p90, %p91
    %p93 = scmp.ne.s32.totalorder %s85, %s87
    %p94 = scmp.eq.s32.totalorder %s35, 1
    %p95 = por %p93, %p94
    %p96 = scmp.ne.s32.totalorder %s87, %s88
    %p97 = scmp.eq.s32.totalorder %s35, 0
    %p98 = por %p96, %p97
    %p99 = scmp.ne.s32.totalorder %s87, %s88
    %p100 = scmp.eq.s32.totalorder %s36, 1
    %p101 = por %p99, %p100
    %p103 = scmp.ne.s32.totalorder %s88, %s102
    %p104 = scmp.eq.s32.totalorder %s36, 0
    %p105 = por %p103, %p104
    %s107 = sadd.s32 %s106, 1
    %p110 = scmp.eq.s32.totalorder %s30, 1
    %p111 = scmp.ne.s32.totalorder %s106, %s108
    %p112 = scmp.eq.s32.totalorder %s30, 0
    %p113 = por %p111, %p112
    %p114 = scmp.ne.s32.totalorder %s106, %s108
    %p115 = scmp.eq.s32.totalorder %s35, 1
    %p116 = por %p114, %p115
    %p117 = scmp.ne.s32.totalorder %s108, %s109
    %p118 = scmp.eq.s32.totalorder %s35, 0
    %p119 = por %p117, %p118
    %p120 = scmp.ne.s32.totalorder %s108, %s109
    %p121 = scmp.eq.s32.totalorder %s36, 1
    %p122 = por %p120, %p121
    %p124 = scmp.ne.s32.totalorder %s109, %s123
    %p125 = scmp.eq.s32.totalorder %s36, 0
    %p126 = por %p124, %p125
    %s128 = sadd.s32 %s127, 1
    %p131 = scmp.eq.s32.totalorder %s30, 1
    %p132 = scmp.ne.s32.totalorder %s127, %s129
    %p133 = scmp.eq.s32.totalorder %s30, 0
    %p134 = por %p132, %p133
    %p135 = scmp.ne.s32.totalorder %s127, %s129
    %p136 = scmp.eq.s32.totalorder %s35, 1
    %p137 = por %p135, %p136
    %p138 = scmp.ne.s32.totalorder %s129, %s130
    %p139 = scmp.eq.s32.totalorder %s35, 0
    %p140 = por %p138, %p139
    %p141 = scmp.ne.s32.totalorder %s129, %s130
    %p142 = scmp.eq.s32.totalorder %s36, 1
    %p143 = por %p141, %p142
    %p145 = scmp.ne.s32.totalorder %s130, %s144
    %p146 = scmp.eq.s32.totalorder %s36, 0
    %p147 = por %p145, %p146
    %s149 = sadd.s32 %s148, 1
    %p152 = scmp.eq.s32.totalorder %s30, 1
    %p153 = scmp.ne.s32.totalorder %s148, %s150
    %p154 = scmp.eq.s32.totalorder %s30, 0
    %p155 = por %p153, %p154
    %p156 = scmp.ne.s32.totalorder %s148, %s150
    %p157 = scmp.eq.s32.totalorder %s35, 1
    %p158 = por %p156, %p157
    %p159 = scmp.ne.s32.totalorder %s150, %s151
    %p160 = scmp.eq.s32.totalorder %s35, 0
    %p161 = por %p159, %p160
    %p162 = scmp.ne.s32.totalorder %s150, %s151
    %p163 = scmp.eq.s32.totalorder %s36, 1
    %p164 = por %p162, %p163
    %p166 = scmp.ne.s32.totalorder %s151, %s165
    %p167 = scmp.eq.s32.totalorder %s36, 0
    %p168 = por %p166, %p167
    %s170 = sadd.s32 %s169, 1
    %p173 = scmp.eq.s32.totalorder %s30, 1
    %p174 = scmp.ne.s32.totalorder %s169, %s171
    %p175 = scmp.eq.s32.totalorder %s30, 0
    %p176 = por %p174, %p175
    %p177 = scmp.ne.s32.totalorder %s169, %s171
    %p178 = scmp.eq.s32.totalorder %s35, 1
    %p179 = por %p177, %p178
    %p180 = scmp.ne.s32.totalorder %s171, %s172
    %p181 = scmp.eq.s32.totalorder %s35, 0
    %p182 = por %p180, %p181
    %p183 = scmp.ne.s32.totalorder %s171, %s172
    %p184 = scmp.eq.s32.totalorder %s36, 1
    %p185 = por %p183, %p184
    %p187 = scmp.ne.s32.totalorder %s172, %s186
    %p188 = scmp.eq.s32.totalorder %s36, 0
    %p189 = por %p187, %p188
    %s191 = sadd.s32 %s190, 1
    %p194 = scmp.eq.s32.totalorder %s30, 1
    %p195 = scmp.ne.s32.totalorder %s190, %s192
    %p196 = scmp.eq.s32.totalorder %s30, 0
    %p197 = por %p195, %p196
    %p198 = scmp.ne.s32.totalorder %s190, %s192
    %p199 = scmp.eq.s32.totalorder %s35, 1
    %p200 = por %p198, %p199
    %p201 = scmp.ne.s32.totalorder %s192, %s193
    %p202 = scmp.eq.s32.totalorder %s35, 0
    %p203 = por %p201, %p202
    %p204 = scmp.ne.s32.totalorder %s192, %s193
    %p205 = scmp.eq.s32.totalorder %s36, 1
    %p206 = por %p204, %p205
    %p208 = scmp.ne.s32.totalorder %s193, %s207
    %p209 = scmp.eq.s32.totalorder %s36, 0
    %p210 = por %p208, %p209
    %s212 = sadd.s32 %s211, 1
    %p215 = scmp.eq.s32.totalorder %s30, 1
    %p216 = scmp.ne.s32.totalorder %s211, %s213
    %p217 = scmp.eq.s32.totalorder %s30, 0
    %p218 = por %p216, %p217
    %p219 = scmp.ne.s32.totalorder %s211, %s213
    %p220 = scmp.eq.s32.totalorder %s35, 1
    %p221 = por %p219, %p220
    %p222 = scmp.ne.s32.totalorder %s213, %s214
    %p223 = scmp.eq.s32.totalorder %s35, 0
    %p224 = por %p222, %p223
    %p225 = scmp.ne.s32.totalorder %s213, %s214
    %p226 = scmp.eq.s32.totalorder %s36, 1
    %p227 = por %p225, %p226
    %p229 = scmp.ne.s32.totalorder %s214, %s228
    %p230 = scmp.eq.s32.totalorder %s36, 0
    %p231 = por %p229, %p230
    %s233 = sadd.s32 %s232, 1
    %p236 = scmp.eq.s32.totalorder %s30, 1
    %p237 = scmp.ne.s32.totalorder %s232, %s234
    %p238 = scmp.eq.s32.totalorder %s30, 0
    %p239 = por %p237, %p238
    %p240 = scmp.ne.s32.totalorder %s232, %s234
    %p241 = scmp.eq.s32.totalorder %s35, 1
    %p242 = por %p240, %p241
    %p243 = scmp.ne.s32.totalorder %s234, %s235
    %p244 = scmp.eq.s32.totalorder %s35, 0
    %p245 = por %p243, %p244
    %p246 = scmp.ne.s32.totalorder %s234, %s235
    %p247 = scmp.eq.s32.totalorder %s36, 1
    %p248 = por %p246, %p247
    %p250 = scmp.ne.s32.totalorder %s235, %s249
    %p251 = scmp.eq.s32.totalorder %s36, 0
    %p252 = por %p250, %p251
    %s254 = sadd.s32 %s253, 1
    %p257 = scmp.eq.s32.totalorder %s30, 1
    %p258 = scmp.ne.s32.totalorder %s253, %s255
    %p259 = scmp.eq.s32.totalorder %s30, 0
    %p260 = por %p258, %p259
    %p261 = scmp.ne.s32.totalorder %s253, %s255
    %p262 = scmp.eq.s32.totalorder %s35, 1
    %p263 = por %p261, %p262
    %p264 = scmp.ne.s32.totalorder %s255, %s256
    %p265 = scmp.eq.s32.totalorder %s35, 0
    %p266 = por %p264, %p265
    %p267 = scmp.ne.s32.totalorder %s255, %s256
    %p268 = scmp.eq.s32.totalorder %s36, 1
    %p269 = por %p267, %p268
    %p271 = scmp.ne.s32.totalorder %s256, %s270
    %p272 = scmp.eq.s32.totalorder %s36, 0
    %p273 = por %p271, %p272
    %s275 = sadd.s32 %s274, 1
    %p278 = scmp.eq.s32.totalorder %s30, 1
    %p279 = scmp.ne.s32.totalorder %s274, %s276
    %p280 = scmp.eq.s32.totalorder %s30, 0
    %p281 = por %p279, %p280
    %p282 = scmp.ne.s32.totalorder %s274, %s276
    %p283 = scmp.eq.s32.totalorder %s35, 1
    %p284 = por %p282, %p283
    %p285 = scmp.ne.s32.totalorder %s276, %s277
    %p286 = scmp.eq.s32.totalorder %s35, 0
    %p287 = por %p285, %p286
    %p288 = scmp.ne.s32.totalorder %s276, %s277
    %p289 = scmp.eq.s32.totalorder %s36, 1
    %p290 = por %p288, %p289
    %p292 = scmp.ne.s32.totalorder %s277, %s291
    %p293 = scmp.eq.s32.totalorder %s36, 0
    %p294 = por %p292, %p293
    %s296 = sadd.s32 %s295, 1
    %p299 = scmp.eq.s32.totalorder %s30, 1
    %p300 = scmp.ne.s32.totalorder %s295, %s297
    %p301 = scmp.eq.s32.totalorder %s30, 0
    %p302 = por %p300, %p301
    %p303 = scmp.ne.s32.totalorder %s295, %s297
    %p304 = scmp.eq.s32.totalorder %s35, 1
    %p305 = por %p303, %p304
    %p306 = scmp.ne.s32.totalorder %s297, %s298
    %p307 = scmp.eq.s32.totalorder %s35, 0
    %p308 = por %p306, %p307
    %p309 = scmp.ne.s32.totalorder %s297, %s298
    %p310 = scmp.eq.s32.totalorder %s36, 1
    %p311 = por %p309, %p310
    %p313 = scmp.ne.s32.totalorder %s298, %s312
    %p314 = scmp.eq.s32.totalorder %s36, 0
    %p315 = por %p313, %p314
    %s317 = sadd.s32 %s316, 1
    %p320 = scmp.eq.s32.totalorder %s30, 1
    %p321 = scmp.ne.s32.totalorder %s316, %s318
    %p322 = scmp.eq.s32.totalorder %s30, 0
    %p323 = por %p321, %p322
    %p324 = scmp.ne.s32.totalorder %s316, %s318
    %p325 = scmp.eq.s32.totalorder %s35, 1
    %p326 = por %p324, %p325
    %p327 = scmp.ne.s32.totalorder %s318, %s319
    %p328 = scmp.eq.s32.totalorder %s35, 0
    %p329 = por %p327, %p328
    %p330 = scmp.ne.s32.totalorder %s318, %s319
    %p331 = scmp.eq.s32.totalorder %s36, 1
    %p332 = por %p330, %p331
    %p334 = scmp.ne.s32.totalorder %s319, %s333
    %p335 = scmp.eq.s32.totalorder %s36, 0
    %p336 = por %p334, %p335
    %s338 = sadd.s32 %s337, 1
    %p341 = scmp.eq.s32.totalorder %s30, 1
    %p342 = scmp.ne.s32.totalorder %s337, %s339
    %p343 = scmp.eq.s32.totalorder %s30, 0
    %p344 = por %p342, %p343
    %p345 = scmp.ne.s32.totalorder %s337, %s339
    %p346 = scmp.eq.s32.totalorder %s35, 1
    %p347 = por %p345, %p346
    %p348 = scmp.ne.s32.totalorder %s339, %s340
    %p349 = scmp.eq.s32.totalorder %s35, 0
    %p350 = por %p348, %p349
    %p351 = scmp.ne.s32.totalorder %s339, %s340
    %p352 = scmp.eq.s32.totalorder %s36, 1
    %p353 = por %p351, %p352
    %p355 = scmp.ne.s32.totalorder %s340, %s354
    %p356 = scmp.eq.s32.totalorder %s36, 0
    %p357 = por %p355, %p356
    %s359 = sadd.s32 %s358, 1
    %p362 = scmp.eq.s32.totalorder %s30, 1
    %p363 = scmp.ne.s32.totalorder %s358, %s360
    %p364 = scmp.eq.s32.totalorder %s30, 0
    %p365 = por %p363, %p364
    %p366 = scmp.ne.s32.totalorder %s358, %s360
    %p367 = scmp.eq.s32.totalorder %s35, 1
    %p368 = por %p366, %p367
    %p369 = scmp.ne.s32.totalorder %s360, %s361
    %p370 = scmp.eq.s32.totalorder %s35, 0
    %p371 = por %p369, %p370
    %p372 = scmp.ne.s32.totalorder %s360, %s361
    %p373 = scmp.eq.s32.totalorder %s36, 1
    %p374 = por %p372, %p373
    %p376 = scmp.ne.s32.totalorder %s361, %s375
    %p377 = scmp.eq.s32.totalorder %s36, 0
    %p378 = por %p376, %p377
    %s380 = sadd.s32 %s379, 1
    %p383 = scmp.eq.s32.totalorder %s30, 1
    %p384 = scmp.ne.s32.totalorder %s379, %s381
    %p385 = scmp.eq.s32.totalorder %s30, 0
    %p386 = por %p384, %p385
    %p387 = scmp.ne.s32.totalorder %s379, %s381
    %p388 = scmp.eq.s32.totalorder %s35, 1
    %p389 = por %p387, %p388
    %p390 = scmp.ne.s32.totalorder %s381, %s382
    %p391 = scmp.eq.s32.totalorder %s35, 0
    %p392 = por %p390, %p391
    %p393 = scmp.ne.s32.totalorder %s381, %s382
    %p394 = scmp.eq.s32.totalorder %s36, 1
    %p395 = por %p393, %p394
    %p397 = scmp.ne.s32.totalorder %s382, %s396
    %p398 = scmp.eq.s32.totalorder %s36, 0
    %p399 = por %p397, %p398
    %s401 = sadd.s32 %s400, 1
    %p404 = scmp.eq.s32.totalorder %s30, 1
    %p405 = scmp.ne.s32.totalorder %s400, %s402
    %p406 = scmp.eq.s32.totalorder %s30, 0
    %p407 = por %p405, %p406
    %p408 = scmp.ne.s32.totalorder %s400, %s402
    %p409 = scmp.eq.s32.totalorder %s35, 1
    %p410 = por %p408, %p409
    %p411 = scmp.ne.s32.totalorder %s402, %s403
    %p412 = scmp.eq.s32.totalorder %s35, 0
    %p413 = por %p411, %p412
    %p414 = scmp.ne.s32.totalorder %s402, %s403
    %p415 = scmp.eq.s32.totalorder %s36, 1
    %p416 = por %p414, %p415
    %p418 = scmp.ne.s32.totalorder %s403, %s417
    %p419 = scmp.eq.s32.totalorder %s36, 0
    %p420 = por %p418, %p419
    %s422 = sadd.s32 %s421, 1
    %p425 = scmp.eq.s32.totalorder %s30, 1
    %p426 = scmp.ne.s32.totalorder %s421, %s423
    %p427 = scmp.eq.s32.totalorder %s30, 0
    %p428 = por %p426, %p427
    %p429 = scmp.ne.s32.totalorder %s421, %s423
    %p430 = scmp.eq.s32.totalorder %s35, 1
    %p431 = por %p429, %p430
    %p432 = scmp.ne.s32.totalorder %s423, %s424
    %p433 = scmp.eq.s32.totalorder %s35, 0
    %p434 = por %p432, %p433
    %p435 = scmp.ne.s32.totalorder %s423, %s424
    %p436 = scmp.eq.s32.totalorder %s36, 1
    %p437 = por %p435, %p436
    %p439 = scmp.ne.s32.totalorder %s424, %s438
    %p440 = scmp.eq.s32.totalorder %s36, 0
    %p441 = por %p439, %p440
    %s443 = sadd.s32 %s442, 1
    %p446 = scmp.eq.s32.totalorder %s30, 1
    %p447 = scmp.ne.s32.totalorder %s442, %s444
    %p448 = scmp.eq.s32.totalorder %s30, 0
    %p449 = por %p447, %p448
    %p450 = scmp.ne.s32.totalorder %s442, %s444
    %p451 = scmp.eq.s32.totalorder %s35, 1
    %p452 = por %p450, %p451
    %p453 = scmp.ne.s32.totalorder %s444, %s445
    %p454 = scmp.eq.s32.totalorder %s35, 0
    %p455 = por %p453, %p454
    %p456 = scmp.ne.s32.totalorder %s444, %s445
    %p457 = scmp.eq.s32.totalorder %s36, 1
    %p458 = por %p456, %p457
    %p460 = scmp.ne.s32.totalorder %s445, %s459
    %p461 = scmp.eq.s32.totalorder %s36, 0
    %p462 = por %p460, %p461
    %s464 = sadd.s32 %s463, 1
    %p467 = scmp.eq.s32.totalorder %s30, 1
    %p468 = scmp.ne.s32.totalorder %s463, %s465
    %p469 = scmp.eq.s32.totalorder %s30, 0
    %p470 = por %p468, %p469
    %p471 = scmp.ne.s32.totalorder %s463, %s465
    %p472 = scmp.eq.s32.totalorder %s35, 1
    %p473 = por %p471, %p472
    %p474 = scmp.ne.s32.totalorder %s465, %s466
    %p475 = scmp.eq.s32.totalorder %s35, 0
    %p476 = por %p474, %p475
    %p477 = scmp.ne.s32.totalorder %s465, %s466
    %p478 = scmp.eq.s32.totalorder %s36, 1
    %p479 = por %p477, %p478
    %p481 = scmp.ne.s32.totalorder %s466, %s480
    %p482 = scmp.eq.s32.totalorder %s36, 0
    %p483 = por %p481, %p482
    %s485 = sadd.s32 %s484, 1
    %p488 = scmp.eq.s32.totalorder %s30, 1
    %p489 = scmp.ne.s32.totalorder %s484, %s486
    %p490 = scmp.eq.s32.totalorder %s30, 0
    %p491 = por %p489, %p490
    %p492 = scmp.ne.s32.totalorder %s484, %s486
    %p493 = scmp.eq.s32.totalorder %s35, 1
    %p494 = por %p492, %p493
    %p495 = scmp.ne.s32.totalorder %s486, %s487
    %p496 = scmp.eq.s32.totalorder %s35, 0
    %p497 = por %p495, %p496
    %p498 = scmp.ne.s32.totalorder %s486, %s487
    %p499 = scmp.eq.s32.totalorder %s36, 1
    %p500 = por %p498, %p499
    %p502 = scmp.ne.s32.totalorder %s487, %s501
    %p503 = scmp.eq.s32.totalorder %s36, 0
    %p504 = por %p502, %p503
    %s506 = sadd.s32 %s505, 1
    %p509 = scmp.eq.s32.totalorder %s30, 1
    %p510 = scmp.ne.s32.totalorder %s505, %s507
    %p511 = scmp.eq.s32.totalorder %s30, 0
    %p512 = por %p510, %p511
    %p513 = scmp.ne.s32.totalorder %s505, %s507
    %p514 = scmp.eq.s32.totalorder %s35, 1
    %p515 = por %p513, %p514
    %p516 = scmp.ne.s32.totalorder %s507, %s508
    %p517 = scmp.eq.s32.totalorder %s35, 0
    %p518 = por %p516, %p517
    %p519 = scmp.ne.s32.totalorder %s507, %s508
    %p520 = scmp.eq.s32.totalorder %s36, 1
    %p521 = por %p519, %p520
    %p523 = scmp.ne.s32.totalorder %s508, %s522
    %p524 = scmp.eq.s32.totalorder %s36, 0
    %p525 = por %p523, %p524
    %s527 = sadd.s32 %s526, 1
    %p530 = scmp.eq.s32.totalorder %s30, 1
    %p531 = scmp.ne.s32.totalorder %s526, %s528
    %p532 = scmp.eq.s32.totalorder %s30, 0
    %p533 = por %p531, %p532
    %p534 = scmp.ne.s32.totalorder %s526, %s528
    %p535 = scmp.eq.s32.totalorder %s35, 1
    %p536 = por %p534, %p535
    %p537 = scmp.ne.s32.totalorder %s528, %s529
    %p538 = scmp.eq.s32.totalorder %s35, 0
    %p539 = por %p537, %p538
    %p540 = scmp.ne.s32.totalorder %s528, %s529
    %p541 = scmp.eq.s32.totalorder %s36, 1
    %p542 = por %p540, %p541
    %p544 = scmp.ne.s32.totalorder %s529, %s543
    %p545 = scmp.eq.s32.totalorder %s36, 0
    %p546 = por %p544, %p545
    %s547 = ssub.s32 %s30, %s37
    %p548 = scmp.eq.s32.totalorder %s547, 0
    %s550 = sadd.s32 %s549, 1
    %s551 = scalar_select %p548, %s549, %s550
    %p554 = pneg %p548
    %p555 = scmp.eq.s32.totalorder %s30, 1
    %p556 = por %p554, %p555
    %p557 = scmp.ne.s32.totalorder %s549, %s552
    %p558 = scmp.eq.s32.totalorder %s30, 0
    %p559 = por %p557, %p558
    %p560 = scmp.ne.s32.totalorder %s549, %s552
    %p561 = scmp.eq.s32.totalorder %s35, 1
    %p562 = por %p560, %p561
    %p563 = scmp.ne.s32.totalorder %s552, %s553
    %p564 = scmp.eq.s32.totalorder %s35, 0
    %p565 = por %p563, %p564
    %p566 = scmp.ne.s32.totalorder %s552, %s553
    %p567 = scmp.eq.s32.totalorder %s36, 1
    %p568 = por %p566, %p567
    %p570 = scmp.ne.s32.totalorder %s553, %s569
    %p571 = scmp.eq.s32.totalorder %s36, 0
    %p572 = por %p570, %p571
    %p573 = scmp.le.s32.totalorder 1, %s30
    %p574 = scmp.lt.s32.totalorder %s30, 3
    %p575 = pnand %p573, %p574
    %p576 = pneg %p575
    // Predicated region
    $region9: #{cvt_forward.6} parent=5 // pred_check
      _
    $region10: #{cvt_forward.6} parent=5 // pred_check_branch
      %578 = sbr.rel (%p575) target = $region12
    $region11: #{cvt_forward.6} parent=5 // pred_region
      %s579 = ssub.s32 %s30, 1
      // Predicated region
      $region13: #{cvt_forward.6} parent=11 // pred_check
        %p580 = pneg %p77
      $region14: #{cvt_forward.6} parent=11 // pred_check_branch
        %582 = sbr.rel (%p580) target = $region16
      $region15: #{cvt_forward.6} parent=11 // pred_region
        _
      $region16: #{cvt_forward.6} parent=11 // pred_fallthru
        _
      // Predicated region
      $region17: #{cvt_forward.6} parent=11 // pred_check
        %p583 = pneg %p98
      $region18: #{cvt_forward.6} parent=11 // pred_check_branch
        %585 = sbr.rel (%p583) target = $region20
      $region19: #{cvt_forward.6} parent=11 // pred_region
        _
      $region20: #{cvt_forward.6} parent=11 // pred_fallthru
        _
      // Predicated region
      $region21: #{cvt_forward.6} parent=11 // pred_check
        %p586 = pneg %p119
      $region22: #{cvt_forward.6} parent=11 // pred_check_branch
        %588 = sbr.rel (%p586) target = $region24
      $region23: #{cvt_forward.6} parent=11 // pred_region
        _
      $region24: #{cvt_forward.6} parent=11 // pred_fallthru
        _
      // Predicated region
      $region25: #{cvt_forward.6} parent=11 // pred_check
        %p589 = pneg %p140
      $region26: #{cvt_forward.6} parent=11 // pred_check_branch
        %591 = sbr.rel (%p589) target = $region28
      $region27: #{cvt_forward.6} parent=11 // pred_region
        _
      $region28: #{cvt_forward.6} parent=11 // pred_fallthru
        _
      // Predicated region
      $region29: #{cvt_forward.6} parent=11 // pred_check
        %p592 = pneg %p161
      $region30: #{cvt_forward.6} parent=11 // pred_check_branch
        %594 = sbr.rel (%p592) target = $region32
      $region31: #{cvt_forward.6} parent=11 // pred_region
        _
      $region32: #{cvt_forward.6} parent=11 // pred_fallthru
        _
      // Predicated region
      $region33: #{cvt_forward.6} parent=11 // pred_check
        %p595 = pneg %p182
      $region34: #{cvt_forward.6} parent=11 // pred_check_branch
        %597 = sbr.rel (%p595) target = $region36
      $region35: #{cvt_forward.6} parent=11 // pred_region
        _
      $region36: #{cvt_forward.6} parent=11 // pred_fallthru
        _
      // Predicated region
      $region37: #{cvt_forward.6} parent=11 // pred_check
        %p598 = pneg %p203
      $region38: #{cvt_forward.6} parent=11 // pred_check_branch
        %600 = sbr.rel (%p598) target = $region40
      $region39: #{cvt_forward.6} parent=11 // pred_region
        _
      $region40: #{cvt_forward.6} parent=11 // pred_fallthru
        _
      // Predicated region
      $region41: #{cvt_forward.6} parent=11 // pred_check
        %p601 = pneg %p224
      $region42: #{cvt_forward.6} parent=11 // pred_check_branch
        %603 = sbr.rel (%p601) target = $region44
      $region43: #{cvt_forward.6} parent=11 // pred_region
        _
      $region44: #{cvt_forward.6} parent=11 // pred_fallthru
        _
      // Predicated region
      $region45: #{cvt_forward.6} parent=11 // pred_check
        %p604 = pneg %p245
      $region46: #{cvt_forward.6} parent=11 // pred_check_branch
        %606 = sbr.rel (%p604) target = $region48
      $region47: #{cvt_forward.6} parent=11 // pred_region
        _
      $region48: #{cvt_forward.6} parent=11 // pred_fallthru
        _
      // Predicated region
      $region49: #{cvt_forward.6} parent=11 // pred_check
        %p607 = pneg %p266
      $region50: #{cvt_forward.6} parent=11 // pred_check_branch
        %609 = sbr.rel (%p607) target = $region52
      $region51: #{cvt_forward.6} parent=11 // pred_region
        _
      $region52: #{cvt_forward.6} parent=11 // pred_fallthru
        _
      // Predicated region
      $region53: #{cvt_forward.6} parent=11 // pred_check
        %p610 = pneg %p287
      $region54: #{cvt_forward.6} parent=11 // pred_check_branch
        %612 = sbr.rel (%p610) target = $region56
      $region55: #{cvt_forward.6} parent=11 // pred_region
        _
      $region56: #{cvt_forward.6} parent=11 // pred_fallthru
        _
      // Predicated region
      $region57: #{cvt_forward.6} parent=11 // pred_check
        %p613 = pneg %p308
      $region58: #{cvt_forward.6} parent=11 // pred_check_branch
        %615 = sbr.rel (%p613) target = $region60
      $region59: #{cvt_forward.6} parent=11 // pred_region
        _
      $region60: #{cvt_forward.6} parent=11 // pred_fallthru
        _
      // Predicated region
      $region61: #{cvt_forward.6} parent=11 // pred_check
        %p616 = pneg %p329
      $region62: #{cvt_forward.6} parent=11 // pred_check_branch
        %618 = sbr.rel (%p616) target = $region64
      $region63: #{cvt_forward.6} parent=11 // pred_region
        _
      $region64: #{cvt_forward.6} parent=11 // pred_fallthru
        _
      // Predicated region
      $region65: #{cvt_forward.6} parent=11 // pred_check
        %p619 = pneg %p350
      $region66: #{cvt_forward.6} parent=11 // pred_check_branch
        %621 = sbr.rel (%p619) target = $region68
      $region67: #{cvt_forward.6} parent=11 // pred_region
        _
      $region68: #{cvt_forward.6} parent=11 // pred_fallthru
        _
      // Predicated region
      $region69: #{cvt_forward.6} parent=11 // pred_check
        %p622 = pneg %p371
      $region70: #{cvt_forward.6} parent=11 // pred_check_branch
        %624 = sbr.rel (%p622) target = $region72
      $region71: #{cvt_forward.6} parent=11 // pred_region
        _
      $region72: #{cvt_forward.6} parent=11 // pred_fallthru
        _
      // Predicated region
      $region73: #{cvt_forward.6} parent=11 // pred_check
        %p625 = pneg %p392
      $region74: #{cvt_forward.6} parent=11 // pred_check_branch
        %627 = sbr.rel (%p625) target = $region76
      $region75: #{cvt_forward.6} parent=11 // pred_region
        _
      $region76: #{cvt_forward.6} parent=11 // pred_fallthru
        _
      // Predicated region
      $region77: #{cvt_forward.6} parent=11 // pred_check
        %p628 = pneg %p413
      $region78: #{cvt_forward.6} parent=11 // pred_check_branch
        %630 = sbr.rel (%p628) target = $region80
      $region79: #{cvt_forward.6} parent=11 // pred_region
        _
      $region80: #{cvt_forward.6} parent=11 // pred_fallthru
        _
      // Predicated region
      $region81: #{cvt_forward.6} parent=11 // pred_check
        %p631 = pneg %p434
      $region82: #{cvt_forward.6} parent=11 // pred_check_branch
        %633 = sbr.rel (%p631) target = $region84
      $region83: #{cvt_forward.6} parent=11 // pred_region
        _
      $region84: #{cvt_forward.6} parent=11 // pred_fallthru
        _
      // Predicated region
      $region85: #{cvt_forward.6} parent=11 // pred_check
        %p634 = pneg %p455
      $region86: #{cvt_forward.6} parent=11 // pred_check_branch
        %636 = sbr.rel (%p634) target = $region88
      $region87: #{cvt_forward.6} parent=11 // pred_region
        _
      $region88: #{cvt_forward.6} parent=11 // pred_fallthru
        _
      // Predicated region
      $region89: #{cvt_forward.6} parent=11 // pred_check
        %p637 = pneg %p476
      $region90: #{cvt_forward.6} parent=11 // pred_check_branch
        %639 = sbr.rel (%p637) target = $region92
      $region91: #{cvt_forward.6} parent=11 // pred_region
        _
      $region92: #{cvt_forward.6} parent=11 // pred_fallthru
        _
      // Predicated region
      $region93: #{cvt_forward.6} parent=11 // pred_check
        %p640 = pneg %p497
      $region94: #{cvt_forward.6} parent=11 // pred_check_branch
        %642 = sbr.rel (%p640) target = $region96
      $region95: #{cvt_forward.6} parent=11 // pred_region
        _
      $region96: #{cvt_forward.6} parent=11 // pred_fallthru
        _
      // Predicated region
      $region97: #{cvt_forward.6} parent=11 // pred_check
        %p643 = pneg %p518
      $region98: #{cvt_forward.6} parent=11 // pred_check_branch
        %645 = sbr.rel (%p643) target = $region100
      $region99: #{cvt_forward.6} parent=11 // pred_region
        _
      $region100: #{cvt_forward.6} parent=11 // pred_fallthru
        _
      // Predicated region
      $region101: #{cvt_forward.6} parent=11 // pred_check
        %p646 = pneg %p539
      $region102: #{cvt_forward.6} parent=11 // pred_check_branch
        %648 = sbr.rel (%p646) target = $region104
      $region103: #{cvt_forward.6} parent=11 // pred_region
        _
      $region104: #{cvt_forward.6} parent=11 // pred_fallthru
        _
    $region12: #{cvt_forward.6} parent=5 // pred_fallthru
      _
    %p649 = scmp.lt.s32.totalorder %s30, 2
    // Predicated region
    $region105: #{cvt_forward.6} parent=5 // pred_check
      %p650 = pneg %p649
    $region106: #{cvt_forward.6} parent=5 // pred_check_branch
      %652 = sbr.rel (%p650) target = $region108
    $region107: #{cvt_forward.6} parent=5 // pred_region
      // Predicated region
      $region109: #{cvt_forward.6} parent=107 // pred_check
        %p653 = pneg %p50
      $region110: #{cvt_forward.6} parent=107 // pred_check_branch
        %655 = sbr.rel (%p653) target = $region112
      $region111: #{cvt_forward.6} parent=107 // pred_region
        %p656 = scmp.lt.s32.totalorder %s30, 1
        %s657 = scalar_select %p656, %s30, 1
        %s658 = smul.addr %s657, 8
        %s659 = smul.addr %s658, 8
        %s660 = scalar_lea.vmem %s0, %s659
      $region112: #{cvt_forward.6} parent=107 // pred_fallthru
        _
    $region108: #{cvt_forward.6} parent=5 // pred_fallthru
      _
    %p661 = scmp.le.s32.totalorder 1, %s30
    %p662 = scmp.lt.s32.totalorder %s30, 3
    %p663 = pnand %p661, %p662
    %p664 = pneg %p663
    // Predicated region
    $region113: #{cvt_forward.6} parent=5 // pred_check
      _
    $region114: #{cvt_forward.6} parent=5 // pred_check_branch
      %666 = sbr.rel (%p663) target = $region116
    $region115: #{cvt_forward.6} parent=5 // pred_region
      %s667 = ssub.s32 %s30, 1
      %p668 = scmp.lt.s32.totalorder %s35, 1
      %s669 = scalar_select %p668, %s35, 1
      %s670 = smul.addr %s669, 8
      %s671 = smul.addr %s670, 8
      %s672 = scalar_lea.vmem %s0, %s671
      %p673 = pneg %p56
      %p674 = pneg %p53
      %p675 = pneg %p77
      %p676 = pneg %p74
      %p677 = pneg %p98
      %p678 = pneg %p95
      %p679 = pneg %p119
      %p680 = pneg %p116
      %p681 = pneg %p140
      %p682 = pneg %p137
      %p683 = pneg %p161
      %p684 = pneg %p158
      %p685 = pneg %p182
      %p686 = pneg %p179
      %p687 = pneg %p203
      %p688 = pneg %p200
      %p689 = pneg %p224
      %p690 = pneg %p221
      %p691 = pneg %p245
      %p692 = pneg %p242
      %p693 = pneg %p266
      %p694 = pneg %p263
      %p695 = pneg %p287
      %p696 = pneg %p284
      %p697 = pneg %p308
      %p698 = pneg %p305
      %p699 = pneg %p329
      %p700 = pneg %p326
      %p701 = pneg %p350
      %p702 = pneg %p347
      %p703 = pneg %p371
      %p704 = pneg %p368
      %p705 = pneg %p392
      %p706 = pneg %p389
      %p707 = pneg %p413
      %p708 = pneg %p410
      %p709 = pneg %p434
      %p710 = pneg %p431
      %p711 = pneg %p455
      %p712 = pneg %p452
      %p713 = pneg %p476
      %p714 = pneg %p473
      %p715 = pneg %p497
      %p716 = pneg %p494
      %p717 = pneg %p518
      %p718 = pneg %p515
      %p719 = pneg %p539
      %p720 = pneg %p536
      %p721 = pneg %p565
      %p722 = pneg %p562
      %p723 = scmp.lt.s32.totalorder %s35, 1
      %s724 = scalar_select %p723, %s35, 1
      %s725 = smul.addr %s724, 8
      %s726 = smul.addr %s725, 8
      %s727 = scalar_lea.vmem %s24, %s726
      %p728 = scmp.lt.s32.totalorder %s35, 1
      %s729 = scalar_select %p728, %s35, 1
      %s730 = smul.addr %s729, 8
      %s731 = smul.addr %s730, 8
      %s732 = scalar_lea.vmem %s0, %s731
      %p733 = scmp.lt.s32.totalorder %s35, 1
      %s734 = scalar_select %p733, %s35, 1
      %s735 = smul.addr %s734, 8
      %s736 = smul.addr %s735, 8
      %s737 = scalar_lea.vmem %s24, %s736
      %v739 = vld [vmem:[%s732] sm:$0xff]
      %v740 = vld [vmem:[%s732 + $0x8] sm:$0xff]
      %v741 = vld [vmem:[%s732 + $0x10] sm:$0xff]
      %v742 = vld [vmem:[%s732 + $0x18] sm:$0xff]
      %v743 = vld [vmem:[%s732 + $0x20] sm:$0xff]
      %v744 = vld [vmem:[%s732 + $0x28] sm:$0xff]
      %v745 = vld [vmem:[%s732 + $0x30] sm:$0xff]
      %v746 = vld [vmem:[%s732 + $0x38] sm:$0xff]
      %v747 = vld [vmem:[%s2] sm:$0x1]
      %v748 = vld [vmem:[%s3] sm:$0x1]
      %vm749 = vcmask 130048
      %v750 = vsel %vm749, %v739, 0.0
      %751 = vadd.xlane.f32.xlu0 %v750
      %v752 = vpop.xlane.xlu0 %751
      %v753 = vsel %vm749, %v740, 0.0
      %754 = vadd.xlane.f32.xlu0 %v753
      %v755 = vpop.xlane.xlu0 %754
      %v756 = vsel %vm749, %v741, 0.0
      %757 = vadd.xlane.f32.xlu0 %v756
      %v758 = vpop.xlane.xlu0 %757
      %v759 = vsel %vm749, %v742, 0.0
      %760 = vadd.xlane.f32.xlu0 %v759
      %v761 = vpop.xlane.xlu0 %760
      %v762 = vsel %vm749, %v743, 0.0
      %763 = vadd.xlane.f32.xlu0 %v762
      %v764 = vpop.xlane.xlu0 %763
      %v765 = vsel %vm749, %v744, 0.0
      %766 = vadd.xlane.f32.xlu0 %v765
      %v767 = vpop.xlane.xlu0 %766
      %v768 = vsel %vm749, %v745, 0.0
      %769 = vadd.xlane.f32.xlu0 %v768
      %v770 = vpop.xlane.xlu0 %769
      %v771 = vsel %vm749, %v746, 0.0
      %772 = vadd.xlane.f32.xlu0 %v771
      %v773 = vpop.xlane.xlu0 %772
      %v774 = vrcp.pop 16.0
      %v775 = vmul.f32 %v752, %v774
      %v776 = vmul.f32 %v755, %v774
      %v777 = vmul.f32 %v758, %v774
      %v778 = vmul.f32 %v761, %v774
      %v779 = vmul.f32 %v764, %v774
      %v780 = vmul.f32 %v767, %v774
      %v781 = vmul.f32 %v770, %v774
      %v782 = vmul.f32 %v773, %v774
      %v783 = vsub.f32 %v739, %v775
      %v784 = vsub.f32 %v740, %v776
      %v785 = vsub.f32 %v741, %v777
      %v786 = vsub.f32 %v742, %v778
      %v787 = vsub.f32 %v743, %v779
      %v788 = vsub.f32 %v744, %v780
      %v789 = vsub.f32 %v745, %v781
      %v790 = vsub.f32 %v746, %v782
      %v791 = vmul.f32 %v783, %v783
      %v792 = vmul.f32 %v784, %v784
      %v793 = vmul.f32 %v785, %v785
      %v794 = vmul.f32 %v786, %v786
      %v795 = vmul.f32 %v787, %v787
      %v796 = vmul.f32 %v788, %v788
      %v797 = vmul.f32 %v789, %v789
      %v798 = vmul.f32 %v790, %v790
      %v799 = vsel %vm749, %v791, 0.0
      %800 = vadd.xlane.f32.xlu0 %v799
      %v801 = vpop.xlane.xlu0 %800
      %v802 = vsel %vm749, %v792, 0.0
      %803 = vadd.xlane.f32.xlu0 %v802
      %v804 = vpop.xlane.xlu0 %803
      %v805 = vsel %vm749, %v793, 0.0
      %806 = vadd.xlane.f32.xlu0 %v805
      %v807 = vpop.xlane.xlu0 %806
      %v808 = vsel %vm749, %v794, 0.0
      %809 = vadd.xlane.f32.xlu0 %v808
      %v810 = vpop.xlane.xlu0 %809
      %v811 = vsel %vm749, %v795, 0.0
      %812 = vadd.xlane.f32.xlu0 %v811
      %v813 = vpop.xlane.xlu0 %812
      %v814 = vsel %vm749, %v796, 0.0
      %815 = vadd.xlane.f32.xlu0 %v814
      %v816 = vpop.xlane.xlu0 %815
      %v817 = vsel %vm749, %v797, 0.0
      %818 = vadd.xlane.f32.xlu0 %v817
      %v819 = vpop.xlane.xlu0 %818
      %v820 = vsel %vm749, %v798, 0.0
      %821 = vadd.xlane.f32.xlu0 %v820
      %v822 = vpop.xlane.xlu0 %821
      %v823 = vmul.f32 %v801, %v774
      %v824 = vmul.f32 %v804, %v774
      %v825 = vmul.f32 %v807, %v774
      %v826 = vmul.f32 %v810, %v774
      %v827 = vmul.f32 %v813, %v774
      %v828 = vmul.f32 %v816, %v774
      %v829 = vmul.f32 %v819, %v774
      %v830 = vmul.f32 %v822, %v774
      %v831 = vadd.f32 %v823, 1e-05
      %v832 = vadd.f32 %v824, 1e-05
      %v833 = vadd.f32 %v825, 1e-05
      %v834 = vadd.f32 %v826, 1e-05
      %v835 = vadd.f32 %v827, 1e-05
      %v836 = vadd.f32 %v828, 1e-05
      %v837 = vadd.f32 %v829, 1e-05
      %v838 = vadd.f32 %v830, 1e-05
      %v839 = vrsqrt.pop %v831
      %v840 = vrsqrt.pop %v832
      %v841 = vrsqrt.pop %v833
      %v842 = vrsqrt.pop %v834
      %v843 = vrsqrt.pop %v835
      %v844 = vrsqrt.pop %v836
      %v845 = vrsqrt.pop %v837
      %v846 = vrsqrt.pop %v838
      %v847 = vmul.f32 %v783, %v839
      %v848 = vmul.f32 %v784, %v840
      %v849 = vmul.f32 %v785, %v841
      %v850 = vmul.f32 %v786, %v842
      %v851 = vmul.f32 %v787, %v843
      %v852 = vmul.f32 %v788, %v844
      %v853 = vmul.f32 %v789, %v845
      %v854 = vmul.f32 %v790, %v846
      %v856 = vlaneseq
      %v857 = vshrl.u32 %v856, 7
      %v858 = vsub.s32 0, %v857
      %v859 = vrot.slane %v747, %v858
      %v861 = vmul.f32 %v847, %v859
      %v862 = vmul.f32 %v848, %v859
      %v863 = vmul.f32 %v849, %v859
      %v864 = vmul.f32 %v850, %v859
      %v865 = vmul.f32 %v851, %v859
      %v866 = vmul.f32 %v852, %v859
      %v867 = vmul.f32 %v853, %v859
      %v868 = vmul.f32 %v854, %v859
      %v870 = vlaneseq
      %v871 = vshrl.u32 %v870, 7
      %v872 = vsub.s32 0, %v871
      %v873 = vrot.slane %v748, %v872
      %v875 = vadd.f32 %v861, %v873
      %v876 = vadd.f32 %v862, %v873
      %v877 = vadd.f32 %v863, %v873
      %v878 = vadd.f32 %v864, %v873
      %v879 = vadd.f32 %v865, %v873
      %v880 = vadd.f32 %v866, %v873
      %v881 = vadd.f32 %v867, %v873
      %v882 = vadd.f32 %v868, %v873
      %883 = vst.msk [vmem:[#allocation2] sm:$0xff] %vm749, 0.0
      %vm884 = vcmask 123904
      %885 = vst.msk [vmem:[#allocation2 + $0x8] sm:$0x3] %vm884, 0.0
      %886 = vst.msk [vmem:[#allocation2 + $0x10] sm:$0xff] %vm749, 0.0
      %887 = vst.msk [vmem:[#allocation2 + $0x18] sm:$0x3] %vm884, 0.0
      %888 = vst.msk [vmem:[#allocation2 + $0x20] sm:$0xff] %vm749, 0.0
      %889 = vst.msk [vmem:[#allocation2 + $0x28] sm:$0x3] %vm884, 0.0
      %890 = vst.msk [vmem:[#allocation2 + $0x30] sm:$0xff] %vm749, 0.0
      %891 = vst.msk [vmem:[#allocation2 + $0x38] sm:$0x3] %vm884, 0.0
      %892 = vst.msk [vmem:[#allocation2 + $0x40] sm:$0xff] %vm749, 0.0
      %893 = vst.msk [vmem:[#allocation2 + $0x48] sm:$0x3] %vm884, 0.0
      %894 = vst.msk [vmem:[#allocation2 + $0x50] sm:$0xff] %vm749, 0.0
      %895 = vst.msk [vmem:[#allocation2 + $0x58] sm:$0x3] %vm884, 0.0
      %896 = vst.msk [vmem:[#allocation2 + $0x60] sm:$0xff] %vm749, 0.0
      %897 = vst.msk [vmem:[#allocation2 + $0x68] sm:$0x3] %vm884, 0.0
      %898 = vst.msk [vmem:[#allocation2 + $0x70] sm:$0xff] %vm749, 0.0
      %899 = vst.msk [vmem:[#allocation2 + $0x78] sm:$0x3] %vm884, 0.0
      %900 = vst.msk [vmem:[#allocation2 + $0x80] sm:$0xff] %vm749, 0.0
      %901 = vst.msk [vmem:[#allocation2 + $0x88] sm:$0x3] %vm884, 0.0
      %902 = vst.msk [vmem:[#allocation2 + $0x90] sm:$0xff] %vm749, 0.0
      %903 = vst.msk [vmem:[#allocation2 + $0x98] sm:$0x3] %vm884, 0.0
      %s904 = scalar_lea.vmem [#allocation2], 16
      %905 = vst.msk [vmem:[%s904 + $0x1] sm:$0xff] %vm749, %v875
      %906 = vst.msk [vmem:[%s904 + $0x11] sm:$0xff] %vm749, %v876
      %907 = vst.msk [vmem:[%s904 + $0x21] sm:$0xff] %vm749, %v877
      %908 = vst.msk [vmem:[%s904 + $0x31] sm:$0xff] %vm749, %v878
      %909 = vst.msk [vmem:[%s904 + $0x41] sm:$0xff] %vm749, %v879
      %910 = vst.msk [vmem:[%s904 + $0x51] sm:$0xff] %vm749, %v880
      %911 = vst.msk [vmem:[%s904 + $0x61] sm:$0xff] %vm749, %v881
      %912 = vst.msk [vmem:[%s904 + $0x71] sm:$0xff] %vm749, %v882
      %v913 = vld [vmem:[%s4] sm:$0x1]
      %v914 = vld [vmem:[%s4 + $0x1] sm:$0x1]
      %v915 = vld [vmem:[%s4 + $0x2] sm:$0x1]
      %v916 = vld [vmem:[%s4 + $0x3] sm:$0x1]
      %v917 = vld [vmem:[%s4 + $0x4] sm:$0x1]
      %v918 = vld [vmem:[%s4 + $0x5] sm:$0x1]
      %v919 = vld [vmem:[%s4 + $0x6] sm:$0x1]
      %v920 = vld [vmem:[%s4 + $0x7] sm:$0x1]
      %v921 = vld [vmem:[%s4 + $0x8] sm:$0x1]
      %v922 = vld [vmem:[%s6] sm:$0x1]
      %v923 = vld [vmem:[%s6 + $0x1] sm:$0x1]
      %v924 = vld [vmem:[%s6 + $0x2] sm:$0x1]
      %v925 = vld [vmem:[%s6 + $0x3] sm:$0x1]
      %v926 = vld [vmem:[%s6 + $0x4] sm:$0x1]
      %v927 = vld [vmem:[%s6 + $0x5] sm:$0x1]
      %v928 = vld [vmem:[%s6 + $0x6] sm:$0x1]
      %v929 = vld [vmem:[%s6 + $0x7] sm:$0x1]
      %v930 = vld [vmem:[%s6 + $0x8] sm:$0x1]
      %v931 = vld [vmem:[%s8] sm:$0x1]
      %v932 = vld [vmem:[%s8 + $0x1] sm:$0x1]
      %v933 = vld [vmem:[%s8 + $0x2] sm:$0x1]
      %v934 = vld [vmem:[%s8 + $0x3] sm:$0x1]
      %v935 = vld [vmem:[%s8 + $0x4] sm:$0x1]
      %v936 = vld [vmem:[%s8 + $0x5] sm:$0x1]
      %v937 = vld [vmem:[%s8 + $0x6] sm:$0x1]
      %v938 = vld [vmem:[%s8 + $0x7] sm:$0x1]
      %v939 = vld [vmem:[%s8 + $0x8] sm:$0x1]
      %v940 = vld [vmem:[#allocation2] sm:$0xff]
      %v941 = vld [vmem:[#allocation2 + $0x10] sm:$0xff]
      %v942 = vld [vmem:[#allocation2 + $0x20] sm:$0xff]
      %v943 = vld [vmem:[#allocation2 + $0x30] sm:$0xff]
      %v944 = vld [vmem:[#allocation2 + $0x40] sm:$0xff]
      %v945 = vld [vmem:[#allocation2 + $0x50] sm:$0xff]
      %v946 = vld [vmem:[#allocation2 + $0x60] sm:$0xff]
      %v947 = vld [vmem:[#allocation2 + $0x70] sm:$0xff]
      %v949 = vlaneseq
      %v950 = vshrl.u32 %v949, 7
      %v951 = vsub.s32 0, %v950
      %v952 = vrot.slane %v913, %v951
      %v954 = vmul.f32 %v940, %v952
      %v955 = vmul.f32 %v941, %v952
      %v956 = vmul.f32 %v942, %v952
      %v957 = vmul.f32 %v943, %v952
      %v958 = vmul.f32 %v944, %v952
      %v959 = vmul.f32 %v945, %v952
      %v960 = vmul.f32 %v946, %v952
      %v961 = vmul.f32 %v947, %v952
      %v963 = vlaneseq
      %v964 = vshrl.u32 %v963, 7
      %v965 = vsub.s32 0, %v964
      %v966 = vrot.slane %v922, %v965
      %v968 = vmul.f32 %v940, %v966
      %v969 = vmul.f32 %v941, %v966
      %v970 = vmul.f32 %v942, %v966
      %v971 = vmul.f32 %v943, %v966
      %v972 = vmul.f32 %v944, %v966
      %v973 = vmul.f32 %v945, %v966
      %v974 = vmul.f32 %v946, %v966
      %v975 = vmul.f32 %v947, %v966
      %v977 = vlaneseq
      %v978 = vshrl.u32 %v977, 7
      %v979 = vsub.s32 0, %v978
      %v980 = vrot.slane %v931, %v979
      %v982 = vmul.f32 %v940, %v980
      %v983 = vmul.f32 %v941, %v980
      %v984 = vmul.f32 %v942, %v980
      %v985 = vmul.f32 %v943, %v980
      %v986 = vmul.f32 %v944, %v980
      %v987 = vmul.f32 %v945, %v980
      %v988 = vmul.f32 %v946, %v980
      %v989 = vmul.f32 %v947, %v980
      %v990 = vld [vmem:[#allocation2 + $0x1] sm:$0xff]
      %v991 = vld [vmem:[#allocation2 + $0x11] sm:$0xff]
      %v992 = vld [vmem:[#allocation2 + $0x21] sm:$0xff]
      %v993 = vld [vmem:[#allocation2 + $0x31] sm:$0xff]
      %v994 = vld [vmem:[#allocation2 + $0x41] sm:$0xff]
      %v995 = vld [vmem:[#allocation2 + $0x51] sm:$0xff]
      %v996 = vld [vmem:[#allocation2 + $0x61] sm:$0xff]
      %v997 = vld [vmem:[#allocation2 + $0x71] sm:$0xff]
      %v999 = vlaneseq
      %v1000 = vshrl.u32 %v999, 7
      %v1001 = vsub.s32 0, %v1000
      %v1002 = vrot.slane %v914, %v1001
      %v1004 = vmul.f32 %v990, %v1002
      %v1005 = vmul.f32 %v991, %v1002
      %v1006 = vmul.f32 %v992, %v1002
      %v1007 = vmul.f32 %v993, %v1002
      %v1008 = vmul.f32 %v994, %v1002
      %v1009 = vmul.f32 %v995, %v1002
      %v1010 = vmul.f32 %v996, %v1002
      %v1011 = vmul.f32 %v997, %v1002
      %v1012 = vadd.f32 %v954, %v1004
      %v1013 = vadd.f32 %v955, %v1005
      %v1014 = vadd.f32 %v956, %v1006
      %v1015 = vadd.f32 %v957, %v1007
      %v1016 = vadd.f32 %v958, %v1008
      %v1017 = vadd.f32 %v959, %v1009
      %v1018 = vadd.f32 %v960, %v1010
      %v1019 = vadd.f32 %v961, %v1011
      %v1021 = vlaneseq
      %v1022 = vshrl.u32 %v1021, 7
      %v1023 = vsub.s32 0, %v1022
      %v1024 = vrot.slane %v923, %v1023
      %v1026 = vmul.f32 %v990, %v1024
      %v1027 = vmul.f32 %v991, %v1024
      %v1028 = vmul.f32 %v992, %v1024
      %v1029 = vmul.f32 %v993, %v1024
      %v1030 = vmul.f32 %v994, %v1024
      %v1031 = vmul.f32 %v995, %v1024
      %v1032 = vmul.f32 %v996, %v1024
      %v1033 = vmul.f32 %v997, %v1024
      %v1034 = vadd.f32 %v968, %v1026
      %v1035 = vadd.f32 %v969, %v1027
      %v1036 = vadd.f32 %v970, %v1028
      %v1037 = vadd.f32 %v971, %v1029
      %v1038 = vadd.f32 %v972, %v1030
      %v1039 = vadd.f32 %v973, %v1031
      %v1040 = vadd.f32 %v974, %v1032
      %v1041 = vadd.f32 %v975, %v1033
      %v1043 = vlaneseq
      %v1044 = vshrl.u32 %v1043, 7
      %v1045 = vsub.s32 0, %v1044
      %v1046 = vrot.slane %v932, %v1045
      %v1048 = vmul.f32 %v990, %v1046
      %v1049 = vmul.f32 %v991, %v1046
      %v1050 = vmul.f32 %v992, %v1046
      %v1051 = vmul.f32 %v993, %v1046
      %v1052 = vmul.f32 %v994, %v1046
      %v1053 = vmul.f32 %v995, %v1046
      %v1054 = vmul.f32 %v996, %v1046
      %v1055 = vmul.f32 %v997, %v1046
      %v1056 = vadd.f32 %v982, %v1048
      %v1057 = vadd.f32 %v983, %v1049
      %v1058 = vadd.f32 %v984, %v1050
      %v1059 = vadd.f32 %v985, %v1051
      %v1060 = vadd.f32 %v986, %v1052
      %v1061 = vadd.f32 %v987, %v1053
      %v1062 = vadd.f32 %v988, %v1054
      %v1063 = vadd.f32 %v989, %v1055
      %v1064 = vld [vmem:[#allocation2 + $0x2] sm:$0xff]
      %v1065 = vld [vmem:[#allocation2 + $0x12] sm:$0xff]
      %v1066 = vld [vmem:[#allocation2 + $0x22] sm:$0xff]
      %v1067 = vld [vmem:[#allocation2 + $0x32] sm:$0xff]
      %v1068 = vld [vmem:[#allocation2 + $0x42] sm:$0xff]
      %v1069 = vld [vmem:[#allocation2 + $0x52] sm:$0xff]
      %v1070 = vld [vmem:[#allocation2 + $0x62] sm:$0xff]
      %v1071 = vld [vmem:[#allocation2 + $0x72] sm:$0xff]
      %v1073 = vlaneseq
      %v1074 = vshrl.u32 %v1073, 7
      %v1075 = vsub.s32 0, %v1074
      %v1076 = vrot.slane %v915, %v1075
      %v1078 = vmul.f32 %v1064, %v1076
      %v1079 = vmul.f32 %v1065, %v1076
      %v1080 = vmul.f32 %v1066, %v1076
      %v1081 = vmul.f32 %v1067, %v1076
      %v1082 = vmul.f32 %v1068, %v1076
      %v1083 = vmul.f32 %v1069, %v1076
      %v1084 = vmul.f32 %v1070, %v1076
      %v1085 = vmul.f32 %v1071, %v1076
      %v1086 = vadd.f32 %v1012, %v1078
      %v1087 = vadd.f32 %v1013, %v1079
      %v1088 = vadd.f32 %v1014, %v1080
      %v1089 = vadd.f32 %v1015, %v1081
      %v1090 = vadd.f32 %v1016, %v1082
      %v1091 = vadd.f32 %v1017, %v1083
      %v1092 = vadd.f32 %v1018, %v1084
      %v1093 = vadd.f32 %v1019, %v1085
      %v1095 = vlaneseq
      %v1096 = vshrl.u32 %v1095, 7
      %v1097 = vsub.s32 0, %v1096
      %v1098 = vrot.slane %v924, %v1097
      %v1100 = vmul.f32 %v1064, %v1098
      %v1101 = vmul.f32 %v1065, %v1098
      %v1102 = vmul.f32 %v1066, %v1098
      %v1103 = vmul.f32 %v1067, %v1098
      %v1104 = vmul.f32 %v1068, %v1098
      %v1105 = vmul.f32 %v1069, %v1098
      %v1106 = vmul.f32 %v1070, %v1098
      %v1107 = vmul.f32 %v1071, %v1098
      %v1108 = vadd.f32 %v1034, %v1100
      %v1109 = vadd.f32 %v1035, %v1101
      %v1110 = vadd.f32 %v1036, %v1102
      %v1111 = vadd.f32 %v1037, %v1103
      %v1112 = vadd.f32 %v1038, %v1104
      %v1113 = vadd.f32 %v1039, %v1105
      %v1114 = vadd.f32 %v1040, %v1106
      %v1115 = vadd.f32 %v1041, %v1107
      %v1117 = vlaneseq
      %v1118 = vshrl.u32 %v1117, 7
      %v1119 = vsub.s32 0, %v1118
      %v1120 = vrot.slane %v933, %v1119
      %v1122 = vmul.f32 %v1064, %v1120
      %v1123 = vmul.f32 %v1065, %v1120
      %v1124 = vmul.f32 %v1066, %v1120
      %v1125 = vmul.f32 %v1067, %v1120
      %v1126 = vmul.f32 %v1068, %v1120
      %v1127 = vmul.f32 %v1069, %v1120
      %v1128 = vmul.f32 %v1070, %v1120
      %v1129 = vmul.f32 %v1071, %v1120
      %v1130 = vadd.f32 %v1056, %v1122
      %v1131 = vadd.f32 %v1057, %v1123
      %v1132 = vadd.f32 %v1058, %v1124
      %v1133 = vadd.f32 %v1059, %v1125
      %v1134 = vadd.f32 %v1060, %v1126
      %v1135 = vadd.f32 %v1061, %v1127
      %v1136 = vadd.f32 %v1062, %v1128
      %v1137 = vadd.f32 %v1063, %v1129
      %v1138 = vld [vmem:[%s904] sm:$0xff]
      %v1139 = vld [vmem:[%s904 + $0x10] sm:$0xff]
      %v1140 = vld [vmem:[%s904 + $0x20] sm:$0xff]
      %v1141 = vld [vmem:[%s904 + $0x30] sm:$0xff]
      %v1142 = vld [vmem:[%s904 + $0x40] sm:$0xff]
      %v1143 = vld [vmem:[%s904 + $0x50] sm:$0xff]
      %v1144 = vld [vmem:[%s904 + $0x60] sm:$0xff]
      %v1145 = vld [vmem:[%s904 + $0x70] sm:$0xff]
      %v1147 = vlaneseq
      %v1148 = vshrl.u32 %v1147, 7
      %v1149 = vsub.s32 0, %v1148
      %v1150 = vrot.slane %v916, %v1149
      %v1152 = vmul.f32 %v1138, %v1150
      %v1153 = vmul.f32 %v1139, %v1150
      %v1154 = vmul.f32 %v1140, %v1150
      %v1155 = vmul.f32 %v1141, %v1150
      %v1156 = vmul.f32 %v1142, %v1150
      %v1157 = vmul.f32 %v1143, %v1150
      %v1158 = vmul.f32 %v1144, %v1150
      %v1159 = vmul.f32 %v1145, %v1150
      %v1160 = vadd.f32 %v1086, %v1152
      %v1161 = vadd.f32 %v1087, %v1153
      %v1162 = vadd.f32 %v1088, %v1154
      %v1163 = vadd.f32 %v1089, %v1155
      %v1164 = vadd.f32 %v1090, %v1156
      %v1165 = vadd.f32 %v1091, %v1157
      %v1166 = vadd.f32 %v1092, %v1158
      %v1167 = vadd.f32 %v1093, %v1159
      %v1169 = vlaneseq
      %v1170 = vshrl.u32 %v1169, 7
      %v1171 = vsub.s32 0, %v1170
      %v1172 = vrot.slane %v925, %v1171
      %v1174 = vmul.f32 %v1138, %v1172
      %v1175 = vmul.f32 %v1139, %v1172
      %v1176 = vmul.f32 %v1140, %v1172
      %v1177 = vmul.f32 %v1141, %v1172
      %v1178 = vmul.f32 %v1142, %v1172
      %v1179 = vmul.f32 %v1143, %v1172
      %v1180 = vmul.f32 %v1144, %v1172
      %v1181 = vmul.f32 %v1145, %v1172
      %v1182 = vadd.f32 %v1108, %v1174
      %v1183 = vadd.f32 %v1109, %v1175
      %v1184 = vadd.f32 %v1110, %v1176
      %v1185 = vadd.f32 %v1111, %v1177
      %v1186 = vadd.f32 %v1112, %v1178
      %v1187 = vadd.f32 %v1113, %v1179
      %v1188 = vadd.f32 %v1114, %v1180
      %v1189 = vadd.f32 %v1115, %v1181
      %v1191 = vlaneseq
      %v1192 = vshrl.u32 %v1191, 7
      %v1193 = vsub.s32 0, %v1192
      %v1194 = vrot.slane %v934, %v1193
      %v1196 = vmul.f32 %v1138, %v1194
      %v1197 = vmul.f32 %v1139, %v1194
      %v1198 = vmul.f32 %v1140, %v1194
      %v1199 = vmul.f32 %v1141, %v1194
      %v1200 = vmul.f32 %v1142, %v1194
      %v1201 = vmul.f32 %v1143, %v1194
      %v1202 = vmul.f32 %v1144, %v1194
      %v1203 = vmul.f32 %v1145, %v1194
      %v1204 = vadd.f32 %v1130, %v1196
      %v1205 = vadd.f32 %v1131, %v1197
      %v1206 = vadd.f32 %v1132, %v1198
      %v1207 = vadd.f32 %v1133, %v1199
      %v1208 = vadd.f32 %v1134, %v1200
      %v1209 = vadd.f32 %v1135, %v1201
      %v1210 = vadd.f32 %v1136, %v1202
      %v1211 = vadd.f32 %v1137, %v1203
      %v1212 = vld [vmem:[%s904 + $0x1] sm:$0xff]
      %v1213 = vld [vmem:[%s904 + $0x11] sm:$0xff]
      %v1214 = vld [vmem:[%s904 + $0x21] sm:$0xff]
      %v1215 = vld [vmem:[%s904 + $0x31] sm:$0xff]
      %v1216 = vld [vmem:[%s904 + $0x41] sm:$0xff]
      %v1217 = vld [vmem:[%s904 + $0x51] sm:$0xff]
      %v1218 = vld [vmem:[%s904 + $0x61] sm:$0xff]
      %v1219 = vld [vmem:[%s904 + $0x71] sm:$0xff]
      %v1221 = vlaneseq
      %v1222 = vshrl.u32 %v1221, 7
      %v1223 = vsub.s32 0, %v1222
      %v1224 = vrot.slane %v917, %v1223
      %v1226 = vmul.f32 %v1212, %v1224
      %v1227 = vmul.f32 %v1213, %v1224
      %v1228 = vmul.f32 %v1214, %v1224
      %v1229 = vmul.f32 %v1215, %v1224
      %v1230 = vmul.f32 %v1216, %v1224
      %v1231 = vmul.f32 %v1217, %v1224
      %v1232 = vmul.f32 %v1218, %v1224
      %v1233 = vmul.f32 %v1219, %v1224
      %v1234 = vadd.f32 %v1160, %v1226
      %v1235 = vadd.f32 %v1161, %v1227
      %v1236 = vadd.f32 %v1162, %v1228
      %v1237 = vadd.f32 %v1163, %v1229
      %v1238 = vadd.f32 %v1164, %v1230
      %v1239 = vadd.f32 %v1165, %v1231
      %v1240 = vadd.f32 %v1166, %v1232
      %v1241 = vadd.f32 %v1167, %v1233
      %v1243 = vlaneseq
      %v1244 = vshrl.u32 %v1243, 7
      %v1245 = vsub.s32 0, %v1244
      %v1246 = vrot.slane %v926, %v1245
      %v1248 = vmul.f32 %v1212, %v1246
      %v1249 = vmul.f32 %v1213, %v1246
      %v1250 = vmul.f32 %v1214, %v1246
      %v1251 = vmul.f32 %v1215, %v1246
      %v1252 = vmul.f32 %v1216, %v1246
      %v1253 = vmul.f32 %v1217, %v1246
      %v1254 = vmul.f32 %v1218, %v1246
      %v1255 = vmul.f32 %v1219, %v1246
      %v1256 = vadd.f32 %v1182, %v1248
      %v1257 = vadd.f32 %v1183, %v1249
      %v1258 = vadd.f32 %v1184, %v1250
      %v1259 = vadd.f32 %v1185, %v1251
      %v1260 = vadd.f32 %v1186, %v1252
      %v1261 = vadd.f32 %v1187, %v1253
      %v1262 = vadd.f32 %v1188, %v1254
      %v1263 = vadd.f32 %v1189, %v1255
      %v1265 = vlaneseq
      %v1266 = vshrl.u32 %v1265, 7
      %v1267 = vsub.s32 0, %v1266
      %v1268 = vrot.slane %v935, %v1267
      %v1270 = vmul.f32 %v1212, %v1268
      %v1271 = vmul.f32 %v1213, %v1268
      %v1272 = vmul.f32 %v1214, %v1268
      %v1273 = vmul.f32 %v1215, %v1268
      %v1274 = vmul.f32 %v1216, %v1268
      %v1275 = vmul.f32 %v1217, %v1268
      %v1276 = vmul.f32 %v1218, %v1268
      %v1277 = vmul.f32 %v1219, %v1268
      %v1278 = vadd.f32 %v1204, %v1270
      %v1279 = vadd.f32 %v1205, %v1271
      %v1280 = vadd.f32 %v1206, %v1272
      %v1281 = vadd.f32 %v1207, %v1273
      %v1282 = vadd.f32 %v1208, %v1274
      %v1283 = vadd.f32 %v1209, %v1275
      %v1284 = vadd.f32 %v1210, %v1276
      %v1285 = vadd.f32 %v1211, %v1277
      %v1286 = vld [vmem:[%s904 + $0x2] sm:$0xff]
      %v1287 = vld [vmem:[%s904 + $0x12] sm:$0xff]
      %v1288 = vld [vmem:[%s904 + $0x22] sm:$0xff]
      %v1289 = vld [vmem:[%s904 + $0x32] sm:$0xff]
      %v1290 = vld [vmem:[%s904 + $0x42] sm:$0xff]
      %v1291 = vld [vmem:[%s904 + $0x52] sm:$0xff]
      %v1292 = vld [vmem:[%s904 + $0x62] sm:$0xff]
      %v1293 = vld [vmem:[%s904 + $0x72] sm:$0xff]
      %v1295 = vlaneseq
      %v1296 = vshrl.u32 %v1295, 7
      %v1297 = vsub.s32 0, %v1296
      %v1298 = vrot.slane %v918, %v1297
      %v1300 = vmul.f32 %v1286, %v1298
      %v1301 = vmul.f32 %v1287, %v1298
      %v1302 = vmul.f32 %v1288, %v1298
      %v1303 = vmul.f32 %v1289, %v1298
      %v1304 = vmul.f32 %v1290, %v1298
      %v1305 = vmul.f32 %v1291, %v1298
      %v1306 = vmul.f32 %v1292, %v1298
      %v1307 = vmul.f32 %v1293, %v1298
      %v1308 = vadd.f32 %v1234, %v1300
      %v1309 = vadd.f32 %v1235, %v1301
      %v1310 = vadd.f32 %v1236, %v1302
      %v1311 = vadd.f32 %v1237, %v1303
      %v1312 = vadd.f32 %v1238, %v1304
      %v1313 = vadd.f32 %v1239, %v1305
      %v1314 = vadd.f32 %v1240, %v1306
      %v1315 = vadd.f32 %v1241, %v1307
      %v1317 = vlaneseq
      %v1318 = vshrl.u32 %v1317, 7
      %v1319 = vsub.s32 0, %v1318
      %v1320 = vrot.slane %v927, %v1319
      %v1322 = vmul.f32 %v1286, %v1320
      %v1323 = vmul.f32 %v1287, %v1320
      %v1324 = vmul.f32 %v1288, %v1320
      %v1325 = vmul.f32 %v1289, %v1320
      %v1326 = vmul.f32 %v1290, %v1320
      %v1327 = vmul.f32 %v1291, %v1320
      %v1328 = vmul.f32 %v1292, %v1320
      %v1329 = vmul.f32 %v1293, %v1320
      %v1330 = vadd.f32 %v1256, %v1322
      %v1331 = vadd.f32 %v1257, %v1323
      %v1332 = vadd.f32 %v1258, %v1324
      %v1333 = vadd.f32 %v1259, %v1325
      %v1334 = vadd.f32 %v1260, %v1326
      %v1335 = vadd.f32 %v1261, %v1327
      %v1336 = vadd.f32 %v1262, %v1328
      %v1337 = vadd.f32 %v1263, %v1329
      %v1339 = vlaneseq
      %v1340 = vshrl.u32 %v1339, 7
      %v1341 = vsub.s32 0, %v1340
      %v1342 = vrot.slane %v936, %v1341
      %v1344 = vmul.f32 %v1286, %v1342
      %v1345 = vmul.f32 %v1287, %v1342
      %v1346 = vmul.f32 %v1288, %v1342
      %v1347 = vmul.f32 %v1289, %v1342
      %v1348 = vmul.f32 %v1290, %v1342
      %v1349 = vmul.f32 %v1291, %v1342
      %v1350 = vmul.f32 %v1292, %v1342
      %v1351 = vmul.f32 %v1293, %v1342
      %v1352 = vadd.f32 %v1278, %v1344
      %v1353 = vadd.f32 %v1279, %v1345
      %v1354 = vadd.f32 %v1280, %v1346
      %v1355 = vadd.f32 %v1281, %v1347
      %v1356 = vadd.f32 %v1282, %v1348
      %v1357 = vadd.f32 %v1283, %v1349
      %v1358 = vadd.f32 %v1284, %v1350
      %v1359 = vadd.f32 %v1285, %v1351
      %s1360 = scalar_lea.vmem [#allocation2], 32
      %v1361 = vld [vmem:[%s1360] sm:$0xff]
      %v1362 = vld [vmem:[%s1360 + $0x10] sm:$0xff]
      %v1363 = vld [vmem:[%s1360 + $0x20] sm:$0xff]
      %v1364 = vld [vmem:[%s1360 + $0x30] sm:$0xff]
      %v1365 = vld [vmem:[%s1360 + $0x40] sm:$0xff]
      %v1366 = vld [vmem:[%s1360 + $0x50] sm:$0xff]
      %v1367 = vld [vmem:[%s1360 + $0x60] sm:$0xff]
      %v1368 = vld [vmem:[%s1360 + $0x70] sm:$0xff]
      %v1370 = vlaneseq
      %v1371 = vshrl.u32 %v1370, 7
      %v1372 = vsub.s32 0, %v1371
      %v1373 = vrot.slane %v919, %v1372
      %v1375 = vmul.f32 %v1361, %v1373
      %v1376 = vmul.f32 %v1362, %v1373
      %v1377 = vmul.f32 %v1363, %v1373
      %v1378 = vmul.f32 %v1364, %v1373
      %v1379 = vmul.f32 %v1365, %v1373
      %v1380 = vmul.f32 %v1366, %v1373
      %v1381 = vmul.f32 %v1367, %v1373
      %v1382 = vmul.f32 %v1368, %v1373
      %v1383 = vadd.f32 %v1308, %v1375
      %v1384 = vadd.f32 %v1309, %v1376
      %v1385 = vadd.f32 %v1310, %v1377
      %v1386 = vadd.f32 %v1311, %v1378
      %v1387 = vadd.f32 %v1312, %v1379
      %v1388 = vadd.f32 %v1313, %v1380
      %v1389 = vadd.f32 %v1314, %v1381
      %v1390 = vadd.f32 %v1315, %v1382
      %v1392 = vlaneseq
      %v1393 = vshrl.u32 %v1392, 7
      %v1394 = vsub.s32 0, %v1393
      %v1395 = vrot.slane %v928, %v1394
      %v1397 = vmul.f32 %v1361, %v1395
      %v1398 = vmul.f32 %v1362, %v1395
      %v1399 = vmul.f32 %v1363, %v1395
      %v1400 = vmul.f32 %v1364, %v1395
      %v1401 = vmul.f32 %v1365, %v1395
      %v1402 = vmul.f32 %v1366, %v1395
      %v1403 = vmul.f32 %v1367, %v1395
      %v1404 = vmul.f32 %v1368, %v1395
      %v1405 = vadd.f32 %v1330, %v1397
      %v1406 = vadd.f32 %v1331, %v1398
      %v1407 = vadd.f32 %v1332, %v1399
      %v1408 = vadd.f32 %v1333, %v1400
      %v1409 = vadd.f32 %v1334, %v1401
      %v1410 = vadd.f32 %v1335, %v1402
      %v1411 = vadd.f32 %v1336, %v1403
      %v1412 = vadd.f32 %v1337, %v1404
      %v1414 = vlaneseq
      %v1415 = vshrl.u32 %v1414, 7
      %v1416 = vsub.s32 0, %v1415
      %v1417 = vrot.slane %v937, %v1416
      %v1419 = vmul.f32 %v1361, %v1417
      %v1420 = vmul.f32 %v1362, %v1417
      %v1421 = vmul.f32 %v1363, %v1417
      %v1422 = vmul.f32 %v1364, %v1417
      %v1423 = vmul.f32 %v1365, %v1417
      %v1424 = vmul.f32 %v1366, %v1417
      %v1425 = vmul.f32 %v1367, %v1417
      %v1426 = vmul.f32 %v1368, %v1417
      %v1427 = vadd.f32 %v1352, %v1419
      %v1428 = vadd.f32 %v1353, %v1420
      %v1429 = vadd.f32 %v1354, %v1421
      %v1430 = vadd.f32 %v1355, %v1422
      %v1431 = vadd.f32 %v1356, %v1423
      %v1432 = vadd.f32 %v1357, %v1424
      %v1433 = vadd.f32 %v1358, %v1425
      %v1434 = vadd.f32 %v1359, %v1426
      %v1435 = vld [vmem:[%s1360 + $0x1] sm:$0xff]
      %v1436 = vld [vmem:[%s1360 + $0x11] sm:$0xff]
      %v1437 = vld [vmem:[%s1360 + $0x21] sm:$0xff]
      %v1438 = vld [vmem:[%s1360 + $0x31] sm:$0xff]
      %v1439 = vld [vmem:[%s1360 + $0x41] sm:$0xff]
      %v1440 = vld [vmem:[%s1360 + $0x51] sm:$0xff]
      %v1441 = vld [vmem:[%s1360 + $0x61] sm:$0xff]
      %v1442 = vld [vmem:[%s1360 + $0x71] sm:$0xff]
      %v1444 = vlaneseq
      %v1445 = vshrl.u32 %v1444, 7
      %v1446 = vsub.s32 0, %v1445
      %v1447 = vrot.slane %v920, %v1446
      %v1449 = vmul.f32 %v1435, %v1447
      %v1450 = vmul.f32 %v1436, %v1447
      %v1451 = vmul.f32 %v1437, %v1447
      %v1452 = vmul.f32 %v1438, %v1447
      %v1453 = vmul.f32 %v1439, %v1447
      %v1454 = vmul.f32 %v1440, %v1447
      %v1455 = vmul.f32 %v1441, %v1447
      %v1456 = vmul.f32 %v1442, %v1447
      %v1457 = vadd.f32 %v1383, %v1449
      %v1458 = vadd.f32 %v1384, %v1450
      %v1459 = vadd.f32 %v1385, %v1451
      %v1460 = vadd.f32 %v1386, %v1452
      %v1461 = vadd.f32 %v1387, %v1453
      %v1462 = vadd.f32 %v1388, %v1454
      %v1463 = vadd.f32 %v1389, %v1455
      %v1464 = vadd.f32 %v1390, %v1456
      %v1466 = vlaneseq
      %v1467 = vshrl.u32 %v1466, 7
      %v1468 = vsub.s32 0, %v1467
      %v1469 = vrot.slane %v929, %v1468
      %v1471 = vmul.f32 %v1435, %v1469
      %v1472 = vmul.f32 %v1436, %v1469
      %v1473 = vmul.f32 %v1437, %v1469
      %v1474 = vmul.f32 %v1438, %v1469
      %v1475 = vmul.f32 %v1439, %v1469
      %v1476 = vmul.f32 %v1440, %v1469
      %v1477 = vmul.f32 %v1441, %v1469
      %v1478 = vmul.f32 %v1442, %v1469
      %v1479 = vadd.f32 %v1405, %v1471
      %v1480 = vadd.f32 %v1406, %v1472
      %v1481 = vadd.f32 %v1407, %v1473
      %v1482 = vadd.f32 %v1408, %v1474
      %v1483 = vadd.f32 %v1409, %v1475
      %v1484 = vadd.f32 %v1410, %v1476
      %v1485 = vadd.f32 %v1411, %v1477
      %v1486 = vadd.f32 %v1412, %v1478
      %v1488 = vlaneseq
      %v1489 = vshrl.u32 %v1488, 7
      %v1490 = vsub.s32 0, %v1489
      %v1491 = vrot.slane %v938, %v1490
      %v1493 = vmul.f32 %v1435, %v1491
      %v1494 = vmul.f32 %v1436, %v1491
      %v1495 = vmul.f32 %v1437, %v1491
      %v1496 = vmul.f32 %v1438, %v1491
      %v1497 = vmul.f32 %v1439, %v1491
      %v1498 = vmul.f32 %v1440, %v1491
      %v1499 = vmul.f32 %v1441, %v1491
      %v1500 = vmul.f32 %v1442, %v1491
      %v1501 = vadd.f32 %v1427, %v1493
      %v1502 = vadd.f32 %v1428, %v1494
      %v1503 = vadd.f32 %v1429, %v1495
      %v1504 = vadd.f32 %v1430, %v1496
      %v1505 = vadd.f32 %v1431, %v1497
      %v1506 = vadd.f32 %v1432, %v1498
      %v1507 = vadd.f32 %v1433, %v1499
      %v1508 = vadd.f32 %v1434, %v1500
      %v1509 = vld [vmem:[%s1360 + $0x2] sm:$0xff]
      %v1510 = vld [vmem:[%s1360 + $0x12] sm:$0xff]
      %v1511 = vld [vmem:[%s1360 + $0x22] sm:$0xff]
      %v1512 = vld [vmem:[%s1360 + $0x32] sm:$0xff]
      %v1513 = vld [vmem:[%s1360 + $0x42] sm:$0xff]
      %v1514 = vld [vmem:[%s1360 + $0x52] sm:$0xff]
      %v1515 = vld [vmem:[%s1360 + $0x62] sm:$0xff]
      %v1516 = vld [vmem:[%s1360 + $0x72] sm:$0xff]
      %v1518 = vlaneseq
      %v1519 = vshrl.u32 %v1518, 7
      %v1520 = vsub.s32 0, %v1519
      %v1521 = vrot.slane %v921, %v1520
      %v1523 = vmul.f32 %v1509, %v1521
      %v1524 = vmul.f32 %v1510, %v1521
      %v1525 = vmul.f32 %v1511, %v1521
      %v1526 = vmul.f32 %v1512, %v1521
      %v1527 = vmul.f32 %v1513, %v1521
      %v1528 = vmul.f32 %v1514, %v1521
      %v1529 = vmul.f32 %v1515, %v1521
      %v1530 = vmul.f32 %v1516, %v1521
      %v1531 = vadd.f32 %v1457, %v1523
      %v1532 = vadd.f32 %v1458, %v1524
      %v1533 = vadd.f32 %v1459, %v1525
      %v1534 = vadd.f32 %v1460, %v1526
      %v1535 = vadd.f32 %v1461, %v1527
      %v1536 = vadd.f32 %v1462, %v1528
      %v1537 = vadd.f32 %v1463, %v1529
      %v1538 = vadd.f32 %v1464, %v1530
      %v1540 = vlaneseq
      %v1541 = vshrl.u32 %v1540, 7
      %v1542 = vsub.s32 0, %v1541
      %v1543 = vrot.slane %v930, %v1542
      %v1545 = vmul.f32 %v1509, %v1543
      %v1546 = vmul.f32 %v1510, %v1543
      %v1547 = vmul.f32 %v1511, %v1543
      %v1548 = vmul.f32 %v1512, %v1543
      %v1549 = vmul.f32 %v1513, %v1543
      %v1550 = vmul.f32 %v1514, %v1543
      %v1551 = vmul.f32 %v1515, %v1543
      %v1552 = vmul.f32 %v1516, %v1543
      %v1553 = vadd.f32 %v1479, %v1545
      %v1554 = vadd.f32 %v1480, %v1546
      %v1555 = vadd.f32 %v1481, %v1547
      %v1556 = vadd.f32 %v1482, %v1548
      %v1557 = vadd.f32 %v1483, %v1549
      %v1558 = vadd.f32 %v1484, %v1550
      %v1559 = vadd.f32 %v1485, %v1551
      %v1560 = vadd.f32 %v1486, %v1552
      %v1562 = vlaneseq
      %v1563 = vshrl.u32 %v1562, 7
      %v1564 = vsub.s32 0, %v1563
      %v1565 = vrot.slane %v939, %v1564
      %v1567 = vmul.f32 %v1509, %v1565
      %v1568 = vmul.f32 %v1510, %v1565
      %v1569 = vmul.f32 %v1511, %v1565
      %v1570 = vmul.f32 %v1512, %v1565
      %v1571 = vmul.f32 %v1513, %v1565
      %v1572 = vmul.f32 %v1514, %v1565
      %v1573 = vmul.f32 %v1515, %v1565
      %v1574 = vmul.f32 %v1516, %v1565
      %v1575 = vadd.f32 %v1501, %v1567
      %v1576 = vadd.f32 %v1502, %v1568
      %v1577 = vadd.f32 %v1503, %v1569
      %v1578 = vadd.f32 %v1504, %v1570
      %v1579 = vadd.f32 %v1505, %v1571
      %v1580 = vadd.f32 %v1506, %v1572
      %v1581 = vadd.f32 %v1507, %v1573
      %v1582 = vadd.f32 %v1508, %v1574
      %v1583 = vld [vmem:[%s5] sm:$0x1]
      %v1585 = vlaneseq
      %v1586 = vshrl.u32 %v1585, 7
      %v1587 = vsub.s32 0, %v1586
      %v1588 = vrot.slane %v1583, %v1587
      %v1590 = vadd.f32 %v1531, %v1588
      %v1591 = vadd.f32 %v1532, %v1588
      %v1592 = vadd.f32 %v1533, %v1588
      %v1593 = vadd.f32 %v1534, %v1588
      %v1594 = vadd.f32 %v1535, %v1588
      %v1595 = vadd.f32 %v1536, %v1588
      %v1596 = vadd.f32 %v1537, %v1588
      %v1597 = vadd.f32 %v1538, %v1588
      %v1598 = vld [vmem:[%s7] sm:$0x1]
      %v1600 = vlaneseq
      %v1601 = vshrl.u32 %v1600, 7
      %v1602 = vsub.s32 0, %v1601
      %v1603 = vrot.slane %v1598, %v1602
      %v1605 = vadd.f32 %v1553, %v1603
      %v1606 = vadd.f32 %v1554, %v1603
      %v1607 = vadd.f32 %v1555, %v1603
      %v1608 = vadd.f32 %v1556, %v1603
      %v1609 = vadd.f32 %v1557, %v1603
      %v1610 = vadd.f32 %v1558, %v1603
      %v1611 = vadd.f32 %v1559, %v1603
      %v1612 = vadd.f32 %v1560, %v1603
      %v1613 = vld [vmem:[%s9] sm:$0x1]
      %v1615 = vlaneseq
      %v1616 = vshrl.u32 %v1615, 7
      %v1617 = vsub.s32 0, %v1616
      %v1618 = vrot.slane %v1613, %v1617
      %v1620 = vadd.f32 %v1575, %v1618
      %v1621 = vadd.f32 %v1576, %v1618
      %v1622 = vadd.f32 %v1577, %v1618
      %v1623 = vadd.f32 %v1578, %v1618
      %v1624 = vadd.f32 %v1579, %v1618
      %v1625 = vadd.f32 %v1580, %v1618
      %v1626 = vadd.f32 %v1581, %v1618
      %v1627 = vadd.f32 %v1582, %v1618
      %v1628 = vld [vmem:[%s1] sm:$0xf]
      %v1629 = vld [vmem:[%s1 + $0x4] sm:$0xf]
      %v1630 = vpack.c.bf16 %v1606, %v1605
      %v1631 = vpack.c.bf16 %v1608, %v1607
      %v1632 = vpack.c.bf16 %v1610, %v1609
      %v1633 = vpack.c.bf16 %v1612, %v1611
      %v1636 = vunpack.c.l.b16 %v1628
      %v1637 = vunpack.c.l.b16 %v1629
      %v1638 = vpack.c.b16 %v1637, %v1636
      %vm1639 = vcmask 523264
      %v1641 = vsel %vm1639, %v1638, 0
      %1643 = vmatprep.subr.bf16.mxu0 0
      %1644 = vmatpush1.bf16.msra.mxu0 %v1630
      %1645 = vmatprep.subr.bf16.mxu0 0
      %1646 = vmatpush1.bf16.msra.mxu0 %v1631
      %1647 = vmatprep.subr.bf16.mxu0 0
      %1648 = vmatpush1.bf16.msra.mxu0 %v1632
      %1649 = vmatprep.subr.bf16.mxu0 0
      %1650 = vmatpush1.bf16.msra.mxu0 %v1633
      %1651 = vmatprep.subr.bf16.mxu0 0
      %1652 = vmatpush1.bf16.msra.mxu0 0
      %1653 = vmatprep.subr.bf16.mxu0 0
      %1654 = vmatpush1.bf16.msra.mxu0 0
      %1655 = vmatprep.subr.bf16.mxu0 0
      %1656 = vmatpush1.bf16.msra.mxu0 0
      %1657 = vmatprep.subr.bf16.mxu0 0
      %1658 = vmatpush1.bf16.msra.mxu0 0
      %1659 = vmatprep.subr.bf16.mxu0 0
      %1660 = vmatpush1.bf16.msra.mxu0 0
      %1661 = vmatprep.subr.bf16.mxu0 0
      %1662 = vmatpush1.bf16.msra.mxu0 0
      %1663 = vmatprep.subr.bf16.mxu0 0
      %1664 = vmatpush1.bf16.msra.mxu0 0
      %1665 = vmatprep.subr.bf16.mxu0 0
      %1666 = vmatpush1.bf16.msra.mxu0 0
      %1667 = vmatprep.subr.bf16.mxu0 0
      %1668 = vmatpush1.bf16.msra.mxu0 0
      %1669 = vmatprep.subr.bf16.mxu0 0
      %1670 = vmatpush1.bf16.msra.mxu0 0
      %1671 = vmatprep.subr.bf16.mxu0 0
      %1672 = vmatpush1.bf16.msra.mxu0 0
      %1673 = vmatprep.subr.bf16.mxu0 0
      %1674 = vmatpush1.bf16.msra.mxu0 0
      %1675 = vmatprep.mubr.bf16.mxu0 0
      %1676 = vmatmul.mubr.bf16.gmra.mrb[0].mxu0 %v1641
      %v1677 = vpop.f32.mrb[0].mxu0
      %v1678 = vadd.f32 0.0, %v1677
      %v1679 = vpop.f32.mrb[0].mxu0
      %v1680 = vpop.f32.mrb[0].mxu0
      %v1681 = vadd.f32 0.0, %v1680
      %v1682 = vpop.f32.mrb[0].mxu0
      %1683 = vdwg.mxu0
      %v1684 = vpack.c.bf16 %v1621, %v1620
      %v1685 = vpack.c.bf16 %v1623, %v1622
      %v1686 = vpack.c.bf16 %v1625, %v1624
      %v1687 = vpack.c.bf16 %v1627, %v1626
      %1688 = vmatprep.subr.bf16.mxu0 0
      %1689 = vmatpush1.bf16.msra.mxu0 %v1684
      %1690 = vmatprep.subr.bf16.mxu0 0
      %1691 = vmatpush1.bf16.msra.mxu0 %v1685
      %1692 = vmatprep.subr.bf16.mxu0 0
      %1693 = vmatpush1.bf16.msra.mxu0 %v1686
      %1694 = vmatprep.subr.bf16.mxu0 0
      %1695 = vmatpush1.bf16.msra.mxu0 %v1687
      %1696 = vmatprep.subr.bf16.mxu0 0
      %1697 = vmatpush1.bf16.msra.mxu0 0
      %1698 = vmatprep.subr.bf16.mxu0 0
      %1699 = vmatpush1.bf16.msra.mxu0 0
      %1700 = vmatprep.subr.bf16.mxu0 0
      %1701 = vmatpush1.bf16.msra.mxu0 0
      %1702 = vmatprep.subr.bf16.mxu0 0
      %1703 = vmatpush1.bf16.msra.mxu0 0
      %1704 = vmatprep.subr.bf16.mxu0 0
      %1705 = vmatpush1.bf16.msra.mxu0 0
      %1706 = vmatprep.subr.bf16.mxu0 0
      %1707 = vmatpush1.bf16.msra.mxu0 0
      %1708 = vmatprep.subr.bf16.mxu0 0
      %1709 = vmatpush1.bf16.msra.mxu0 0
      %1710 = vmatprep.subr.bf16.mxu0 0
      %1711 = vmatpush1.bf16.msra.mxu0 0
      %1712 = vmatprep.subr.bf16.mxu0 0
      %1713 = vmatpush1.bf16.msra.mxu0 0
      %1714 = vmatprep.subr.bf16.mxu0 0
      %1715 = vmatpush1.bf16.msra.mxu0 0
      %1716 = vmatprep.subr.bf16.mxu0 0
      %1717 = vmatpush1.bf16.msra.mxu0 0
      %1718 = vmatprep.subr.bf16.mxu0 0
      %1719 = vmatpush1.bf16.msra.mxu0 0
      %1720 = vmatprep.mubr.bf16.mxu0 0
      %1721 = vmatmul.mubr.bf16.gmra.mrb[0].mxu0 %v1641
      %v1722 = vpop.f32.mrb[0].mxu0
      %v1723 = vadd.f32 0.0, %v1722
      %v1724 = vpop.f32.mrb[0].mxu0
      %v1725 = vpop.f32.mrb[0].mxu0
      %v1726 = vadd.f32 0.0, %v1725
      %v1727 = vpop.f32.mrb[0].mxu0
      %1728 = vdwg.mxu0
      %1729 = vst.msk [vmem:[#allocation3] sm:$0xff] %vm749, %v1590
      %1730 = vst.msk [vmem:[#allocation3 + $0x8] sm:$0xff] %vm749, %v1591
      %1731 = vst.msk [vmem:[#allocation3 + $0x10] sm:$0xff] %vm749, %v1592
      %1732 = vst.msk [vmem:[#allocation3 + $0x18] sm:$0xff] %vm749, %v1593
      %1733 = vst.msk [vmem:[#allocation3 + $0x20] sm:$0xff] %vm749, %v1594
      %1734 = vst.msk [vmem:[#allocation3 + $0x28] sm:$0xff] %vm749, %v1595
      %1735 = vst.msk [vmem:[#allocation3 + $0x30] sm:$0xff] %vm749, %v1596
      %1736 = vst.msk [vmem:[#allocation3 + $0x38] sm:$0xff] %vm749, %v1597
      %1737 = vst.msk [vmem:[#allocation4] sm:$0xff] %vm749, %v1678
      %1738 = vst.msk [vmem:[#allocation4 + $0x8] sm:$0xff] %vm749, %v1681
      %1739 = vst.msk [vmem:[#allocation5] sm:$0xff] %vm749, %v1723
      %1740 = vst.msk [vmem:[#allocation5 + $0x8] sm:$0xff] %vm749, %v1726
      %v1741 = vld [vmem:[#allocation3] sm:$0xff]
      %v1742 = vld [vmem:[#allocation3 + $0x8] sm:$0xff]
      %v1743 = vld [vmem:[#allocation3 + $0x10] sm:$0xff]
      %v1744 = vld [vmem:[#allocation3 + $0x18] sm:$0xff]
      %v1745 = vld [vmem:[#allocation3 + $0x20] sm:$0xff]
      %v1746 = vld [vmem:[#allocation3 + $0x28] sm:$0xff]
      %v1747 = vld [vmem:[#allocation3 + $0x30] sm:$0xff]
      %v1748 = vld [vmem:[#allocation3 + $0x38] sm:$0xff]
      %v1749 = vld [vmem:[#allocation4] sm:$0xff]
      %v1750 = vld [vmem:[#allocation4 + $0x8] sm:$0xff]
      %v1751 = vld [vmem:[#allocation5] sm:$0xff]
      %v1752 = vld [vmem:[#allocation5 + $0x8] sm:$0xff]
      %v1753 = vpack.c.bf16 %v1742, %v1741
      %v1754 = vpack.c.bf16 %v1744, %v1743
      %v1755 = vpack.c.bf16 %v1746, %v1745
      %v1756 = vpack.c.bf16 %v1748, %v1747
      %v1757 = vld [vmem:[%s10] sm:$0xf]
      %v1758 = vld [vmem:[%s10 + $0x4] sm:$0xf]
      %v1759 = vld [vmem:[%s11] sm:$0x1]
      %v1761 = vlaneseq
      %v1762 = vshrl.u32 %v1761, 7
      %v1763 = vsub.s32 0, %v1762
      %v1764 = vrot.slane %v1759, %v1763
      %v1768 = vunpack.c.l.b16 %v1757
      %v1769 = vunpack.c.l.b16 %v1758
      %v1770 = vpack.c.b16 %v1769, %v1768
      %v1773 = vsel %vm749, %v1753, 0
      %v1776 = vsel %vm749, %v1754, 0
      %v1779 = vsel %vm749, %v1755, 0
      %v1782 = vsel %vm749, %v1756, 0
      %1784 = vmatprep.subr.bf16.mxu0 0
      %1785 = vmatpush1.bf16.msra.mxu0 %v1770
      %1786 = vmatprep.subr.bf16.mxu0 0
      %1787 = vmatpush1.bf16.msra.mxu0 0
      %1788 = vmatprep.subr.bf16.mxu0 0
      %1789 = vmatpush1.bf16.msra.mxu0 0
      %1790 = vmatprep.subr.bf16.mxu0 0
      %1791 = vmatpush1.bf16.msra.mxu0 0
      %1792 = vmatprep.subr.bf16.mxu0 0
      %1793 = vmatpush1.bf16.msra.mxu0 0
      %1794 = vmatprep.subr.bf16.mxu0 0
      %1795 = vmatpush1.bf16.msra.mxu0 0
      %1796 = vmatprep.subr.bf16.mxu0 0
      %1797 = vmatpush1.bf16.msra.mxu0 0
      %1798 = vmatprep.subr.bf16.mxu0 0
      %1799 = vmatpush1.bf16.msra.mxu0 0
      %1800 = vmatprep.subr.bf16.mxu0 0
      %1801 = vmatpush1.bf16.msra.mxu0 0
      %1802 = vmatprep.subr.bf16.mxu0 0
      %1803 = vmatpush1.bf16.msra.mxu0 0
      %1804 = vmatprep.subr.bf16.mxu0 0
      %1805 = vmatpush1.bf16.msra.mxu0 0
      %1806 = vmatprep.subr.bf16.mxu0 0
      %1807 = vmatpush1.bf16.msra.mxu0 0
      %1808 = vmatprep.subr.bf16.mxu0 0
      %1809 = vmatpush1.bf16.msra.mxu0 0
      %1810 = vmatprep.subr.bf16.mxu0 0
      %1811 = vmatpush1.bf16.msra.mxu0 0
      %1812 = vmatprep.subr.bf16.mxu0 0
      %1813 = vmatpush1.bf16.msra.mxu0 0
      %1814 = vmatprep.subr.bf16.mxu0 0
      %1815 = vmatpush1.bf16.msra.mxu0 0
      %1816 = vmatprep.mubr.bf16.mxu0 0
      %1817 = vmatmul.mubr.bf16.gmra.mrb[0].mxu0 %v1773
      %v1818 = vpop.f32.mrb[0].mxu0
      %v1819 = vadd.f32 %v1764, %v1818
      %v1820 = vpop.f32.mrb[0].mxu0
      %v1821 = vpop.f32.mrb[0].mxu0
      %v1822 = vadd.f32 %v1764, %v1821
      %v1823 = vpop.f32.mrb[0].mxu0
      %1824 = vmatprep.mubr.bf16.mxu0 0
      %1825 = vmatmul.mubr.bf16.gmra.mrb[0].mxu0 %v1776
      %v1826 = vpop.f32.mrb[0].mxu0
      %v1827 = vadd.f32 %v1764, %v1826
      %v1828 = vpop.f32.mrb[0].mxu0
      %v1829 = vpop.f32.mrb[0].mxu0
      %v1830 = vadd.f32 %v1764, %v1829
      %v1831 = vpop.f32.mrb[0].mxu0
      %1832 = vmatprep.mubr.bf16.mxu0 0
      %1833 = vmatmul.mubr.bf16.gmra.mrb[0].mxu0 %v1779
      %v1834 = vpop.f32.mrb[0].mxu0
      %v1835 = vadd.f32 %v1764, %v1834
      %v1836 = vpop.f32.mrb[0].mxu0
      %v1837 = vpop.f32.mrb[0].mxu0
      %v1838 = vadd.f32 %v1764, %v1837
      %v1839 = vpop.f32.mrb[0].mxu0
      %1840 = vmatprep.mubr.bf16.mxu0 0
      %1841 = vmatmul.mubr.bf16.gmra.mrb[0].mxu0 %v1782
      %v1842 = vpop.f32.mrb[0].mxu0
      %v1843 = vadd.f32 %v1764, %v1842
      %v1844 = vpop.f32.mrb[0].mxu0
      %v1845 = vpop.f32.mrb[0].mxu0
      %v1846 = vadd.f32 %v1764, %v1845
      %v1847 = vpop.f32.mrb[0].mxu0
      %1848 = vdwg.mxu0
      %v1849 = vpack.c.bf16 %v1750, %v1749
      %v1850 = vld [vmem:[%s12] sm:$0xf]
      %v1851 = vld [vmem:[%s12 + $0x4] sm:$0xf]
      %v1852 = vld [vmem:[%s13] sm:$0x1]
      %v1854 = vlaneseq
      %v1855 = vshrl.u32 %v1854, 7
      %v1856 = vsub.s32 0, %v1855
      %v1857 = vrot.slane %v1852, %v1856
      %v1861 = vunpack.c.l.b16 %v1850
      %v1862 = vunpack.c.l.b16 %v1851
      %v1863 = vpack.c.b16 %v1862, %v1861
      %v1866 = vsel %vm749, %v1849, 0
      %1868 = vmatprep.subr.bf16.mxu0 0
      %1869 = vmatpush1.bf16.msra.mxu0 %v1863
      %1870 = vmatprep.subr.bf16.mxu0 0
      %1871 = vmatpush1.bf16.msra.mxu0 0
      %1872 = vmatprep.subr.bf16.mxu0 0
      %1873 = vmatpush1.bf16.msra.mxu0 0
      %1874 = vmatprep.subr.bf16.mxu0 0
      %1875 = vmatpush1.bf16.msra.mxu0 0
      %1876 = vmatprep.subr.bf16.mxu0 0
      %1877 = vmatpush1.bf16.msra.mxu0 0
      %1878 = vmatprep.subr.bf16.mxu0 0
      %1879 = vmatpush1.bf16.msra.mxu0 0
      %1880 = vmatprep.subr.bf16.mxu0 0
      %1881 = vmatpush1.bf16.msra.mxu0 0
      %1882 = vmatprep.subr.bf16.mxu0 0
      %1883 = vmatpush1.bf16.msra.mxu0 0
      %1884 = vmatprep.subr.bf16.mxu0 0
      %1885 = vmatpush1.bf16.msra.mxu0 0
      %1886 = vmatprep.subr.bf16.mxu0 0
      %1887 = vmatpush1.bf16.msra.mxu0 0
      %1888 = vmatprep.subr.bf16.mxu0 0
      %1889 = vmatpush1.bf16.msra.mxu0 0
      %1890 = vmatprep.subr.bf16.mxu0 0
      %1891 = vmatpush1.bf16.msra.mxu0 0
      %1892 = vmatprep.subr.bf16.mxu0 0
      %1893 = vmatpush1.bf16.msra.mxu0 0
      %1894 = vmatprep.subr.bf16.mxu0 0
      %1895 = vmatpush1.bf16.msra.mxu0 0
      %1896 = vmatprep.subr.bf16.mxu0 0
      %1897 = vmatpush1.bf16.msra.mxu0 0
      %1898 = vmatprep.subr.bf16.mxu0 0
      %1899 = vmatpush1.bf16.msra.mxu0 0
      %1900 = vmatprep.mubr.bf16.mxu0 0
      %1901 = vmatmul.mubr.bf16.gmra.mrb[0].mxu0 %v1866
      %v1902 = vpop.f32.mrb[0].mxu0
      %v1903 = vadd.f32 %v1857, %v1902
      %v1904 = vpop.f32.mrb[0].mxu0
      %v1905 = vpop.f32.mrb[0].mxu0
      %v1906 = vadd.f32 %v1857, %v1905
      %v1907 = vpop.f32.mrb[0].mxu0
      %1908 = vdwg.mxu0
      %v1909 = vpack.c.bf16 %v1752, %v1751
      %v1910 = vld [vmem:[%s14] sm:$0xf]
      %v1911 = vld [vmem:[%s14 + $0x4] sm:$0xf]
      %v1912 = vld [vmem:[%s15] sm:$0x1]
      %v1914 = vlaneseq
      %v1915 = vshrl.u32 %v1914, 7
      %v1916 = vsub.s32 0, %v1915
      %v1917 = vrot.slane %v1912, %v1916
      %v1921 = vunpack.c.l.b16 %v1910
      %v1922 = vunpack.c.l.b16 %v1911
      %v1923 = vpack.c.b16 %v1922, %v1921
      %v1926 = vsel %vm749, %v1909, 0
      %1928 = vmatprep.subr.bf16.mxu0 0
      %1929 = vmatpush1.bf16.msra.mxu0 %v1923
      %1930 = vmatprep.subr.bf16.mxu0 0
      %1931 = vmatpush1.bf16.msra.mxu0 0
      %1932 = vmatprep.subr.bf16.mxu0 0
      %1933 = vmatpush1.bf16.msra.mxu0 0
      %1934 = vmatprep.subr.bf16.mxu0 0
      %1935 = vmatpush1.bf16.msra.mxu0 0
      %1936 = vmatprep.subr.bf16.mxu0 0
      %1937 = vmatpush1.bf16.msra.mxu0 0
      %1938 = vmatprep.subr.bf16.mxu0 0
      %1939 = vmatpush1.bf16.msra.mxu0 0
      %1940 = vmatprep.subr.bf16.mxu0 0
      %1941 = vmatpush1.bf16.msra.mxu0 0
      %1942 = vmatprep.subr.bf16.mxu0 0
      %1943 = vmatpush1.bf16.msra.mxu0 0
      %1944 = vmatprep.subr.bf16.mxu0 0
      %1945 = vmatpush1.bf16.msra.mxu0 0
      %1946 = vmatprep.subr.bf16.mxu0 0
      %1947 = vmatpush1.bf16.msra.mxu0 0
      %1948 = vmatprep.subr.bf16.mxu0 0
      %1949 = vmatpush1.bf16.msra.mxu0 0
      %1950 = vmatprep.subr.bf16.mxu0 0
      %1951 = vmatpush1.bf16.msra.mxu0 0
      %1952 = vmatprep.subr.bf16.mxu0 0
      %1953 = vmatpush1.bf16.msra.mxu0 0
      %1954 = vmatprep.subr.bf16.mxu0 0
      %1955 = vmatpush1.bf16.msra.mxu0 0
      %1956 = vmatprep.subr.bf16.mxu0 0
      %1957 = vmatpush1.bf16.msra.mxu0 0
      %1958 = vmatprep.subr.bf16.mxu0 0
      %1959 = vmatpush1.bf16.msra.mxu0 0
      %1960 = vmatprep.mubr.bf16.mxu0 0
      %1961 = vmatmul.mubr.bf16.gmra.mrb[0].mxu0 %v1926
      %v1962 = vpop.f32.mrb[0].mxu0
      %v1963 = vadd.f32 %v1917, %v1962
      %v1964 = vpop.f32.mrb[0].mxu0
      %v1965 = vpop.f32.mrb[0].mxu0
      %v1966 = vadd.f32 %v1917, %v1965
      %v1967 = vpop.f32.mrb[0].mxu0
      %1968 = vdwg.mxu0
      %v1969 = vpack.c.bf16 %v1822, %v1819
      %v1970 = vpack.c.bf16 %v1830, %v1827
      %v1971 = vpack.c.bf16 %v1838, %v1835
      %v1972 = vpack.c.bf16 %v1846, %v1843
      %v1973 = vpack.c.bf16 %v1906, %v1903
      %v1975 = vsel %vm749, %v1969, 0
      %v1978 = vsel %vm749, %v1970, 0
      %v1981 = vsel %vm749, %v1971, 0
      %v1984 = vsel %vm749, %v1972, 0
      %v1987 = vsel %vm749, %v1973, 0
      %1989 = vmatprep.subr.bf16.mxu0 0
      %1990 = vmatpush1.bf16.xpose.msra.mxu0 %v1987
      %1991 = vmatprep.subr.bf16.mxu0 0
      %1992 = vmatpush1.bf16.xpose.msra.mxu0 0
      %1993 = vmatprep.subr.bf16.mxu0 0
      %1994 = vmatpush1.bf16.xpose.msra.mxu0 0
      %1995 = vmatprep.subr.bf16.mxu0 0
      %1996 = vmatpush1.bf16.xpose.msra.mxu0 0
      %1997 = vmatprep.subr.bf16.mxu0 0
      %1998 = vmatpush1.bf16.xpose.msra.mxu0 0
      %1999 = vmatprep.subr.bf16.mxu0 0
      %2000 = vmatpush1.bf16.xpose.msra.mxu0 0
      %2001 = vmatprep.subr.bf16.mxu0 0
      %2002 = vmatpush1.bf16.xpose.msra.mxu0 0
      %2003 = vmatprep.subr.bf16.mxu0 0
      %2004 = vmatpush1.bf16.xpose.msra.mxu0 0
      %2005 = vmatprep.subr.bf16.mxu0 0
      %2006 = vmatpush1.bf16.xpose.msra.mxu0 0
      %2007 = vmatprep.subr.bf16.mxu0 0
      %2008 = vmatpush1.bf16.xpose.msra.mxu0 0
      %2009 = vmatprep.subr.bf16.mxu0 0
      %2010 = vmatpush1.bf16.xpose.msra.mxu0 0
      %2011 = vmatprep.subr.bf16.mxu0 0
      %2012 = vmatpush1.bf16.xpose.msra.mxu0 0
      %2013 = vmatprep.subr.bf16.mxu0 0
      %2014 = vmatpush1.bf16.xpose.msra.mxu0 0
      %2015 = vmatprep.subr.bf16.mxu0 0
      %2016 = vmatpush1.bf16.xpose.msra.mxu0 0
      %2017 = vmatprep.subr.bf16.mxu0 0
      %2018 = vmatpush1.bf16.xpose.msra.mxu0 0
      %2019 = vmatprep.subr.bf16.mxu0 0
      %2020 = vmatpush1.bf16.xpose.msra.mxu0 0
      %2021 = vmatprep.mubr.bf16.mxu0 0
      %2022 = vmatmul.mubr.bf16.gmra.mrb[0].mxu0 %v1975
      %v2023 = vpop.f32.mrb[0].mxu0
      %v2024 = vadd.f32 0.0, %v2023
      %v2025 = vpop.f32.mrb[0].mxu0
      %v2026 = vpop.f32.mrb[0].mxu0
      %v2027 = vadd.f32 0.0, %v2026
      %v2028 = vpop.f32.mrb[0].mxu0
      %2029 = vmatprep.mubr.bf16.mxu0 0
      %2030 = vmatmul.mubr.bf16.gmra.mrb[0].mxu0 %v1978
      %v2031 = vpop.f32.mrb[0].mxu0
      %v2032 = vadd.f32 0.0, %v2031
      %v2033 = vpop.f32.mrb[0].mxu0
      %v2034 = vpop.f32.mrb[0].mxu0
      %v2035 = vadd.f32 0.0, %v2034
      %v2036 = vpop.f32.mrb[0].mxu0
      %2037 = vmatprep.mubr.bf16.mxu0 0
      %2038 = vmatmul.mubr.bf16.gmra.mrb[0].mxu0 %v1981
      %v2039 = vpop.f32.mrb[0].mxu0
      %v2040 = vadd.f32 0.0, %v2039
      %v2041 = vpop.f32.mrb[0].mxu0
      %v2042 = vpop.f32.mrb[0].mxu0
      %v2043 = vadd.f32 0.0, %v2042
      %v2044 = vpop.f32.mrb[0].mxu0
      %2045 = vmatprep.mubr.bf16.mxu0 0
      %2046 = vmatmul.mubr.bf16.gmra.mrb[0].mxu0 %v1984
      %v2047 = vpop.f32.mrb[0].mxu0
      %v2048 = vadd.f32 0.0, %v2047
      %v2049 = vpop.f32.mrb[0].mxu0
      %v2050 = vpop.f32.mrb[0].mxu0
      %v2051 = vadd.f32 0.0, %v2050
      %v2052 = vpop.f32.mrb[0].mxu0
      %2053 = vdwg.mxu0
      %v2054 = vsel %vm749, %v2024, -inf
      %2055 = vmax.xlane.f32.xlu0 %v2054
      %v2056 = vpop.xlane.xlu0 %2055
      %v2057 = vsel %vm749, %v2027, -inf
      %2058 = vmax.xlane.f32.xlu0 %v2057
      %v2059 = vpop.xlane.xlu0 %2058
      %v2060 = vsel %vm749, %v2032, -inf
      %2061 = vmax.xlane.f32.xlu0 %v2060
      %v2062 = vpop.xlane.xlu0 %2061
      %v2063 = vsel %vm749, %v2035, -inf
      %2064 = vmax.xlane.f32.xlu0 %v2063
      %v2065 = vpop.xlane.xlu0 %2064
      %v2066 = vsel %vm749, %v2040, -inf
      %2067 = vmax.xlane.f32.xlu0 %v2066
      %v2068 = vpop.xlane.xlu0 %2067
      %v2069 = vsel %vm749, %v2043, -inf
      %2070 = vmax.xlane.f32.xlu0 %v2069
      %v2071 = vpop.xlane.xlu0 %2070
      %v2072 = vsel %vm749, %v2048, -inf
      %2073 = vmax.xlane.f32.xlu0 %v2072
      %v2074 = vpop.xlane.xlu0 %2073
      %v2075 = vsel %vm749, %v2051, -inf
      %2076 = vmax.xlane.f32.xlu0 %v2075
      %v2077 = vpop.xlane.xlu0 %2076
      %v2078 = vsub.f32 %v2024, %v2056
      %v2079 = vsub.f32 %v2027, %v2059
      %v2080 = vsub.f32 %v2032, %v2062
      %v2081 = vsub.f32 %v2035, %v2065
      %v2082 = vsub.f32 %v2040, %v2068
      %v2083 = vsub.f32 %v2043, %v2071
      %v2084 = vsub.f32 %v2048, %v2074
      %v2085 = vsub.f32 %v2051, %v2077
      %v2086 = vmul.f32 %v2078, 1.442695
      %v2087 = vpow.pop %v2086
      %v2088 = vmul.f32 %v2079, 1.442695
      %v2089 = vpow.pop %v2088
      %v2090 = vmul.f32 %v2080, 1.442695
      %v2091 = vpow.pop %v2090
      %v2092 = vmul.f32 %v2081, 1.442695
      %v2093 = vpow.pop %v2092
      %v2094 = vmul.f32 %v2082, 1.442695
      %v2095 = vpow.pop %v2094
      %v2096 = vmul.f32 %v2083, 1.442695
      %v2097 = vpow.pop %v2096
      %v2098 = vmul.f32 %v2084, 1.442695
      %v2099 = vpow.pop %v2098
      %v2100 = vmul.f32 %v2085, 1.442695
      %v2101 = vpow.pop %v2100
      %v2102 = vsel %vm749, %v2087, 0.0
      %2103 = vadd.xlane.f32.xlu0 %v2102
      %v2104 = vpop.xlane.xlu0 %2103
      %v2105 = vsel %vm749, %v2089, 0.0
      %2106 = vadd.xlane.f32.xlu0 %v2105
      %v2107 = vpop.xlane.xlu0 %2106
      %v2108 = vsel %vm749, %v2091, 0.0
      %2109 = vadd.xlane.f32.xlu0 %v2108
      %v2110 = vpop.xlane.xlu0 %2109
      %v2111 = vsel %vm749, %v2093, 0.0
      %2112 = vadd.xlane.f32.xlu0 %v2111
      %v2113 = vpop.xlane.xlu0 %2112
      %v2114 = vsel %vm749, %v2095, 0.0
      %2115 = vadd.xlane.f32.xlu0 %v2114
      %v2116 = vpop.xlane.xlu0 %2115
      %v2117 = vsel %vm749, %v2097, 0.0
      %2118 = vadd.xlane.f32.xlu0 %v2117
      %v2119 = vpop.xlane.xlu0 %2118
      %v2120 = vsel %vm749, %v2099, 0.0
      %2121 = vadd.xlane.f32.xlu0 %v2120
      %v2122 = vpop.xlane.xlu0 %2121
      %v2123 = vsel %vm749, %v2101, 0.0
      %2124 = vadd.xlane.f32.xlu0 %v2123
      %v2125 = vpop.xlane.xlu0 %2124
      %v2126 = vrcp.pop %v2104
      %v2127 = vrcp.pop %v2107
      %v2128 = vrcp.pop %v2110
      %v2129 = vrcp.pop %v2113
      %v2130 = vrcp.pop %v2116
      %v2131 = vrcp.pop %v2119
      %v2132 = vrcp.pop %v2122
      %v2133 = vrcp.pop %v2125
      %v2134 = vmul.f32 %v2087, %v2126
      %v2135 = vmul.f32 %v2089, %v2127
      %v2136 = vmul.f32 %v2091, %v2128
      %v2137 = vmul.f32 %v2093, %v2129
      %v2138 = vmul.f32 %v2095, %v2130
      %v2139 = vmul.f32 %v2097, %v2131
      %v2140 = vmul.f32 %v2099, %v2132
      %v2141 = vmul.f32 %v2101, %v2133
      %v2142 = vpack.c.bf16 %v2135, %v2134
      %v2143 = vpack.c.bf16 %v2137, %v2136
      %v2144 = vpack.c.bf16 %v2139, %v2138
      %v2145 = vpack.c.bf16 %v2141, %v2140
      %v2146 = vpack.c.bf16 %v1966, %v1963
      %v2148 = vsel %vm749, %v2142, 0
      %v2151 = vsel %vm749, %v2143, 0
      %v2154 = vsel %vm749, %v2144, 0
      %v2157 = vsel %vm749, %v2145, 0
      %2159 = vmatprep.subr.bf16.mxu0 0
      %2160 = vmatpush1.bf16.msra.mxu0 %v2146
      %2161 = vmatprep.subr.bf16.mxu0 0
      %2162 = vmatpush1.bf16.msra.mxu0 0
      %2163 = vmatprep.subr.bf16.mxu0 0
      %2164 = vmatpush1.bf16.msra.mxu0 0
      %2165 = vmatprep.subr.bf16.mxu0 0
      %2166 = vmatpush1.bf16.msra.mxu0 0
      %2167 = vmatprep.subr.bf16.mxu0 0
      %2168 = vmatpush1.bf16.msra.mxu0 0
      %2169 = vmatprep.subr.bf16.mxu0 0
      %2170 = vmatpush1.bf16.msra.mxu0 0
      %2171 = vmatprep.subr.bf16.mxu0 0
      %2172 = vmatpush1.bf16.msra.mxu0 0
      %2173 = vmatprep.subr.bf16.mxu0 0
      %2174 = vmatpush1.bf16.msra.mxu0 0
      %2175 = vmatprep.subr.bf16.mxu0 0
      %2176 = vmatpush1.bf16.msra.mxu0 0
      %2177 = vmatprep.subr.bf16.mxu0 0
      %2178 = vmatpush1.bf16.msra.mxu0 0
      %2179 = vmatprep.subr.bf16.mxu0 0
      %2180 = vmatpush1.bf16.msra.mxu0 0
      %2181 = vmatprep.subr.bf16.mxu0 0
      %2182 = vmatpush1.bf16.msra.mxu0 0
      %2183 = vmatprep.subr.bf16.mxu0 0
      %2184 = vmatpush1.bf16.msra.mxu0 0
      %2185 = vmatprep.subr.bf16.mxu0 0
      %2186 = vmatpush1.bf16.msra.mxu0 0
      %2187 = vmatprep.subr.bf16.mxu0 0
      %2188 = vmatpush1.bf16.msra.mxu0 0
      %2189 = vmatprep.subr.bf16.mxu0 0
      %2190 = vmatpush1.bf16.msra.mxu0 0
      %2191 = vmatprep.mubr.bf16.mxu0 0
      %2192 = vmatmul.mubr.bf16.gmra.mrb[0].mxu0 %v2148
      %v2193 = vpop.f32.mrb[0].mxu0
      %v2194 = vadd.f32 0.0, %v2193
      %v2195 = vpop.f32.mrb[0].mxu0
      %v2196 = vpop.f32.mrb[0].mxu0
      %v2197 = vadd.f32 0.0, %v2196
      %v2198 = vpop.f32.mrb[0].mxu0
      %2199 = vmatprep.mubr.bf16.mxu0 0
      %2200 = vmatmul.mubr.bf16.gmra.mrb[0].mxu0 %v2151
      %v2201 = vpop.f32.mrb[0].mxu0
      %v2202 = vadd.f32 0.0, %v2201
      %v2203 = vpop.f32.mrb[0].mxu0
      %v2204 = vpop.f32.mrb[0].mxu0
      %v2205 = vadd.f32 0.0, %v2204
      %v2206 = vpop.f32.mrb[0].mxu0
      %2207 = vmatprep.mubr.bf16.mxu0 0
      %2208 = vmatmul.mubr.bf16.gmra.mrb[0].mxu0 %v2154
      %v2209 = vpop.f32.mrb[0].mxu0
      %v2210 = vadd.f32 0.0, %v2209
      %v2211 = vpop.f32.mrb[0].mxu0
      %v2212 = vpop.f32.mrb[0].mxu0
      %v2213 = vadd.f32 0.0, %v2212
      %v2214 = vpop.f32.mrb[0].mxu0
      %2215 = vmatprep.mubr.bf16.mxu0 0
      %2216 = vmatmul.mubr.bf16.gmra.mrb[0].mxu0 %v2157
      %v2217 = vpop.f32.mrb[0].mxu0
      %v2218 = vadd.f32 0.0, %v2217
      %v2219 = vpop.f32.mrb[0].mxu0
      %v2220 = vpop.f32.mrb[0].mxu0
      %v2221 = vadd.f32 0.0, %v2220
      %v2222 = vpop.f32.mrb[0].mxu0
      %2223 = vdwg.mxu0
      %v2224 = vpack.c.bf16 %v2197, %v2194
      %v2225 = vpack.c.bf16 %v2205, %v2202
      %v2226 = vpack.c.bf16 %v2213, %v2210
      %v2227 = vpack.c.bf16 %v2221, %v2218
      %v2228 = vld [vmem:[%s16] sm:$0xf]
      %v2229 = vld [vmem:[%s16 + $0x4] sm:$0xf]
      %v2230 = vld [vmem:[%s17] sm:$0x1]
      %v2232 = vlaneseq
      %v2233 = vshrl.u32 %v2232, 7
      %v2234 = vsub.s32 0, %v2233
      %v2235 = vrot.slane %v2230, %v2234
      %v2239 = vunpack.c.l.b16 %v2228
      %v2240 = vunpack.c.l.b16 %v2229
      %v2241 = vpack.c.b16 %v2240, %v2239
      %v2244 = vsel %vm749, %v2224, 0
      %v2247 = vsel %vm749, %v2225, 0
      %v2250 = vsel %vm749, %v2226, 0
      %v2253 = vsel %vm749, %v2227, 0
      %2255 = vmatprep.subr.bf16.mxu0 0
      %2256 = vmatpush1.bf16.msra.mxu0 %v2241
      %2257 = vmatprep.subr.bf16.mxu0 0
      %2258 = vmatpush1.bf16.msra.mxu0 0
      %2259 = vmatprep.subr.bf16.mxu0 0
      %2260 = vmatpush1.bf16.msra.mxu0 0
      %2261 = vmatprep.subr.bf16.mxu0 0
      %2262 = vmatpush1.bf16.msra.mxu0 0
      %2263 = vmatprep.subr.bf16.mxu0 0
      %2264 = vmatpush1.bf16.msra.mxu0 0
      %2265 = vmatprep.subr.bf16.mxu0 0
      %2266 = vmatpush1.bf16.msra.mxu0 0
      %2267 = vmatprep.subr.bf16.mxu0 0
      %2268 = vmatpush1.bf16.msra.mxu0 0
      %2269 = vmatprep.subr.bf16.mxu0 0
      %2270 = vmatpush1.bf16.msra.mxu0 0
      %2271 = vmatprep.subr.bf16.mxu0 0
      %2272 = vmatpush1.bf16.msra.mxu0 0
      %2273 = vmatprep.subr.bf16.mxu0 0
      %2274 = vmatpush1.bf16.msra.mxu0 0
      %2275 = vmatprep.subr.bf16.mxu0 0
      %2276 = vmatpush1.bf16.msra.mxu0 0
      %2277 = vmatprep.subr.bf16.mxu0 0
      %2278 = vmatpush1.bf16.msra.mxu0 0
      %2279 = vmatprep.subr.bf16.mxu0 0
      %2280 = vmatpush1.bf16.msra.mxu0 0
      %2281 = vmatprep.subr.bf16.mxu0 0
      %2282 = vmatpush1.bf16.msra.mxu0 0
      %2283 = vmatprep.subr.bf16.mxu0 0
      %2284 = vmatpush1.bf16.msra.mxu0 0
      %2285 = vmatprep.subr.bf16.mxu0 0
      %2286 = vmatpush1.bf16.msra.mxu0 0
      %2287 = vmatprep.mubr.bf16.mxu0 0
      %2288 = vmatmul.mubr.bf16.gmra.mrb[0].mxu0 %v2244
      %v2289 = vpop.f32.mrb[0].mxu0
      %v2290 = vadd.f32 %v2235, %v2289
      %v2291 = vpop.f32.mrb[0].mxu0
      %v2292 = vpop.f32.mrb[0].mxu0
      %v2293 = vadd.f32 %v2235, %v2292
      %v2294 = vpop.f32.mrb[0].mxu0
      %2295 = vmatprep.mubr.bf16.mxu0 0
      %2296 = vmatmul.mubr.bf16.gmra.mrb[0].mxu0 %v2247
      %v2297 = vpop.f32.mrb[0].mxu0
      %v2298 = vadd.f32 %v2235, %v2297
      %v2299 = vpop.f32.mrb[0].mxu0
      %v2300 = vpop.f32.mrb[0].mxu0
      %v2301 = vadd.f32 %v2235, %v2300
      %v2302 = vpop.f32.mrb[0].mxu0
      %2303 = vmatprep.mubr.bf16.mxu0 0
      %2304 = vmatmul.mubr.bf16.gmra.mrb[0].mxu0 %v2250
      %v2305 = vpop.f32.mrb[0].mxu0
      %v2306 = vadd.f32 %v2235, %v2305
      %v2307 = vpop.f32.mrb[0].mxu0
      %v2308 = vpop.f32.mrb[0].mxu0
      %v2309 = vadd.f32 %v2235, %v2308
      %v2310 = vpop.f32.mrb[0].mxu0
      %2311 = vmatprep.mubr.bf16.mxu0 0
      %2312 = vmatmul.mubr.bf16.gmra.mrb[0].mxu0 %v2253
      %v2313 = vpop.f32.mrb[0].mxu0
      %v2314 = vadd.f32 %v2235, %v2313
      %v2315 = vpop.f32.mrb[0].mxu0
      %v2316 = vpop.f32.mrb[0].mxu0
      %v2317 = vadd.f32 %v2235, %v2316
      %v2318 = vpop.f32.mrb[0].mxu0
      %2319 = vdwg.mxu0
      %v2320 = vadd.f32 %v739, %v2290
      %v2321 = vadd.f32 %v740, %v2293
      %v2322 = vadd.f32 %v741, %v2298
      %v2323 = vadd.f32 %v742, %v2301
      %v2324 = vadd.f32 %v743, %v2306
      %v2325 = vadd.f32 %v744, %v2309
      %v2326 = vadd.f32 %v745, %v2314
      %v2327 = vadd.f32 %v746, %v2317
      %v2328 = vld [vmem:[%s18] sm:$0x1]
      %v2329 = vld [vmem:[%s19] sm:$0x1]
      %v2330 = vsel %vm749, %v2320, 0.0
      %2331 = vadd.xlane.f32.xlu0 %v2330
      %v2332 = vpop.xlane.xlu0 %2331
      %v2333 = vsel %vm749, %v2321, 0.0
      %2334 = vadd.xlane.f32.xlu0 %v2333
      %v2335 = vpop.xlane.xlu0 %2334
      %v2336 = vsel %vm749, %v2322, 0.0
      %2337 = vadd.xlane.f32.xlu0 %v2336
      %v2338 = vpop.xlane.xlu0 %2337
      %v2339 = vsel %vm749, %v2323, 0.0
      %2340 = vadd.xlane.f32.xlu0 %v2339
      %v2341 = vpop.xlane.xlu0 %2340
      %v2342 = vsel %vm749, %v2324, 0.0
      %2343 = vadd.xlane.f32.xlu0 %v2342
      %v2344 = vpop.xlane.xlu0 %2343
      %v2345 = vsel %vm749, %v2325, 0.0
      %2346 = vadd.xlane.f32.xlu0 %v2345
      %v2347 = vpop.xlane.xlu0 %2346
      %v2348 = vsel %vm749, %v2326, 0.0
      %2349 = vadd.xlane.f32.xlu0 %v2348
      %v2350 = vpop.xlane.xlu0 %2349
      %v2351 = vsel %vm749, %v2327, 0.0
      %2352 = vadd.xlane.f32.xlu0 %v2351
      %v2353 = vpop.xlane.xlu0 %2352
      %v2354 = vmul.f32 %v2332, %v774
      %v2355 = vmul.f32 %v2335, %v774
      %v2356 = vmul.f32 %v2338, %v774
      %v2357 = vmul.f32 %v2341, %v774
      %v2358 = vmul.f32 %v2344, %v774
      %v2359 = vmul.f32 %v2347, %v774
      %v2360 = vmul.f32 %v2350, %v774
      %v2361 = vmul.f32 %v2353, %v774
      %v2362 = vsub.f32 %v2320, %v2354
      %v2363 = vsub.f32 %v2321, %v2355
      %v2364 = vsub.f32 %v2322, %v2356
      %v2365 = vsub.f32 %v2323, %v2357
      %v2366 = vsub.f32 %v2324, %v2358
      %v2367 = vsub.f32 %v2325, %v2359
      %v2368 = vsub.f32 %v2326, %v2360
      %v2369 = vsub.f32 %v2327, %v2361
      %v2370 = vmul.f32 %v2362, %v2362
      %v2371 = vmul.f32 %v2363, %v2363
      %v2372 = vmul.f32 %v2364, %v2364
      %v2373 = vmul.f32 %v2365, %v2365
      %v2374 = vmul.f32 %v2366, %v2366
      %v2375 = vmul.f32 %v2367, %v2367
      %v2376 = vmul.f32 %v2368, %v2368
      %v2377 = vmul.f32 %v2369, %v2369
      %v2378 = vsel %vm749, %v2370, 0.0
      %2379 = vadd.xlane.f32.xlu0 %v2378
      %v2380 = vpop.xlane.xlu0 %2379
      %v2381 = vsel %vm749, %v2371, 0.0
      %2382 = vadd.xlane.f32.xlu0 %v2381
      %v2383 = vpop.xlane.xlu0 %2382
      %v2384 = vsel %vm749, %v2372, 0.0
      %2385 = vadd.xlane.f32.xlu0 %v2384
      %v2386 = vpop.xlane.xlu0 %2385
      %v2387 = vsel %vm749, %v2373, 0.0
      %2388 = vadd.xlane.f32.xlu0 %v2387
      %v2389 = vpop.xlane.xlu0 %2388
      %v2390 = vsel %vm749, %v2374, 0.0
      %2391 = vadd.xlane.f32.xlu0 %v2390
      %v2392 = vpop.xlane.xlu0 %2391
      %v2393 = vsel %vm749, %v2375, 0.0
      %2394 = vadd.xlane.f32.xlu0 %v2393
      %v2395 = vpop.xlane.xlu0 %2394
      %v2396 = vsel %vm749, %v2376, 0.0
      %2397 = vadd.xlane.f32.xlu0 %v2396
      %v2398 = vpop.xlane.xlu0 %2397
      %v2399 = vsel %vm749, %v2377, 0.0
      %2400 = vadd.xlane.f32.xlu0 %v2399
      %v2401 = vpop.xlane.xlu0 %2400
      %v2402 = vmul.f32 %v2380, %v774
      %v2403 = vmul.f32 %v2383, %v774
      %v2404 = vmul.f32 %v2386, %v774
      %v2405 = vmul.f32 %v2389, %v774
      %v2406 = vmul.f32 %v2392, %v774
      %v2407 = vmul.f32 %v2395, %v774
      %v2408 = vmul.f32 %v2398, %v774
      %v2409 = vmul.f32 %v2401, %v774
      %v2410 = vadd.f32 %v2402, 1e-05
      %v2411 = vadd.f32 %v2403, 1e-05
      %v2412 = vadd.f32 %v2404, 1e-05
      %v2413 = vadd.f32 %v2405, 1e-05
      %v2414 = vadd.f32 %v2406, 1e-05
      %v2415 = vadd.f32 %v2407, 1e-05
      %v2416 = vadd.f32 %v2408, 1e-05
      %v2417 = vadd.f32 %v2409, 1e-05
      %v2418 = vrsqrt.pop %v2410
      %v2419 = vrsqrt.pop %v2411
      %v2420 = vrsqrt.pop %v2412
      %v2421 = vrsqrt.pop %v2413
      %v2422 = vrsqrt.pop %v2414
      %v2423 = vrsqrt.pop %v2415
      %v2424 = vrsqrt.pop %v2416
      %v2425 = vrsqrt.pop %v2417
      %v2426 = vmul.f32 %v2362, %v2418
      %v2427 = vmul.f32 %v2363, %v2419
      %v2428 = vmul.f32 %v2364, %v2420
      %v2429 = vmul.f32 %v2365, %v2421
      %v2430 = vmul.f32 %v2366, %v2422
      %v2431 = vmul.f32 %v2367, %v2423
      %v2432 = vmul.f32 %v2368, %v2424
      %v2433 = vmul.f32 %v2369, %v2425
      %v2435 = vlaneseq
      %v2436 = vshrl.u32 %v2435, 7
      %v2437 = vsub.s32 0, %v2436
      %v2438 = vrot.slane %v2328, %v2437
      %v2440 = vmul.f32 %v2426, %v2438
      %v2441 = vmul.f32 %v2427, %v2438
      %v2442 = vmul.f32 %v2428, %v2438
      %v2443 = vmul.f32 %v2429, %v2438
      %v2444 = vmul.f32 %v2430, %v2438
      %v2445 = vmul.f32 %v2431, %v2438
      %v2446 = vmul.f32 %v2432, %v2438
      %v2447 = vmul.f32 %v2433, %v2438
      %v2449 = vlaneseq
      %v2450 = vshrl.u32 %v2449, 7
      %v2451 = vsub.s32 0, %v2450
      %v2452 = vrot.slane %v2329, %v2451
      %v2454 = vadd.f32 %v2440, %v2452
      %v2455 = vadd.f32 %v2441, %v2452
      %v2456 = vadd.f32 %v2442, %v2452
      %v2457 = vadd.f32 %v2443, %v2452
      %v2458 = vadd.f32 %v2444, %v2452
      %v2459 = vadd.f32 %v2445, %v2452
      %v2460 = vadd.f32 %v2446, %v2452
      %v2461 = vadd.f32 %v2447, %v2452
      %v2462 = vpack.c.bf16 %v2455, %v2454
      %v2463 = vpack.c.bf16 %v2457, %v2456
      %v2464 = vpack.c.bf16 %v2459, %v2458
      %v2465 = vpack.c.bf16 %v2461, %v2460
      %v2466 = vld [vmem:[%s20] sm:$0xf]
      %v2467 = vld [vmem:[%s20 + $0x4] sm:$0xf]
      %v2468 = vld [vmem:[%s21] sm:$0x1]
      %v2470 = vlaneseq
      %v2471 = vshrl.u32 %v2470, 7
      %v2472 = vsub.s32 0, %v2471
      %v2473 = vrot.slane %v2468, %v2472
      %v2477 = vunpack.c.l.b16 %v2466
      %v2478 = vunpack.c.l.b16 %v2467
      %v2479 = vpack.c.b16 %v2478, %v2477
      %v2482 = vsel %vm749, %v2462, 0
      %v2485 = vsel %vm749, %v2463, 0
      %v2488 = vsel %vm749, %v2464, 0
      %v2491 = vsel %vm749, %v2465, 0
      %2493 = vmatprep.subr.bf16.mxu0 0
      %2494 = vmatpush1.bf16.msra.mxu0 %v2479
      %2495 = vmatprep.subr.bf16.mxu0 0
      %2496 = vmatpush1.bf16.msra.mxu0 0
      %2497 = vmatprep.subr.bf16.mxu0 0
      %2498 = vmatpush1.bf16.msra.mxu0 0
      %2499 = vmatprep.subr.bf16.mxu0 0
      %2500 = vmatpush1.bf16.msra.mxu0 0
      %2501 = vmatprep.subr.bf16.mxu0 0
      %2502 = vmatpush1.bf16.msra.mxu0 0
      %2503 = vmatprep.subr.bf16.mxu0 0
      %2504 = vmatpush1.bf16.msra.mxu0 0
      %2505 = vmatprep.subr.bf16.mxu0 0
      %2506 = vmatpush1.bf16.msra.mxu0 0
      %2507 = vmatprep.subr.bf16.mxu0 0
      %2508 = vmatpush1.bf16.msra.mxu0 0
      %2509 = vmatprep.subr.bf16.mxu0 0
      %2510 = vmatpush1.bf16.msra.mxu0 0
      %2511 = vmatprep.subr.bf16.mxu0 0
      %2512 = vmatpush1.bf16.msra.mxu0 0
      %2513 = vmatprep.subr.bf16.mxu0 0
      %2514 = vmatpush1.bf16.msra.mxu0 0
      %2515 = vmatprep.subr.bf16.mxu0 0
      %2516 = vmatpush1.bf16.msra.mxu0 0
      %2517 = vmatprep.subr.bf16.mxu0 0
      %2518 = vmatpush1.bf16.msra.mxu0 0
      %2519 = vmatprep.subr.bf16.mxu0 0
      %2520 = vmatpush1.bf16.msra.mxu0 0
      %2521 = vmatprep.subr.bf16.mxu0 0
      %2522 = vmatpush1.bf16.msra.mxu0 0
      %2523 = vmatprep.subr.bf16.mxu0 0
      %2524 = vmatpush1.bf16.msra.mxu0 0
      %2525 = vmatprep.mubr.bf16.mxu0 0
      %2526 = vmatmul.mubr.bf16.gmra.mrb[0].mxu0 %v2482
      %v2527 = vpop.f32.mrb[0].mxu0
      %v2528 = vadd.f32 %v2473, %v2527
      %v2529 = vpop.f32.mrb[0].mxu0
      %v2530 = vpop.f32.mrb[0].mxu0
      %v2531 = vadd.f32 %v2473, %v2530
      %v2532 = vpop.f32.mrb[0].mxu0
      %2533 = vmatprep.mubr.bf16.mxu0 0
      %2534 = vmatmul.mubr.bf16.gmra.mrb[0].mxu0 %v2485
      %v2535 = vpop.f32.mrb[0].mxu0
      %v2536 = vadd.f32 %v2473, %v2535
      %v2537 = vpop.f32.mrb[0].mxu0
      %v2538 = vpop.f32.mrb[0].mxu0
      %v2539 = vadd.f32 %v2473, %v2538
      %v2540 = vpop.f32.mrb[0].mxu0
      %2541 = vmatprep.mubr.bf16.mxu0 0
      %2542 = vmatmul.mubr.bf16.gmra.mrb[0].mxu0 %v2488
      %v2543 = vpop.f32.mrb[0].mxu0
      %v2544 = vadd.f32 %v2473, %v2543
      %v2545 = vpop.f32.mrb[0].mxu0
      %v2546 = vpop.f32.mrb[0].mxu0
      %v2547 = vadd.f32 %v2473, %v2546
      %v2548 = vpop.f32.mrb[0].mxu0
      %2549 = vmatprep.mubr.bf16.mxu0 0
      %2550 = vmatmul.mubr.bf16.gmra.mrb[0].mxu0 %v2491
      %v2551 = vpop.f32.mrb[0].mxu0
      %v2552 = vadd.f32 %v2473, %v2551
      %v2553 = vpop.f32.mrb[0].mxu0
      %v2554 = vpop.f32.mrb[0].mxu0
      %v2555 = vadd.f32 %v2473, %v2554
      %v2556 = vpop.f32.mrb[0].mxu0
      %2557 = vdwg.mxu0
      %v2558 = vmul.f32 %v2528, 0.5
      %v2559 = vmul.f32 %v2531, 0.5
      %v2560 = vmul.f32 %v2536, 0.5
      %v2561 = vmul.f32 %v2539, 0.5
      %v2562 = vmul.f32 %v2544, 0.5
      %v2563 = vmul.f32 %v2547, 0.5
      %v2564 = vmul.f32 %v2552, 0.5
      %v2565 = vmul.f32 %v2555, 0.5
      %v2566 = vmul.f32 %v2528, 0.70710677
      %v2567 = vmul.f32 %v2531, 0.70710677
      %v2568 = vmul.f32 %v2536, 0.70710677
      %v2569 = vmul.f32 %v2539, 0.70710677
      %v2570 = vmul.f32 %v2544, 0.70710677
      %v2571 = vmul.f32 %v2547, 0.70710677
      %v2572 = vmul.f32 %v2552, 0.70710677
      %v2573 = vmul.f32 %v2555, 0.70710677
      %v2574 = verf.f32.pop %v2566
      %v2575 = verf.f32.pop %v2567
      %v2576 = verf.f32.pop %v2568
      %v2577 = verf.f32.pop %v2569
      %v2578 = verf.f32.pop %v2570
      %v2579 = verf.f32.pop %v2571
      %v2580 = verf.f32.pop %v2572
      %v2581 = verf.f32.pop %v2573
      %v2582 = vadd.f32 %v2574, 1.0
      %v2583 = vadd.f32 %v2575, 1.0
      %v2584 = vadd.f32 %v2576, 1.0
      %v2585 = vadd.f32 %v2577, 1.0
      %v2586 = vadd.f32 %v2578, 1.0
      %v2587 = vadd.f32 %v2579, 1.0
      %v2588 = vadd.f32 %v2580, 1.0
      %v2589 = vadd.f32 %v2581, 1.0
      %v2590 = vmul.f32 %v2558, %v2582
      %v2591 = vmul.f32 %v2559, %v2583
      %v2592 = vmul.f32 %v2560, %v2584
      %v2593 = vmul.f32 %v2561, %v2585
      %v2594 = vmul.f32 %v2562, %v2586
      %v2595 = vmul.f32 %v2563, %v2587
      %v2596 = vmul.f32 %v2564, %v2588
      %v2597 = vmul.f32 %v2565, %v2589
      %v2598 = vpack.c.bf16 %v2591, %v2590
      %v2599 = vpack.c.bf16 %v2593, %v2592
      %v2600 = vpack.c.bf16 %v2595, %v2594
      %v2601 = vpack.c.bf16 %v2597, %v2596
      %v2602 = vld [vmem:[%s22] sm:$0xf]
      %v2603 = vld [vmem:[%s22 + $0x4] sm:$0xf]
      %v2604 = vld [vmem:[%s22 + $0x8] sm:$0xf]
      %v2605 = vld [vmem:[%s22 + $0xc] sm:$0xf]
      %v2606 = vld [vmem:[%s23] sm:$0x1]
      %v2608 = vlaneseq
      %v2609 = vshrl.u32 %v2608, 7
      %v2610 = vsub.s32 0, %v2609
      %v2611 = vrot.slane %v2606, %v2610
      %v2617 = vunpack.c.l.b16 %v2602
      %v2618 = vunpack.c.l.b16 %v2603
      %v2619 = vunpack.c.l.b16 %v2604
      %v2620 = vunpack.c.l.b16 %v2605
      %v2621 = vpack.c.b16 %v2618, %v2617
      %v2622 = vpack.c.b16 %v2620, %v2619
      %vm2625 = vcmask 261120
      %v2627 = vsel %vm2625, %v2598, 0
      %v2630 = vsel %vm2625, %v2599, 0
      %v2633 = vsel %vm2625, %v2600, 0
      %v2636 = vsel %vm2625, %v2601, 0
      %2638 = vmatprep.subr.bf16.mxu0 0
      %2639 = vmatpush1.bf16.msra.mxu0 %v2621
      %2640 = vmatprep.subr.bf16.mxu0 0
      %2641 = vmatpush1.bf16.msra.mxu0 %v2622
      %2642 = vmatprep.subr.bf16.mxu0 0
      %2643 = vmatpush1.bf16.msra.mxu0 0
      %2644 = vmatprep.subr.bf16.mxu0 0
      %2645 = vmatpush1.bf16.msra.mxu0 0
      %2646 = vmatprep.subr.bf16.mxu0 0
      %2647 = vmatpush1.bf16.msra.mxu0 0
      %2648 = vmatprep.subr.bf16.mxu0 0
      %2649 = vmatpush1.bf16.msra.mxu0 0
      %2650 = vmatprep.subr.bf16.mxu0 0
      %2651 = vmatpush1.bf16.msra.mxu0 0
      %2652 = vmatprep.subr.bf16.mxu0 0
      %2653 = vmatpush1.bf16.msra.mxu0 0
      %2654 = vmatprep.subr.bf16.mxu0 0
      %2655 = vmatpush1.bf16.msra.mxu0 0
      %2656 = vmatprep.subr.bf16.mxu0 0
      %2657 = vmatpush1.bf16.msra.mxu0 0
      %2658 = vmatprep.subr.bf16.mxu0 0
      %2659 = vmatpush1.bf16.msra.mxu0 0
      %2660 = vmatprep.subr.bf16.mxu0 0
      %2661 = vmatpush1.bf16.msra.mxu0 0
      %2662 = vmatprep.subr.bf16.mxu0 0
      %2663 = vmatpush1.bf16.msra.mxu0 0
      %2664 = vmatprep.subr.bf16.mxu0 0
      %2665 = vmatpush1.bf16.msra.mxu0 0
      %2666 = vmatprep.subr.bf16.mxu0 0
      %2667 = vmatpush1.bf16.msra.mxu0 0
      %2668 = vmatprep.subr.bf16.mxu0 0
      %2669 = vmatpush1.bf16.msra.mxu0 0
      %2670 = vmatprep.mubr.bf16.mxu0 0
      %2671 = vmatmul.mubr.bf16.gmra.mrb[0].mxu0 %v2627
      %v2672 = vpop.f32.mrb[0].mxu0
      %v2673 = vadd.f32 %v2611, %v2672
      %v2674 = vpop.f32.mrb[0].mxu0
      %v2675 = vpop.f32.mrb[0].mxu0
      %v2676 = vadd.f32 %v2611, %v2675
      %v2677 = vpop.f32.mrb[0].mxu0
      %2678 = vmatprep.mubr.bf16.mxu0 0
      %2679 = vmatmul.mubr.bf16.gmra.mrb[0].mxu0 %v2630
      %v2680 = vpop.f32.mrb[0].mxu0
      %v2681 = vadd.f32 %v2611, %v2680
      %v2682 = vpop.f32.mrb[0].mxu0
      %v2683 = vpop.f32.mrb[0].mxu0
      %v2684 = vadd.f32 %v2611, %v2683
      %v2685 = vpop.f32.mrb[0].mxu0
      %2686 = vmatprep.mubr.bf16.mxu0 0
      %2687 = vmatmul.mubr.bf16.gmra.mrb[0].mxu0 %v2633
      %v2688 = vpop.f32.mrb[0].mxu0
      %v2689 = vadd.f32 %v2611, %v2688
      %v2690 = vpop.f32.mrb[0].mxu0
      %v2691 = vpop.f32.mrb[0].mxu0
      %v2692 = vadd.f32 %v2611, %v2691
      %v2693 = vpop.f32.mrb[0].mxu0
      %2694 = vmatprep.mubr.bf16.mxu0 0
      %2695 = vmatmul.mubr.bf16.gmra.mrb[0].mxu0 %v2636
      %v2696 = vpop.f32.mrb[0].mxu0
      %v2697 = vadd.f32 %v2611, %v2696
      %v2698 = vpop.f32.mrb[0].mxu0
      %v2699 = vpop.f32.mrb[0].mxu0
      %v2700 = vadd.f32 %v2611, %v2699
      %v2701 = vpop.f32.mrb[0].mxu0
      %2702 = vdwg.mxu0
      %v2703 = vadd.f32 %v2320, %v2673
      %v2704 = vadd.f32 %v2321, %v2676
      %v2705 = vadd.f32 %v2322, %v2681
      %v2706 = vadd.f32 %v2323, %v2684
      %v2707 = vadd.f32 %v2324, %v2689
      %v2708 = vadd.f32 %v2325, %v2692
      %v2709 = vadd.f32 %v2326, %v2697
      %v2710 = vadd.f32 %v2327, %v2700
      %2711 = vst.msk [vmem:[%s737] sm:$0xff] %vm749, %v2703
      %2712 = vst.msk [vmem:[%s737 + $0x8] sm:$0xff] %vm749, %v2704
      %2713 = vst.msk [vmem:[%s737 + $0x10] sm:$0xff] %vm749, %v2705
      %2714 = vst.msk [vmem:[%s737 + $0x18] sm:$0xff] %vm749, %v2706
      %2715 = vst.msk [vmem:[%s737 + $0x20] sm:$0xff] %vm749, %v2707
      %2716 = vst.msk [vmem:[%s737 + $0x28] sm:$0xff] %vm749, %v2708
      %2717 = vst.msk [vmem:[%s737 + $0x30] sm:$0xff] %vm749, %v2709
      %2718 = vst.msk [vmem:[%s737 + $0x38] sm:$0xff] %vm749, %v2710
      %p2719 = scmp.lt.s32.totalorder %s35, 1
      %s2720 = scalar_select %p2719, %s35, 1
      %s2721 = smul.addr %s2720, 8
      %s2722 = smul.addr %s2721, 8
      %s2723 = scalar_lea.vmem %s24, %s2722
      // Predicated region
      $region117: #{cvt_forward.6} parent=115 // pred_check
        %p2724 = pneg %p562
      $region118: #{cvt_forward.6} parent=115 // pred_check_branch
        %2726 = sbr.rel (%p2724) target = $region120
      $region119: #{cvt_forward.6} parent=115 // pred_region
        _
      $region120: #{cvt_forward.6} parent=115 // pred_fallthru
        _
    $region116: #{cvt_forward.6} parent=5 // pred_fallthru
      _
    %p2727 = scmp.le.s32.totalorder 2, %s30
    // Predicated region
    $region121: #{cvt_forward.6} parent=5 // pred_check
      %p2728 = pneg %p2727
    $region122: #{cvt_forward.6} parent=5 // pred_check_branch
      %2730 = sbr.rel (%p2728) target = $region124
    $region123: #{cvt_forward.6} parent=5 // pred_region
      %s2731 = ssub.s32 %s30, 2
      // Predicated region
      $region125: #{cvt_forward.6} parent=123 // pred_check
        %p2732 = pneg %p568
      $region126: #{cvt_forward.6} parent=123 // pred_check_branch
        %2734 = sbr.rel (%p2732) target = $region128
      $region127: #{cvt_forward.6} parent=123 // pred_region
        %p2735 = scmp.lt.s32.totalorder %s36, 1
        %s2736 = scalar_select %p2735, %s36, 1
        %s2737 = smul.addr %s2736, 8
        %s2738 = smul.addr %s2737, 8
        %s2739 = scalar_lea.vmem %s24, %s2738
      $region128: #{cvt_forward.6} parent=123 // pred_fallthru
        _
    $region124: #{cvt_forward.6} parent=5 // pred_fallthru
      _
  $region6: #{cvt_forward.6} parent=0 // loop_footer
    %s34 = sadd.s32 1, %s30
  $region7: #{cvt_forward.6} parent=0 // loop_footer_branch
    %29 = sbr.rel target = $region3
  $region8: #{cvt_forward.6} parent=0 // loop_exit
    _

// kernel: cvt_forward.9
$region0: #{cvt_forward.9}
  #allocation0 [shape = 'u32[]', space=smem, size = 0x4, offset = 0x4, fixed_abs, tag = 'smem constant byte address 0x4 - core index']
  #allocation1 [shape = 'u32[144,128]{1,0:T(1,128)}', space=vmem, size = 0x12000, scoped, tag = 'internal scratch']
  %s0 = inlined_call_operand.vmem [shape: f32[2,1,32], index: 0, kind: input, shape index: {}]
  %s1 = inlined_call_operand.vmem [shape: f32[1,1,32], index: 1, kind: input, shape index: {}]
  %s2 = inlined_call_operand.vmem [shape: f32[1,1,32], index: 2, kind: input, shape index: {}]
  %s3 = inlined_call_operand.vmem [shape: bf16[32,10], index: 3, kind: input, shape index: {}]
  %s4 = inlined_call_operand.vmem [shape: f32[1,10], index: 4, kind: input, shape index: {}]
  %s5 = inlined_call_operand.hbm [shape: f32[2,10], index: 5, kind: output, shape index: {}]
  %s6 = sld [smem:[#allocation0]]
  $region30: #{cvt_forward.9} parent=0
    _
  %s8 = ssub.s32 1, %s6
  %s9 = scalar_select 0, %s8, %s6
  $region1: #{cvt_forward.9} parent=0
    #allocation2 [shape = 'u8[1024]{0}', space=vmem, size = 0x400, scoped, tag = 'output window, operand 0, single buffered']
    #allocation3 [shape = 's32[1]{0}', space=sflag, size = 0x4, scoped, tag = 'scoped memory for cvt_forward.9']
    %10 = vsyncpa [#allocation3], 0
    // Predicated region
    $region2: #{cvt_forward.9} parent=1 // pred_check
      _
    $region3: #{cvt_forward.9} parent=1 // pred_check_branch
      %12 = sbr.rel (0) target = $region5
    $region4: #{cvt_forward.9} parent=1 // pred_region
      _
    $region5: #{cvt_forward.9} parent=1 // pred_fallthru
      _
    // Predicated region
    $region6: #{cvt_forward.9} parent=1 // pred_check
      _
    $region7: #{cvt_forward.9} parent=1 // pred_check_branch
      %14 = sbr.rel (0) target = $region9
    $region8: #{cvt_forward.9} parent=1 // pred_region
      _
    $region9: #{cvt_forward.9} parent=1 // pred_fallthru
      _
    // Predicated region
    $region10: #{cvt_forward.9} parent=1 // pred_check
      _
    $region11: #{cvt_forward.9} parent=1 // pred_check_branch
      %16 = sbr.rel (0) target = $region13
    $region12: #{cvt_forward.9} parent=1 // pred_region
      _
    $region13: #{cvt_forward.9} parent=1 // pred_fallthru
      _
    // Predicated region
    $region14: #{cvt_forward.9} parent=1 // pred_check
      _
    $region15: #{cvt_forward.9} parent=1 // pred_check_branch
      %18 = sbr.rel (0) target = $region17
    $region16: #{cvt_forward.9} parent=1 // pred_region
      _
    $region17: #{cvt_forward.9} parent=1 // pred_fallthru
      _
    // Predicated region
    $region18: #{cvt_forward.9} parent=1 // pred_check
      _
    $region19: #{cvt_forward.9} parent=1 // pred_check_branch
      %20 = sbr.rel (0) target = $region21
    $region20: #{cvt_forward.9} parent=1 // pred_region
      _
    $region21: #{cvt_forward.9} parent=1 // pred_fallthru
      _
    %v22 = vld [vmem:[%s0] sm:$0x1]
    %v23 = vld [vmem:[%s0 + $0x1] sm:$0x1]
    %v24 = vld [vmem:[%s1] sm:$0x1]
    %v25 = vld [vmem:[%s2] sm:$0x1]
    %vm26 = vcmask 253952
    %v27 = vsel %vm26, %v22, 0.0
    %28 = vadd.xlane.f32.xlu0 %v27
    %v29 = vpop.xlane.xlu0 %28
    %v30 = vsel %vm26, %v23, 0.0
    %31 = vadd.xlane.f32.xlu0 %v30
    %v32 = vpop.xlane.xlu0 %31
    %v33 = vrcp.pop 32.0
    %v34 = vmul.f32 %v29, %v33
    %v35 = vmul.f32 %v32, %v33
    %v36 = vsub.f32 %v22, %v34
    %v37 = vsub.f32 %v23, %v35
    %v38 = vmul.f32 %v36, %v36
    %v39 = vmul.f32 %v37, %v37
    %v40 = vsel %vm26, %v38, 0.0
    %41 = vadd.xlane.f32.xlu0 %v40
    %v42 = vpop.xlane.xlu0 %41
    %v43 = vsel %vm26, %v39, 0.0
    %44 = vadd.xlane.f32.xlu0 %v43
    %v45 = vpop.xlane.xlu0 %44
    %v46 = vmul.f32 %v42, %v33
    %v47 = vmul.f32 %v45, %v33
    %v48 = vadd.f32 %v46, 1e-05
    %v49 = vadd.f32 %v47, 1e-05
    %v50 = vrsqrt.pop %v48
    %v51 = vrsqrt.pop %v49
    %v52 = vmul.f32 %v36, %v50
    %v53 = vmul.f32 %v37, %v51
    %v54 = vmul.f32 %v52, %v24
    %v55 = vmul.f32 %v53, %v24
    %v56 = vadd.f32 %v54, %v25
    %v57 = vadd.f32 %v55, %v25
    %v58 = vadd.f32 %v56, 0.0
    %v59 = vadd.f32 %v57, 0.0
    %v60 = vpack.c.bf16 %v58, %v58
    %v61 = vpack.c.bf16 %v59, %v59
    %v62 = vld [vmem:[%s3] sm:$0xf]
    %v63 = vld [vmem:[%s3 + $0x4] sm:$0xf]
    %v64 = vld [vmem:[%s3 + $0x8] sm:$0xf]
    %v65 = vld [vmem:[%s3 + $0xc] sm:$0xf]
    %v66 = vld [vmem:[%s4] sm:$0x1]
    %v68 = vlaneseq
    %v69 = vshrl.u32 %v68, 7
    %v70 = vsub.s32 0, %v69
    %v71 = vrot.slane %v66, %v70
    %v75 = vunpack.c.l.b16 %v60
    %v76 = vunpack.c.l.b16 %v61
    %v77 = vrot.slane %v76, 7
    %vm78 = vcmask 1041409
    %v79 = vsel %vm78, %v77, %v75
    %v80 = vpack.c.b16 %v79, %v79
    %v85 = vunpack.c.l.b16 %v62
    %v86 = vunpack.c.l.b16 %v63
    %v87 = vunpack.c.l.b16 %v64
    %v88 = vunpack.c.l.b16 %v65
    %v89 = vpack.c.b16 %v86, %v85
    %v90 = vpack.c.b16 %v88, %v87
    %vm93 = vcmask 261120
    %v95 = vsel %vm93, %v80, 0
    %97 = vmatprep.subr.bf16.mxu0 0
    %98 = vmatpush1.bf16.msra.mxu0 %v89
    %99 = vmatprep.subr.bf16.mxu0 0
    %100 = vmatpush1.bf16.msra.mxu0 %v90
    %101 = vmatprep.subr.bf16.mxu0 0
    %102 = vmatpush1.bf16.msra.mxu0 0
    %103 = vmatprep.subr.bf16.mxu0 0
    %104 = vmatpush1.bf16.msra.mxu0 0
    %105 = vmatprep.subr.bf16.mxu0 0
    %106 = vmatpush1.bf16.msra.mxu0 0
    %107 = vmatprep.subr.bf16.mxu0 0
    %108 = vmatpush1.bf16.msra.mxu0 0
    %109 = vmatprep.subr.bf16.mxu0 0
    %110 = vmatpush1.bf16.msra.mxu0 0
    %111 = vmatprep.subr.bf16.mxu0 0
    %112 = vmatpush1.bf16.msra.mxu0 0
    %113 = vmatprep.subr.bf16.mxu0 0
    %114 = vmatpush1.bf16.msra.mxu0 0
    %115 = vmatprep.subr.bf16.mxu0 0
    %116 = vmatpush1.bf16.msra.mxu0 0
    %117 = vmatprep.subr.bf16.mxu0 0
    %118 = vmatpush1.bf16.msra.mxu0 0
    %119 = vmatprep.subr.bf16.mxu0 0
    %120 = vmatpush1.bf16.msra.mxu0 0
    %121 = vmatprep.subr.bf16.mxu0 0
    %122 = vmatpush1.bf16.msra.mxu0 0
    %123 = vmatprep.subr.bf16.mxu0 0
    %124 = vmatpush1.bf16.msra.mxu0 0
    %125 = vmatprep.subr.bf16.mxu0 0
    %126 = vmatpush1.bf16.msra.mxu0 0
    %127 = vmatprep.subr.bf16.mxu0 0
    %128 = vmatpush1.bf16.msra.mxu0 0
    %129 = vmatprep.mubr.bf16.mxu0 0
    %130 = vmatmul.mubr.bf16.gmra.mrb[0].mxu0 %v95
    %v131 = vpop.f32.mrb[0].mxu0
    %v132 = vadd.f32 %v71, %v131
    %v133 = vpop.f32.mrb[0].mxu0
    %v134 = vpop.f32.mrb[0].mxu0
    %v135 = vpop.f32.mrb[0].mxu0
    %136 = vdwg.mxu0
    %vm137 = vcmask 74752
    %138 = vst.msk [vmem:[#allocation2] sm:$0x3] %vm137, %v132
    // Predicated region
    $region22: #{cvt_forward.9} parent=1 // pred_check
      _
    $region23: #{cvt_forward.9} parent=1 // pred_check_branch
      %140 = sbr.rel (0) target = $region25
    $region24: #{cvt_forward.9} parent=1 // pred_region
      %s142 = ssub.s32 32, 32
      %143 = vsyncadd [#allocation3], %s142
      %s145 = sshll.u32 [#allocation2], 4
      %s146 = int_to_ptr.vmem [resolvable:$true] %s145
      %148 = dma.vmem_to_hbm [thread:$0]  %s146, 32, %s5, [#allocation3]
    $region25: #{cvt_forward.9} parent=1 // pred_fallthru
      _
    // Predicated region
    $region26: #{cvt_forward.9} parent=1 // pred_check
      _
    $region27: #{cvt_forward.9} parent=1 // pred_check_branch
      %150 = sbr.rel (0) target = $region29
    $region28: #{cvt_forward.9} parent=1 // pred_region
      %151 = dma.done [#allocation3], 32
    $region29: #{cvt_forward.9} parent=1 // pred_fallthru
      _
    %152 = vsyncpa [#allocation3], 1

// kernel: cvt_forward.8
$region0: #{cvt_forward.8}
  #allocation0 [shape = 'u32[]', space=smem, size = 0x4, offset = 0x4, fixed_abs, tag = 'smem constant byte address 0x4 - core index']
  #allocation1 [shape = 'u32[144,128]{1,0:T(1,128)}', space=vmem, size = 0x12000, scoped, tag = 'internal scratch']
  #allocation2 [shape = 'f32[6,6,32]{2,1,0:T(8,128)}', space=vmem, size = 0x6000, scoped, tag = 'scratch operand']
  #allocation3 [shape = 'f32[17,32]{1,0:T(8,128)}', space=vmem, size = 0x3000, scoped, tag = 'scratch operand']
  #allocation4 [shape = 'f32[5,32]{1,0:T(8,128)}', space=vmem, size = 0x1000, scoped, tag = 'scratch operand']
  #allocation5 [shape = 'f32[5,32]{1,0:T(8,128)}', space=vmem, size = 0x1000, scoped, tag = 'scratch operand']
  %s0 = inlined_call_operand.vmem [shape: f32[2,17,32], index: 0, kind: input, shape index: {}]
  %s1 = inlined_call_operand.vmem [shape: bf16[4,16], index: 1, kind: input, shape index: {}]
  %s2 = inlined_call_operand.vmem [shape: f32[1,32], index: 2, kind: input, shape index: {}]
  %s3 = inlined_call_operand.vmem [shape: f32[1,32], index: 3, kind: input, shape index: {}]
  %s4 = inlined_call_operand.vmem [shape: f32[9,1,32], index: 4, kind: input, shape index: {}]
  %s5 = inlined_call_operand.vmem [shape: f32[1,32], index: 5, kind: input, shape index: {}]
  %s6 = inlined_call_operand.vmem [shape: f32[9,1,32], index: 6, kind: input, shape index: {}]
  %s7 = inlined_call_operand.vmem [shape: f32[1,32], index: 7, kind: input, shape index: {}]
  %s8 = inlined_call_operand.vmem [shape: f32[9,1,32], index: 8, kind: input, shape index: {}]
  %s9 = inlined_call_operand.vmem [shape: f32[1,32], index: 9, kind: input, shape index: {}]
  %s10 = inlined_call_operand.vmem [shape: bf16[32,32], index: 10, kind: input, shape index: {}]
  %s11 = inlined_call_operand.vmem [shape: f32[1,32], index: 11, kind: input, shape index: {}]
  %s12 = inlined_call_operand.vmem [shape: bf16[32,32], index: 12, kind: input, shape index: {}]
  %s13 = inlined_call_operand.vmem [shape: f32[1,32], index: 13, kind: input, shape index: {}]
  %s14 = inlined_call_operand.vmem [shape: bf16[32,32], index: 14, kind: input, shape index: {}]
  %s15 = inlined_call_operand.vmem [shape: f32[1,32], index: 15, kind: input, shape index: {}]
  %s16 = inlined_call_operand.vmem [shape: bf16[32,32], index: 16, kind: input, shape index: {}]
  %s17 = inlined_call_operand.vmem [shape: f32[1,32], index: 17, kind: input, shape index: {}]
  %s18 = inlined_call_operand.vmem [shape: f32[1,32], index: 18, kind: input, shape index: {}]
  %s19 = inlined_call_operand.vmem [shape: f32[1,32], index: 19, kind: input, shape index: {}]
  %s20 = inlined_call_operand.vmem [shape: bf16[32,64], index: 20, kind: input, shape index: {}]
  %s21 = inlined_call_operand.vmem [shape: f32[1,64], index: 21, kind: input, shape index: {}]
  %s22 = inlined_call_operand.vmem [shape: bf16[64,32], index: 22, kind: input, shape index: {}]
  %s23 = inlined_call_operand.vmem [shape: f32[1,32], index: 23, kind: input, shape index: {}]
  %s24 = inlined_call_operand.vmem [shape: f32[2,17,32], index: 24, kind: output, shape index: {}]
  %s25 = sld [smem:[#allocation0]]
  $region129: #{cvt_forward.8} parent=0
    _
  %s27 = ssub.s32 1, %s25
  %s28 = scalar_select 0, %s27, %s25
  loop: start=0, step=1, limit=4
  $region2: #{cvt_forward.8} parent=0 // loop_pre_header
    _
  $region3: #{cvt_forward.8} parent=0 // loop_header
    %s30 = sphi 0, %s34
    %p31 = scmp.ge.s32.totalorder %s30, 4
    %s40 = sphi 0, %s42
    %s43 = sphi 0, %s40
    %s44 = sphi 0, %s43
    %s60 = sphi 0, %s44
    %s64 = sphi 0, %s64
    %s66 = sphi 0, %s64
    %s67 = sphi 0, %s66
    %s81 = sphi 0, %s67
    %s85 = sphi 0, %s85
    %s87 = sphi 0, %s85
    %s88 = sphi 0, %s87
    %s102 = sphi 0, %s88
    %s106 = sphi 0, %s106
    %s108 = sphi 0, %s106
    %s109 = sphi 0, %s108
    %s123 = sphi 0, %s109
    %s127 = sphi 0, %s127
    %s129 = sphi 0, %s127
    %s130 = sphi 0, %s129
    %s144 = sphi 0, %s130
    %s148 = sphi 0, %s148
    %s150 = sphi 0, %s148
    %s151 = sphi 0, %s150
    %s165 = sphi 0, %s151
    %s169 = sphi 0, %s169
    %s171 = sphi 0, %s169
    %s172 = sphi 0, %s171
    %s186 = sphi 0, %s172
    %s190 = sphi 0, %s190
    %s192 = sphi 0, %s190
    %s193 = sphi 0, %s192
    %s207 = sphi 0, %s193
    %s211 = sphi 0, %s211
    %s213 = sphi 0, %s211
    %s214 = sphi 0, %s213
    %s228 = sphi 0, %s214
    %s232 = sphi 0, %s232
    %s234 = sphi 0, %s232
    %s235 = sphi 0, %s234
    %s249 = sphi 0, %s235
    %s253 = sphi 0, %s253
    %s255 = sphi 0, %s253
    %s256 = sphi 0, %s255
    %s270 = sphi 0, %s256
    %s274 = sphi 0, %s274
    %s276 = sphi 0, %s274
    %s277 = sphi 0, %s276
    %s291 = sphi 0, %s277
    %s295 = sphi 0, %s295
    %s297 = sphi 0, %s295
    %s298 = sphi 0, %s297
    %s312 = sphi 0, %s298
    %s316 = sphi 0, %s316
    %s318 = sphi 0, %s316
    %s319 = sphi 0, %s318
    %s333 = sphi 0, %s319
    %s337 = sphi 0, %s337
    %s339 = sphi 0, %s337
    %s340 = sphi 0, %s339
    %s354 = sphi 0, %s340
    %s358 = sphi 0, %s358
    %s360 = sphi 0, %s358
    %s361 = sphi 0, %s360
    %s375 = sphi 0, %s361
    %s379 = sphi 0, %s379
    %s381 = sphi 0, %s379
    %s382 = sphi 0, %s381
    %s396 = sphi 0, %s382
    %s400 = sphi 0, %s400
    %s402 = sphi 0, %s400
    %s403 = sphi 0, %s402
    %s417 = sphi 0, %s403
    %s421 = sphi 0, %s421
    %s423 = sphi 0, %s421
    %s424 = sphi 0, %s423
    %s438 = sphi 0, %s424
    %s442 = sphi 0, %s442
    %s444 = sphi 0, %s442
    %s445 = sphi 0, %s444
    %s459 = sphi 0, %s445
    %s463 = sphi 0, %s463
    %s465 = sphi 0, %s463
    %s466 = sphi 0, %s465
    %s480 = sphi 0, %s466
    %s484 = sphi 0, %s484
    %s486 = sphi 0, %s484
    %s487 = sphi 0, %s486
    %s501 = sphi 0, %s487
    %s505 = sphi 0, %s505
    %s507 = sphi 0, %s505
    %s508 = sphi 0, %s507
    %s522 = sphi 0, %s508
    %s526 = sphi 0, %s526
    %s528 = sphi 0, %s526
    %s529 = sphi 0, %s528
    %s543 = sphi 0, %s529
    %s549 = sphi 0, %s551
    %s552 = sphi 0, %s549
    %s553 = sphi 0, %s552
    %s569 = sphi 0, %s553
  $region4: #{cvt_forward.8} parent=0 // loop_header_branch
    %33 = sbr.rel (%p31) target = $region8
  $region5: #{cvt_forward.8} parent=0 // loop_body
    %s35 = ssub.s32 %s30, 1
    %s36 = ssub.s32 %s30, 2
    %s37 = sadd.s32 %s30, 1
    %s38 = ssub.s32 %s30, %s37
    %p39 = scmp.eq.s32.totalorder %s38, 0
    %s41 = sadd.s32 %s40, 1
    %s42 = scalar_select %p39, %s40, %s41
    %p45 = pneg %p39
    %p46 = scmp.eq.s32.totalorder %s30, 1
    %p47 = por %p45, %p46
    %p48 = scmp.ne.s32.totalorder %s40, %s43
    %p49 = scmp.eq.s32.totalorder %s30, 0
    %p50 = por %p48, %p49
    %p51 = scmp.ne.s32.totalorder %s40, %s43
    %p52 = scmp.eq.s32.totalorder %s35, 1
    %p53 = por %p51, %p52
    %p54 = scmp.ne.s32.totalorder %s43, %s44
    %p55 = scmp.eq.s32.totalorder %s35, 0
    %p56 = por %p54, %p55
    %p57 = scmp.ne.s32.totalorder %s43, %s44
    %p58 = scmp.eq.s32.totalorder %s36, 1
    %p59 = por %p57, %p58
    %p61 = scmp.ne.s32.totalorder %s44, %s60
    %p62 = scmp.eq.s32.totalorder %s36, 0
    %p63 = por %p61, %p62
    %s65 = sadd.s32 %s64, 1
    %p68 = scmp.eq.s32.totalorder %s30, 1
    %p69 = scmp.ne.s32.totalorder %s64, %s66
    %p70 = scmp.eq.s32.totalorder %s30, 0
    %p71 = por %p69, %p70
    %p72 = scmp.ne.s32.totalorder %s64, %s66
    %p73 = scmp.eq.s32.totalorder %s35, 1
    %p74 = por %p72, %p73
    %p75 = scmp.ne.s32.totalorder %s66, %s67
    %p76 = scmp.eq.s32.totalorder %s35, 0
    %p77 = por %p75, %p76
    %p78 = scmp.ne.s32.totalorder %s66, %s67
    %p79 = scmp.eq.s32.totalorder %s36, 1
    %p80 = por %p78, %p79
    %p82 = scmp.ne.s32.totalorder %s67, %s81
    %p83 = scmp.eq.s32.totalorder %s36, 0
    %p84 = por %p82, %p83
    %s86 = sadd.s32 %s85, 1
    %p89 = scmp.eq.s32.totalorder %s30, 1
    %p90 = scmp.ne.s32.totalorder %s85, %s87
    %p91 = scmp.eq.s32.totalorder %s30, 0
    %p92 = por %p90, %p91
    %p93 = scmp.ne.s32.totalorder %s85, %s87
    %p94 = scmp.eq.s32.totalorder %s35, 1
    %p95 = por %p93, %p94
    %p96 = scmp.ne.s32.totalorder %s87, %s88
    %p97 = scmp.eq.s32.totalorder %s35, 0
    %p98 = por %p96, %p97
    %p99 = scmp.ne.s32.totalorder %s87, %s88
    %p100 = scmp.eq.s32.totalorder %s36, 1
    %p101 = por %p99, %p100
    %p103 = scmp.ne.s32.totalorder %s88, %s102
    %p104 = scmp.eq.s32.totalorder %s36, 0
    %p105 = por %p103, %p104
    %s107 = sadd.s32 %s106, 1
    %p110 = scmp.eq.s32.totalorder %s30, 1
    %p111 = scmp.ne.s32.totalorder %s106, %s108
    %p112 = scmp.eq.s32.totalorder %s30, 0
    %p113 = por %p111, %p112
    %p114 = scmp.ne.s32.totalorder %s106, %s108
    %p115 = scmp.eq.s32.totalorder %s35, 1
    %p116 = por %p114, %p115
    %p117 = scmp.ne.s32.totalorder %s108, %s109
    %p118 = scmp.eq.s32.totalorder %s35, 0
    %p119 = por %p117, %p118
    %p120 = scmp.ne.s32.totalorder %s108, %s109
    %p121 = scmp.eq.s32.totalorder %s36, 1
    %p122 = por %p120, %p121
    %p124 = scmp.ne.s32.totalorder %s109, %s123
    %p125 = scmp.eq.s32.totalorder %s36, 0
    %p126 = por %p124, %p125
    %s128 = sadd.s32 %s127, 1
    %p131 = scmp.eq.s32.totalorder %s30, 1
    %p132 = scmp.ne.s32.totalorder %s127, %s129
    %p133 = scmp.eq.s32.totalorder %s30, 0
    %p134 = por %p132, %p133
    %p135 = scmp.ne.s32.totalorder %s127, %s129
    %p136 = scmp.eq.s32.totalorder %s35, 1
    %p137 = por %p135, %p136
    %p138 = scmp.ne.s32.totalorder %s129, %s130
    %p139 = scmp.eq.s32.totalorder %s35, 0
    %p140 = por %p138, %p139
    %p141 = scmp.ne.s32.totalorder %s129, %s130
    %p142 = scmp.eq.s32.totalorder %s36, 1
    %p143 = por %p141, %p142
    %p145 = scmp.ne.s32.totalorder %s130, %s144
    %p146 = scmp.eq.s32.totalorder %s36, 0
    %p147 = por %p145, %p146
    %s149 = sadd.s32 %s148, 1
    %p152 = scmp.eq.s32.totalorder %s30, 1
    %p153 = scmp.ne.s32.totalorder %s148, %s150
    %p154 = scmp.eq.s32.totalorder %s30, 0
    %p155 = por %p153, %p154
    %p156 = scmp.ne.s32.totalorder %s148, %s150
    %p157 = scmp.eq.s32.totalorder %s35, 1
    %p158 = por %p156, %p157
    %p159 = scmp.ne.s32.totalorder %s150, %s151
    %p160 = scmp.eq.s32.totalorder %s35, 0
    %p161 = por %p159, %p160
    %p162 = scmp.ne.s32.totalorder %s150, %s151
    %p163 = scmp.eq.s32.totalorder %s36, 1
    %p164 = por %p162, %p163
    %p166 = scmp.ne.s32.totalorder %s151, %s165
    %p167 = scmp.eq.s32.totalorder %s36, 0
    %p168 = por %p166, %p167
    %s170 = sadd.s32 %s169, 1
    %p173 = scmp.eq.s32.totalorder %s30, 1
    %p174 = scmp.ne.s32.totalorder %s169, %s171
    %p175 = scmp.eq.s32.totalorder %s30, 0
    %p176 = por %p174, %p175
    %p177 = scmp.ne.s32.totalorder %s169, %s171
    %p178 = scmp.eq.s32.totalorder %s35, 1
    %p179 = por %p177, %p178
    %p180 = scmp.ne.s32.totalorder %s171, %s172
    %p181 = scmp.eq.s32.totalorder %s35, 0
    %p182 = por %p180, %p181
    %p183 = scmp.ne.s32.totalorder %s171, %s172
    %p184 = scmp.eq.s32.totalorder %s36, 1
    %p185 = por %p183, %p184
    %p187 = scmp.ne.s32.totalorder %s172, %s186
    %p188 = scmp.eq.s32.totalorder %s36, 0
    %p189 = por %p187, %p188
    %s191 = sadd.s32 %s190, 1
    %p194 = scmp.eq.s32.totalorder %s30, 1
    %p195 = scmp.ne.s32.totalorder %s190, %s192
    %p196 = scmp.eq.s32.totalorder %s30, 0
    %p197 = por %p195, %p196
    %p198 = scmp.ne.s32.totalorder %s190, %s192
    %p199 = scmp.eq.s32.totalorder %s35, 1
    %p200 = por %p198, %p199
    %p201 = scmp.ne.s32.totalorder %s192, %s193
    %p202 = scmp.eq.s32.totalorder %s35, 0
    %p203 = por %p201, %p202
    %p204 = scmp.ne.s32.totalorder %s192, %s193
    %p205 = scmp.eq.s32.totalorder %s36, 1
    %p206 = por %p204, %p205
    %p208 = scmp.ne.s32.totalorder %s193, %s207
    %p209 = scmp.eq.s32.totalorder %s36, 0
    %p210 = por %p208, %p209
    %s212 = sadd.s32 %s211, 1
    %p215 = scmp.eq.s32.totalorder %s30, 1
    %p216 = scmp.ne.s32.totalorder %s211, %s213
    %p217 = scmp.eq.s32.totalorder %s30, 0
    %p218 = por %p216, %p217
    %p219 = scmp.ne.s32.totalorder %s211, %s213
    %p220 = scmp.eq.s32.totalorder %s35, 1
    %p221 = por %p219, %p220
    %p222 = scmp.ne.s32.totalorder %s213, %s214
    %p223 = scmp.eq.s32.totalorder %s35, 0
    %p224 = por %p222, %p223
    %p225 = scmp.ne.s32.totalorder %s213, %s214
    %p226 = scmp.eq.s32.totalorder %s36, 1
    %p227 = por %p225, %p226
    %p229 = scmp.ne.s32.totalorder %s214, %s228
    %p230 = scmp.eq.s32.totalorder %s36, 0
    %p231 = por %p229, %p230
    %s233 = sadd.s32 %s232, 1
    %p236 = scmp.eq.s32.totalorder %s30, 1
    %p237 = scmp.ne.s32.totalorder %s232, %s234
    %p238 = scmp.eq.s32.totalorder %s30, 0
    %p239 = por %p237, %p238
    %p240 = scmp.ne.s32.totalorder %s232, %s234
    %p241 = scmp.eq.s32.totalorder %s35, 1
    %p242 = por %p240, %p241
    %p243 = scmp.ne.s32.totalorder %s234, %s235
    %p244 = scmp.eq.s32.totalorder %s35, 0
    %p245 = por %p243, %p244
    %p246 = scmp.ne.s32.totalorder %s234, %s235
    %p247 = scmp.eq.s32.totalorder %s36, 1
    %p248 = por %p246, %p247
    %p250 = scmp.ne.s32.totalorder %s235, %s249
    %p251 = scmp.eq.s32.totalorder %s36, 0
    %p252 = por %p250, %p251
    %s254 = sadd.s32 %s253, 1
    %p257 = scmp.eq.s32.totalorder %s30, 1
    %p258 = scmp.ne.s32.totalorder %s253, %s255
    %p259 = scmp.eq.s32.totalorder %s30, 0
    %p260 = por %p258, %p259
    %p261 = scmp.ne.s32.totalorder %s253, %s255
    %p262 = scmp.eq.s32.totalorder %s35, 1
    %p263 = por %p261, %p262
    %p264 = scmp.ne.s32.totalorder %s255, %s256
    %p265 = scmp.eq.s32.totalorder %s35, 0
    %p266 = por %p264, %p265
    %p267 = scmp.ne.s32.totalorder %s255, %s256
    %p268 = scmp.eq.s32.totalorder %s36, 1
    %p269 = por %p267, %p268
    %p271 = scmp.ne.s32.totalorder %s256, %s270
    %p272 = scmp.eq.s32.totalorder %s36, 0
    %p273 = por %p271, %p272
    %s275 = sadd.s32 %s274, 1
    %p278 = scmp.eq.s32.totalorder %s30, 1
    %p279 = scmp.ne.s32.totalorder %s274, %s276
    %p280 = scmp.eq.s32.totalorder %s30, 0
    %p281 = por %p279, %p280
    %p282 = scmp.ne.s32.totalorder %s274, %s276
    %p283 = scmp.eq.s32.totalorder %s35, 1
    %p284 = por %p282, %p283
    %p285 = scmp.ne.s32.totalorder %s276, %s277
    %p286 = scmp.eq.s32.totalorder %s35, 0
    %p287 = por %p285, %p286
    %p288 = scmp.ne.s32.totalorder %s276, %s277
    %p289 = scmp.eq.s32.totalorder %s36, 1
    %p290 = por %p288, %p289
    %p292 = scmp.ne.s32.totalorder %s277, %s291
    %p293 = scmp.eq.s32.totalorder %s36, 0
    %p294 = por %p292, %p293
    %s296 = sadd.s32 %s295, 1
    %p299 = scmp.eq.s32.totalorder %s30, 1
    %p300 = scmp.ne.s32.totalorder %s295, %s297
    %p301 = scmp.eq.s32.totalorder %s30, 0
    %p302 = por %p300, %p301
    %p303 = scmp.ne.s32.totalorder %s295, %s297
    %p304 = scmp.eq.s32.totalorder %s35, 1
    %p305 = por %p303, %p304
    %p306 = scmp.ne.s32.totalorder %s297, %s298
    %p307 = scmp.eq.s32.totalorder %s35, 0
    %p308 = por %p306, %p307
    %p309 = scmp.ne.s32.totalorder %s297, %s298
    %p310 = scmp.eq.s32.totalorder %s36, 1
    %p311 = por %p309, %p310
    %p313 = scmp.ne.s32.totalorder %s298, %s312
    %p314 = scmp.eq.s32.totalorder %s36, 0
    %p315 = por %p313, %p314
    %s317 = sadd.s32 %s316, 1
    %p320 = scmp.eq.s32.totalorder %s30, 1
    %p321 = scmp.ne.s32.totalorder %s316, %s318
    %p322 = scmp.eq.s32.totalorder %s30, 0
    %p323 = por %p321, %p322
    %p324 = scmp.ne.s32.totalorder %s316, %s318
    %p325 = scmp.eq.s32.totalorder %s35, 1
    %p326 = por %p324, %p325
    %p327 = scmp.ne.s32.totalorder %s318, %s319
    %p328 = scmp.eq.s32.totalorder %s35, 0
    %p329 = por %p327, %p328
    %p330 = scmp.ne.s32.totalorder %s318, %s319
    %p331 = scmp.eq.s32.totalorder %s36, 1
    %p332 = por %p330, %p331
    %p334 = scmp.ne.s32.totalorder %s319, %s333
    %p335 = scmp.eq.s32.totalorder %s36, 0
    %p336 = por %p334, %p335
    %s338 = sadd.s32 %s337, 1
    %p341 = scmp.eq.s32.totalorder %s30, 1
    %p342 = scmp.ne.s32.totalorder %s337, %s339
    %p343 = scmp.eq.s32.totalorder %s30, 0
    %p344 = por %p342, %p343
    %p345 = scmp.ne.s32.totalorder %s337, %s339
    %p346 = scmp.eq.s32.totalorder %s35, 1
    %p347 = por %p345, %p346
    %p348 = scmp.ne.s32.totalorder %s339, %s340
    %p349 = scmp.eq.s32.totalorder %s35, 0
    %p350 = por %p348, %p349
    %p351 = scmp.ne.s32.totalorder %s339, %s340
    %p352 = scmp.eq.s32.totalorder %s36, 1
    %p353 = por %p351, %p352
    %p355 = scmp.ne.s32.totalorder %s340, %s354
    %p356 = scmp.eq.s32.totalorder %s36, 0
    %p357 = por %p355, %p356
    %s359 = sadd.s32 %s358, 1
    %p362 = scmp.eq.s32.totalorder %s30, 1
    %p363 = scmp.ne.s32.totalorder %s358, %s360
    %p364 = scmp.eq.s32.totalorder %s30, 0
    %p365 = por %p363, %p364
    %p366 = scmp.ne.s32.totalorder %s358, %s360
    %p367 = scmp.eq.s32.totalorder %s35, 1
    %p368 = por %p366, %p367
    %p369 = scmp.ne.s32.totalorder %s360, %s361
    %p370 = scmp.eq.s32.totalorder %s35, 0
    %p371 = por %p369, %p370
    %p372 = scmp.ne.s32.totalorder %s360, %s361
    %p373 = scmp.eq.s32.totalorder %s36, 1
    %p374 = por %p372, %p373
    %p376 = scmp.ne.s32.totalorder %s361, %s375
    %p377 = scmp.eq.s32.totalorder %s36, 0
    %p378 = por %p376, %p377
    %s380 = sadd.s32 %s379, 1
    %p383 = scmp.eq.s32.totalorder %s30, 1
    %p384 = scmp.ne.s32.totalorder %s379, %s381
    %p385 = scmp.eq.s32.totalorder %s30, 0
    %p386 = por %p384, %p385
    %p387 = scmp.ne.s32.totalorder %s379, %s381
    %p388 = scmp.eq.s32.totalorder %s35, 1
    %p389 = por %p387, %p388
    %p390 = scmp.ne.s32.totalorder %s381, %s382
    %p391 = scmp.eq.s32.totalorder %s35, 0
    %p392 = por %p390, %p391
    %p393 = scmp.ne.s32.totalorder %s381, %s382
    %p394 = scmp.eq.s32.totalorder %s36, 1
    %p395 = por %p393, %p394
    %p397 = scmp.ne.s32.totalorder %s382, %s396
    %p398 = scmp.eq.s32.totalorder %s36, 0
    %p399 = por %p397, %p398
    %s401 = sadd.s32 %s400, 1
    %p404 = scmp.eq.s32.totalorder %s30, 1
    %p405 = scmp.ne.s32.totalorder %s400, %s402
    %p406 = scmp.eq.s32.totalorder %s30, 0
    %p407 = por %p405, %p406
    %p408 = scmp.ne.s32.totalorder %s400, %s402
    %p409 = scmp.eq.s32.totalorder %s35, 1
    %p410 = por %p408, %p409
    %p411 = scmp.ne.s32.totalorder %s402, %s403
    %p412 = scmp.eq.s32.totalorder %s35, 0
    %p413 = por %p411, %p412
    %p414 = scmp.ne.s32.totalorder %s402, %s403
    %p415 = scmp.eq.s32.totalorder %s36, 1
    %p416 = por %p414, %p415
    %p418 = scmp.ne.s32.totalorder %s403, %s417
    %p419 = scmp.eq.s32.totalorder %s36, 0
    %p420 = por %p418, %p419
    %s422 = sadd.s32 %s421, 1
    %p425 = scmp.eq.s32.totalorder %s30, 1
    %p426 = scmp.ne.s32.totalorder %s421, %s423
    %p427 = scmp.eq.s32.totalorder %s30, 0
    %p428 = por %p426, %p427
    %p429 = scmp.ne.s32.totalorder %s421, %s423
    %p430 = scmp.eq.s32.totalorder %s35, 1
    %p431 = por %p429, %p430
    %p432 = scmp.ne.s32.totalorder %s423, %s424
    %p433 = scmp.eq.s32.totalorder %s35, 0
    %p434 = por %p432, %p433
    %p435 = scmp.ne.s32.totalorder %s423, %s424
    %p436 = scmp.eq.s32.totalorder %s36, 1
    %p437 = por %p435, %p436
    %p439 = scmp.ne.s32.totalorder %s424, %s438
    %p440 = scmp.eq.s32.totalorder %s36, 0
    %p441 = por %p439, %p440
    %s443 = sadd.s32 %s442, 1
    %p446 = scmp.eq.s32.totalorder %s30, 1
    %p447 = scmp.ne.s32.totalorder %s442, %s444
    %p448 = scmp.eq.s32.totalorder %s30, 0
    %p449 = por %p447, %p448
    %p450 = scmp.ne.s32.totalorder %s442, %s444
    %p451 = scmp.eq.s32.totalorder %s35, 1
    %p452 = por %p450, %p451
    %p453 = scmp.ne.s32.totalorder %s444, %s445
    %p454 = scmp.eq.s32.totalorder %s35, 0
    %p455 = por %p453, %p454
    %p456 = scmp.ne.s32.totalorder %s444, %s445
    %p457 = scmp.eq.s32.totalorder %s36, 1
    %p458 = por %p456, %p457
    %p460 = scmp.ne.s32.totalorder %s445, %s459
    %p461 = scmp.eq.s32.totalorder %s36, 0
    %p462 = por %p460, %p461
    %s464 = sadd.s32 %s463, 1
    %p467 = scmp.eq.s32.totalorder %s30, 1
    %p468 = scmp.ne.s32.totalorder %s463, %s465
    %p469 = scmp.eq.s32.totalorder %s30, 0
    %p470 = por %p468, %p469
    %p471 = scmp.ne.s32.totalorder %s463, %s465
    %p472 = scmp.eq.s32.totalorder %s35, 1
    %p473 = por %p471, %p472
    %p474 = scmp.ne.s32.totalorder %s465, %s466
    %p475 = scmp.eq.s32.totalorder %s35, 0
    %p476 = por %p474, %p475
    %p477 = scmp.ne.s32.totalorder %s465, %s466
    %p478 = scmp.eq.s32.totalorder %s36, 1
    %p479 = por %p477, %p478
    %p481 = scmp.ne.s32.totalorder %s466, %s480
    %p482 = scmp.eq.s32.totalorder %s36, 0
    %p483 = por %p481, %p482
    %s485 = sadd.s32 %s484, 1
    %p488 = scmp.eq.s32.totalorder %s30, 1
    %p489 = scmp.ne.s32.totalorder %s484, %s486
    %p490 = scmp.eq.s32.totalorder %s30, 0
    %p491 = por %p489, %p490
    %p492 = scmp.ne.s32.totalorder %s484, %s486
    %p493 = scmp.eq.s32.totalorder %s35, 1
    %p494 = por %p492, %p493
    %p495 = scmp.ne.s32.totalorder %s486, %s487
    %p496 = scmp.eq.s32.totalorder %s35, 0
    %p497 = por %p495, %p496
    %p498 = scmp.ne.s32.totalorder %s486, %s487
    %p499 = scmp.eq.s32.totalorder %s36, 1
    %p500 = por %p498, %p499
    %p502 = scmp.ne.s32.totalorder %s487, %s501
    %p503 = scmp.eq.s32.totalorder %s36, 0
    %p504 = por %p502, %p503
    %s506 = sadd.s32 %s505, 1
    %p509 = scmp.eq.s32.totalorder %s30, 1
    %p510 = scmp.ne.s32.totalorder %s505, %s507
    %p511 = scmp.eq.s32.totalorder %s30, 0
    %p512 = por %p510, %p511
    %p513 = scmp.ne.s32.totalorder %s505, %s507
    %p514 = scmp.eq.s32.totalorder %s35, 1
    %p515 = por %p513, %p514
    %p516 = scmp.ne.s32.totalorder %s507, %s508
    %p517 = scmp.eq.s32.totalorder %s35, 0
    %p518 = por %p516, %p517
    %p519 = scmp.ne.s32.totalorder %s507, %s508
    %p520 = scmp.eq.s32.totalorder %s36, 1
    %p521 = por %p519, %p520
    %p523 = scmp.ne.s32.totalorder %s508, %s522
    %p524 = scmp.eq.s32.totalorder %s36, 0
    %p525 = por %p523, %p524
    %s527 = sadd.s32 %s526, 1
    %p530 = scmp.eq.s32.totalorder %s30, 1
    %p531 = scmp.ne.s32.totalorder %s526, %s528
    %p532 = scmp.eq.s32.totalorder %s30, 0
    %p533 = por %p531, %p532
    %p534 = scmp.ne.s32.totalorder %s526, %s528
    %p535 = scmp.eq.s32.totalorder %s35, 1
    %p536 = por %p534, %p535
    %p537 = scmp.ne.s32.totalorder %s528, %s529
    %p538 = scmp.eq.s32.totalorder %s35, 0
    %p539 = por %p537, %p538
    %p540 = scmp.ne.s32.totalorder %s528, %s529
    %p541 = scmp.eq.s32.totalorder %s36, 1
    %p542 = por %p540, %p541
    %p544 = scmp.ne.s32.totalorder %s529, %s543
    %p545 = scmp.eq.s32.totalorder %s36, 0
    %p546 = por %p544, %p545
    %s547 = ssub.s32 %s30, %s37
    %p548 = scmp.eq.s32.totalorder %s547, 0
    %s550 = sadd.s32 %s549, 1
    %s551 = scalar_select %p548, %s549, %s550
    %p554 = pneg %p548
    %p555 = scmp.eq.s32.totalorder %s30, 1
    %p556 = por %p554, %p555
    %p557 = scmp.ne.s32.totalorder %s549, %s552
    %p558 = scmp.eq.s32.totalorder %s30, 0
    %p559 = por %p557, %p558
    %p560 = scmp.ne.s32.totalorder %s549, %s552
    %p561 = scmp.eq.s32.totalorder %s35, 1
    %p562 = por %p560, %p561
    %p563 = scmp.ne.s32.totalorder %s552, %s553
    %p564 = scmp.eq.s32.totalorder %s35, 0
    %p565 = por %p563, %p564
    %p566 = scmp.ne.s32.totalorder %s552, %s553
    %p567 = scmp.eq.s32.totalorder %s36, 1
    %p568 = por %p566, %p567
    %p570 = scmp.ne.s32.totalorder %s553, %s569
    %p571 = scmp.eq.s32.totalorder %s36, 0
    %p572 = por %p570, %p571
    %p573 = scmp.le.s32.totalorder 1, %s30
    %p574 = scmp.lt.s32.totalorder %s30, 3
    %p575 = pnand %p573, %p574
    %p576 = pneg %p575
    // Predicated region
    $region9: #{cvt_forward.8} parent=5 // pred_check
      _
    $region10: #{cvt_forward.8} parent=5 // pred_check_branch
      %578 = sbr.rel (%p575) target = $region12
    $region11: #{cvt_forward.8} parent=5 // pred_region
      %s579 = ssub.s32 %s30, 1
      // Predicated region
      $region13: #{cvt_forward.8} parent=11 // pred_check
        %p580 = pneg %p77
      $region14: #{cvt_forward.8} parent=11 // pred_check_branch
        %582 = sbr.rel (%p580) target = $region16
      $region15: #{cvt_forward.8} parent=11 // pred_region
        _
      $region16: #{cvt_forward.8} parent=11 // pred_fallthru
        _
      // Predicated region
      $region17: #{cvt_forward.8} parent=11 // pred_check
        %p583 = pneg %p98
      $region18: #{cvt_forward.8} parent=11 // pred_check_branch
        %585 = sbr.rel (%p583) target = $region20
      $region19: #{cvt_forward.8} parent=11 // pred_region
        _
      $region20: #{cvt_forward.8} parent=11 // pred_fallthru
        _
      // Predicated region
      $region21: #{cvt_forward.8} parent=11 // pred_check
        %p586 = pneg %p119
      $region22: #{cvt_forward.8} parent=11 // pred_check_branch
        %588 = sbr.rel (%p586) target = $region24
      $region23: #{cvt_forward.8} parent=11 // pred_region
        _
      $region24: #{cvt_forward.8} parent=11 // pred_fallthru
        _
      // Predicated region
      $region25: #{cvt_forward.8} parent=11 // pred_check
        %p589 = pneg %p140
      $region26: #{cvt_forward.8} parent=11 // pred_check_branch
        %591 = sbr.rel (%p589) target = $region28
      $region27: #{cvt_forward.8} parent=11 // pred_region
        _
      $region28: #{cvt_forward.8} parent=11 // pred_fallthru
        _
      // Predicated region
      $region29: #{cvt_forward.8} parent=11 // pred_check
        %p592 = pneg %p161
      $region30: #{cvt_forward.8} parent=11 // pred_check_branch
        %594 = sbr.rel (%p592) target = $region32
      $region31: #{cvt_forward.8} parent=11 // pred_region
        _
      $region32: #{cvt_forward.8} parent=11 // pred_fallthru
        _
      // Predicated region
      $region33: #{cvt_forward.8} parent=11 // pred_check
        %p595 = pneg %p182
      $region34: #{cvt_forward.8} parent=11 // pred_check_branch
        %597 = sbr.rel (%p595) target = $region36
      $region35: #{cvt_forward.8} parent=11 // pred_region
        _
      $region36: #{cvt_forward.8} parent=11 // pred_fallthru
        _
      // Predicated region
      $region37: #{cvt_forward.8} parent=11 // pred_check
        %p598 = pneg %p203
      $region38: #{cvt_forward.8} parent=11 // pred_check_branch
        %600 = sbr.rel (%p598) target = $region40
      $region39: #{cvt_forward.8} parent=11 // pred_region
        _
      $region40: #{cvt_forward.8} parent=11 // pred_fallthru
        _
      // Predicated region
      $region41: #{cvt_forward.8} parent=11 // pred_check
        %p601 = pneg %p224
      $region42: #{cvt_forward.8} parent=11 // pred_check_branch
        %603 = sbr.rel (%p601) target = $region44
      $region43: #{cvt_forward.8} parent=11 // pred_region
        _
      $region44: #{cvt_forward.8} parent=11 // pred_fallthru
        _
      // Predicated region
      $region45: #{cvt_forward.8} parent=11 // pred_check
        %p604 = pneg %p245
      $region46: #{cvt_forward.8} parent=11 // pred_check_branch
        %606 = sbr.rel (%p604) target = $region48
      $region47: #{cvt_forward.8} parent=11 // pred_region
        _
      $region48: #{cvt_forward.8} parent=11 // pred_fallthru
        _
      // Predicated region
      $region49: #{cvt_forward.8} parent=11 // pred_check
        %p607 = pneg %p266
      $region50: #{cvt_forward.8} parent=11 // pred_check_branch
        %609 = sbr.rel (%p607) target = $region52
      $region51: #{cvt_forward.8} parent=11 // pred_region
        _
      $region52: #{cvt_forward.8} parent=11 // pred_fallthru
        _
      // Predicated region
      $region53: #{cvt_forward.8} parent=11 // pred_check
        %p610 = pneg %p287
      $region54: #{cvt_forward.8} parent=11 // pred_check_branch
        %612 = sbr.rel (%p610) target = $region56
      $region55: #{cvt_forward.8} parent=11 // pred_region
        _
      $region56: #{cvt_forward.8} parent=11 // pred_fallthru
        _
      // Predicated region
      $region57: #{cvt_forward.8} parent=11 // pred_check
        %p613 = pneg %p308
      $region58: #{cvt_forward.8} parent=11 // pred_check_branch
        %615 = sbr.rel (%p613) target = $region60
      $region59: #{cvt_forward.8} parent=11 // pred_region
        _
      $region60: #{cvt_forward.8} parent=11 // pred_fallthru
        _
      // Predicated region
      $region61: #{cvt_forward.8} parent=11 // pred_check
        %p616 = pneg %p329
      $region62: #{cvt_forward.8} parent=11 // pred_check_branch
        %618 = sbr.rel (%p616) target = $region64
      $region63: #{cvt_forward.8} parent=11 // pred_region
        _
      $region64: #{cvt_forward.8} parent=11 // pred_fallthru
        _
      // Predicated region
      $region65: #{cvt_forward.8} parent=11 // pred_check
        %p619 = pneg %p350
      $region66: #{cvt_forward.8} parent=11 // pred_check_branch
        %621 = sbr.rel (%p619) target = $region68
      $region67: #{cvt_forward.8} parent=11 // pred_region
        _
      $region68: #{cvt_forward.8} parent=11 // pred_fallthru
        _
      // Predicated region
      $region69: #{cvt_forward.8} parent=11 // pred_check
        %p622 = pneg %p371
      $region70: #{cvt_forward.8} parent=11 // pred_check_branch
        %624 = sbr.rel (%p622) target = $region72
      $region71: #{cvt_forward.8} parent=11 // pred_region
        _
      $region72: #{cvt_forward.8} parent=11 // pred_fallthru
        _
      // Predicated region
      $region73: #{cvt_forward.8} parent=11 // pred_check
        %p625 = pneg %p392
      $region74: #{cvt_forward.8} parent=11 // pred_check_branch
        %627 = sbr.rel (%p625) target = $region76
      $region75: #{cvt_forward.8} parent=11 // pred_region
        _
      $region76: #{cvt_forward.8} parent=11 // pred_fallthru
        _
      // Predicated region
      $region77: #{cvt_forward.8} parent=11 // pred_check
        %p628 = pneg %p413
      $region78: #{cvt_forward.8} parent=11 // pred_check_branch
        %630 = sbr.rel (%p628) target = $region80
      $region79: #{cvt_forward.8} parent=11 // pred_region
        _
      $region80: #{cvt_forward.8} parent=11 // pred_fallthru
        _
      // Predicated region
      $region81: #{cvt_forward.8} parent=11 // pred_check
        %p631 = pneg %p434
      $region82: #{cvt_forward.8} parent=11 // pred_check_branch
        %633 = sbr.rel (%p631) target = $region84
      $region83: #{cvt_forward.8} parent=11 // pred_region
        _
      $region84: #{cvt_forward.8} parent=11 // pred_fallthru
        _
      // Predicated region
      $region85: #{cvt_forward.8} parent=11 // pred_check
        %p634 = pneg %p455
      $region86: #{cvt_forward.8} parent=11 // pred_check_branch
        %636 = sbr.rel (%p634) target = $region88
      $region87: #{cvt_forward.8} parent=11 // pred_region
        _
      $region88: #{cvt_forward.8} parent=11 // pred_fallthru
        _
      // Predicated region
      $region89: #{cvt_forward.8} parent=11 // pred_check
        %p637 = pneg %p476
      $region90: #{cvt_forward.8} parent=11 // pred_check_branch
        %639 = sbr.rel (%p637) target = $region92
      $region91: #{cvt_forward.8} parent=11 // pred_region
        _
      $region92: #{cvt_forward.8} parent=11 // pred_fallthru
        _
      // Predicated region
      $region93: #{cvt_forward.8} parent=11 // pred_check
        %p640 = pneg %p497
      $region94: #{cvt_forward.8} parent=11 // pred_check_branch
        %642 = sbr.rel (%p640) target = $region96
      $region95: #{cvt_forward.8} parent=11 // pred_region
        _
      $region96: #{cvt_forward.8} parent=11 // pred_fallthru
        _
      // Predicated region
      $region97: #{cvt_forward.8} parent=11 // pred_check
        %p643 = pneg %p518
      $region98: #{cvt_forward.8} parent=11 // pred_check_branch
        %645 = sbr.rel (%p643) target = $region100
      $region99: #{cvt_forward.8} parent=11 // pred_region
        _
      $region100: #{cvt_forward.8} parent=11 // pred_fallthru
        _
      // Predicated region
      $region101: #{cvt_forward.8} parent=11 // pred_check
        %p646 = pneg %p539
      $region102: #{cvt_forward.8} parent=11 // pred_check_branch
        %648 = sbr.rel (%p646) target = $region104
      $region103: #{cvt_forward.8} parent=11 // pred_region
        _
      $region104: #{cvt_forward.8} parent=11 // pred_fallthru
        _
    $region12: #{cvt_forward.8} parent=5 // pred_fallthru
      _
    %p649 = scmp.lt.s32.totalorder %s30, 2
    // Predicated region
    $region105: #{cvt_forward.8} parent=5 // pred_check
      %p650 = pneg %p649
    $region106: #{cvt_forward.8} parent=5 // pred_check_branch
      %652 = sbr.rel (%p650) target = $region108
    $region107: #{cvt_forward.8} parent=5 // pred_region
      // Predicated region
      $region109: #{cvt_forward.8} parent=107 // pred_check
        %p653 = pneg %p50
      $region110: #{cvt_forward.8} parent=107 // pred_check_branch
        %655 = sbr.rel (%p653) target = $region112
      $region111: #{cvt_forward.8} parent=107 // pred_region
        %p656 = scmp.lt.s32.totalorder %s30, 1
        %s657 = scalar_select %p656, %s30, 1
        %s658 = smul.addr %s657, 3
        %s659 = smul.addr %s658, 8
        %s660 = scalar_lea.vmem %s0, %s659
      $region112: #{cvt_forward.8} parent=107 // pred_fallthru
        _
    $region108: #{cvt_forward.8} parent=5 // pred_fallthru
      _
    %p661 = scmp.le.s32.totalorder 1, %s30
    %p662 = scmp.lt.s32.totalorder %s30, 3
    %p663 = pnand %p661, %p662
    %p664 = pneg %p663
    // Predicated region
    $region113: #{cvt_forward.8} parent=5 // pred_check
      _
    $region114: #{cvt_forward.8} parent=5 // pred_check_branch
      %666 = sbr.rel (%p663) target = $region116
    $region115: #{cvt_forward.8} parent=5 // pred_region
      %s667 = ssub.s32 %s30, 1
      %p668 = scmp.lt.s32.totalorder %s35, 1
      %s669 = scalar_select %p668, %s35, 1
      %s670 = smul.addr %s669, 3
      %s671 = smul.addr %s670, 8
      %s672 = scalar_lea.vmem %s0, %s671
      %p673 = pneg %p56
      %p674 = pneg %p53
      %p675 = pneg %p77
      %p676 = pneg %p74
      %p677 = pneg %p98
      %p678 = pneg %p95
      %p679 = pneg %p119
      %p680 = pneg %p116
      %p681 = pneg %p140
      %p682 = pneg %p137
      %p683 = pneg %p161
      %p684 = pneg %p158
      %p685 = pneg %p182
      %p686 = pneg %p179
      %p687 = pneg %p203
      %p688 = pneg %p200
      %p689 = pneg %p224
      %p690 = pneg %p221
      %p691 = pneg %p245
      %p692 = pneg %p242
      %p693 = pneg %p266
      %p694 = pneg %p263
      %p695 = pneg %p287
      %p696 = pneg %p284
      %p697 = pneg %p308
      %p698 = pneg %p305
      %p699 = pneg %p329
      %p700 = pneg %p326
      %p701 = pneg %p350
      %p702 = pneg %p347
      %p703 = pneg %p371
      %p704 = pneg %p368
      %p705 = pneg %p392
      %p706 = pneg %p389
      %p707 = pneg %p413
      %p708 = pneg %p410
      %p709 = pneg %p434
      %p710 = pneg %p431
      %p711 = pneg %p455
      %p712 = pneg %p452
      %p713 = pneg %p476
      %p714 = pneg %p473
      %p715 = pneg %p497
      %p716 = pneg %p494
      %p717 = pneg %p518
      %p718 = pneg %p515
      %p719 = pneg %p539
      %p720 = pneg %p536
      %p721 = pneg %p565
      %p722 = pneg %p562
      %p723 = scmp.lt.s32.totalorder %s35, 1
      %s724 = scalar_select %p723, %s35, 1
      %s725 = smul.addr %s724, 3
      %s726 = smul.addr %s725, 8
      %s727 = scalar_lea.vmem %s24, %s726
      %p728 = scmp.lt.s32.totalorder %s35, 1
      %s729 = scalar_select %p728, %s35, 1
      %s730 = smul.addr %s729, 3
      %s731 = smul.addr %s730, 8
      %s732 = scalar_lea.vmem %s0, %s731
      %p733 = scmp.lt.s32.totalorder %s35, 1
      %s734 = scalar_select %p733, %s35, 1
      %s735 = smul.addr %s734, 3
      %s736 = smul.addr %s735, 8
      %s737 = scalar_lea.vmem %s24, %s736
      %v739 = vld [vmem:[%s732] sm:$0xff]
      %v740 = vld [vmem:[%s732 + $0x8] sm:$0xff]
      %v741 = vld [vmem:[%s732 + $0x10] sm:$0x1]
      %v742 = vld [vmem:[%s2] sm:$0x1]
      %v743 = vld [vmem:[%s3] sm:$0x1]
      %vm744 = vcmask 261120
      %v745 = vsel %vm744, %v739, 0.0
      %746 = vadd.xlane.f32.xlu0 %v745
      %v747 = vpop.xlane.xlu0 %746
      %v748 = vsel %vm744, %v740, 0.0
      %749 = vadd.xlane.f32.xlu0 %v748
      %v750 = vpop.xlane.xlu0 %749
      %vm751 = vcmask 253952
      %v752 = vsel %vm751, %v741, 0.0
      %753 = vadd.xlane.f32.xlu0 %v752
      %v754 = vpop.xlane.xlu0 %753
      %v755 = vrcp.pop 32.0
      %v756 = vmul.f32 %v747, %v755
      %v757 = vmul.f32 %v750, %v755
      %v758 = vmul.f32 %v754, %v755
      %v759 = vsub.f32 %v739, %v756
      %v760 = vsub.f32 %v740, %v757
      %v761 = vsub.f32 %v741, %v758
      %v762 = vmul.f32 %v759, %v759
      %v763 = vmul.f32 %v760, %v760
      %v764 = vmul.f32 %v761, %v761
      %v765 = vsel %vm744, %v762, 0.0
      %766 = vadd.xlane.f32.xlu0 %v765
      %v767 = vpop.xlane.xlu0 %766
      %v768 = vsel %vm744, %v763, 0.0
      %769 = vadd.xlane.f32.xlu0 %v768
      %v770 = vpop.xlane.xlu0 %769
      %v771 = vsel %vm751, %v764, 0.0
      %772 = vadd.xlane.f32.xlu0 %v771
      %v773 = vpop.xlane.xlu0 %772
      %v774 = vmul.f32 %v767, %v755
      %v775 = vmul.f32 %v770, %v755
      %v776 = vmul.f32 %v773, %v755
      %v777 = vadd.f32 %v774, 1e-05
      %v778 = vadd.f32 %v775, 1e-05
      %v779 = vadd.f32 %v776, 1e-05
      %v780 = vrsqrt.pop %v777
      %v781 = vrsqrt.pop %v778
      %v782 = vrsqrt.pop %v779
      %v783 = vmul.f32 %v759, %v780
      %v784 = vmul.f32 %v760, %v781
      %v785 = vmul.f32 %v761, %v782
      %v787 = vlaneseq
      %v788 = vshrl.u32 %v787, 7
      %v789 = vsub.s32 0, %v788
      %v790 = vrot.slane %v742, %v789
      %v792 = vmul.f32 %v783, %v790
      %v793 = vmul.f32 %v784, %v790
      %v794 = vmul.f32 %v785, %v790
      %v796 = vlaneseq
      %v797 = vshrl.u32 %v796, 7
      %v798 = vsub.s32 0, %v797
      %v799 = vrot.slane %v743, %v798
      %v801 = vadd.f32 %v792, %v799
      %v802 = vadd.f32 %v793, %v799
      %v803 = vadd.f32 %v794, %v799
      %vm804 = vcmask 259072
      %805 = vst.msk [vmem:[#allocation2] sm:$0x3f] %vm804, 0.0
      %806 = vst.msk [vmem:[#allocation2 + $0x8] sm:$0x3f] %vm804, 0.0
      %807 = vst.msk [vmem:[#allocation2 + $0x10] sm:$0x3f] %vm804, 0.0
      %808 = vst.msk [vmem:[#allocation2 + $0x18] sm:$0x3f] %vm804, 0.0
      %809 = vst.msk [vmem:[#allocation2 + $0x20] sm:$0x3f] %vm804, 0.0
      %810 = vst.msk [vmem:[#allocation2 + $0x28] sm:$0x3f] %vm804, 0.0
      %v814 = vcombine.high %v801, %v801
      %v815 = vcombine.high %v802, %v802
      %vm816 = vcmask 1042432
      %vm817 = vcmask 1046532
      %vm818 = vmor %vm816, %vm817
      %v819 = vrot.slane %v801, 5
      %v820 = vrot.slane %v819, 4
      %v821 = vrot.slane %v814, 5
      %v822 = vsel %vm818, %v820, %v821
      %v823 = vrot.slane %v821, 4
      %v824 = vrot.slane %v802, 5
      %v825 = vsel %vm818, %v823, %v824
      %v826 = vrot.slane %v824, 4
      %v827 = vrot.slane %v815, 5
      %v828 = vsel %vm818, %v826, %v827
      %v829 = vrot.slane %v827, 4
      %v830 = vrot.slane %v803, 5
      %v831 = vsel %vm818, %v829, %v830
      %s836 = scalar_lea.vmem [#allocation2], 8
      %vm837 = vcmask 257024
      %838 = vst.msk [vmem:[%s836 + $0x1] sm:$0xf] %vm837, %v822
      %839 = vst.msk [vmem:[%s836 + $0x9] sm:$0xf] %vm837, %v825
      %840 = vst.msk [vmem:[%s836 + $0x11] sm:$0xf] %vm837, %v828
      %841 = vst.msk [vmem:[%s836 + $0x19] sm:$0xf] %vm837, %v831
      %v842 = vld [vmem:[%s4] sm:$0x1]
      %v843 = vld [vmem:[%s4 + $0x1] sm:$0x1]
      %v844 = vld [vmem:[%s4 + $0x2] sm:$0x1]
      %v845 = vld [vmem:[%s4 + $0x3] sm:$0x1]
      %v846 = vld [vmem:[%s4 + $0x4] sm:$0x1]
      %v847 = vld [vmem:[%s4 + $0x5] sm:$0x1]
      %v848 = vld [vmem:[%s4 + $0x6] sm:$0x1]
      %v849 = vld [vmem:[%s4 + $0x7] sm:$0x1]
      %v850 = vld [vmem:[%s4 + $0x8] sm:$0x1]
      %v851 = vld [vmem:[%s6] sm:$0x1]
      %v852 = vld [vmem:[%s6 + $0x1] sm:$0x1]
      %v853 = vld [vmem:[%s6 + $0x2] sm:$0x1]
      %v854 = vld [vmem:[%s6 + $0x3] sm:$0x1]
      %v855 = vld [vmem:[%s6 + $0x4] sm:$0x1]
      %v856 = vld [vmem:[%s6 + $0x5] sm:$0x1]
      %v857 = vld [vmem:[%s6 + $0x6] sm:$0x1]
      %v858 = vld [vmem:[%s6 + $0x7] sm:$0x1]
      %v859 = vld [vmem:[%s6 + $0x8] sm:$0x1]
      %v860 = vld [vmem:[%s8] sm:$0x1]
      %v861 = vld [vmem:[%s8 + $0x1] sm:$0x1]
      %v862 = vld [vmem:[%s8 + $0x2] sm:$0x1]
      %v863 = vld [vmem:[%s8 + $0x3] sm:$0x1]
      %v864 = vld [vmem:[%s8 + $0x4] sm:$0x1]
      %v865 = vld [vmem:[%s8 + $0x5] sm:$0x1]
      %v866 = vld [vmem:[%s8 + $0x6] sm:$0x1]
      %v867 = vld [vmem:[%s8 + $0x7] sm:$0x1]
      %v868 = vld [vmem:[%s8 + $0x8] sm:$0x1]
      %v869 = vld [vmem:[#allocation2] sm:$0xf]
      %v870 = vld [vmem:[#allocation2 + $0x8] sm:$0xf]
      %v871 = vld [vmem:[#allocation2 + $0x10] sm:$0xf]
      %v872 = vld [vmem:[#allocation2 + $0x18] sm:$0xf]
      %v874 = vlaneseq
      %v875 = vshrl.u32 %v874, 7
      %v876 = vsub.s32 0, %v875
      %v877 = vrot.slane %v842, %v876
      %v879 = vmul.f32 %v869, %v877
      %v880 = vmul.f32 %v870, %v877
      %v881 = vmul.f32 %v871, %v877
      %v882 = vmul.f32 %v872, %v877
      %v884 = vlaneseq
      %v885 = vshrl.u32 %v884, 7
      %v886 = vsub.s32 0, %v885
      %v887 = vrot.slane %v851, %v886
      %v889 = vmul.f32 %v869, %v887
      %v890 = vmul.f32 %v870, %v887
      %v891 = vmul.f32 %v871, %v887
      %v892 = vmul.f32 %v872, %v887
      %v894 = vlaneseq
      %v895 = vshrl.u32 %v894, 7
      %v896 = vsub.s32 0, %v895
      %v897 = vrot.slane %v860, %v896
      %v899 = vmul.f32 %v869, %v897
      %v900 = vmul.f32 %v870, %v897
      %v901 = vmul.f32 %v871, %v897
      %v902 = vmul.f32 %v872, %v897
      %v903 = vld [vmem:[#allocation2 + $0x1] sm:$0xf]
      %v904 = vld [vmem:[#allocation2 + $0x9] sm:$0xf]
      %v905 = vld [vmem:[#allocation2 + $0x11] sm:$0xf]
      %v906 = vld [vmem:[#allocation2 + $0x19] sm:$0xf]
      %v908 = vlaneseq
      %v909 = vshrl.u32 %v908, 7
      %v910 = vsub.s32 0, %v909
      %v911 = vrot.slane %v843, %v910
      %v913 = vmul.f32 %v903, %v911
      %v914 = vmul.f32 %v904, %v911
      %v915 = vmul.f32 %v905, %v911
      %v916 = vmul.f32 %v906, %v911
      %v917 = vadd.f32 %v879, %v913
      %v918 = vadd.f32 %v880, %v914
      %v919 = vadd.f32 %v881, %v915
      %v920 = vadd.f32 %v882, %v916
      %v922 = vlaneseq
      %v923 = vshrl.u32 %v922, 7
      %v924 = vsub.s32 0, %v923
      %v925 = vrot.slane %v852, %v924
      %v927 = vmul.f32 %v903, %v925
      %v928 = vmul.f32 %v904, %v925
      %v929 = vmul.f32 %v905, %v925
      %v930 = vmul.f32 %v906, %v925
      %v931 = vadd.f32 %v889, %v927
      %v932 = vadd.f32 %v890, %v928
      %v933 = vadd.f32 %v891, %v929
      %v934 = vadd.f32 %v892, %v930
      %v936 = vlaneseq
      %v937 = vshrl.u32 %v936, 7
      %v938 = vsub.s32 0, %v937
      %v939 = vrot.slane %v861, %v938
      %v941 = vmul.f32 %v903, %v939
      %v942 = vmul.f32 %v904, %v939
      %v943 = vmul.f32 %v905, %v939
      %v944 = vmul.f32 %v906, %v939
      %v945 = vadd.f32 %v899, %v941
      %v946 = vadd.f32 %v900, %v942
      %v947 = vadd.f32 %v901, %v943
      %v948 = vadd.f32 %v902, %v944
      %v949 = vld [vmem:[#allocation2 + $0x2] sm:$0xf]
      %v950 = vld [vmem:[#allocation2 + $0xa] sm:$0xf]
      %v951 = vld [vmem:[#allocation2 + $0x12] sm:$0xf]
      %v952 = vld [vmem:[#allocation2 + $0x1a] sm:$0xf]
      %v954 = vlaneseq
      %v955 = vshrl.u32 %v954, 7
      %v956 = vsub.s32 0, %v955
      %v957 = vrot.slane %v844, %v956
      %v959 = vmul.f32 %v949, %v957
      %v960 = vmul.f32 %v950, %v957
      %v961 = vmul.f32 %v951, %v957
      %v962 = vmul.f32 %v952, %v957
      %v963 = vadd.f32 %v917, %v959
      %v964 = vadd.f32 %v918, %v960
      %v965 = vadd.f32 %v919, %v961
      %v966 = vadd.f32 %v920, %v962
      %v968 = vlaneseq
      %v969 = vshrl.u32 %v968, 7
      %v970 = vsub.s32 0, %v969
      %v971 = vrot.slane %v853, %v970
      %v973 = vmul.f32 %v949, %v971
      %v974 = vmul.f32 %v950, %v971
      %v975 = vmul.f32 %v951, %v971
      %v976 = vmul.f32 %v952, %v971
      %v977 = vadd.f32 %v931, %v973
      %v978 = vadd.f32 %v932, %v974
      %v979 = vadd.f32 %v933, %v975
      %v980 = vadd.f32 %v934, %v976
      %v982 = vlaneseq
      %v983 = vshrl.u32 %v982, 7
      %v984 = vsub.s32 0, %v983
      %v985 = vrot.slane %v862, %v984
      %v987 = vmul.f32 %v949, %v985
      %v988 = vmul.f32 %v950, %v985
      %v989 = vmul.f32 %v951, %v985
      %v990 = vmul.f32 %v952, %v985
      %v991 = vadd.f32 %v945, %v987
      %v992 = vadd.f32 %v946, %v988
      %v993 = vadd.f32 %v947, %v989
      %v994 = vadd.f32 %v948, %v990
      %v995 = vld [vmem:[%s836] sm:$0xf]
      %v996 = vld [vmem:[%s836 + $0x8] sm:$0xf]
      %v997 = vld [vmem:[%s836 + $0x10] sm:$0xf]
      %v998 = vld [vmem:[%s836 + $0x18] sm:$0xf]
      %v1000 = vlaneseq
      %v1001 = vshrl.u32 %v1000, 7
      %v1002 = vsub.s32 0, %v1001
      %v1003 = vrot.slane %v845, %v1002
      %v1005 = vmul.f32 %v995, %v1003
      %v1006 = vmul.f32 %v996, %v1003
      %v1007 = vmul.f32 %v997, %v1003
      %v1008 = vmul.f32 %v998, %v1003
      %v1009 = vadd.f32 %v963, %v1005
      %v1010 = vadd.f32 %v964, %v1006
      %v1011 = vadd.f32 %v965, %v1007
      %v1012 = vadd.f32 %v966, %v1008
      %v1014 = vlaneseq
      %v1015 = vshrl.u32 %v1014, 7
      %v1016 = vsub.s32 0, %v1015
      %v1017 = vrot.slane %v854, %v1016
      %v1019 = vmul.f32 %v995, %v1017
      %v1020 = vmul.f32 %v996, %v1017
      %v1021 = vmul.f32 %v997, %v1017
      %v1022 = vmul.f32 %v998, %v1017
      %v1023 = vadd.f32 %v977, %v1019
      %v1024 = vadd.f32 %v978, %v1020
      %v1025 = vadd.f32 %v979, %v1021
      %v1026 = vadd.f32 %v980, %v1022
      %v1028 = vlaneseq
      %v1029 = vshrl.u32 %v1028, 7
      %v1030 = vsub.s32 0, %v1029
      %v1031 = vrot.slane %v863, %v1030
      %v1033 = vmul.f32 %v995, %v1031
      %v1034 = vmul.f32 %v996, %v1031
      %v1035 = vmul.f32 %v997, %v1031
      %v1036 = vmul.f32 %v998, %v1031
      %v1037 = vadd.f32 %v991, %v1033
      %v1038 = vadd.f32 %v992, %v1034
      %v1039 = vadd.f32 %v993, %v1035
      %v1040 = vadd.f32 %v994, %v1036
      %v1041 = vld [vmem:[%s836 + $0x1] sm:$0xf]
      %v1042 = vld [vmem:[%s836 + $0x9] sm:$0xf]
      %v1043 = vld [vmem:[%s836 + $0x11] sm:$0xf]
      %v1044 = vld [vmem:[%s836 + $0x19] sm:$0xf]
      %v1046 = vlaneseq
      %v1047 = vshrl.u32 %v1046, 7
      %v1048 = vsub.s32 0, %v1047
      %v1049 = vrot.slane %v846, %v1048
      %v1051 = vmul.f32 %v1041, %v1049
      %v1052 = vmul.f32 %v1042, %v1049
      %v1053 = vmul.f32 %v1043, %v1049
      %v1054 = vmul.f32 %v1044, %v1049
      %v1055 = vadd.f32 %v1009, %v1051
      %v1056 = vadd.f32 %v1010, %v1052
      %v1057 = vadd.f32 %v1011, %v1053
      %v1058 = vadd.f32 %v1012, %v1054
      %v1060 = vlaneseq
      %v1061 = vshrl.u32 %v1060, 7
      %v1062 = vsub.s32 0, %v1061
      %v1063 = vrot.slane %v855, %v1062
      %v1065 = vmul.f32 %v1041, %v1063
      %v1066 = vmul.f32 %v1042, %v1063
      %v1067 = vmul.f32 %v1043, %v1063
      %v1068 = vmul.f32 %v1044, %v1063
      %v1069 = vadd.f32 %v1023, %v1065
      %v1070 = vadd.f32 %v1024, %v1066
      %v1071 = vadd.f32 %v1025, %v1067
      %v1072 = vadd.f32 %v1026, %v1068
      %v1074 = vlaneseq
      %v1075 = vshrl.u32 %v1074, 7
      %v1076 = vsub.s32 0, %v1075
      %v1077 = vrot.slane %v864, %v1076
      %v1079 = vmul.f32 %v1041, %v1077
      %v1080 = vmul.f32 %v1042, %v1077
      %v1081 = vmul.f32 %v1043, %v1077
      %v1082 = vmul.f32 %v1044, %v1077
      %v1083 = vadd.f32 %v1037, %v1079
      %v1084 = vadd.f32 %v1038, %v1080
      %v1085 = vadd.f32 %v1039, %v1081
      %v1086 = vadd.f32 %v1040, %v1082
      %v1087 = vld [vmem:[%s836 + $0x2] sm:$0xf]
      %v1088 = vld [vmem:[%s836 + $0xa] sm:$0xf]
      %v1089 = vld [vmem:[%s836 + $0x12] sm:$0xf]
      %v1090 = vld [vmem:[%s836 + $0x1a] sm:$0xf]
      %v1092 = vlaneseq
      %v1093 = vshrl.u32 %v1092, 7
      %v1094 = vsub.s32 0, %v1093
      %v1095 = vrot.slane %v847, %v1094
      %v1097 = vmul.f32 %v1087, %v1095
      %v1098 = vmul.f32 %v1088, %v1095
      %v1099 = vmul.f32 %v1089, %v1095
      %v1100 = vmul.f32 %v1090, %v1095
      %v1101 = vadd.f32 %v1055, %v1097
      %v1102 = vadd.f32 %v1056, %v1098
      %v1103 = vadd.f32 %v1057, %v1099
      %v1104 = vadd.f32 %v1058, %v1100
      %v1106 = vlaneseq
      %v1107 = vshrl.u32 %v1106, 7
      %v1108 = vsub.s32 0, %v1107
      %v1109 = vrot.slane %v856, %v1108
      %v1111 = vmul.f32 %v1087, %v1109
      %v1112 = vmul.f32 %v1088, %v1109
      %v1113 = vmul.f32 %v1089, %v1109
      %v1114 = vmul.f32 %v1090, %v1109
      %v1115 = vadd.f32 %v1069, %v1111
      %v1116 = vadd.f32 %v1070, %v1112
      %v1117 = vadd.f32 %v1071, %v1113
      %v1118 = vadd.f32 %v1072, %v1114
      %v1120 = vlaneseq
      %v1121 = vshrl.u32 %v1120, 7
      %v1122 = vsub.s32 0, %v1121
      %v1123 = vrot.slane %v865, %v1122
      %v1125 = vmul.f32 %v1087, %v1123
      %v1126 = vmul.f32 %v1088, %v1123
      %v1127 = vmul.f32 %v1089, %v1123
      %v1128 = vmul.f32 %v1090, %v1123
      %v1129 = vadd.f32 %v1083, %v1125
      %v1130 = vadd.f32 %v1084, %v1126
      %v1131 = vadd.f32 %v1085, %v1127
      %v1132 = vadd.f32 %v1086, %v1128
      %s1133 = scalar_lea.vmem [#allocation2], 16
      %v1134 = vld [vmem:[%s1133] sm:$0xf]
      %v1135 = vld [vmem:[%s1133 + $0x8] sm:$0xf]
      %v1136 = vld [vmem:[%s1133 + $0x10] sm:$0xf]
      %v1137 = vld [vmem:[%s1133 + $0x18] sm:$0xf]
      %v1139 = vlaneseq
      %v1140 = vshrl.u32 %v1139, 7
      %v1141 = vsub.s32 0, %v1140
      %v1142 = vrot.slane %v848, %v1141
      %v1144 = vmul.f32 %v1134, %v1142
      %v1145 = vmul.f32 %v1135, %v1142
      %v1146 = vmul.f32 %v1136, %v1142
      %v1147 = vmul.f32 %v1137, %v1142
      %v1148 = vadd.f32 %v1101, %v1144
      %v1149 = vadd.f32 %v1102, %v1145
      %v1150 = vadd.f32 %v1103, %v1146
      %v1151 = vadd.f32 %v1104, %v1147
      %v1153 = vlaneseq
      %v1154 = vshrl.u32 %v1153, 7
      %v1155 = vsub.s32 0, %v1154
      %v1156 = vrot.slane %v857, %v1155
      %v1158 = vmul.f32 %v1134, %v1156
      %v1159 = vmul.f32 %v1135, %v1156
      %v1160 = vmul.f32 %v1136, %v1156
      %v1161 = vmul.f32 %v1137, %v1156
      %v1162 = vadd.f32 %v1115, %v1158
      %v1163 = vadd.f32 %v1116, %v1159
      %v1164 = vadd.f32 %v1117, %v1160
      %v1165 = vadd.f32 %v1118, %v1161
      %v1167 = vlaneseq
      %v1168 = vshrl.u32 %v1167, 7
      %v1169 = vsub.s32 0, %v1168
      %v1170 = vrot.slane %v866, %v1169
      %v1172 = vmul.f32 %v1134, %v1170
      %v1173 = vmul.f32 %v1135, %v1170
      %v1174 = vmul.f32 %v1136, %v1170
      %v1175 = vmul.f32 %v1137, %v1170
      %v1176 = vadd.f32 %v1129, %v1172
      %v1177 = vadd.f32 %v1130, %v1173
      %v1178 = vadd.f32 %v1131, %v1174
      %v1179 = vadd.f32 %v1132, %v1175
      %v1180 = vld [vmem:[%s1133 + $0x1] sm:$0xf]
      %v1181 = vld [vmem:[%s1133 + $0x9] sm:$0xf]
      %v1182 = vld [vmem:[%s1133 + $0x11] sm:$0xf]
      %v1183 = vld [vmem:[%s1133 + $0x19] sm:$0xf]
      %v1185 = vlaneseq
      %v1186 = vshrl.u32 %v1185, 7
      %v1187 = vsub.s32 0, %v1186
      %v1188 = vrot.slane %v849, %v1187
      %v1190 = vmul.f32 %v1180, %v1188
      %v1191 = vmul.f32 %v1181, %v1188
      %v1192 = vmul.f32 %v1182, %v1188
      %v1193 = vmul.f32 %v1183, %v1188
      %v1194 = vadd.f32 %v1148, %v1190
      %v1195 = vadd.f32 %v1149, %v1191
      %v1196 = vadd.f32 %v1150, %v1192
      %v1197 = vadd.f32 %v1151, %v1193
      %v1199 = vlaneseq
      %v1200 = vshrl.u32 %v1199, 7
      %v1201 = vsub.s32 0, %v1200
      %v1202 = vrot.slane %v858, %v1201
      %v1204 = vmul.f32 %v1180, %v1202
      %v1205 = vmul.f32 %v1181, %v1202
      %v1206 = vmul.f32 %v1182, %v1202
      %v1207 = vmul.f32 %v1183, %v1202
      %v1208 = vadd.f32 %v1162, %v1204
      %v1209 = vadd.f32 %v1163, %v1205
      %v1210 = vadd.f32 %v1164, %v1206
      %v1211 = vadd.f32 %v1165, %v1207
      %v1213 = vlaneseq
      %v1214 = vshrl.u32 %v1213, 7
      %v1215 = vsub.s32 0, %v1214
      %v1216 = vrot.slane %v867, %v1215
      %v1218 = vmul.f32 %v1180, %v1216
      %v1219 = vmul.f32 %v1181, %v1216
      %v1220 = vmul.f32 %v1182, %v1216
      %v1221 = vmul.f32 %v1183, %v1216
      %v1222 = vadd.f32 %v1176, %v1218
      %v1223 = vadd.f32 %v1177, %v1219
      %v1224 = vadd.f32 %v1178, %v1220
      %v1225 = vadd.f32 %v1179, %v1221
      %v1226 = vld [vmem:[%s1133 + $0x2] sm:$0xf]
      %v1227 = vld [vmem:[%s1133 + $0xa] sm:$0xf]
      %v1228 = vld [vmem:[%s1133 + $0x12] sm:$0xf]
      %v1229 = vld [vmem:[%s1133 + $0x1a] sm:$0xf]
      %v1231 = vlaneseq
      %v1232 = vshrl.u32 %v1231, 7
      %v1233 = vsub.s32 0, %v1232
      %v1234 = vrot.slane %v850, %v1233
      %v1236 = vmul.f32 %v1226, %v1234
      %v1237 = vmul.f32 %v1227, %v1234
      %v1238 = vmul.f32 %v1228, %v1234
      %v1239 = vmul.f32 %v1229, %v1234
      %v1240 = vadd.f32 %v1194, %v1236
      %v1241 = vadd.f32 %v1195, %v1237
      %v1242 = vadd.f32 %v1196, %v1238
      %v1243 = vadd.f32 %v1197, %v1239
      %v1245 = vlaneseq
      %v1246 = vshrl.u32 %v1245, 7
      %v1247 = vsub.s32 0, %v1246
      %v1248 = vrot.slane %v859, %v1247
      %v1250 = vmul.f32 %v1226, %v1248
      %v1251 = vmul.f32 %v1227, %v1248
      %v1252 = vmul.f32 %v1228, %v1248
      %v1253 = vmul.f32 %v1229, %v1248
      %v1254 = vadd.f32 %v1208, %v1250
      %v1255 = vadd.f32 %v1209, %v1251
      %v1256 = vadd.f32 %v1210, %v1252
      %v1257 = vadd.f32 %v1211, %v1253
      %v1259 = vlaneseq
      %v1260 = vshrl.u32 %v1259, 7
      %v1261 = vsub.s32 0, %v1260
      %v1262 = vrot.slane %v868, %v1261
      %v1264 = vmul.f32 %v1226, %v1262
      %v1265 = vmul.f32 %v1227, %v1262
      %v1266 = vmul.f32 %v1228, %v1262
      %v1267 = vmul.f32 %v1229, %v1262
      %v1268 = vadd.f32 %v1222, %v1264
      %v1269 = vadd.f32 %v1223, %v1265
      %v1270 = vadd.f32 %v1224, %v1266
      %v1271 = vadd.f32 %v1225, %v1267
      %v1272 = vld [vmem:[%s5] sm:$0x1]
      %v1274 = vlaneseq
      %v1275 = vshrl.u32 %v1274, 7
      %v1276 = vsub.s32 0, %v1275
      %v1277 = vrot.slane %v1272, %v1276
      %v1279 = vcombine.high %v1277, %v1277
      %v1281 = vadd.f32 %v1240, %v1277
      %v1282 = vadd.f32 %v1241, %v1279
      %v1283 = vadd.f32 %v1242, %v1277
      %v1284 = vadd.f32 %v1243, %v1279
      %v1285 = vld [vmem:[%s7] sm:$0x1]
      %v1287 = vlaneseq
      %v1288 = vshrl.u32 %v1287, 7
      %v1289 = vsub.s32 0, %v1288
      %v1290 = vrot.slane %v1285, %v1289
      %v1292 = vcombine.high %v1290, %v1290
      %v1294 = vadd.f32 %v1254, %v1290
      %v1295 = vadd.f32 %v1255, %v1292
      %v1296 = vadd.f32 %v1256, %v1290
      %v1297 = vadd.f32 %v1257, %v1292
      %v1298 = vld [vmem:[%s9] sm:$0x1]
      %v1300 = vlaneseq
      %v1301 = vshrl.u32 %v1300, 7
      %v1302 = vsub.s32 0, %v1301
      %v1303 = vrot.slane %v1298, %v1302
      %v1305 = vcombine.high %v1303, %v1303
      %v1307 = vadd.f32 %v1268, %v1303
      %v1308 = vadd.f32 %v1269, %v1305
      %v1309 = vadd.f32 %v1270, %v1303
      %v1310 = vadd.f32 %v1271, %v1305
      %v1311 = vld [vmem:[%s1] sm:$0x3]
      %v1316 = vcombine.low %v1294, %v1295
      %v1317 = vcombine.low %v1296, %v1297
      %v1320 = vpack.c.bf16 %v1317, %v1316
      %vm1321 = vcmask 130048
      %v1323 = vsel %vm1321, %v1311, 0
      %1325 = vmatprep.subr.bf16.mxu0 0
      %1326 = vmatpush1.bf16.msra.mxu0 %v1320
      %1327 = vmatprep.subr.bf16.mxu0 0
      %1328 = vmatpush1.bf16.msra.mxu0 0
      %1329 = vmatprep.subr.bf16.mxu0 0
      %1330 = vmatpush1.bf16.msra.mxu0 0
      %1331 = vmatprep.subr.bf16.mxu0 0
      %1332 = vmatpush1.bf16.msra.mxu0 0
      %1333 = vmatprep.subr.bf16.mxu0 0
      %1334 = vmatpush1.bf16.msra.mxu0 0
      %1335 = vmatprep.subr.bf16.mxu0 0
      %1336 = vmatpush1.bf16.msra.mxu0 0
      %1337 = vmatprep.subr.bf16.mxu0 0
      %1338 = vmatpush1.bf16.msra.mxu0 0
      %1339 = vmatprep.subr.bf16.mxu0 0
      %1340 = vmatpush1.bf16.msra.mxu0 0
      %1341 = vmatprep.subr.bf16.mxu0 0
      %1342 = vmatpush1.bf16.msra.mxu0 0
      %1343 = vmatprep.subr.bf16.mxu0 0
      %1344 = vmatpush1.bf16.msra.mxu0 0
      %1345 = vmatprep.subr.bf16.mxu0 0
      %1346 = vmatpush1.bf16.msra.mxu0 0
      %1347 = vmatprep.subr.bf16.mxu0 0
      %1348 = vmatpush1.bf16.msra.mxu0 0
      %1349 = vmatprep.subr.bf16.mxu0 0
      %1350 = vmatpush1.bf16.msra.mxu0 0
      %1351 = vmatprep.subr.bf16.mxu0 0
      %1352 = vmatpush1.bf16.msra.mxu0 0
      %1353 = vmatprep.subr.bf16.mxu0 0
      %1354 = vmatpush1.bf16.msra.mxu0 0
      %1355 = vmatprep.subr.bf16.mxu0 0
      %1356 = vmatpush1.bf16.msra.mxu0 0
      %1357 = vmatprep.mubr.bf16.mxu0 0
      %1358 = vmatmul.mubr.bf16.gmra.mrb[0].mxu0 %v1323
      %v1359 = vpop.f32.mrb[0].mxu0
      %v1360 = vadd.f32 0.0, %v1359
      %v1361 = vpop.f32.mrb[0].mxu0
      %v1362 = vpop.f32.mrb[0].mxu0
      %v1363 = vpop.f32.mrb[0].mxu0
      %1364 = vdwg.mxu0
      %v1369 = vcombine.low %v1307, %v1308
      %v1370 = vcombine.low %v1309, %v1310
      %v1373 = vpack.c.bf16 %v1370, %v1369
      %1374 = vmatprep.subr.bf16.mxu0 0
      %1375 = vmatpush1.bf16.msra.mxu0 %v1373
      %1376 = vmatprep.subr.bf16.mxu0 0
      %1377 = vmatpush1.bf16.msra.mxu0 0
      %1378 = vmatprep.subr.bf16.mxu0 0
      %1379 = vmatpush1.bf16.msra.mxu0 0
      %1380 = vmatprep.subr.bf16.mxu0 0
      %1381 = vmatpush1.bf16.msra.mxu0 0
      %1382 = vmatprep.subr.bf16.mxu0 0
      %1383 = vmatpush1.bf16.msra.mxu0 0
      %1384 = vmatprep.subr.bf16.mxu0 0
      %1385 = vmatpush1.bf16.msra.mxu0 0
      %1386 = vmatprep.subr.bf16.mxu0 0
      %1387 = vmatpush1.bf16.msra.mxu0 0
      %1388 = vmatprep.subr.bf16.mxu0 0
      %1389 = vmatpush1.bf16.msra.mxu0 0
      %1390 = vmatprep.subr.bf16.mxu0 0
      %1391 = vmatpush1.bf16.msra.mxu0 0
      %1392 = vmatprep.subr.bf16.mxu0 0
      %1393 = vmatpush1.bf16.msra.mxu0 0
      %1394 = vmatprep.subr.bf16.mxu0 0
      %1395 = vmatpush1.bf16.msra.mxu0 0
      %1396 = vmatprep.subr.bf16.mxu0 0
      %1397 = vmatpush1.bf16.msra.mxu0 0
      %1398 = vmatprep.subr.bf16.mxu0 0
      %1399 = vmatpush1.bf16.msra.mxu0 0
      %1400 = vmatprep.subr.bf16.mxu0 0
      %1401 = vmatpush1.bf16.msra.mxu0 0
      %1402 = vmatprep.subr.bf16.mxu0 0
      %1403 = vmatpush1.bf16.msra.mxu0 0
      %1404 = vmatprep.subr.bf16.mxu0 0
      %1405 = vmatpush1.bf16.msra.mxu0 0
      %1406 = vmatprep.mubr.bf16.mxu0 0
      %1407 = vmatmul.mubr.bf16.gmra.mrb[0].mxu0 %v1323
      %v1408 = vpop.f32.mrb[0].mxu0
      %v1409 = vadd.f32 0.0, %v1408
      %v1410 = vpop.f32.mrb[0].mxu0
      %v1411 = vpop.f32.mrb[0].mxu0
      %v1412 = vpop.f32.mrb[0].mxu0
      %1413 = vdwg.mxu0
      %1414 = vst.msk [vmem:[#allocation3] sm:$0x1] %vm751, %v801
      %1415 = vst.msk [vmem:[#allocation4] sm:$0x1] %vm751, %v801
      %1416 = vst.msk [vmem:[#allocation5] sm:$0x1] %vm751, %v801
      %v1421 = vcombine.low %v1281, %v1282
      %v1422 = vcombine.low %v1283, %v1284
      %1425 = vst.msk [vmem:[#allocation3 + $0x1] sm:$0xff] %vm744, %v1421
      %1426 = vst.msk [vmem:[#allocation3 + $0x9] sm:$0xff] %vm744, %v1422
      %1427 = vst.msk [vmem:[#allocation4 + $0x1] sm:$0xf] %vm837, %v1360
      %1428 = vst.msk [vmem:[#allocation5 + $0x1] sm:$0xf] %vm837, %v1409
      %v1429 = vld [vmem:[#allocation3] sm:$0xff]
      %v1430 = vld [vmem:[#allocation3 + $0x8] sm:$0xff]
      %v1431 = vld [vmem:[#allocation3 + $0x10] sm:$0x1]
      %v1432 = vld [vmem:[#allocation4] sm:$0x1f]
      %v1433 = vld [vmem:[#allocation5] sm:$0x1f]
      %v1434 = vpack.c.bf16 %v1430, %v1429
      %v1435 = vpack.c.bf16 %v1431, %v1431
      %v1436 = vld [vmem:[%s10] sm:$0xf]
      %v1437 = vld [vmem:[%s10 + $0x4] sm:$0xf]
      %v1438 = vld [vmem:[%s10 + $0x8] sm:$0xf]
      %v1439 = vld [vmem:[%s10 + $0xc] sm:$0xf]
      %v1440 = vld [vmem:[%s11] sm:$0x1]
      %v1442 = vlaneseq
      %v1443 = vshrl.u32 %v1442, 7
      %v1444 = vsub.s32 0, %v1443
      %v1445 = vrot.slane %v1440, %v1444
      %v1451 = vunpack.c.l.b16 %v1436
      %v1452 = vunpack.c.l.b16 %v1437
      %v1453 = vunpack.c.l.b16 %v1438
      %v1454 = vunpack.c.l.b16 %v1439
      %v1455 = vpack.c.b16 %v1452, %v1451
      %v1456 = vpack.c.b16 %v1454, %v1453
      %v1460 = vsel %vm744, %v1434, 0
      %v1463 = vsel %vm744, %v1435, 0
      %1465 = vmatprep.subr.bf16.mxu0 0
      %1466 = vmatpush1.bf16.msra.mxu0 %v1455
      %1467 = vmatprep.subr.bf16.mxu0 0
      %1468 = vmatpush1.bf16.msra.mxu0 %v1456
      %1469 = vmatprep.subr.bf16.mxu0 0
      %1470 = vmatpush1.bf16.msra.mxu0 0
      %1471 = vmatprep.subr.bf16.mxu0 0
      %1472 = vmatpush1.bf16.msra.mxu0 0
      %1473 = vmatprep.subr.bf16.mxu0 0
      %1474 = vmatpush1.bf16.msra.mxu0 0
      %1475 = vmatprep.subr.bf16.mxu0 0
      %1476 = vmatpush1.bf16.msra.mxu0 0
      %1477 = vmatprep.subr.bf16.mxu0 0
      %1478 = vmatpush1.bf16.msra.mxu0 0
      %1479 = vmatprep.subr.bf16.mxu0 0
      %1480 = vmatpush1.bf16.msra.mxu0 0
      %1481 = vmatprep.subr.bf16.mxu0 0
      %1482 = vmatpush1.bf16.msra.mxu0 0
      %1483 = vmatprep.subr.bf16.mxu0 0
      %1484 = vmatpush1.bf16.msra.mxu0 0
      %1485 = vmatprep.subr.bf16.mxu0 0
      %1486 = vmatpush1.bf16.msra.mxu0 0
      %1487 = vmatprep.subr.bf16.mxu0 0
      %1488 = vmatpush1.bf16.msra.mxu0 0
      %1489 = vmatprep.subr.bf16.mxu0 0
      %1490 = vmatpush1.bf16.msra.mxu0 0
      %1491 = vmatprep.subr.bf16.mxu0 0
      %1492 = vmatpush1.bf16.msra.mxu0 0
      %1493 = vmatprep.subr.bf16.mxu0 0
      %1494 = vmatpush1.bf16.msra.mxu0 0
      %1495 = vmatprep.subr.bf16.mxu0 0
      %1496 = vmatpush1.bf16.msra.mxu0 0
      %1497 = vmatprep.mubr.bf16.mxu0 0
      %1498 = vmatmul.mubr.bf16.gmra.mrb[0].mxu0 %v1460
      %v1499 = vpop.f32.mrb[0].mxu0
      %v1500 = vadd.f32 %v1445, %v1499
      %v1501 = vpop.f32.mrb[0].mxu0
      %v1502 = vpop.f32.mrb[0].mxu0
      %v1503 = vadd.f32 %v1445, %v1502
      %v1504 = vpop.f32.mrb[0].mxu0
      %1505 = vmatprep.mubr.bf16.mxu0 0
      %1506 = vmatmul.mubr.bf16.gmra.mrb[0].mxu0 %v1463
      %v1507 = vpop.f32.mrb[0].mxu0
      %v1508 = vadd.f32 %v1445, %v1507
      %v1509 = vpop.f32.mrb[0].mxu0
      %v1510 = vpop.f32.mrb[0].mxu0
      %v1511 = vpop.f32.mrb[0].mxu0
      %1512 = vdwg.mxu0
      %v1513 = vpack.c.bf16 %v1432, %v1432
      %v1514 = vld [vmem:[%s12] sm:$0xf]
      %v1515 = vld [vmem:[%s12 + $0x4] sm:$0xf]
      %v1516 = vld [vmem:[%s12 + $0x8] sm:$0xf]
      %v1517 = vld [vmem:[%s12 + $0xc] sm:$0xf]
      %v1518 = vld [vmem:[%s13] sm:$0x1]
      %v1520 = vlaneseq
      %v1521 = vshrl.u32 %v1520, 7
      %v1522 = vsub.s32 0, %v1521
      %v1523 = vrot.slane %v1518, %v1522
      %v1529 = vunpack.c.l.b16 %v1514
      %v1530 = vunpack.c.l.b16 %v1515
      %v1531 = vunpack.c.l.b16 %v1516
      %v1532 = vunpack.c.l.b16 %v1517
      %v1533 = vpack.c.b16 %v1530, %v1529
      %v1534 = vpack.c.b16 %v1532, %v1531
      %v1538 = vsel %vm744, %v1513, 0
      %1540 = vmatprep.subr.bf16.mxu0 0
      %1541 = vmatpush1.bf16.msra.mxu0 %v1533
      %1542 = vmatprep.subr.bf16.mxu0 0
      %1543 = vmatpush1.bf16.msra.mxu0 %v1534
      %1544 = vmatprep.subr.bf16.mxu0 0
      %1545 = vmatpush1.bf16.msra.mxu0 0
      %1546 = vmatprep.subr.bf16.mxu0 0
      %1547 = vmatpush1.bf16.msra.mxu0 0
      %1548 = vmatprep.subr.bf16.mxu0 0
      %1549 = vmatpush1.bf16.msra.mxu0 0
      %1550 = vmatprep.subr.bf16.mxu0 0
      %1551 = vmatpush1.bf16.msra.mxu0 0
      %1552 = vmatprep.subr.bf16.mxu0 0
      %1553 = vmatpush1.bf16.msra.mxu0 0
      %1554 = vmatprep.subr.bf16.mxu0 0
      %1555 = vmatpush1.bf16.msra.mxu0 0
      %1556 = vmatprep.subr.bf16.mxu0 0
      %1557 = vmatpush1.bf16.msra.mxu0 0
      %1558 = vmatprep.subr.bf16.mxu0 0
      %1559 = vmatpush1.bf16.msra.mxu0 0
      %1560 = vmatprep.subr.bf16.mxu0 0
      %1561 = vmatpush1.bf16.msra.mxu0 0
      %1562 = vmatprep.subr.bf16.mxu0 0
      %1563 = vmatpush1.bf16.msra.mxu0 0
      %1564 = vmatprep.subr.bf16.mxu0 0
      %1565 = vmatpush1.bf16.msra.mxu0 0
      %1566 = vmatprep.subr.bf16.mxu0 0
      %1567 = vmatpush1.bf16.msra.mxu0 0
      %1568 = vmatprep.subr.bf16.mxu0 0
      %1569 = vmatpush1.bf16.msra.mxu0 0
      %1570 = vmatprep.subr.bf16.mxu0 0
      %1571 = vmatpush1.bf16.msra.mxu0 0
      %1572 = vmatprep.mubr.bf16.mxu0 0
      %1573 = vmatmul.mubr.bf16.gmra.mrb[0].mxu0 %v1538
      %v1574 = vpop.f32.mrb[0].mxu0
      %v1575 = vadd.f32 %v1523, %v1574
      %v1576 = vpop.f32.mrb[0].mxu0
      %v1577 = vpop.f32.mrb[0].mxu0
      %v1578 = vpop.f32.mrb[0].mxu0
      %1579 = vdwg.mxu0
      %v1580 = vpack.c.bf16 %v1433, %v1433
      %v1581 = vld [vmem:[%s14] sm:$0xf]
      %v1582 = vld [vmem:[%s14 + $0x4] sm:$0xf]
      %v1583 = vld [vmem:[%s14 + $0x8] sm:$0xf]
      %v1584 = vld [vmem:[%s14 + $0xc] sm:$0xf]
      %v1585 = vld [vmem:[%s15] sm:$0x1]
      %v1587 = vlaneseq
      %v1588 = vshrl.u32 %v1587, 7
      %v1589 = vsub.s32 0, %v1588
      %v1590 = vrot.slane %v1585, %v1589
      %v1596 = vunpack.c.l.b16 %v1581
      %v1597 = vunpack.c.l.b16 %v1582
      %v1598 = vunpack.c.l.b16 %v1583
      %v1599 = vunpack.c.l.b16 %v1584
      %v1600 = vpack.c.b16 %v1597, %v1596
      %v1601 = vpack.c.b16 %v1599, %v1598
      %v1605 = vsel %vm744, %v1580, 0
      %1607 = vmatprep.subr.bf16.mxu0 0
      %1608 = vmatpush1.bf16.msra.mxu0 %v1600
      %1609 = vmatprep.subr.bf16.mxu0 0
      %1610 = vmatpush1.bf16.msra.mxu0 %v1601
      %1611 = vmatprep.subr.bf16.mxu0 0
      %1612 = vmatpush1.bf16.msra.mxu0 0
      %1613 = vmatprep.subr.bf16.mxu0 0
      %1614 = vmatpush1.bf16.msra.mxu0 0
      %1615 = vmatprep.subr.bf16.mxu0 0
      %1616 = vmatpush1.bf16.msra.mxu0 0
      %1617 = vmatprep.subr.bf16.mxu0 0
      %1618 = vmatpush1.bf16.msra.mxu0 0
      %1619 = vmatprep.subr.bf16.mxu0 0
      %1620 = vmatpush1.bf16.msra.mxu0 0
      %1621 = vmatprep.subr.bf16.mxu0 0
      %1622 = vmatpush1.bf16.msra.mxu0 0
      %1623 = vmatprep.subr.bf16.mxu0 0
      %1624 = vmatpush1.bf16.msra.mxu0 0
      %1625 = vmatprep.subr.bf16.mxu0 0
      %1626 = vmatpush1.bf16.msra.mxu0 0
      %1627 = vmatprep.subr.bf16.mxu0 0
      %1628 = vmatpush1.bf16.msra.mxu0 0
      %1629 = vmatprep.subr.bf16.mxu0 0
      %1630 = vmatpush1.bf16.msra.mxu0 0
      %1631 = vmatprep.subr.bf16.mxu0 0
      %1632 = vmatpush1.bf16.msra.mxu0 0
      %1633 = vmatprep.subr.bf16.mxu0 0
      %1634 = vmatpush1.bf16.msra.mxu0 0
      %1635 = vmatprep.subr.bf16.mxu0 0
      %1636 = vmatpush1.bf16.msra.mxu0 0
      %1637 = vmatprep.subr.bf16.mxu0 0
      %1638 = vmatpush1.bf16.msra.mxu0 0
      %1639 = vmatprep.mubr.bf16.mxu0 0
      %1640 = vmatmul.mubr.bf16.gmra.mrb[0].mxu0 %v1605
      %v1641 = vpop.f32.mrb[0].mxu0
      %v1642 = vadd.f32 %v1590, %v1641
      %v1643 = vpop.f32.mrb[0].mxu0
      %v1644 = vpop.f32.mrb[0].mxu0
      %v1645 = vpop.f32.mrb[0].mxu0
      %1646 = vdwg.mxu0
      %v1647 = vpack.c.bf16 %v1503, %v1500
      %v1648 = vpack.c.bf16 %v1508, %v1508
      %v1649 = vpack.c.bf16 %v1575, %v1575
      %v1651 = vsel %vm1321, %v1647, 0
      %v1654 = vsel %vm1321, %v1648, 0
      %v1657 = vsel %vm1321, %v1649, 0
      %1659 = vmatprep.subr.bf16.mxu0 0
      %1660 = vmatpush1.bf16.xpose.msra.mxu0 %v1657
      %1661 = vmatprep.subr.bf16.mxu0 0
      %1662 = vmatpush1.bf16.xpose.msra.mxu0 0
      %1663 = vmatprep.subr.bf16.mxu0 0
      %1664 = vmatpush1.bf16.xpose.msra.mxu0 0
      %1665 = vmatprep.subr.bf16.mxu0 0
      %1666 = vmatpush1.bf16.xpose.msra.mxu0 0
      %1667 = vmatprep.subr.bf16.mxu0 0
      %1668 = vmatpush1.bf16.xpose.msra.mxu0 0
      %1669 = vmatprep.subr.bf16.mxu0 0
      %1670 = vmatpush1.bf16.xpose.msra.mxu0 0
      %1671 = vmatprep.subr.bf16.mxu0 0
      %1672 = vmatpush1.bf16.xpose.msra.mxu0 0
      %1673 = vmatprep.subr.bf16.mxu0 0
      %1674 = vmatpush1.bf16.xpose.msra.mxu0 0
      %1675 = vmatprep.subr.bf16.mxu0 0
      %1676 = vmatpush1.bf16.xpose.msra.mxu0 0
      %1677 = vmatprep.subr.bf16.mxu0 0
      %1678 = vmatpush1.bf16.xpose.msra.mxu0 0
      %1679 = vmatprep.subr.bf16.mxu0 0
      %1680 = vmatpush1.bf16.xpose.msra.mxu0 0
      %1681 = vmatprep.subr.bf16.mxu0 0
      %1682 = vmatpush1.bf16.xpose.msra.mxu0 0
      %1683 = vmatprep.subr.bf16.mxu0 0
      %1684 = vmatpush1.bf16.xpose.msra.mxu0 0
      %1685 = vmatprep.subr.bf16.mxu0 0
      %1686 = vmatpush1.bf16.xpose.msra.mxu0 0
      %1687 = vmatprep.subr.bf16.mxu0 0
      %1688 = vmatpush1.bf16.xpose.msra.mxu0 0
      %1689 = vmatprep.subr.bf16.mxu0 0
      %1690 = vmatpush1.bf16.xpose.msra.mxu0 0
      %1691 = vmatprep.mubr.bf16.mxu0 0
      %1692 = vmatmul.mubr.bf16.gmra.mrb[0].mxu0 %v1651
      %v1693 = vpop.f32.mrb[0].mxu0
      %v1694 = vadd.f32 0.0, %v1693
      %v1695 = vpop.f32.mrb[0].mxu0
      %v1696 = vpop.f32.mrb[0].mxu0
      %v1697 = vadd.f32 0.0, %v1696
      %v1698 = vpop.f32.mrb[0].mxu0
      %1699 = vmatprep.mubr.bf16.mxu0 0
      %1700 = vmatmul.mubr.bf16.gmra.mrb[0].mxu0 %v1654
      %v1701 = vpop.f32.mrb[0].mxu0
      %v1702 = vadd.f32 0.0, %v1701
      %v1703 = vpop.f32.mrb[0].mxu0
      %v1704 = vpop.f32.mrb[0].mxu0
      %v1705 = vpop.f32.mrb[0].mxu0
      %1706 = vdwg.mxu0
      %vm1707 = vcmask 39936
      %v1708 = vsel %vm1707, %v1694, -inf
      %1709 = vmax.xlane.f32.xlu0 %v1708
      %v1710 = vpop.xlane.xlu0 %1709
      %v1711 = vsel %vm1707, %v1697, -inf
      %1712 = vmax.xlane.f32.xlu0 %v1711
      %v1713 = vpop.xlane.xlu0 %1712
      %vm1714 = vcmask 32768
      %v1715 = vsel %vm1714, %v1702, -inf
      %1716 = vmax.xlane.f32.xlu0 %v1715
      %v1717 = vpop.xlane.xlu0 %1716
      %v1718 = vsub.f32 %v1694, %v1710
      %v1719 = vsub.f32 %v1697, %v1713
      %v1720 = vsub.f32 %v1702, %v1717
      %v1721 = vmul.f32 %v1718, 1.442695
      %v1722 = vpow.pop %v1721
      %v1723 = vmul.f32 %v1719, 1.442695
      %v1724 = vpow.pop %v1723
      %v1725 = vmul.f32 %v1720, 1.442695
      %v1726 = vpow.pop %v1725
      %v1727 = vsel %vm1707, %v1722, 0.0
      %1728 = vadd.xlane.f32.xlu0 %v1727
      %v1729 = vpop.xlane.xlu0 %1728
      %v1730 = vsel %vm1707, %v1724, 0.0
      %1731 = vadd.xlane.f32.xlu0 %v1730
      %v1732 = vpop.xlane.xlu0 %1731
      %v1733 = vsel %vm1714, %v1726, 0.0
      %1734 = vadd.xlane.f32.xlu0 %v1733
      %v1735 = vpop.xlane.xlu0 %1734
      %v1736 = vrcp.pop %v1729
      %v1737 = vrcp.pop %v1732
      %v1738 = vrcp.pop %v1735
      %v1739 = vmul.f32 %v1722, %v1736
      %v1740 = vmul.f32 %v1724, %v1737
      %v1741 = vmul.f32 %v1726, %v1738
      %v1742 = vpack.c.bf16 %v1740, %v1739
      %v1743 = vpack.c.bf16 %v1741, %v1741
      %v1744 = vpack.c.bf16 %v1642, %v1642
      %v1746 = vsel %vm1707, %v1742, 0
      %v1749 = vsel %vm1707, %v1743, 0
      %vm1751 = vcmask 1041408
      %v1752 = vsel %vm1751, 4294967295, 65535
      %v1753 = vsel %vm816, %v1752, 0
      %v1755 = vand.u32 %v1744, %v1753
      %1757 = vmatprep.subr.bf16.mxu0 0
      %1758 = vmatpush1.bf16.msra.mxu0 %v1755
      %1759 = vmatprep.subr.bf16.mxu0 0
      %1760 = vmatpush1.bf16.msra.mxu0 0
      %1761 = vmatprep.subr.bf16.mxu0 0
      %1762 = vmatpush1.bf16.msra.mxu0 0
      %1763 = vmatprep.subr.bf16.mxu0 0
      %1764 = vmatpush1.bf16.msra.mxu0 0
      %1765 = vmatprep.subr.bf16.mxu0 0
      %1766 = vmatpush1.bf16.msra.mxu0 0
      %1767 = vmatprep.subr.bf16.mxu0 0
      %1768 = vmatpush1.bf16.msra.mxu0 0
      %1769 = vmatprep.subr.bf16.mxu0 0
      %1770 = vmatpush1.bf16.msra.mxu0 0
      %1771 = vmatprep.subr.bf16.mxu0 0
      %1772 = vmatpush1.bf16.msra.mxu0 0
      %1773 = vmatprep.subr.bf16.mxu0 0
      %1774 = vmatpush1.bf16.msra.mxu0 0
      %1775 = vmatprep.subr.bf16.mxu0 0
      %1776 = vmatpush1.bf16.msra.mxu0 0
      %1777 = vmatprep.subr.bf16.mxu0 0
      %1778 = vmatpush1.bf16.msra.mxu0 0
      %1779 = vmatprep.subr.bf16.mxu0 0
      %1780 = vmatpush1.bf16.msra.mxu0 0
      %1781 = vmatprep.subr.bf16.mxu0 0
      %1782 = vmatpush1.bf16.msra.mxu0 0
      %1783 = vmatprep.subr.bf16.mxu0 0
      %1784 = vmatpush1.bf16.msra.mxu0 0
      %1785 = vmatprep.subr.bf16.mxu0 0
      %1786 = vmatpush1.bf16.msra.mxu0 0
      %1787 = vmatprep.subr.bf16.mxu0 0
      %1788 = vmatpush1.bf16.msra.mxu0 0
      %1789 = vmatprep.mubr.bf16.mxu0 0
      %1790 = vmatmul.mubr.bf16.gmra.mrb[0].mxu0 %v1746
      %v1791 = vpop.f32.mrb[0].mxu0
      %v1792 = vadd.f32 0.0, %v1791
      %v1793 = vpop.f32.mrb[0].mxu0
      %v1794 = vpop.f32.mrb[0].mxu0
      %v1795 = vadd.f32 0.0, %v1794
      %v1796 = vpop.f32.mrb[0].mxu0
      %1797 = vmatprep.mubr.bf16.mxu0 0
      %1798 = vmatmul.mubr.bf16.gmra.mrb[0].mxu0 %v1749
      %v1799 = vpop.f32.mrb[0].mxu0
      %v1800 = vadd.f32 0.0, %v1799
      %v1801 = vpop.f32.mrb[0].mxu0
      %v1802 = vpop.f32.mrb[0].mxu0
      %v1803 = vpop.f32.mrb[0].mxu0
      %1804 = vdwg.mxu0
      %1807 = vrot.lane.b32.xlu0 %v1647, 112
      %v1808 = vpop.permute.xlu0 %1807
      %1809 = vrot.lane.b32.xlu0 %v1648, 112
      %v1810 = vpop.permute.xlu0 %1809
      %1812 = vrot.lane.b32.xlu0 %v1649, 112
      %v1813 = vpop.permute.xlu0 %1812
      %v1815 = vsel %vm1321, %v1808, 0
      %v1818 = vsel %vm1321, %v1810, 0
      %v1821 = vsel %vm1321, %v1813, 0
      %1823 = vmatprep.subr.bf16.mxu0 0
      %1824 = vmatpush1.bf16.xpose.msra.mxu0 %v1821
      %1825 = vmatprep.subr.bf16.mxu0 0
      %1826 = vmatpush1.bf16.xpose.msra.mxu0 0
      %1827 = vmatprep.subr.bf16.mxu0 0
      %1828 = vmatpush1.bf16.xpose.msra.mxu0 0
      %1829 = vmatprep.subr.bf16.mxu0 0
      %1830 = vmatpush1.bf16.xpose.msra.mxu0 0
      %1831 = vmatprep.subr.bf16.mxu0 0
      %1832 = vmatpush1.bf16.xpose.msra.mxu0 0
      %1833 = vmatprep.subr.bf16.mxu0 0
      %1834 = vmatpush1.bf16.xpose.msra.mxu0 0
      %1835 = vmatprep.subr.bf16.mxu0 0
      %1836 = vmatpush1.bf16.xpose.msra.mxu0 0
      %1837 = vmatprep.subr.bf16.mxu0 0
      %1838 = vmatpush1.bf16.xpose.msra.mxu0 0
      %1839 = vmatprep.subr.bf16.mxu0 0
      %1840 = vmatpush1.bf16.xpose.msra.mxu0 0
      %1841 = vmatprep.subr.bf16.mxu0 0
      %1842 = vmatpush1.bf16.xpose.msra.mxu0 0
      %1843 = vmatprep.subr.bf16.mxu0 0
      %1844 = vmatpush1.bf16.xpose.msra.mxu0 0
      %1845 = vmatprep.subr.bf16.mxu0 0
      %1846 = vmatpush1.bf16.xpose.msra.mxu0 0
      %1847 = vmatprep.subr.bf16.mxu0 0
      %1848 = vmatpush1.bf16.xpose.msra.mxu0 0
      %1849 = vmatprep.subr.bf16.mxu0 0
      %1850 = vmatpush1.bf16.xpose.msra.mxu0 0
      %1851 = vmatprep.subr.bf16.mxu0 0
      %1852 = vmatpush1.bf16.xpose.msra.mxu0 0
      %1853 = vmatprep.subr.bf16.mxu0 0
      %1854 = vmatpush1.bf16.xpose.msra.mxu0 0
      %1855 = vmatprep.mubr.bf16.mxu0 0
      %1856 = vmatmul.mubr.bf16.gmra.mrb[0].mxu0 %v1815
      %v1857 = vpop.f32.mrb[0].mxu0
      %v1858 = vadd.f32 0.0, %v1857
      %v1859 = vpop.f32.mrb[0].mxu0
      %v1860 = vpop.f32.mrb[0].mxu0
      %v1861 = vadd.f32 0.0, %v1860
      %v1862 = vpop.f32.mrb[0].mxu0
      %1863 = vmatprep.mubr.bf16.mxu0 0
      %1864 = vmatmul.mubr.bf16.gmra.mrb[0].mxu0 %v1818
      %v1865 = vpop.f32.mrb[0].mxu0
      %v1866 = vadd.f32 0.0, %v1865
      %v1867 = vpop.f32.mrb[0].mxu0
      %v1868 = vpop.f32.mrb[0].mxu0
      %v1869 = vpop.f32.mrb[0].mxu0
      %1870 = vdwg.mxu0
      %v1871 = vsel %vm1707, %v1858, -inf
      %1872 = vmax.xlane.f32.xlu0 %v1871
      %v1873 = vpop.xlane.xlu0 %1872
      %v1874 = vsel %vm1707, %v1861, -inf
      %1875 = vmax.xlane.f32.xlu0 %v1874
      %v1876 = vpop.xlane.xlu0 %1875
      %v1877 = vsel %vm1714, %v1866, -inf
      %1878 = vmax.xlane.f32.xlu0 %v1877
      %v1879 = vpop.xlane.xlu0 %1878
      %v1880 = vsub.f32 %v1858, %v1873
      %v1881 = vsub.f32 %v1861, %v1876
      %v1882 = vsub.f32 %v1866, %v1879
      %v1883 = vmul.f32 %v1880, 1.442695
      %v1884 = vpow.pop %v1883
      %v1885 = vmul.f32 %v1881, 1.442695
      %v1886 = vpow.pop %v1885
      %v1887 = vmul.f32 %v1882, 1.442695
      %v1888 = vpow.pop %v1887
      %v1889 = vsel %vm1707, %v1884, 0.0
      %1890 = vadd.xlane.f32.xlu0 %v1889
      %v1891 = vpop.xlane.xlu0 %1890
      %v1892 = vsel %vm1707, %v1886, 0.0
      %1893 = vadd.xlane.f32.xlu0 %v1892
      %v1894 = vpop.xlane.xlu0 %1893
      %v1895 = vsel %vm1714, %v1888, 0.0
      %1896 = vadd.xlane.f32.xlu0 %v1895
      %v1897 = vpop.xlane.xlu0 %1896
      %v1898 = vrcp.pop %v1891
      %v1899 = vrcp.pop %v1894
      %v1900 = vrcp.pop %v1897
      %v1901 = vmul.f32 %v1884, %v1898
      %v1902 = vmul.f32 %v1886, %v1899
      %v1903 = vmul.f32 %v1888, %v1900
      %v1904 = vpack.c.bf16 %v1902, %v1901
      %v1905 = vpack.c.bf16 %v1903, %v1903
      %1907 = vrot.lane.b32.xlu0 %v1744, 112
      %v1908 = vpop.permute.xlu0 %1907
      %v1910 = vsel %vm1707, %v1904, 0
      %v1913 = vsel %vm1707, %v1905, 0
      %v1916 = vand.u32 %v1908, %v1753
      %1918 = vmatprep.subr.bf16.mxu0 0
      %1919 = vmatpush1.bf16.msra.mxu0 %v1916
      %1920 = vmatprep.subr.bf16.mxu0 0
      %1921 = vmatpush1.bf16.msra.mxu0 0
      %1922 = vmatprep.subr.bf16.mxu0 0
      %1923 = vmatpush1.bf16.msra.mxu0 0
      %1924 = vmatprep.subr.bf16.mxu0 0
      %1925 = vmatpush1.bf16.msra.mxu0 0
      %1926 = vmatprep.subr.bf16.mxu0 0
      %1927 = vmatpush1.bf16.msra.mxu0 0
      %1928 = vmatprep.subr.bf16.mxu0 0
      %1929 = vmatpush1.bf16.msra.mxu0 0
      %1930 = vmatprep.subr.bf16.mxu0 0
      %1931 = vmatpush1.bf16.msra.mxu0 0
      %1932 = vmatprep.subr.bf16.mxu0 0
      %1933 = vmatpush1.bf16.msra.mxu0 0
      %1934 = vmatprep.subr.bf16.mxu0 0
      %1935 = vmatpush1.bf16.msra.mxu0 0
      %1936 = vmatprep.subr.bf16.mxu0 0
      %1937 = vmatpush1.bf16.msra.mxu0 0
      %1938 = vmatprep.subr.bf16.mxu0 0
      %1939 = vmatpush1.bf16.msra.mxu0 0
      %1940 = vmatprep.subr.bf16.mxu0 0
      %1941 = vmatpush1.bf16.msra.mxu0 0
      %1942 = vmatprep.subr.bf16.mxu0 0
      %1943 = vmatpush1.bf16.msra.mxu0 0
      %1944 = vmatprep.subr.bf16.mxu0 0
      %1945 = vmatpush1.bf16.msra.mxu0 0
      %1946 = vmatprep.subr.bf16.mxu0 0
      %1947 = vmatpush1.bf16.msra.mxu0 0
      %1948 = vmatprep.subr.bf16.mxu0 0
      %1949 = vmatpush1.bf16.msra.mxu0 0
      %1950 = vmatprep.mubr.bf16.mxu0 0
      %1951 = vmatmul.mubr.bf16.gmra.mrb[0].mxu0 %v1910
      %v1952 = vpop.f32.mrb[0].mxu0
      %v1953 = vadd.f32 0.0, %v1952
      %v1954 = vpop.f32.mrb[0].mxu0
      %v1955 = vpop.f32.mrb[0].mxu0
      %v1956 = vadd.f32 0.0, %v1955
      %v1957 = vpop.f32.mrb[0].mxu0
      %1958 = vmatprep.mubr.bf16.mxu0 0
      %1959 = vmatmul.mubr.bf16.gmra.mrb[0].mxu0 %v1913
      %v1960 = vpop.f32.mrb[0].mxu0
      %v1961 = vadd.f32 0.0, %v1960
      %v1962 = vpop.f32.mrb[0].mxu0
      %v1963 = vpop.f32.mrb[0].mxu0
      %v1964 = vpop.f32.mrb[0].mxu0
      %1965 = vdwg.mxu0
      %1969 = vrot.lane.b32.xlu0 %v1953, 16
      %v1970 = vpop.permute.xlu0 %1969
      %1971 = vrot.lane.b32.xlu0 %v1956, 16
      %v1972 = vpop.permute.xlu0 %1971
      %1973 = vrot.lane.b32.xlu0 %v1961, 16
      %v1974 = vpop.permute.xlu0 %1973
      %v1978 = vsel %vm1321, %v1792, %v1970
      %v1979 = vsel %vm1321, %v1795, %v1972
      %v1980 = vsel %vm1321, %v1800, %v1974
      %v1981 = vpack.c.bf16 %v1979, %v1978
      %v1982 = vpack.c.bf16 %v1980, %v1980
      %v1983 = vld [vmem:[%s16] sm:$0xf]
      %v1984 = vld [vmem:[%s16 + $0x4] sm:$0xf]
      %v1985 = vld [vmem:[%s16 + $0x8] sm:$0xf]
      %v1986 = vld [vmem:[%s16 + $0xc] sm:$0xf]
      %v1987 = vld [vmem:[%s17] sm:$0x1]
      %v1989 = vlaneseq
      %v1990 = vshrl.u32 %v1989, 7
      %v1991 = vsub.s32 0, %v1990
      %v1992 = vrot.slane %v1987, %v1991
      %v1998 = vunpack.c.l.b16 %v1983
      %v1999 = vunpack.c.l.b16 %v1984
      %v2000 = vunpack.c.l.b16 %v1985
      %v2001 = vunpack.c.l.b16 %v1986
      %v2002 = vpack.c.b16 %v1999, %v1998
      %v2003 = vpack.c.b16 %v2001, %v2000
      %v2007 = vsel %vm744, %v1981, 0
      %v2010 = vsel %vm744, %v1982, 0
      %2012 = vmatprep.subr.bf16.mxu0 0
      %2013 = vmatpush1.bf16.msra.mxu0 %v2002
      %2014 = vmatprep.subr.bf16.mxu0 0
      %2015 = vmatpush1.bf16.msra.mxu0 %v2003
      %2016 = vmatprep.subr.bf16.mxu0 0
      %2017 = vmatpush1.bf16.msra.mxu0 0
      %2018 = vmatprep.subr.bf16.mxu0 0
      %2019 = vmatpush1.bf16.msra.mxu0 0
      %2020 = vmatprep.subr.bf16.mxu0 0
      %2021 = vmatpush1.bf16.msra.mxu0 0
      %2022 = vmatprep.subr.bf16.mxu0 0
      %2023 = vmatpush1.bf16.msra.mxu0 0
      %2024 = vmatprep.subr.bf16.mxu0 0
      %2025 = vmatpush1.bf16.msra.mxu0 0
      %2026 = vmatprep.subr.bf16.mxu0 0
      %2027 = vmatpush1.bf16.msra.mxu0 0
      %2028 = vmatprep.subr.bf16.mxu0 0
      %2029 = vmatpush1.bf16.msra.mxu0 0
      %2030 = vmatprep.subr.bf16.mxu0 0
      %2031 = vmatpush1.bf16.msra.mxu0 0
      %2032 = vmatprep.subr.bf16.mxu0 0
      %2033 = vmatpush1.bf16.msra.mxu0 0
      %2034 = vmatprep.subr.bf16.mxu0 0
      %2035 = vmatpush1.bf16.msra.mxu0 0
      %2036 = vmatprep.subr.bf16.mxu0 0
      %2037 = vmatpush1.bf16.msra.mxu0 0
      %2038 = vmatprep.subr.bf16.mxu0 0
      %2039 = vmatpush1.bf16.msra.mxu0 0
      %2040 = vmatprep.subr.bf16.mxu0 0
      %2041 = vmatpush1.bf16.msra.mxu0 0
      %2042 = vmatprep.subr.bf16.mxu0 0
      %2043 = vmatpush1.bf16.msra.mxu0 0
      %2044 = vmatprep.mubr.bf16.mxu0 0
      %2045 = vmatmul.mubr.bf16.gmra.mrb[0].mxu0 %v2007
      %v2046 = vpop.f32.mrb[0].mxu0
      %v2047 = vadd.f32 %v1992, %v2046
      %v2048 = vpop.f32.mrb[0].mxu0
      %v2049 = vpop.f32.mrb[0].mxu0
      %v2050 = vadd.f32 %v1992, %v2049
      %v2051 = vpop.f32.mrb[0].mxu0
      %2052 = vmatprep.mubr.bf16.mxu0 0
      %2053 = vmatmul.mubr.bf16.gmra.mrb[0].mxu0 %v2010
      %v2054 = vpop.f32.mrb[0].mxu0
      %v2055 = vadd.f32 %v1992, %v2054
      %v2056 = vpop.f32.mrb[0].mxu0
      %v2057 = vpop.f32.mrb[0].mxu0
      %v2058 = vpop.f32.mrb[0].mxu0
      %2059 = vdwg.mxu0
      %v2060 = vadd.f32 %v739, %v2047
      %v2061 = vadd.f32 %v740, %v2050
      %v2062 = vadd.f32 %v741, %v2055
      %v2063 = vld [vmem:[%s18] sm:$0x1]
      %v2064 = vld [vmem:[%s19] sm:$0x1]
      %v2065 = vsel %vm744, %v2060, 0.0
      %2066 = vadd.xlane.f32.xlu0 %v2065
      %v2067 = vpop.xlane.xlu0 %2066
      %v2068 = vsel %vm744, %v2061, 0.0
      %2069 = vadd.xlane.f32.xlu0 %v2068
      %v2070 = vpop.xlane.xlu0 %2069
      %v2071 = vsel %vm751, %v2062, 0.0
      %2072 = vadd.xlane.f32.xlu0 %v2071
      %v2073 = vpop.xlane.xlu0 %2072
      %v2074 = vmul.f32 %v2067, %v755
      %v2075 = vmul.f32 %v2070, %v755
      %v2076 = vmul.f32 %v2073, %v755
      %v2077 = vsub.f32 %v2060, %v2074
      %v2078 = vsub.f32 %v2061, %v2075
      %v2079 = vsub.f32 %v2062, %v2076
      %v2080 = vmul.f32 %v2077, %v2077
      %v2081 = vmul.f32 %v2078, %v2078
      %v2082 = vmul.f32 %v2079, %v2079
      %v2083 = vsel %vm744, %v2080, 0.0
      %2084 = vadd.xlane.f32.xlu0 %v2083
      %v2085 = vpop.xlane.xlu0 %2084
      %v2086 = vsel %vm744, %v2081, 0.0
      %2087 = vadd.xlane.f32.xlu0 %v2086
      %v2088 = vpop.xlane.xlu0 %2087
      %v2089 = vsel %vm751, %v2082, 0.0
      %2090 = vadd.xlane.f32.xlu0 %v2089
      %v2091 = vpop.xlane.xlu0 %2090
      %v2092 = vmul.f32 %v2085, %v755
      %v2093 = vmul.f32 %v2088, %v755
      %v2094 = vmul.f32 %v2091, %v755
      %v2095 = vadd.f32 %v2092, 1e-05
      %v2096 = vadd.f32 %v2093, 1e-05
      %v2097 = vadd.f32 %v2094, 1e-05
      %v2098 = vrsqrt.pop %v2095
      %v2099 = vrsqrt.pop %v2096
      %v2100 = vrsqrt.pop %v2097
      %v2101 = vmul.f32 %v2077, %v2098
      %v2102 = vmul.f32 %v2078, %v2099
      %v2103 = vmul.f32 %v2079, %v2100
      %v2105 = vlaneseq
      %v2106 = vshrl.u32 %v2105, 7
      %v2107 = vsub.s32 0, %v2106
      %v2108 = vrot.slane %v2063, %v2107
      %v2110 = vmul.f32 %v2101, %v2108
      %v2111 = vmul.f32 %v2102, %v2108
      %v2112 = vmul.f32 %v2103, %v2108
      %v2114 = vlaneseq
      %v2115 = vshrl.u32 %v2114, 7
      %v2116 = vsub.s32 0, %v2115
      %v2117 = vrot.slane %v2064, %v2116
      %v2119 = vadd.f32 %v2110, %v2117
      %v2120 = vadd.f32 %v2111, %v2117
      %v2121 = vadd.f32 %v2112, %v2117
      %v2122 = vpack.c.bf16 %v2120, %v2119
      %v2123 = vpack.c.bf16 %v2121, %v2121
      %v2124 = vld [vmem:[%s20] sm:$0xf]
      %v2125 = vld [vmem:[%s20 + $0x4] sm:$0xf]
      %v2126 = vld [vmem:[%s20 + $0x8] sm:$0xf]
      %v2127 = vld [vmem:[%s20 + $0xc] sm:$0xf]
      %v2128 = vld [vmem:[%s21] sm:$0x1]
      %v2130 = vlaneseq
      %v2131 = vshrl.u32 %v2130, 7
      %v2132 = vsub.s32 0, %v2131
      %v2133 = vrot.slane %v2128, %v2132
      %v2139 = vunpack.c.l.b16 %v2124
      %v2140 = vunpack.c.l.b16 %v2125
      %v2141 = vunpack.c.l.b16 %v2126
      %v2142 = vunpack.c.l.b16 %v2127
      %v2143 = vpack.c.b16 %v2140, %v2139
      %v2144 = vpack.c.b16 %v2142, %v2141
      %v2148 = vsel %vm744, %v2122, 0
      %v2151 = vsel %vm744, %v2123, 0
      %2153 = vmatprep.subr.bf16.mxu0 0
      %2154 = vmatpush1.bf16.msra.mxu0 %v2143
      %2155 = vmatprep.subr.bf16.mxu0 0
      %2156 = vmatpush1.bf16.msra.mxu0 %v2144
      %2157 = vmatprep.subr.bf16.mxu0 0
      %2158 = vmatpush1.bf16.msra.mxu0 0
      %2159 = vmatprep.subr.bf16.mxu0 0
      %2160 = vmatpush1.bf16.msra.mxu0 0
      %2161 = vmatprep.subr.bf16.mxu0 0
      %2162 = vmatpush1.bf16.msra.mxu0 0
      %2163 = vmatprep.subr.bf16.mxu0 0
      %2164 = vmatpush1.bf16.msra.mxu0 0
      %2165 = vmatprep.subr.bf16.mxu0 0
      %2166 = vmatpush1.bf16.msra.mxu0 0
      %2167 = vmatprep.subr.bf16.mxu0 0
      %2168 = vmatpush1.bf16.msra.mxu0 0
      %2169 = vmatprep.subr.bf16.mxu0 0
      %2170 = vmatpush1.bf16.msra.mxu0 0
      %2171 = vmatprep.subr.bf16.mxu0 0
      %2172 = vmatpush1.bf16.msra.mxu0 0
      %2173 = vmatprep.subr.bf16.mxu0 0
      %2174 = vmatpush1.bf16.msra.mxu0 0
      %2175 = vmatprep.subr.bf16.mxu0 0
      %2176 = vmatpush1.bf16.msra.mxu0 0
      %2177 = vmatprep.subr.bf16.mxu0 0
      %2178 = vmatpush1.bf16.msra.mxu0 0
      %2179 = vmatprep.subr.bf16.mxu0 0
      %2180 = vmatpush1.bf16.msra.mxu0 0
      %2181 = vmatprep.subr.bf16.mxu0 0
      %2182 = vmatpush1.bf16.msra.mxu0 0
      %2183 = vmatprep.subr.bf16.mxu0 0
      %2184 = vmatpush1.bf16.msra.mxu0 0
      %2185 = vmatprep.mubr.bf16.mxu0 0
      %2186 = vmatmul.mubr.bf16.gmra.mrb[0].mxu0 %v2148
      %v2187 = vpop.f32.mrb[0].mxu0
      %v2188 = vadd.f32 %v2133, %v2187
      %v2189 = vpop.f32.mrb[0].mxu0
      %v2190 = vpop.f32.mrb[0].mxu0
      %v2191 = vadd.f32 %v2133, %v2190
      %v2192 = vpop.f32.mrb[0].mxu0
      %2193 = vmatprep.mubr.bf16.mxu0 0
      %2194 = vmatmul.mubr.bf16.gmra.mrb[0].mxu0 %v2151
      %v2195 = vpop.f32.mrb[0].mxu0
      %v2196 = vadd.f32 %v2133, %v2195
      %v2197 = vpop.f32.mrb[0].mxu0
      %v2198 = vpop.f32.mrb[0].mxu0
      %v2199 = vpop.f32.mrb[0].mxu0
      %2200 = vdwg.mxu0
      %v2201 = vmul.f32 %v2188, 0.5
      %v2202 = vmul.f32 %v2191, 0.5
      %v2203 = vmul.f32 %v2196, 0.5
      %v2204 = vmul.f32 %v2188, 0.70710677
      %v2205 = vmul.f32 %v2191, 0.70710677
      %v2206 = vmul.f32 %v2196, 0.70710677
      %v2207 = verf.f32.pop %v2204
      %v2208 = verf.f32.pop %v2205
      %v2209 = verf.f32.pop %v2206
      %v2210 = vadd.f32 %v2207, 1.0
      %v2211 = vadd.f32 %v2208, 1.0
      %v2212 = vadd.f32 %v2209, 1.0
      %v2213 = vmul.f32 %v2201, %v2210
      %v2214 = vmul.f32 %v2202, %v2211
      %v2215 = vmul.f32 %v2203, %v2212
      %v2216 = vpack.c.bf16 %v2214, %v2213
      %v2217 = vpack.c.bf16 %v2215, %v2215
      %v2218 = vld [vmem:[%s22] sm:$0xf]
      %v2219 = vld [vmem:[%s22 + $0x4] sm:$0xf]
      %v2220 = vld [vmem:[%s22 + $0x8] sm:$0xf]
      %v2221 = vld [vmem:[%s22 + $0xc] sm:$0xf]
      %v2222 = vld [vmem:[%s22 + $0x10] sm:$0xf]
      %v2223 = vld [vmem:[%s22 + $0x14] sm:$0xf]
      %v2224 = vld [vmem:[%s22 + $0x18] sm:$0xf]
      %v2225 = vld [vmem:[%s22 + $0x1c] sm:$0xf]
      %v2226 = vld [vmem:[%s23] sm:$0x1]
      %v2228 = vlaneseq
      %v2229 = vshrl.u32 %v2228, 7
      %v2230 = vsub.s32 0, %v2229
      %v2231 = vrot.slane %v2226, %v2230
      %v2241 = vunpack.c.l.b16 %v2218
      %v2242 = vunpack.c.l.b16 %v2219
      %v2243 = vunpack.c.l.b16 %v2220
      %v2244 = vunpack.c.l.b16 %v2221
      %v2245 = vunpack.c.l.b16 %v2222
      %v2246 = vunpack.c.l.b16 %v2223
      %v2247 = vunpack.c.l.b16 %v2224
      %v2248 = vunpack.c.l.b16 %v2225
      %v2249 = vpack.c.b16 %v2242, %v2241
      %v2250 = vpack.c.b16 %v2244, %v2243
      %v2251 = vpack.c.b16 %v2246, %v2245
      %v2252 = vpack.c.b16 %v2248, %v2247
      %vm2257 = vcmask 523264
      %v2259 = vsel %vm2257, %v2216, 0
      %v2262 = vsel %vm2257, %v2217, 0
      %2264 = vmatprep.subr.bf16.mxu0 0
      %2265 = vmatpush1.bf16.msra.mxu0 %v2249
      %2266 = vmatprep.subr.bf16.mxu0 0
      %2267 = vmatpush1.bf16.msra.mxu0 %v2250
      %2268 = vmatprep.subr.bf16.mxu0 0
      %2269 = vmatpush1.bf16.msra.mxu0 %v2251
      %2270 = vmatprep.subr.bf16.mxu0 0
      %2271 = vmatpush1.bf16.msra.mxu0 %v2252
      %2272 = vmatprep.subr.bf16.mxu0 0
      %2273 = vmatpush1.bf16.msra.mxu0 0
      %2274 = vmatprep.subr.bf16.mxu0 0
      %2275 = vmatpush1.bf16.msra.mxu0 0
      %2276 = vmatprep.subr.bf16.mxu0 0
      %2277 = vmatpush1.bf16.msra.mxu0 0
      %2278 = vmatprep.subr.bf16.mxu0 0
      %2279 = vmatpush1.bf16.msra.mxu0 0
      %2280 = vmatprep.subr.bf16.mxu0 0
      %2281 = vmatpush1.bf16.msra.mxu0 0
      %2282 = vmatprep.subr.bf16.mxu0 0
      %2283 = vmatpush1.bf16.msra.mxu0 0
      %2284 = vmatprep.subr.bf16.mxu0 0
      %2285 = vmatpush1.bf16.msra.mxu0 0
      %2286 = vmatprep.subr.bf16.mxu0 0
      %2287 = vmatpush1.bf16.msra.mxu0 0
      %2288 = vmatprep.subr.bf16.mxu0 0
      %2289 = vmatpush1.bf16.msra.mxu0 0
      %2290 = vmatprep.subr.bf16.mxu0 0
      %2291 = vmatpush1.bf16.msra.mxu0 0
      %2292 = vmatprep.subr.bf16.mxu0 0
      %2293 = vmatpush1.bf16.msra.mxu0 0
      %2294 = vmatprep.subr.bf16.mxu0 0
      %2295 = vmatpush1.bf16.msra.mxu0 0
      %2296 = vmatprep.mubr.bf16.mxu0 0
      %2297 = vmatmul.mubr.bf16.gmra.mrb[0].mxu0 %v2259
      %v2298 = vpop.f32.mrb[0].mxu0
      %v2299 = vadd.f32 %v2231, %v2298
      %v2300 = vpop.f32.mrb[0].mxu0
      %v2301 = vpop.f32.mrb[0].mxu0
      %v2302 = vadd.f32 %v2231, %v2301
      %v2303 = vpop.f32.mrb[0].mxu0
      %2304 = vmatprep.mubr.bf16.mxu0 0
      %2305 = vmatmul.mubr.bf16.gmra.mrb[0].mxu0 %v2262
      %v2306 = vpop.f32.mrb[0].mxu0
      %v2307 = vadd.f32 %v2231, %v2306
      %v2308 = vpop.f32.mrb[0].mxu0
      %v2309 = vpop.f32.mrb[0].mxu0
      %v2310 = vpop.f32.mrb[0].mxu0
      %2311 = vdwg.mxu0
      %v2312 = vadd.f32 %v2060, %v2299
      %v2313 = vadd.f32 %v2061, %v2302
      %v2314 = vadd.f32 %v2062, %v2307
      %2315 = vst.msk [vmem:[%s737] sm:$0xff] %vm744, %v2312
      %2316 = vst.msk [vmem:[%s737 + $0x8] sm:$0xff] %vm744, %v2313
      %2317 = vst.msk [vmem:[%s737 + $0x10] sm:$0x1] %vm751, %v2314
      %p2318 = scmp.lt.s32.totalorder %s35, 1
      %s2319 = scalar_select %p2318, %s35, 1
      %s2320 = smul.addr %s2319, 3
      %s2321 = smul.addr %s2320, 8
      %s2322 = scalar_lea.vmem %s24, %s2321
      // Predicated region
      $region117: #{cvt_forward.8} parent=115 // pred_check
        %p2323 = pneg %p562
      $region118: #{cvt_forward.8} parent=115 // pred_check_branch
        %2325 = sbr.rel (%p2323) target = $region120
      $region119: #{cvt_forward.8} parent=115 // pred_region
        _
      $region120: #{cvt_forward.8} parent=115 // pred_fallthru
        _
    $region116: #{cvt_forward.8} parent=5 // pred_fallthru
      _
    %p2326 = scmp.le.s32.totalorder 2, %s30
    // Predicated region
    $region121: #{cvt_forward.8} parent=5 // pred_check
      %p2327 = pneg %p2326
    $region122: #{cvt_forward.8} parent=5 // pred_check_branch
      %2329 = sbr.rel (%p2327) target = $region124
    $region123: #{cvt_forward.8} parent=5 // pred_region
      %s2330 = ssub.s32 %s30, 2
      // Predicated region
      $region125: #{cvt_forward.8} parent=123 // pred_check
        %p2331 = pneg %p568
      $region126: #{cvt_forward.8} parent=123 // pred_check_branch
        %2333 = sbr.rel (%p2331) target = $region128
      $region127: #{cvt_forward.8} parent=123 // pred_region
        %p2334 = scmp.lt.s32.totalorder %s36, 1
        %s2335 = scalar_select %p2334, %s36, 1
        %s2336 = smul.addr %s2335, 3
        %s2337 = smul.addr %s2336, 8
        %s2338 = scalar_lea.vmem %s24, %s2337
      $region128: #{cvt_forward.8} parent=123 // pred_fallthru
        _
    $region124: #{cvt_forward.8} parent=5 // pred_fallthru
      _
  $region6: #{cvt_forward.8} parent=0 // loop_footer
    %s34 = sadd.s32 1, %s30
  $region7: #{cvt_forward.8} parent=0 // loop_footer_branch
    %29 = sbr.rel target = $region3
  $region8: #{cvt_forward.8} parent=0 // loop_exit
    _

</llo_original>
